<compile_context>
chip_gen: v7x
topology: tpu7x:2x2x1
jax: 0.10.0
libtpu: 0.0.40
codegen_flags: <defaults>
</compile_context>

<pallas_src>
import functools

import jax
import jax.numpy as jnp
from jax.experimental import pallas as pl
from jax.experimental.pallas import tpu as pltpu


# --------------------------------------------------------------------------
# Generation-aware limits / tiling
# --------------------------------------------------------------------------

def _vmem_limit_bytes():
    try:
        cap = int(pltpu.get_tpu_info().vmem_capacity_bytes)
    except Exception:
        cap = 64 << 20                       # conservative (v7x-sized) fallback
    return max(32 << 20, min(cap - (16 << 20), 96 << 20))


_VMEM_LIMIT = _vmem_limit_bytes()
_TM = 512 if _VMEM_LIMIT >= (80 << 20) else 256   # bigger row tiles on v5e/v6e
_TN = 512


def _row_tile(m):
    return m if m <= _TM else _TM


def _col_tile(n):
    return n if n <= _TN else _TN


def _params(*sem):
    return pltpu.CompilerParams(dimension_semantics=tuple(sem),
                                vmem_limit_bytes=_VMEM_LIMIT)


def _isize(dt):
    return jnp.dtype(dt).itemsize


# --------------------------------------------------------------------------
# Small in-kernel helpers
# --------------------------------------------------------------------------

def _mm(x, w):
    """bf16 MXU matmul (weights already stored bf16), f32 accumulation."""
    if w.dtype != jnp.bfloat16:
        w = w.astype(jnp.bfloat16)
    return jnp.dot(x.astype(jnp.bfloat16), w, preferred_element_type=jnp.float32)


def _ln(y, g, b):
    mu = jnp.mean(y, axis=-1, keepdims=True)
    var = jnp.mean(jnp.square(y - mu), axis=-1, keepdims=True)
    return (y - mu) * jax.lax.rsqrt(var + 1e-5) * g + b


def _act(h, act):
    if act == "relu":
        return jnp.maximum(h, 0.0)
    if act == "swish":
        return h * jax.nn.sigmoid(h)
    return h


# --------------------------------------------------------------------------
# Pallas kernels
# --------------------------------------------------------------------------

def _linear_kernel(x_ref, w_ref, b_ref, o_ref, *, act):
    h = _mm(x_ref[...], w_ref[...]) + b_ref[...]
    o_ref[...] = _act(h, act).astype(o_ref.dtype)


def linear(x, w, b, act=None, out_dtype=jnp.float32):
    """(M,K)@(K,N)+b with fused activation; grid is (N outer, M inner) so the
    weight column tile stays resident across the inner M loop."""
    M, K = x.shape
    N = w.shape[1]
    tm, tn = _row_tile(M), _col_tile(N)
    return pl.pallas_call(
        functools.partial(_linear_kernel, act=act),
        grid=(pl.cdiv(N, tn), pl.cdiv(M, tm)),
        in_specs=[
            pl.BlockSpec((tm, K), lambda j, i: (i, 0)),
            pl.BlockSpec((K, tn), lambda j, i: (0, j)),   # resident across inner i
            pl.BlockSpec((1, tn), lambda j, i: (0, j)),
        ],
        out_specs=pl.BlockSpec((tm, tn), lambda j, i: (i, j)),
        out_shape=jax.ShapeDtypeStruct((M, N), out_dtype),
        compiler_params=_params("parallel", "parallel"),
        cost_estimate=pl.CostEstimate(
            flops=2 * M * K * N,
            transcendentals=M * N if act == "swish" else 0,
            bytes_accessed=(M * K * _isize(x.dtype) + K * N * _isize(w.dtype)
                            + M * N * _isize(out_dtype))),
    )(x, w, b.reshape(1, N))


def _ln_linear_kernel(x_ref, g_ref, bb_ref, w_ref, b_ref, o_ref, *, act):
    xn = _ln(x_ref[...], g_ref[...], bb_ref[...])
    h = _mm(xn, w_ref[...]) + b_ref[...]
    o_ref[...] = _act(h, act).astype(o_ref.dtype)


def ln_linear(x, g, bln, w, b, act=None, out_dtype=jnp.float32):
    """Fused LayerNorm -> Linear (-> Swish / ReLU); tiled over M and N (the x/LN
    row block stays resident across the inner N loop)."""
    M, K = x.shape
    N = w.shape[1]
    tm, tn = _row_tile(M), _col_tile(N)
    return pl.pallas_call(
        functools.partial(_ln_linear_kernel, act=act),
        grid=(pl.cdiv(M, tm), pl.cdiv(N, tn)),
        in_specs=[
            pl.BlockSpec((tm, K), lambda i, j: (i, 0)),   # resident across inner j
            pl.BlockSpec((1, K), lambda i, j: (0, 0)),
            pl.BlockSpec((1, K), lambda i, j: (0, 0)),
            pl.BlockSpec((K, tn), lambda i, j: (0, j)),
            pl.BlockSpec((1, tn), lambda i, j: (0, j)),
        ],
        out_specs=pl.BlockSpec((tm, tn), lambda i, j: (i, j)),
        out_shape=jax.ShapeDtypeStruct((M, N), out_dtype),
        compiler_params=_params("parallel", "parallel"),
        cost_estimate=pl.CostEstimate(
            flops=2 * M * K * N + 8 * M * K,
            transcendentals=M * N if act == "swish" else 0,
            bytes_accessed=(M * K * _isize(x.dtype) + K * N * _isize(w.dtype)
                            + M * N * _isize(out_dtype))),
    )(x, g.reshape(1, K), bln.reshape(1, K), w, b.reshape(1, N))


def _ln_linear_glu_kernel(x_ref, g_ref, bb_ref, wa_ref, ba_ref, wb_ref, bg_ref, o_ref):
    xn = _ln(x_ref[...], g_ref[...], bb_ref[...])
    val = _mm(xn, wa_ref[...]) + ba_ref[...]
    gate = _mm(xn, wb_ref[...]) + bg_ref[...]
    o_ref[...] = (val * jax.nn.sigmoid(gate)).astype(o_ref.dtype)


def ln_linear_glu(x, g, bln, wa, ba, wb, bb, out_dtype=jnp.float32):
    """Fused LayerNorm -> Linear(2C) -> GLU.  The 2C projection is pre-split into
    value/gate halves at init (host-side, free) so both halves tile over N."""
    M, K = x.shape
    N = wa.shape[1]
    tm, tn = _row_tile(M), _col_tile(N)
    return pl.pallas_call(
        _ln_linear_glu_kernel,
        grid=(pl.cdiv(M, tm), pl.cdiv(N, tn)),
        in_specs=[
            pl.BlockSpec((tm, K), lambda i, j: (i, 0)),
            pl.BlockSpec((1, K), lambda i, j: (0, 0)),
            pl.BlockSpec((1, K), lambda i, j: (0, 0)),
            pl.BlockSpec((K, tn), lambda i, j: (0, j)),
            pl.BlockSpec((1, tn), lambda i, j: (0, j)),
            pl.BlockSpec((K, tn), lambda i, j: (0, j)),
            pl.BlockSpec((1, tn), lambda i, j: (0, j)),
        ],
        out_specs=pl.BlockSpec((tm, tn), lambda i, j: (i, j)),
        out_shape=jax.ShapeDtypeStruct((M, N), out_dtype),
        compiler_params=_params("parallel", "parallel"),
        cost_estimate=pl.CostEstimate(
            flops=4 * M * K * N + 8 * M * K, transcendentals=M * N,
            bytes_accessed=(M * K * _isize(x.dtype) + 2 * K * N * _isize(wa.dtype)
                            + M * N * _isize(out_dtype))),
    )(x, g.reshape(1, K), bln.reshape(1, K), wa, ba.reshape(1, N), wb, bb.reshape(1, N))


def _linear_add_kernel(x_ref, w_ref, b_ref, r_ref, o_ref, *, scale):
    h = _mm(x_ref[...], w_ref[...]) + b_ref[...]
    o_ref[...] = r_ref[...] + scale * h


def linear_add(x, w, b, res, scale=1.0):
    """Fused Linear + residual add (optionally scaled); tiled over M and N."""
    M, K = x.shape
    N = w.shape[1]
    tm, tn = _row_tile(M), _col_tile(N)
    return pl.pallas_call(
        functools.partial(_linear_add_kernel, scale=scale),
        grid=(pl.cdiv(M, tm), pl.cdiv(N, tn)),
        in_specs=[
            pl.BlockSpec((tm, K), lambda i, j: (i, 0)),
            pl.BlockSpec((K, tn), lambda i, j: (0, j)),
            pl.BlockSpec((1, tn), lambda i, j: (0, j)),
            pl.BlockSpec((tm, tn), lambda i, j: (i, j)),
        ],
        out_specs=pl.BlockSpec((tm, tn), lambda i, j: (i, j)),
        out_shape=jax.ShapeDtypeStruct((M, N), jnp.float32),
        compiler_params=_params("parallel", "parallel"),
        cost_estimate=pl.CostEstimate(
            flops=2 * M * K * N, transcendentals=0,
            bytes_accessed=(M * K * _isize(x.dtype) + K * N * _isize(w.dtype)
                            + 3 * M * N * 4)),
    )(x, w, b.reshape(1, N), res)


def _linear_add_ln_kernel(x_ref, w_ref, b_ref, r_ref, g_ref, bb_ref, o_ref, *, scale):
    h = _mm(x_ref[...], w_ref[...]) + b_ref[...]
    y = r_ref[...] + scale * h
    o_ref[...] = _ln(y, g_ref[...], bb_ref[...])


def linear_add_ln(x, w, b, res, g, bln, scale=1.0):
    """Fused Linear + residual + LayerNorm; tiled over M only (LayerNorm runs over
    the output dim N = d_model/encoder_dim <= 512, i.e. one column tile)."""
    M, K = x.shape
    N = w.shape[1]
    tm = _row_tile(M)
    return pl.pallas_call(
        functools.partial(_linear_add_ln_kernel, scale=scale),
        grid=(pl.cdiv(M, tm),),
        in_specs=[
            pl.BlockSpec((tm, K), lambda i: (i, 0)),
            pl.BlockSpec((K, N), lambda i: (0, 0)),
            pl.BlockSpec((1, N), lambda i: (0, 0)),
            pl.BlockSpec((tm, N), lambda i: (i, 0)),
            pl.BlockSpec((1, N), lambda i: (0, 0)),
            pl.BlockSpec((1, N), lambda i: (0, 0)),
        ],
        out_specs=pl.BlockSpec((tm, N), lambda i: (i, 0)),
        out_shape=jax.ShapeDtypeStruct((M, N), jnp.float32),
        compiler_params=_params("parallel"),
        cost_estimate=pl.CostEstimate(
            flops=2 * M * K * N + 10 * M * N, transcendentals=0,
            bytes_accessed=(M * K * _isize(x.dtype) + K * N * _isize(w.dtype)
                            + 2 * M * N * 4)),
    )(x, w, b.reshape(1, N), res, g.reshape(1, N), bln.reshape(1, N))


def _mha_kernel(qkv_ref, o_ref, *, nhead):
    """All heads of one batch element; each head's output is stored directly into
    its lane slice of o_ref (no concatenate, heads' vregs freed early)."""
    D = o_ref.shape[2]
    dh = D // nhead
    scale = 1.0 / (dh ** 0.5)
    # TODO(synk): for production dh (e.g. 32), per-head lane slices are not
    # 128-lane aligned; permuting w_qkv columns at init to group heads into
    # 128-lane blocks would remove the resulting lane extracts.
    for h in range(nhead):                                   # static unroll over heads
        q = (qkv_ref[0, :, h * dh:(h + 1) * dh] * scale).astype(jnp.bfloat16)
        k = qkv_ref[0, :, D + h * dh: D + (h + 1) * dh].astype(jnp.bfloat16)
        v = qkv_ref[0, :, 2 * D + h * dh: 2 * D + (h + 1) * dh].astype(jnp.bfloat16)
        s = jax.lax.dot_general(q, k, (((1,), (1,)), ((), ())),
                                preferred_element_type=jnp.float32)
        s = s - jnp.max(s, axis=-1, keepdims=True)
        p = jnp.exp(s)
        p = p * pl.reciprocal(jnp.sum(p, axis=-1, keepdims=True), approx=True)
        o = jnp.dot(p.astype(jnp.bfloat16), v, preferred_element_type=jnp.float32)
        o_ref[0, :, h * dh:(h + 1) * dh] = o.astype(o_ref.dtype)


def mha_core(qkv, nhead, out_dtype=jnp.bfloat16):
    """softmax(QK^T/sqrt(dh))V over the fused (B, T, 3D) qkv buffer -> (B, T, D)."""
    # TODO(synk): no key-padding mask is applied for frames beyond input_length.
    B, T, threeD = qkv.shape
    D = threeD // 3
    return pl.pallas_call(
        functools.partial(_mha_kernel, nhead=nhead),
        grid=(B,),
        in_specs=[pl.BlockSpec((1, T, threeD), lambda b: (b, 0, 0))],
        out_specs=pl.BlockSpec((1, T, D), lambda b: (b, 0, 0)),
        out_shape=jax.ShapeDtypeStruct((B, T, D), out_dtype),
        compiler_params=_params("parallel"),
        cost_estimate=pl.CostEstimate(
            flops=4 * B * T * T * D, transcendentals=B * nhead * T * T,
            bytes_accessed=(qkv.size * _isize(qkv.dtype)
                            + B * T * D * _isize(out_dtype))),
    )(qkv)


def _dwconv_bn_swish_kernel(x_ref, w_ref, s_ref, t_ref, o_ref, *, ksize):
    T, C = o_ref.shape[1], o_ref.shape[2]
    pad = (ksize - 1) // 2
    x = x_ref[0].astype(jnp.float32)                          # (T, C)
    t_idx = jax.lax.broadcasted_iota(jnp.int32, (T, C), 0)
    acc = jnp.zeros((T, C), jnp.float32)
    for k in range(ksize):                                    # static unroll over taps
        off = k - pad                                         # out[t] += w[k] * x[t+off]
        shifted = x if off == 0 else pltpu.roll(x, shift=(-off) % T, axis=0)
        valid = (t_idx >= -off) & (t_idx < T - off)           # zero-pad edge mask
        acc = acc + jnp.where(valid, shifted, 0.0) * w_ref[k:k + 1, :]
    h = acc * s_ref[...] + t_ref[...]                         # BatchNorm (eval)
    o_ref[0] = (h * jax.nn.sigmoid(h)).astype(o_ref.dtype)    # SiLU


def depthwise_conv_bn_swish(x, w, bn_scale, bn_shift, out_dtype=jnp.bfloat16):
    """Same-padding depthwise conv over time (per-tap pltpu.roll + iota edge mask,
    no padded scratch copy), fused with BN(eval) + SiLU."""
    B, T, C = x.shape
    K = w.shape[0]
    return pl.pallas_call(
        functools.partial(_dwconv_bn_swish_kernel, ksize=K),
        grid=(B,),
        in_specs=[
            pl.BlockSpec((1, T, C), lambda b: (b, 0, 0)),
            pl.BlockSpec((K, C), lambda b: (0, 0)),
            pl.BlockSpec((1, C), lambda b: (0, 0)),
            pl.BlockSpec((1, C), lambda b: (0, 0)),
        ],
        out_specs=pl.BlockSpec((1, T, C), lambda b: (b, 0, 0)),
        out_shape=jax.ShapeDtypeStruct((B, T, C), out_dtype),
        compiler_params=_params("parallel"),
        cost_estimate=pl.CostEstimate(
            flops=B * T * C * (2 * K + 4), transcendentals=B * T * C,
            bytes_accessed=(x.size * _isize(x.dtype) + K * C * 4
                            + B * T * C * _isize(out_dtype))),
    )(x, w, bn_scale.reshape(1, C), bn_shift.reshape(1, C))


def _pool_pred_kernel(x_ref, w1_ref, b1_ref, s_ref, t_ref, w2_ref, b2_ref, o_ref):
    stats = jnp.mean(x_ref[...].astype(jnp.float32), axis=1)  # mean pooling over time
    h = _mm(stats, w1_ref[...]) + b1_ref[...]
    h = jnp.maximum(h * s_ref[...] + t_ref[...], 0.0)         # BN(eval)+ReLU; Dropout=identity
    o_ref[...] = _mm(h, w2_ref[...]) + b2_ref[...]


def pool_pred(x, p):
    """Fused mean-pool + Linear -> BatchNorm1d -> ReLU -> Linear, tiled over B."""
    B, T, D = x.shape
    N = p["w2"].shape[1]
    tb = B if B < 8 else 8
    return pl.pallas_call(
        _pool_pred_kernel,
        grid=(pl.cdiv(B, tb),),
        in_specs=[
            pl.BlockSpec((tb, T, D), lambda i: (i, 0, 0)),
            pl.BlockSpec((D, D), lambda i: (0, 0)),
            pl.BlockSpec((1, D), lambda i: (0, 0)),
            pl.BlockSpec((1, D), lambda i: (0, 0)),
            pl.BlockSpec((1, D), lambda i: (0, 0)),
            pl.BlockSpec((D, N), lambda i: (0, 0)),
            pl.BlockSpec((1, N), lambda i: (0, 0)),
        ],
        out_specs=pl.BlockSpec((tb, N), lambda i: (i, 0)),
        out_shape=jax.ShapeDtypeStruct((B, N), jnp.float32),
        compiler_params=_params("parallel"),
        cost_estimate=pl.CostEstimate(
            flops=2 * B * D * (D + N) + B * T * D, transcendentals=0,
            bytes_accessed=(x.size * _isize(x.dtype) + D * D * 2 + D * N * 2
                            + B * N * 4)),
    )(x, p["w1"], p["b1"].reshape(1, D), p["bn_scale"].reshape(1, D),
      p["bn_shift"].reshape(1, D), p["w2"], p["b2"].reshape(1, N))


# --------------------------------------------------------------------------
# Model composition (all hot paths are fused Pallas kernels above)
# --------------------------------------------------------------------------

def transformer_encoder_layer(x2d, B, T, p, nhead):
    """nn.TransformerEncoderLayer(batch_first=True, norm_first=False, relu), eval."""
    D = x2d.shape[1]
    qkv = linear(x2d, p["mha"]["w_qkv"], p["mha"]["b_qkv"], out_dtype=jnp.bfloat16)
    a = mha_core(qkv.reshape(B, T, 3 * D), nhead).reshape(B * T, D)
    x2d = linear_add_ln(a, p["mha"]["w_o"], p["mha"]["b_o"], x2d,
                        p["ln1_g"], p["ln1_b"])              # LN(x + W_o attn)
    h = linear(x2d, p["w_ff1"], p["b_ff1"], act="relu", out_dtype=jnp.bfloat16)
    x2d = linear_add_ln(h, p["w_ff2"], p["b_ff2"], x2d,
                        p["ln2_g"], p["ln2_b"])              # LN(x + FF(x))
    return x2d


def conformer_block(x2d, B, T, p, nhead):
    C = x2d.shape[1]
    # FF module 1 (half-step residual)
    h = ln_linear(x2d, p["ff1"]["ln_g"], p["ff1"]["ln_b"],
                  p["ff1"]["w1"], p["ff1"]["b1"], act="swish", out_dtype=jnp.bfloat16)
    x2d = linear_add(h, p["ff1"]["w2"], p["ff1"]["b2"], x2d, scale=0.5)
    # MHSA module (pre-LN fused into the qkv projection)
    # TODO(synk): relative positional encoding of the Conformer MHSA is omitted
    # (plain scaled-dot-product MHSA is used instead).
    qkv = ln_linear(x2d, p["mhsa"]["ln_g"], p["mhsa"]["ln_b"],
                    p["mhsa"]["w_qkv"], p["mhsa"]["b_qkv"], out_dtype=jnp.bfloat16)
    a = mha_core(qkv.reshape(B, T, 3 * C), nhead).reshape(B * T, C)
    x2d = linear_add(a, p["mhsa"]["w_o"], p["mhsa"]["b_o"], x2d)
    # Convolution module: LN -> pointwise(2C) -> GLU -> depthwise -> BN -> SiLU -> pointwise
    g = ln_linear_glu(x2d, p["conv"]["ln_g"], p["conv"]["ln_b"],
                      p["conv"]["pw1_wa"], p["conv"]["pw1_ba"],
                      p["conv"]["pw1_wb"], p["conv"]["pw1_bb"], out_dtype=jnp.bfloat16)
    dw = depthwise_conv_bn_swish(g.reshape(B, T, C), p["conv"]["dw_w"],
                                 p["conv"]["bn_scale"], p["conv"]["bn_shift"])
    x2d = linear_add(dw.reshape(B * T, C), p["conv"]["pw2_w"], p["conv"]["pw2_b"], x2d)
    # FF module 2 (half-step residual) + final block LayerNorm, fused
    h = ln_linear(x2d, p["ff2"]["ln_g"], p["ff2"]["ln_b"],
                  p["ff2"]["w1"], p["ff2"]["b1"], act="swish", out_dtype=jnp.bfloat16)
    x2d = linear_add_ln(h, p["ff2"]["w2"], p["ff2"]["b2"], x2d,
                        p["ln_g"], p["ln_b"], scale=0.5)
    return x2d


def conformer_forward(x2d, B, T, input_length, p, nhead):
    # TODO(synk): Conv2dSubsampling (4x time reduction) of the reference Conformer
    # is omitted; the sequence length is preserved and features are projected directly.
    h = linear(x2d, p["in_w"], p["in_b"])
    for blk in p["blocks"]:
        h = conformer_block(h, B, T, blk, nhead)
    out = linear(h, p["fc_w"], p["fc_b"])                    # reference fc has bias=False
    out_len = jnp.full((B,), min(int(input_length), T), dtype=jnp.int32)
    return out, out_len


def classifier3_forward(params, mels, cfg):
    B, T, F = mels.shape
    d = cfg["d_model"]
    # prenet (output consumed only by the conformer input projection -> bf16)
    x2d = linear(mels.reshape(B * T, F), params["prenet_w"], params["prenet_b"],
                 out_dtype=jnp.bfloat16)
    # Conformer
    x2d, _ = conformer_forward(x2d, B, T, cfg["segment_len"], params["conformer"],
                               cfg["conformer_heads"])
    # Self-attention (TransformerEncoder, 2 layers)
    for lp in params["encoder_layers"]:
        x2d = transformer_encoder_layer(x2d, B, T, lp, cfg["nhead"])
    # Mean pooling + prediction layer (fused)
    return pool_pred(x2d.reshape(B, T, d), params["pred"])


# --------------------------------------------------------------------------
# Deterministic parameter initialization
# --------------------------------------------------------------------------

class KeyGen:
    def __init__(self, seed):
        self._key = jax.random.PRNGKey(seed)

    def __call__(self):
        self._key, sub = jax.random.split(self._key)
        return sub


def init_params(seed, cfg):
    kg = KeyGen(seed)
    d = cfg["d_model"]; ed = cfg["encoder_dim"]; ns = cfg["n_spks"]
    ffe = cfg["ff_expansion"]; K = cfg["conv_kernel_size"]; dff = cfg["dim_feedforward"]

    def W(i, o):  # matmul weights stored bf16 (halves weight DMA + VMEM residency)
        w = jax.random.normal(kg(), (i, o), jnp.float32) * (1.0 / (i ** 0.5))
        return w.astype(jnp.bfloat16)

    def zeros(n): return jnp.zeros((n,), jnp.float32)
    def ones(n): return jnp.ones((n,), jnp.float32)

    bn_eps = 1e-5

    def bn(dim):  # eval-mode BN folded to scale/shift (gamma=1, beta=0, mean=0, var=1)
        scale = jnp.full((dim,), 1.0 / (1.0 + bn_eps) ** 0.5, jnp.float32)
        return scale, jnp.zeros((dim,), jnp.float32)

    def mha(dim):
        return {"w_qkv": W(dim, 3 * dim), "b_qkv": zeros(3 * dim),
                "w_o": W(dim, dim), "b_o": zeros(dim)}

    def conf_ff(dim):
        return {"ln_g": ones(dim), "ln_b": zeros(dim),
                "w1": W(dim, ffe * dim), "b1": zeros(ffe * dim),
                "w2": W(ffe * dim, dim), "b2": zeros(dim)}

    def conf_conv(dim):
        s, t = bn(dim)
        pw1 = W(dim, 2 * dim)            # GLU projection, split host-side (free)
        return {"ln_g": ones(dim), "ln_b": zeros(dim),
                "pw1_wa": pw1[:, :dim], "pw1_ba": zeros(dim),
                "pw1_wb": pw1[:, dim:], "pw1_bb": zeros(dim),
                "dw_w": jax.random.normal(kg(), (K, dim), jnp.float32) * (1.0 / (K ** 0.5)),
                "bn_scale": s, "bn_shift": t,
                "pw2_w": W(dim, dim), "pw2_b": zeros(dim)}

    def conf_block(dim):
        m = mha(dim)
        m.update({"ln_g": ones(dim), "ln_b": zeros(dim)})
        return {"ff1": conf_ff(dim), "mhsa": m, "conv": conf_conv(dim),
                "ff2": conf_ff(dim), "ln_g": ones(dim), "ln_b": zeros(dim)}

    def enc_layer(dim):
        return {"mha": mha(dim),
                "ln1_g": ones(dim), "ln1_b": zeros(dim),
                "w_ff1": W(dim, dff), "b_ff1": zeros(dff),
                "w_ff2": W(dff, dim), "b_ff2": zeros(dim),
                "ln2_g": ones(dim), "ln2_b": zeros(dim)}

    s, t = bn(d)
    return {
        "prenet_w": W(40, d), "prenet_b": zeros(d),
        "conformer": {
            "in_w": W(d, ed), "in_b": zeros(ed),
            "blocks": [conf_block(ed) for _ in range(cfg["num_conformer_layers"])],
            "fc_w": W(ed, d), "fc_b": zeros(d),  # reference fc has bias=False (zero here)
        },
        "encoder_layers": [enc_layer(d) for _ in range(cfg["num_encoder_layers"])],
        "pred": {"w1": W(d, d), "b1": zeros(d),
                 "bn_scale": s, "bn_shift": t,
                 "w2": W(d, ns), "b2": zeros(ns)},
    }


# --------------------------------------------------------------------------

if __name__ == "__main__":
    # Small, module-consistent config (original: d_model=256, encoder_dim=512,
    # 6 conformer layers, 2 transformer layers, n_spks=600).
    cfg = dict(
        d_model=64, nhead=8, dim_feedforward=128,
        segment_len=128, n_spks=10,
        encoder_dim=32, num_conformer_layers=2, conformer_heads=4,
        ff_expansion=4, conv_kernel_size=7,
        num_encoder_layers=2,
    )
    key = jax.random.PRNGKey(0)
    mels = jax.random.normal(key, (2, 16, 40), jnp.float32)  # (B, T, 40) mel features
    params = init_params(0, cfg)

    fwd = jax.jit(functools.partial(classifier3_forward, cfg=cfg))
    logits = fwd(params, mels)
    jax.block_until_ready(logits)

    assert logits.shape == (2, cfg["n_spks"]), logits.shape
    assert bool(jnp.all(jnp.isfinite(logits)))
    print("KERNEL_OK")
</pallas_src>

<mosaic_0001>
module attributes {stable_mosaic.version = 11 : i64} {
  func.func @_linear_kernel(%arg0: i32, %arg1: i32, %arg2: memref<32x64xbf16, #tpu.memory_space<vmem>>, %arg3: memref<64x32xbf16, #tpu.memory_space<vmem>>, %arg4: memref<1x32xf32, #tpu.memory_space<vmem>>, %arg5: memref<32x32xf32, #tpu.memory_space<vmem>>) attributes {dimension_semantics = [#tpu.dimension_semantics<parallel>, #tpu.dimension_semantics<parallel>], iteration_bounds = array<i64: 1, 1>, scalar_prefetch = 0 : i64, scratch_operands = 0 : i64, tpu.core_type = #tpu.core_type<tc>, window_params = [{transform_indices = @transform_0, window_bounds = array<i64: 32, 64>}, {transform_indices = @transform_1, window_bounds = array<i64: 64, 32>}, {transform_indices = @transform_2, window_bounds = array<i64: 1, 32>}, {transform_indices = @transform_3, window_bounds = array<i64: 32, 32>}]} {
    %c0 = arith.constant 0 : index
    %c0_0 = arith.constant 0 : index
    %0 = vector.load %arg2[%c0, %c0_0] : memref<32x64xbf16, #tpu.memory_space<vmem>>, vector<32x64xbf16>
    %c0_1 = arith.constant 0 : index
    %c0_2 = arith.constant 0 : index
    %1 = vector.load %arg3[%c0_1, %c0_2] : memref<64x32xbf16, #tpu.memory_space<vmem>>, vector<64x32xbf16>
    %cst = arith.constant dense<0.000000e+00> : vector<32x32xf32>
    %2 = tpu.matmul %0, %1, %cst {dimension_numbers = #tpu.dot_dimension_numbers<[1], [0], [0], [1], [0, 0, 1, 1], [], []>} : vector<32x64xbf16>, vector<64x32xbf16>, vector<32x32xf32> -> vector<32x32xf32>
    %c0_3 = arith.constant 0 : index
    %c0_4 = arith.constant 0 : index
    %3 = vector.load %arg4[%c0_3, %c0_4] : memref<1x32xf32, #tpu.memory_space<vmem>>, vector<1x32xf32>
    %4 = vector.broadcast %3 : vector<1x32xf32> to vector<32x32xf32>
    %5 = arith.addf %2, %4 : vector<32x32xf32>
    %c0_5 = arith.constant 0 : index
    %c0_6 = arith.constant 0 : index
    %6 = vector.load %arg5[%c0_5, %c0_6] : memref<32x32xf32, #tpu.memory_space<vmem>>, vector<32x32xf32>
    tpu.vector_store %arg5[%c0_5, %c0_6], %5 {strides = array<i32>} : memref<32x32xf32, #tpu.memory_space<vmem>>, vector<32x32xf32>,
    return
  }
  func.func @transform_0(%arg0: i32, %arg1: i32) -> (i32, i32) {
    %c0_i32 = arith.constant 0 : i32
    %c0_i32_0 = arith.constant 0 : i32
    return %arg1, %c0_i32 : i32, i32
  }
  func.func @transform_1(%arg0: i32, %arg1: i32) -> (i32, i32) {
    %c0_i32 = arith.constant 0 : i32
    %c0_i32_0 = arith.constant 0 : i32
    return %c0_i32, %arg0 : i32, i32
  }
  func.func @transform_2(%arg0: i32, %arg1: i32) -> (i32, i32) {
    %c0_i32 = arith.constant 0 : i32
    %c0_i32_0 = arith.constant 0 : i32
    return %c0_i32, %arg0 : i32, i32
  }
  func.func @transform_3(%arg0: i32, %arg1: i32) -> (i32, i32) {
    %c0_i32 = arith.constant 0 : i32
    return %arg1, %arg0 : i32, i32
  }
}

module attributes {stable_mosaic.version = 11 : i64} {
  func.func @_linear_kernel(%arg0: i32, %arg1: i32, %arg2: memref<32x40xf32, #tpu.memory_space<vmem>>, %arg3: memref<40x64xbf16, #tpu.memory_space<vmem>>, %arg4: memref<1x64xf32, #tpu.memory_space<vmem>>, %arg5: memref<32x64xbf16, #tpu.memory_space<vmem>>) attributes {dimension_semantics = [#tpu.dimension_semantics<parallel>, #tpu.dimension_semantics<parallel>], iteration_bounds = array<i64: 1, 1>, scalar_prefetch = 0 : i64, scratch_operands = 0 : i64, tpu.core_type = #tpu.core_type<tc>, window_params = [{transform_indices = @transform_0, window_bounds = array<i64: 32, 40>}, {transform_indices = @transform_1, window_bounds = array<i64: 40, 64>}, {transform_indices = @transform_2, window_bounds = array<i64: 1, 64>}, {transform_indices = @transform_3, window_bounds = array<i64: 32, 64>}]} {
    %c0 = arith.constant 0 : index
    %c0_0 = arith.constant 0 : index
    %0 = vector.load %arg2[%c0, %c0_0] : memref<32x40xf32, #tpu.memory_space<vmem>>, vector<32x40xf32>
    %c0_1 = arith.constant 0 : index
    %c0_2 = arith.constant 0 : index
    %1 = vector.load %arg3[%c0_1, %c0_2] : memref<40x64xbf16, #tpu.memory_space<vmem>>, vector<40x64xbf16>
    %2 = arith.truncf %0 : vector<32x40xf32> to vector<32x40xbf16>
    %cst = arith.constant dense<0.000000e+00> : vector<32x64xf32>
    %3 = tpu.matmul %2, %1, %cst {dimension_numbers = #tpu.dot_dimension_numbers<[1], [0], [0], [1], [0, 0, 1, 1], [], []>} : vector<32x40xbf16>, vector<40x64xbf16>, vector<32x64xf32> -> vector<32x64xf32>
    %c0_3 = arith.constant 0 : index
    %c0_4 = arith.constant 0 : index
    %4 = vector.load %arg4[%c0_3, %c0_4] : memref<1x64xf32, #tpu.memory_space<vmem>>, vector<1x64xf32>
    %5 = vector.broadcast %4 : vector<1x64xf32> to vector<32x64xf32>
    %6 = arith.addf %3, %5 : vector<32x64xf32>
    %7 = arith.truncf %6 : vector<32x64xf32> to vector<32x64xbf16>
    %c0_5 = arith.constant 0 : index
    %c0_6 = arith.constant 0 : index
    %8 = vector.load %arg5[%c0_5, %c0_6] : memref<32x64xbf16, #tpu.memory_space<vmem>>, vector<32x64xbf16>
    tpu.vector_store %arg5[%c0_5, %c0_6], %7 {strides = array<i32>} : memref<32x64xbf16, #tpu.memory_space<vmem>>, vector<32x64xbf16>,
    return
  }
  func.func @transform_0(%arg0: i32, %arg1: i32) -> (i32, i32) {
    %c0_i32 = arith.constant 0 : i32
    %c0_i32_0 = arith.constant 0 : i32
    return %arg1, %c0_i32 : i32, i32
  }
  func.func @transform_1(%arg0: i32, %arg1: i32) -> (i32, i32) {
    %c0_i32 = arith.constant 0 : i32
    %c0_i32_0 = arith.constant 0 : i32
    return %c0_i32, %arg0 : i32, i32
  }
  func.func @transform_2(%arg0: i32, %arg1: i32) -> (i32, i32) {
    %c0_i32 = arith.constant 0 : i32
    %c0_i32_0 = arith.constant 0 : i32
    return %c0_i32, %arg0 : i32, i32
  }
  func.func @transform_3(%arg0: i32, %arg1: i32) -> (i32, i32) {
    %c0_i32 = arith.constant 0 : i32
    return %arg1, %arg0 : i32, i32
  }
}

module attributes {stable_mosaic.version = 11 : i64} {
  func.func @_ln_linear_kernel(%arg0: i32, %arg1: i32, %arg2: memref<32x32xf32, #tpu.memory_space<vmem>>, %arg3: memref<1x32xf32, #tpu.memory_space<vmem>>, %arg4: memref<1x32xf32, #tpu.memory_space<vmem>>, %arg5: memref<32x128xbf16, #tpu.memory_space<vmem>>, %arg6: memref<1x128xf32, #tpu.memory_space<vmem>>, %arg7: memref<32x128xbf16, #tpu.memory_space<vmem>>) attributes {dimension_semantics = [#tpu.dimension_semantics<parallel>, #tpu.dimension_semantics<parallel>], iteration_bounds = array<i64: 1, 1>, scalar_prefetch = 0 : i64, scratch_operands = 0 : i64, tpu.core_type = #tpu.core_type<tc>, window_params = [{transform_indices = @transform_0, window_bounds = array<i64: 32, 32>}, {pipeline_mode = #tpu.pipeline_mode<synchronous>, transform_indices = @transform_1, window_bounds = array<i64: 1, 32>}, {pipeline_mode = #tpu.pipeline_mode<synchronous>, transform_indices = @transform_2, window_bounds = array<i64: 1, 32>}, {transform_indices = @transform_3, window_bounds = array<i64: 32, 128>}, {transform_indices = @transform_4, window_bounds = array<i64: 1, 128>}, {transform_indices = @transform_5, window_bounds = array<i64: 32, 128>}]} {
    %c0 = arith.constant 0 : index
    %c0_0 = arith.constant 0 : index
    %0 = vector.load %arg2[%c0, %c0_0] : memref<32x32xf32, #tpu.memory_space<vmem>>, vector<32x32xf32>
    %c0_1 = arith.constant 0 : index
    %c0_2 = arith.constant 0 : index
    %1 = vector.load %arg3[%c0_1, %c0_2] : memref<1x32xf32, #tpu.memory_space<vmem>>, vector<1x32xf32>
    %c0_3 = arith.constant 0 : index
    %c0_4 = arith.constant 0 : index
    %2 = vector.load %arg4[%c0_3, %c0_4] : memref<1x32xf32, #tpu.memory_space<vmem>>, vector<1x32xf32>
    %cst = arith.constant dense<0.000000e+00> : vector<32xf32>
    %3 = vector.multi_reduction <add>, %0, %cst [1] : vector<32x32xf32> to vector<32xf32>
    %4 = vector.shape_cast %3 : vector<32xf32> to vector<32x1xf32>
    %cst_5 = arith.constant 3.200000e+01 : f32
    %5 = vector.broadcast %cst_5 : f32 to vector<32x1xf32>
    %6 = arith.divf %4, %5 : vector<32x1xf32>
    %7 = vector.broadcast %6 : vector<32x1xf32> to vector<32x32xf32>
    %8 = arith.subf %0, %7 : vector<32x32xf32>
    %9 = arith.mulf %8, %8 : vector<32x32xf32>
    %cst_6 = arith.constant dense<0.000000e+00> : vector<32xf32>
    %10 = vector.multi_reduction <add>, %9, %cst_6 [1] : vector<32x32xf32> to vector<32xf32>
    %11 = vector.shape_cast %10 : vector<32xf32> to vector<32x1xf32>
    %cst_7 = arith.constant 3.200000e+01 : f32
    %12 = vector.broadcast %cst_7 : f32 to vector<32x1xf32>
    %13 = arith.divf %11, %12 : vector<32x1xf32>
    %14 = vector.broadcast %6 : vector<32x1xf32> to vector<32x32xf32>
    %15 = arith.subf %0, %14 : vector<32x32xf32>
    %cst_8 = arith.constant 9.99999974E-6 : f32
    %16 = vector.broadcast %cst_8 : f32 to vector<32x1xf32>
    %17 = arith.addf %13, %16 : vector<32x1xf32>
    %18 = math.rsqrt %17 : vector<32x1xf32>
    %19 = vector.broadcast %18 : vector<32x1xf32> to vector<32x32xf32>
    %20 = arith.mulf %15, %19 : vector<32x32xf32>
    %21 = vector.broadcast %1 : vector<1x32xf32> to vector<32x32xf32>
    %22 = arith.mulf %20, %21 : vector<32x32xf32>
    %23 = vector.broadcast %2 : vector<1x32xf32> to vector<32x32xf32>
    %24 = arith.addf %22, %23 : vector<32x32xf32>
    %c0_9 = arith.constant 0 : index
    %c0_10 = arith.constant 0 : index
    %25 = vector.load %arg5[%c0_9, %c0_10] : memref<32x128xbf16, #tpu.memory_space<vmem>>, vector<32x128xbf16>
    %26 = arith.truncf %24 : vector<32x32xf32> to vector<32x32xbf16>
    %cst_11 = arith.constant dense<0.000000e+00> : vector<32x128xf32>
    %27 = tpu.matmul %26, %25, %cst_11 {dimension_numbers = #tpu.dot_dimension_numbers<[1], [0], [0], [1], [0, 0, 1, 1], [], []>} : vector<32x32xbf16>, vector<32x128xbf16>, vector<32x128xf32> -> vector<32x128xf32>
    %c0_12 = arith.constant 0 : index
    %c0_13 = arith.constant 0 : index
    %28 = vector.load %arg6[%c0_12, %c0_13] : memref<1x128xf32, #tpu.memory_space<vmem>>, vector<1x128xf32>
    %29 = vector.broadcast %28 : vector<1x128xf32> to vector<32x128xf32>
    %30 = arith.addf %27, %29 : vector<32x128xf32>
    %31 = arith.negf %30 : vector<32x128xf32>
    %32 = math.exp %31 : vector<32x128xf32>
    %cst_14 = arith.constant 1.000000e+00 : f32
    %33 = vector.broadcast %cst_14 : f32 to vector<32x128xf32>
    %34 = arith.addf %33, %32 : vector<32x128xf32>
    %35 = arith.divf %33, %34 : vector<32x128xf32>
    %36 = arith.mulf %30, %35 : vector<32x128xf32>
    %37 = arith.truncf %36 : vector<32x128xf32> to vector<32x128xbf16>
    %c0_15 = arith.constant 0 : index
    %c0_16 = arith.constant 0 : index
    %38 = vector.load %arg7[%c0_15, %c0_16] : memref<32x128xbf16, #tpu.memory_space<vmem>>, vector<32x128xbf16>
    tpu.vector_store %arg7[%c0_15, %c0_16], %37 {strides = array<i32>} : memref<32x128xbf16, #tpu.memory_space<vmem>>, vector<32x128xbf16>,
    return
  }
  func.func @transform_0(%arg0: i32, %arg1: i32) -> (i32, i32) {
    %c0_i32 = arith.constant 0 : i32
    %c0_i32_0 = arith.constant 0 : i32
    return %arg0, %c0_i32 : i32, i32
  }
  func.func @transform_1(%arg0: i32, %arg1: i32) -> (i32, i32) {
    %c0_i32 = arith.constant 0 : i32
    %c0_i32_0 = arith.constant 0 : i32
    %c0_i32_1 = arith.constant 0 : i32
    return %c0_i32, %c0_i32_0 : i32, i32
  }
  func.func @transform_2(%arg0: i32, %arg1: i32) -> (i32, i32) {
    %c0_i32 = arith.constant 0 : i32
    %c0_i32_0 = arith.constant 0 : i32
    %c0_i32_1 = arith.constant 0 : i32
    return %c0_i32, %c0_i32_0 : i32, i32
  }
  func.func @transform_3(%arg0: i32, %arg1: i32) -> (i32, i32) {
    %c0_i32 = arith.constant 0 : i32
    %c0_i32_0 = arith.constant 0 : i32
    return %c0_i32, %arg1 : i32, i32
  }
  func.func @transform_4(%arg0: i32, %arg1: i32) -> (i32, i32) {
    %c0_i32 = arith.constant 0 : i32
    %c0_i32_0 = arith.constant 0 : i32
    return %c0_i32, %arg1 : i32, i32
  }
  func.func @transform_5(%arg0: i32, %arg1: i32) -> (i32, i32) {
    %c0_i32 = arith.constant 0 : i32
    return %arg0, %arg1 : i32, i32
  }
}

module attributes {stable_mosaic.version = 11 : i64} {
  func.func @_linear_add_kernel(%arg0: i32, %arg1: i32, %arg2: memref<32x32xbf16, #tpu.memory_space<vmem>>, %arg3: memref<32x32xbf16, #tpu.memory_space<vmem>>, %arg4: memref<1x32xf32, #tpu.memory_space<vmem>>, %arg5: memref<32x32xf32, #tpu.memory_space<vmem>>, %arg6: memref<32x32xf32, #tpu.memory_space<vmem>>) attributes {dimension_semantics = [#tpu.dimension_semantics<parallel>, #tpu.dimension_semantics<parallel>], iteration_bounds = array<i64: 1, 1>, scalar_prefetch = 0 : i64, scratch_operands = 0 : i64, tpu.core_type = #tpu.core_type<tc>, window_params = [{transform_indices = @transform_0, window_bounds = array<i64: 32, 32>}, {transform_indices = @transform_1, window_bounds = array<i64: 32, 32>}, {transform_indices = @transform_2, window_bounds = array<i64: 1, 32>}, {transform_indices = @transform_3, window_bounds = array<i64: 32, 32>}, {transform_indices = @transform_4, window_bounds = array<i64: 32, 32>}]} {
    %c0 = arith.constant 0 : index
    %c0_0 = arith.constant 0 : index
    %0 = vector.load %arg2[%c0, %c0_0] : memref<32x32xbf16, #tpu.memory_space<vmem>>, vector<32x32xbf16>
    %c0_1 = arith.constant 0 : index
    %c0_2 = arith.constant 0 : index
    %1 = vector.load %arg3[%c0_1, %c0_2] : memref<32x32xbf16, #tpu.memory_space<vmem>>, vector<32x32xbf16>
    %cst = arith.constant dense<0.000000e+00> : vector<32x32xf32>
    %2 = tpu.matmul %0, %1, %cst {dimension_numbers = #tpu.dot_dimension_numbers<[1], [0], [0], [1], [0, 0, 1, 1], [], []>} : vector<32x32xbf16>, vector<32x32xbf16>, vector<32x32xf32> -> vector<32x32xf32>
    %c0_3 = arith.constant 0 : index
    %c0_4 = arith.constant 0 : index
    %3 = vector.load %arg4[%c0_3, %c0_4] : memref<1x32xf32, #tpu.memory_space<vmem>>, vector<1x32xf32>
    %4 = vector.broadcast %3 : vector<1x32xf32> to vector<32x32xf32>
    %5 = arith.addf %2, %4 : vector<32x32xf32>
    %c0_5 = arith.constant 0 : index
    %c0_6 = arith.constant 0 : index
    %6 = vector.load %arg5[%c0_5, %c0_6] : memref<32x32xf32, #tpu.memory_space<vmem>>, vector<32x32xf32>
    %cst_7 = arith.constant 1.000000e+00 : f32
    %7 = vector.broadcast %cst_7 : f32 to vector<32x32xf32>
    %8 = arith.mulf %7, %5 : vector<32x32xf32>
    %9 = arith.addf %6, %8 : vector<32x32xf32>
    %c0_8 = arith.constant 0 : index
    %c0_9 = arith.constant 0 : index
    %10 = vector.load %arg6[%c0_8, %c0_9] : memref<32x32xf32, #tpu.memory_space<vmem>>, vector<32x32xf32>
    tpu.vector_store %arg6[%c0_8, %c0_9], %9 {strides = array<i32>} : memref<32x32xf32, #tpu.memory_space<vmem>>, vector<32x32xf32>,
    return
  }
  func.func @transform_0(%arg0: i32, %arg1: i32) -> (i32, i32) {
    %c0_i32 = arith.constant 0 : i32
    %c0_i32_0 = arith.constant 0 : i32
    return %arg0, %c0_i32 : i32, i32
  }
  func.func @transform_1(%arg0: i32, %arg1: i32) -> (i32, i32) {
    %c0_i32 = arith.constant 0 : i32
    %c0_i32_0 = arith.constant 0 : i32
    return %c0_i32, %arg1 : i32, i32
  }
  func.func @transform_2(%arg0: i32, %arg1: i32) -> (i32, i32) {
    %c0_i32 = arith.constant 0 : i32
    %c0_i32_0 = arith.constant 0 : i32
    return %c0_i32, %arg1 : i32, i32
  }
  func.func @transform_3(%arg0: i32, %arg1: i32) -> (i32, i32) {
    %c0_i32 = arith.constant 0 : i32
    return %arg0, %arg1 : i32, i32
  }
  func.func @transform_4(%arg0: i32, %arg1: i32) -> (i32, i32) {
    %c0_i32 = arith.constant 0 : i32
    return %arg0, %arg1 : i32, i32
  }
}

module attributes {stable_mosaic.version = 11 : i64} {
  func.func @_ln_linear_kernel(%arg0: i32, %arg1: i32, %arg2: memref<32x32xf32, #tpu.memory_space<vmem>>, %arg3: memref<1x32xf32, #tpu.memory_space<vmem>>, %arg4: memref<1x32xf32, #tpu.memory_space<vmem>>, %arg5: memref<32x96xbf16, #tpu.memory_space<vmem>>, %arg6: memref<1x96xf32, #tpu.memory_space<vmem>>, %arg7: memref<32x96xbf16, #tpu.memory_space<vmem>>) attributes {dimension_semantics = [#tpu.dimension_semantics<parallel>, #tpu.dimension_semantics<parallel>], iteration_bounds = array<i64: 1, 1>, scalar_prefetch = 0 : i64, scratch_operands = 0 : i64, tpu.core_type = #tpu.core_type<tc>, window_params = [{transform_indices = @transform_0, window_bounds = array<i64: 32, 32>}, {pipeline_mode = #tpu.pipeline_mode<synchronous>, transform_indices = @transform_1, window_bounds = array<i64: 1, 32>}, {pipeline_mode = #tpu.pipeline_mode<synchronous>, transform_indices = @transform_2, window_bounds = array<i64: 1, 32>}, {transform_indices = @transform_3, window_bounds = array<i64: 32, 96>}, {transform_indices = @transform_4, window_bounds = array<i64: 1, 96>}, {transform_indices = @transform_5, window_bounds = array<i64: 32, 96>}]} {
    %c0 = arith.constant 0 : index
    %c0_0 = arith.constant 0 : index
    %0 = vector.load %arg2[%c0, %c0_0] : memref<32x32xf32, #tpu.memory_space<vmem>>, vector<32x32xf32>
    %c0_1 = arith.constant 0 : index
    %c0_2 = arith.constant 0 : index
    %1 = vector.load %arg3[%c0_1, %c0_2] : memref<1x32xf32, #tpu.memory_space<vmem>>, vector<1x32xf32>
    %c0_3 = arith.constant 0 : index
    %c0_4 = arith.constant 0 : index
    %2 = vector.load %arg4[%c0_3, %c0_4] : memref<1x32xf32, #tpu.memory_space<vmem>>, vector<1x32xf32>
    %cst = arith.constant dense<0.000000e+00> : vector<32xf32>
    %3 = vector.multi_reduction <add>, %0, %cst [1] : vector<32x32xf32> to vector<32xf32>
    %4 = vector.shape_cast %3 : vector<32xf32> to vector<32x1xf32>
    %cst_5 = arith.constant 3.200000e+01 : f32
    %5 = vector.broadcast %cst_5 : f32 to vector<32x1xf32>
    %6 = arith.divf %4, %5 : vector<32x1xf32>
    %7 = vector.broadcast %6 : vector<32x1xf32> to vector<32x32xf32>
    %8 = arith.subf %0, %7 : vector<32x32xf32>
    %9 = arith.mulf %8, %8 : vector<32x32xf32>
    %cst_6 = arith.constant dense<0.000000e+00> : vector<32xf32>
    %10 = vector.multi_reduction <add>, %9, %cst_6 [1] : vector<32x32xf32> to vector<32xf32>
    %11 = vector.shape_cast %10 : vector<32xf32> to vector<32x1xf32>
    %cst_7 = arith.constant 3.200000e+01 : f32
    %12 = vector.broadcast %cst_7 : f32 to vector<32x1xf32>
    %13 = arith.divf %11, %12 : vector<32x1xf32>
    %14 = vector.broadcast %6 : vector<32x1xf32> to vector<32x32xf32>
    %15 = arith.subf %0, %14 : vector<32x32xf32>
    %cst_8 = arith.constant 9.99999974E-6 : f32
    %16 = vector.broadcast %cst_8 : f32 to vector<32x1xf32>
    %17 = arith.addf %13, %16 : vector<32x1xf32>
    %18 = math.rsqrt %17 : vector<32x1xf32>
    %19 = vector.broadcast %18 : vector<32x1xf32> to vector<32x32xf32>
    %20 = arith.mulf %15, %19 : vector<32x32xf32>
    %21 = vector.broadcast %1 : vector<1x32xf32> to vector<32x32xf32>
    %22 = arith.mulf %20, %21 : vector<32x32xf32>
    %23 = vector.broadcast %2 : vector<1x32xf32> to vector<32x32xf32>
    %24 = arith.addf %22, %23 : vector<32x32xf32>
    %c0_9 = arith.constant 0 : index
    %c0_10 = arith.constant 0 : index
    %25 = vector.load %arg5[%c0_9, %c0_10] : memref<32x96xbf16, #tpu.memory_space<vmem>>, vector<32x96xbf16>
    %26 = arith.truncf %24 : vector<32x32xf32> to vector<32x32xbf16>
    %cst_11 = arith.constant dense<0.000000e+00> : vector<32x96xf32>
    %27 = tpu.matmul %26, %25, %cst_11 {dimension_numbers = #tpu.dot_dimension_numbers<[1], [0], [0], [1], [0, 0, 1, 1], [], []>} : vector<32x32xbf16>, vector<32x96xbf16>, vector<32x96xf32> -> vector<32x96xf32>
    %c0_12 = arith.constant 0 : index
    %c0_13 = arith.constant 0 : index
    %28 = vector.load %arg6[%c0_12, %c0_13] : memref<1x96xf32, #tpu.memory_space<vmem>>, vector<1x96xf32>
    %29 = vector.broadcast %28 : vector<1x96xf32> to vector<32x96xf32>
    %30 = arith.addf %27, %29 : vector<32x96xf32>
    %31 = arith.truncf %30 : vector<32x96xf32> to vector<32x96xbf16>
    %c0_14 = arith.constant 0 : index
    %c0_15 = arith.constant 0 : index
    %32 = vector.load %arg7[%c0_14, %c0_15] : memref<32x96xbf16, #tpu.memory_space<vmem>>, vector<32x96xbf16>
    tpu.vector_store %arg7[%c0_14, %c0_15], %31 {strides = array<i32>} : memref<32x96xbf16, #tpu.memory_space<vmem>>, vector<32x96xbf16>,
    return
  }
  func.func @transform_0(%arg0: i32, %arg1: i32) -> (i32, i32) {
    %c0_i32 = arith.constant 0 : i32
    %c0_i32_0 = arith.constant 0 : i32
    return %arg0, %c0_i32 : i32, i32
  }
  func.func @transform_1(%arg0: i32, %arg1: i32) -> (i32, i32) {
    %c0_i32 = arith.constant 0 : i32
    %c0_i32_0 = arith.constant 0 : i32
    %c0_i32_1 = arith.constant 0 : i32
    return %c0_i32, %c0_i32_0 : i32, i32
  }
  func.func @transform_2(%arg0: i32, %arg1: i32) -> (i32, i32) {
    %c0_i32 = arith.constant 0 : i32
    %c0_i32_0 = arith.constant 0 : i32
    %c0_i32_1 = arith.constant 0 : i32
    return %c0_i32, %c0_i32_0 : i32, i32
  }
  func.func @transform_3(%arg0: i32, %arg1: i32) -> (i32, i32) {
    %c0_i32 = arith.constant 0 : i32
    %c0_i32_0 = arith.constant 0 : i32
    return %c0_i32, %arg1 : i32, i32
  }
  func.func @transform_4(%arg0: i32, %arg1: i32) -> (i32, i32) {
    %c0_i32 = arith.constant 0 : i32
    %c0_i32_0 = arith.constant 0 : i32
    return %c0_i32, %arg1 : i32, i32
  }
  func.func @transform_5(%arg0: i32, %arg1: i32) -> (i32, i32) {
    %c0_i32 = arith.constant 0 : i32
    return %arg0, %arg1 : i32, i32
  }
}

module attributes {stable_mosaic.version = 11 : i64} {
  func.func @_mha_kernel(%arg0: i32, %arg1: memref<1x16x96xbf16, #tpu.memory_space<vmem>>, %arg2: memref<1x16x32xbf16, #tpu.memory_space<vmem>>) attributes {dimension_semantics = [#tpu.dimension_semantics<parallel>], iteration_bounds = array<i64: 2>, scalar_prefetch = 0 : i64, scratch_operands = 0 : i64, tpu.core_type = #tpu.core_type<tc>, window_params = [{transform_indices = @transform_0, window_bounds = array<i64: 1, 16, 96>}, {transform_indices = @transform_1, window_bounds = array<i64: 1, 16, 32>}]} {
    %c0 = arith.constant 0 : index
    %c0_0 = arith.constant 0 : index
    %c0_1 = arith.constant 0 : index
    %0 = vector.load %arg1[%c0, %c0_0, %c0_1] : memref<1x16x96xbf16, #tpu.memory_space<vmem>>, vector<1x16x8xbf16>
    %1 = vector.shape_cast %0 : vector<1x16x8xbf16> to vector<16x8xbf16>
    %cst = arith.constant 3.535160e-01 : bf16
    %2 = vector.broadcast %cst : bf16 to vector<16x8xbf16>
    %3 = arith.mulf %1, %2 : vector<16x8xbf16>
    %c0_2 = arith.constant 0 : index
    %c0_3 = arith.constant 0 : index
    %c32 = arith.constant 32 : index
    %4 = vector.load %arg1[%c0_2, %c0_3, %c32] : memref<1x16x96xbf16, #tpu.memory_space<vmem>>, vector<1x16x8xbf16>
    %5 = vector.shape_cast %4 : vector<1x16x8xbf16> to vector<16x8xbf16>
    %c0_4 = arith.constant 0 : index
    %c0_5 = arith.constant 0 : index
    %c64 = arith.constant 64 : index
    %6 = vector.load %arg1[%c0_4, %c0_5, %c64] : memref<1x16x96xbf16, #tpu.memory_space<vmem>>, vector<1x16x8xbf16>
    %7 = vector.shape_cast %6 : vector<1x16x8xbf16> to vector<16x8xbf16>
    %cst_6 = arith.constant dense<0.000000e+00> : vector<16x16xf32>
    %8 = tpu.matmul %3, %5, %cst_6 {dimension_numbers = #tpu.dot_dimension_numbers<[1], [1], [0], [0], [0, 0, 1, 0], [], []>} : vector<16x8xbf16>, vector<16x8xbf16>, vector<16x16xf32> -> vector<16x16xf32>
    %cst_7 = arith.constant dense<0xFF800000> : vector<16xf32>
    %9 = vector.multi_reduction <maximumf>, %8, %cst_7 [1] : vector<16x16xf32> to vector<16xf32>
    %10 = vector.shape_cast %9 : vector<16xf32> to vector<16x1xf32>
    %11 = vector.broadcast %10 : vector<16x1xf32> to vector<16x16xf32>
    %12 = arith.subf %8, %11 : vector<16x16xf32>
    %13 = math.exp %12 : vector<16x16xf32>
    %cst_8 = arith.constant dense<0.000000e+00> : vector<16xf32>
    %14 = vector.multi_reduction <add>, %13, %cst_8 [1] : vector<16x16xf32> to vector<16xf32>
    %15 = vector.shape_cast %14 : vector<16xf32> to vector<16x1xf32>
    %16 = tpu.reciprocal %15 {approx = true} : vector<16x1xf32> -> vector<16x1xf32>
    %17 = vector.broadcast %16 : vector<16x1xf32> to vector<16x16xf32>
    %18 = arith.mulf %13, %17 : vector<16x16xf32>
    %19 = arith.truncf %18 : vector<16x16xf32> to vector<16x16xbf16>
    %cst_9 = arith.constant dense<0.000000e+00> : vector<16x8xf32>
    %20 = tpu.matmul %19, %7, %cst_9 {dimension_numbers = #tpu.dot_dimension_numbers<[1], [0], [0], [1], [0, 0, 1, 1], [], []>} : vector<16x16xbf16>, vector<16x8xbf16>, vector<16x8xf32> -> vector<16x8xf32>
    %21 = arith.truncf %20 : vector<16x8xf32> to vector<16x8xbf16>
    %c0_10 = arith.constant 0 : index
    %c0_11 = arith.constant 0 : index
    %c0_12 = arith.constant 0 : index
    %22 = vector.load %arg2[%c0_10, %c0_11, %c0_12] : memref<1x16x32xbf16, #tpu.memory_space<vmem>>, vector<1x16x8xbf16>
    %23 = vector.shape_cast %22 : vector<1x16x8xbf16> to vector<16x8xbf16>
    %24 = vector.shape_cast %21 : vector<16x8xbf16> to vector<1x16x8xbf16>
    tpu.vector_store %arg2[%c0_10, %c0_11, %c0_12], %24 {strides = array<i32>} : memref<1x16x32xbf16, #tpu.memory_space<vmem>>, vector<1x16x8xbf16>,
    %c0_13 = arith.constant 0 : index
    %c0_14 = arith.constant 0 : index
    %c8 = arith.constant 8 : index
    %25 = vector.load %arg1[%c0_13, %c0_14, %c8] : memref<1x16x96xbf16, #tpu.memory_space<vmem>>, vector<1x16x8xbf16>
    %26 = vector.shape_cast %25 : vector<1x16x8xbf16> to vector<16x8xbf16>
    %cst_15 = arith.constant 3.535160e-01 : bf16
    %27 = vector.broadcast %cst_15 : bf16 to vector<16x8xbf16>
    %28 = arith.mulf %26, %27 : vector<16x8xbf16>
    %c0_16 = arith.constant 0 : index
    %c0_17 = arith.constant 0 : index
    %c40 = arith.constant 40 : index
    %29 = vector.load %arg1[%c0_16, %c0_17, %c40] : memref<1x16x96xbf16, #tpu.memory_space<vmem>>, vector<1x16x8xbf16>
    %30 = vector.shape_cast %29 : vector<1x16x8xbf16> to vector<16x8xbf16>
    %c0_18 = arith.constant 0 : index
    %c0_19 = arith.constant 0 : index
    %c72 = arith.constant 72 : index
    %31 = vector.load %arg1[%c0_18, %c0_19, %c72] : memref<1x16x96xbf16, #tpu.memory_space<vmem>>, vector<1x16x8xbf16>
    %32 = vector.shape_cast %31 : vector<1x16x8xbf16> to vector<16x8xbf16>
    %cst_20 = arith.constant dense<0.000000e+00> : vector<16x16xf32>
    %33 = tpu.matmul %28, %30, %cst_20 {dimension_numbers = #tpu.dot_dimension_numbers<[1], [1], [0], [0], [0, 0, 1, 0], [], []>} : vector<16x8xbf16>, vector<16x8xbf16>, vector<16x16xf32> -> vector<16x16xf32>
    %cst_21 = arith.constant dense<0xFF800000> : vector<16xf32>
    %34 = vector.multi_reduction <maximumf>, %33, %cst_21 [1] : vector<16x16xf32> to vector<16xf32>
    %35 = vector.shape_cast %34 : vector<16xf32> to vector<16x1xf32>
    %36 = vector.broadcast %35 : vector<16x1xf32> to vector<16x16xf32>
    %37 = arith.subf %33, %36 : vector<16x16xf32>
    %38 = math.exp %37 : vector<16x16xf32>
    %cst_22 = arith.constant dense<0.000000e+00> : vector<16xf32>
    %39 = vector.multi_reduction <add>, %38, %cst_22 [1] : vector<16x16xf32> to vector<16xf32>
    %40 = vector.shape_cast %39 : vector<16xf32> to vector<16x1xf32>
    %41 = tpu.reciprocal %40 {approx = true} : vector<16x1xf32> -> vector<16x1xf32>
    %42 = vector.broadcast %41 : vector<16x1xf32> to vector<16x16xf32>
    %43 = arith.mulf %38, %42 : vector<16x16xf32>
    %44 = arith.truncf %43 : vector<16x16xf32> to vector<16x16xbf16>
    %cst_23 = arith.constant dense<0.000000e+00> : vector<16x8xf32>
    %45 = tpu.matmul %44, %32, %cst_23 {dimension_numbers = #tpu.dot_dimension_numbers<[1], [0], [0], [1], [0, 0, 1, 1], [], []>} : vector<16x16xbf16>, vector<16x8xbf16>, vector<16x8xf32> -> vector<16x8xf32>
    %46 = arith.truncf %45 : vector<16x8xf32> to vector<16x8xbf16>
    %c0_24 = arith.constant 0 : index
    %c0_25 = arith.constant 0 : index
    %c8_26 = arith.constant 8 : index
    %47 = vector.load %arg2[%c0_24, %c0_25, %c8_26] : memref<1x16x32xbf16, #tpu.memory_space<vmem>>, vector<1x16x8xbf16>
    %48 = vector.shape_cast %47 : vector<1x16x8xbf16> to vector<16x8xbf16>
    %49 = vector.shape_cast %46 : vector<16x8xbf16> to vector<1x16x8xbf16>
    tpu.vector_store %arg2[%c0_24, %c0_25, %c8_26], %49 {strides = array<i32>} : memref<1x16x32xbf16, #tpu.memory_space<vmem>>, vector<1x16x8xbf16>,
    %c0_27 = arith.constant 0 : index
    %c0_28 = arith.constant 0 : index
    %c16 = arith.constant 16 : index
    %50 = vector.load %arg1[%c0_27, %c0_28, %c16] : memref<1x16x96xbf16, #tpu.memory_space<vmem>>, vector<1x16x8xbf16>
    %51 = vector.shape_cast %50 : vector<1x16x8xbf16> to vector<16x8xbf16>
    %cst_29 = arith.constant 3.535160e-01 : bf16
    %52 = vector.broadcast %cst_29 : bf16 to vector<16x8xbf16>
    %53 = arith.mulf %51, %52 : vector<16x8xbf16>
    %c0_30 = arith.constant 0 : index
    %c0_31 = arith.constant 0 : index
    %c48 = arith.constant 48 : index
    %54 = vector.load %arg1[%c0_30, %c0_31, %c48] : memref<1x16x96xbf16, #tpu.memory_space<vmem>>, vector<1x16x8xbf16>
    %55 = vector.shape_cast %54 : vector<1x16x8xbf16> to vector<16x8xbf16>
    %c0_32 = arith.constant 0 : index
    %c0_33 = arith.constant 0 : index
    %c80 = arith.constant 80 : index
    %56 = vector.load %arg1[%c0_32, %c0_33, %c80] : memref<1x16x96xbf16, #tpu.memory_space<vmem>>, vector<1x16x8xbf16>
    %57 = vector.shape_cast %56 : vector<1x16x8xbf16> to vector<16x8xbf16>
    %cst_34 = arith.constant dense<0.000000e+00> : vector<16x16xf32>
    %58 = tpu.matmul %53, %55, %cst_34 {dimension_numbers = #tpu.dot_dimension_numbers<[1], [1], [0], [0], [0, 0, 1, 0], [], []>} : vector<16x8xbf16>, vector<16x8xbf16>, vector<16x16xf32> -> vector<16x16xf32>
    %cst_35 = arith.constant dense<0xFF800000> : vector<16xf32>
    %59 = vector.multi_reduction <maximumf>, %58, %cst_35 [1] : vector<16x16xf32> to vector<16xf32>
    %60 = vector.shape_cast %59 : vector<16xf32> to vector<16x1xf32>
    %61 = vector.broadcast %60 : vector<16x1xf32> to vector<16x16xf32>
    %62 = arith.subf %58, %61 : vector<16x16xf32>
    %63 = math.exp %62 : vector<16x16xf32>
    %cst_36 = arith.constant dense<0.000000e+00> : vector<16xf32>
    %64 = vector.multi_reduction <add>, %63, %cst_36 [1] : vector<16x16xf32> to vector<16xf32>
    %65 = vector.shape_cast %64 : vector<16xf32> to vector<16x1xf32>
    %66 = tpu.reciprocal %65 {approx = true} : vector<16x1xf32> -> vector<16x1xf32>
    %67 = vector.broadcast %66 : vector<16x1xf32> to vector<16x16xf32>
    %68 = arith.mulf %63, %67 : vector<16x16xf32>
    %69 = arith.truncf %68 : vector<16x16xf32> to vector<16x16xbf16>
    %cst_37 = arith.constant dense<0.000000e+00> : vector<16x8xf32>
    %70 = tpu.matmul %69, %57, %cst_37 {dimension_numbers = #tpu.dot_dimension_numbers<[1], [0], [0], [1], [0, 0, 1, 1], [], []>} : vector<16x16xbf16>, vector<16x8xbf16>, vector<16x8xf32> -> vector<16x8xf32>
    %71 = arith.truncf %70 : vector<16x8xf32> to vector<16x8xbf16>
    %c0_38 = arith.constant 0 : index
    %c0_39 = arith.constant 0 : index
    %c16_40 = arith.constant 16 : index
    %72 = vector.load %arg2[%c0_38, %c0_39, %c16_40] : memref<1x16x32xbf16, #tpu.memory_space<vmem>>, vector<1x16x8xbf16>
    %73 = vector.shape_cast %72 : vector<1x16x8xbf16> to vector<16x8xbf16>
    %74 = vector.shape_cast %71 : vector<16x8xbf16> to vector<1x16x8xbf16>
    tpu.vector_store %arg2[%c0_38, %c0_39, %c16_40], %74 {strides = array<i32>} : memref<1x16x32xbf16, #tpu.memory_space<vmem>>, vector<1x16x8xbf16>,
    %c0_41 = arith.constant 0 : index
    %c0_42 = arith.constant 0 : index
    %c24 = arith.constant 24 : index
    %75 = vector.load %arg1[%c0_41, %c0_42, %c24] : memref<1x16x96xbf16, #tpu.memory_space<vmem>>, vector<1x16x8xbf16>
    %76 = vector.shape_cast %75 : vector<1x16x8xbf16> to vector<16x8xbf16>
    %cst_43 = arith.constant 3.535160e-01 : bf16
    %77 = vector.broadcast %cst_43 : bf16 to vector<16x8xbf16>
    %78 = arith.mulf %76, %77 : vector<16x8xbf16>
    %c0_44 = arith.constant 0 : index
    %c0_45 = arith.constant 0 : index
    %c56 = arith.constant 56 : index
    %79 = vector.load %arg1[%c0_44, %c0_45, %c56] : memref<1x16x96xbf16, #tpu.memory_space<vmem>>, vector<1x16x8xbf16>
    %80 = vector.shape_cast %79 : vector<1x16x8xbf16> to vector<16x8xbf16>
    %c0_46 = arith.constant 0 : index
    %c0_47 = arith.constant 0 : index
    %c88 = arith.constant 88 : index
    %81 = vector.load %arg1[%c0_46, %c0_47, %c88] : memref<1x16x96xbf16, #tpu.memory_space<vmem>>, vector<1x16x8xbf16>
    %82 = vector.shape_cast %81 : vector<1x16x8xbf16> to vector<16x8xbf16>
    %cst_48 = arith.constant dense<0.000000e+00> : vector<16x16xf32>
    %83 = tpu.matmul %78, %80, %cst_48 {dimension_numbers = #tpu.dot_dimension_numbers<[1], [1], [0], [0], [0, 0, 1, 0], [], []>} : vector<16x8xbf16>, vector<16x8xbf16>, vector<16x16xf32> -> vector<16x16xf32>
    %cst_49 = arith.constant dense<0xFF800000> : vector<16xf32>
    %84 = vector.multi_reduction <maximumf>, %83, %cst_49 [1] : vector<16x16xf32> to vector<16xf32>
    %85 = vector.shape_cast %84 : vector<16xf32> to vector<16x1xf32>
    %86 = vector.broadcast %85 : vector<16x1xf32> to vector<16x16xf32>
    %87 = arith.subf %83, %86 : vector<16x16xf32>
    %88 = math.exp %87 : vector<16x16xf32>
    %cst_50 = arith.constant dense<0.000000e+00> : vector<16xf32>
    %89 = vector.multi_reduction <add>, %88, %cst_50 [1] : vector<16x16xf32> to vector<16xf32>
    %90 = vector.shape_cast %89 : vector<16xf32> to vector<16x1xf32>
    %91 = tpu.reciprocal %90 {approx = true} : vector<16x1xf32> -> vector<16x1xf32>
    %92 = vector.broadcast %91 : vector<16x1xf32> to vector<16x16xf32>
    %93 = arith.mulf %88, %92 : vector<16x16xf32>
    %94 = arith.truncf %93 : vector<16x16xf32> to vector<16x16xbf16>
    %cst_51 = arith.constant dense<0.000000e+00> : vector<16x8xf32>
    %95 = tpu.matmul %94, %82, %cst_51 {dimension_numbers = #tpu.dot_dimension_numbers<[1], [0], [0], [1], [0, 0, 1, 1], [], []>} : vector<16x16xbf16>, vector<16x8xbf16>, vector<16x8xf32> -> vector<16x8xf32>
    %96 = arith.truncf %95 : vector<16x8xf32> to vector<16x8xbf16>
    %c0_52 = arith.constant 0 : index
    %c0_53 = arith.constant 0 : index
    %c24_54 = arith.constant 24 : index
    %97 = vector.load %arg2[%c0_52, %c0_53, %c24_54] : memref<1x16x32xbf16, #tpu.memory_space<vmem>>, vector<1x16x8xbf16>
    %98 = vector.shape_cast %97 : vector<1x16x8xbf16> to vector<16x8xbf16>
    %99 = vector.shape_cast %96 : vector<16x8xbf16> to vector<1x16x8xbf16>
    tpu.vector_store %arg2[%c0_52, %c0_53, %c24_54], %99 {strides = array<i32>} : memref<1x16x32xbf16, #tpu.memory_space<vmem>>, vector<1x16x8xbf16>,
    return
  }
  func.func @transform_0(%arg0: i32) -> (i32, i32, i32) {
    %c0_i32 = arith.constant 0 : i32
    %c0_i32_0 = arith.constant 0 : i32
    %c0_i32_1 = arith.constant 0 : i32
    return %arg0, %c0_i32, %c0_i32_0 : i32, i32, i32
  }
  func.func @transform_1(%arg0: i32) -> (i32, i32, i32) {
    %c0_i32 = arith.constant 0 : i32
    %c0_i32_0 = arith.constant 0 : i32
    %c0_i32_1 = arith.constant 0 : i32
    return %arg0, %c0_i32, %c0_i32_0 : i32, i32, i32
  }
}

module attributes {stable_mosaic.version = 11 : i64} {
  func.func @_linear_add_kernel(%arg0: i32, %arg1: i32, %arg2: memref<32x128xbf16, #tpu.memory_space<vmem>>, %arg3: memref<128x32xbf16, #tpu.memory_space<vmem>>, %arg4: memref<1x32xf32, #tpu.memory_space<vmem>>, %arg5: memref<32x32xf32, #tpu.memory_space<vmem>>, %arg6: memref<32x32xf32, #tpu.memory_space<vmem>>) attributes {dimension_semantics = [#tpu.dimension_semantics<parallel>, #tpu.dimension_semantics<parallel>], iteration_bounds = array<i64: 1, 1>, scalar_prefetch = 0 : i64, scratch_operands = 0 : i64, tpu.core_type = #tpu.core_type<tc>, window_params = [{transform_indices = @transform_0, window_bounds = array<i64: 32, 128>}, {transform_indices = @transform_1, window_bounds = array<i64: 128, 32>}, {transform_indices = @transform_2, window_bounds = array<i64: 1, 32>}, {transform_indices = @transform_3, window_bounds = array<i64: 32, 32>}, {transform_indices = @transform_4, window_bounds = array<i64: 32, 32>}]} {
    %c0 = arith.constant 0 : index
    %c0_0 = arith.constant 0 : index
    %0 = vector.load %arg2[%c0, %c0_0] : memref<32x128xbf16, #tpu.memory_space<vmem>>, vector<32x128xbf16>
    %c0_1 = arith.constant 0 : index
    %c0_2 = arith.constant 0 : index
    %1 = vector.load %arg3[%c0_1, %c0_2] : memref<128x32xbf16, #tpu.memory_space<vmem>>, vector<128x32xbf16>
    %cst = arith.constant dense<0.000000e+00> : vector<32x32xf32>
    %2 = tpu.matmul %0, %1, %cst {dimension_numbers = #tpu.dot_dimension_numbers<[1], [0], [0], [1], [0, 0, 1, 1], [], []>} : vector<32x128xbf16>, vector<128x32xbf16>, vector<32x32xf32> -> vector<32x32xf32>
    %c0_3 = arith.constant 0 : index
    %c0_4 = arith.constant 0 : index
    %3 = vector.load %arg4[%c0_3, %c0_4] : memref<1x32xf32, #tpu.memory_space<vmem>>, vector<1x32xf32>
    %4 = vector.broadcast %3 : vector<1x32xf32> to vector<32x32xf32>
    %5 = arith.addf %2, %4 : vector<32x32xf32>
    %c0_5 = arith.constant 0 : index
    %c0_6 = arith.constant 0 : index
    %6 = vector.load %arg5[%c0_5, %c0_6] : memref<32x32xf32, #tpu.memory_space<vmem>>, vector<32x32xf32>
    %cst_7 = arith.constant 5.000000e-01 : f32
    %7 = vector.broadcast %cst_7 : f32 to vector<32x32xf32>
    %8 = arith.mulf %7, %5 : vector<32x32xf32>
    %9 = arith.addf %6, %8 : vector<32x32xf32>
    %c0_8 = arith.constant 0 : index
    %c0_9 = arith.constant 0 : index
    %10 = vector.load %arg6[%c0_8, %c0_9] : memref<32x32xf32, #tpu.memory_space<vmem>>, vector<32x32xf32>
    tpu.vector_store %arg6[%c0_8, %c0_9], %9 {strides = array<i32>} : memref<32x32xf32, #tpu.memory_space<vmem>>, vector<32x32xf32>,
    return
  }
  func.func @transform_0(%arg0: i32, %arg1: i32) -> (i32, i32) {
    %c0_i32 = arith.constant 0 : i32
    %c0_i32_0 = arith.constant 0 : i32
    return %arg0, %c0_i32 : i32, i32
  }
  func.func @transform_1(%arg0: i32, %arg1: i32) -> (i32, i32) {
    %c0_i32 = arith.constant 0 : i32
    %c0_i32_0 = arith.constant 0 : i32
    return %c0_i32, %arg1 : i32, i32
  }
  func.func @transform_2(%arg0: i32, %arg1: i32) -> (i32, i32) {
    %c0_i32 = arith.constant 0 : i32
    %c0_i32_0 = arith.constant 0 : i32
    return %c0_i32, %arg1 : i32, i32
  }
  func.func @transform_3(%arg0: i32, %arg1: i32) -> (i32, i32) {
    %c0_i32 = arith.constant 0 : i32
    return %arg0, %arg1 : i32, i32
  }
  func.func @transform_4(%arg0: i32, %arg1: i32) -> (i32, i32) {
    %c0_i32 = arith.constant 0 : i32
    return %arg0, %arg1 : i32, i32
  }
}

module attributes {stable_mosaic.version = 11 : i64} {
  func.func @_ln_linear_glu_kernel(%arg0: i32, %arg1: i32, %arg2: memref<32x32xf32, #tpu.memory_space<vmem>>, %arg3: memref<1x32xf32, #tpu.memory_space<vmem>>, %arg4: memref<1x32xf32, #tpu.memory_space<vmem>>, %arg5: memref<32x32xbf16, #tpu.memory_space<vmem>>, %arg6: memref<1x32xf32, #tpu.memory_space<vmem>>, %arg7: memref<32x32xbf16, #tpu.memory_space<vmem>>, %arg8: memref<1x32xf32, #tpu.memory_space<vmem>>, %arg9: memref<32x32xbf16, #tpu.memory_space<vmem>>) attributes {dimension_semantics = [#tpu.dimension_semantics<parallel>, #tpu.dimension_semantics<parallel>], iteration_bounds = array<i64: 1, 1>, scalar_prefetch = 0 : i64, scratch_operands = 0 : i64, tpu.core_type = #tpu.core_type<tc>, window_params = [{transform_indices = @transform_0, window_bounds = array<i64: 32, 32>}, {pipeline_mode = #tpu.pipeline_mode<synchronous>, transform_indices = @transform_1, window_bounds = array<i64: 1, 32>}, {pipeline_mode = #tpu.pipeline_mode<synchronous>, transform_indices = @transform_2, window_bounds = array<i64: 1, 32>}, {transform_indices = @transform_3, window_bounds = array<i64: 32, 32>}, {transform_indices = @transform_4, window_bounds = array<i64: 1, 32>}, {transform_indices = @transform_5, window_bounds = array<i64: 32, 32>}, {transform_indices = @transform_6, window_bounds = array<i64: 1, 32>}, {transform_indices = @transform_7, window_bounds = array<i64: 32, 32>}]} {
    %c0 = arith.constant 0 : index
    %c0_0 = arith.constant 0 : index
    %0 = vector.load %arg2[%c0, %c0_0] : memref<32x32xf32, #tpu.memory_space<vmem>>, vector<32x32xf32>
    %c0_1 = arith.constant 0 : index
    %c0_2 = arith.constant 0 : index
    %1 = vector.load %arg3[%c0_1, %c0_2] : memref<1x32xf32, #tpu.memory_space<vmem>>, vector<1x32xf32>
    %c0_3 = arith.constant 0 : index
    %c0_4 = arith.constant 0 : index
    %2 = vector.load %arg4[%c0_3, %c0_4] : memref<1x32xf32, #tpu.memory_space<vmem>>, vector<1x32xf32>
    %cst = arith.constant dense<0.000000e+00> : vector<32xf32>
    %3 = vector.multi_reduction <add>, %0, %cst [1] : vector<32x32xf32> to vector<32xf32>
    %4 = vector.shape_cast %3 : vector<32xf32> to vector<32x1xf32>
    %cst_5 = arith.constant 3.200000e+01 : f32
    %5 = vector.broadcast %cst_5 : f32 to vector<32x1xf32>
    %6 = arith.divf %4, %5 : vector<32x1xf32>
    %7 = vector.broadcast %6 : vector<32x1xf32> to vector<32x32xf32>
    %8 = arith.subf %0, %7 : vector<32x32xf32>
    %9 = arith.mulf %8, %8 : vector<32x32xf32>
    %cst_6 = arith.constant dense<0.000000e+00> : vector<32xf32>
    %10 = vector.multi_reduction <add>, %9, %cst_6 [1] : vector<32x32xf32> to vector<32xf32>
    %11 = vector.shape_cast %10 : vector<32xf32> to vector<32x1xf32>
    %cst_7 = arith.constant 3.200000e+01 : f32
    %12 = vector.broadcast %cst_7 : f32 to vector<32x1xf32>
    %13 = arith.divf %11, %12 : vector<32x1xf32>
    %14 = vector.broadcast %6 : vector<32x1xf32> to vector<32x32xf32>
    %15 = arith.subf %0, %14 : vector<32x32xf32>
    %cst_8 = arith.constant 9.99999974E-6 : f32
    %16 = vector.broadcast %cst_8 : f32 to vector<32x1xf32>
    %17 = arith.addf %13, %16 : vector<32x1xf32>
    %18 = math.rsqrt %17 : vector<32x1xf32>
    %19 = vector.broadcast %18 : vector<32x1xf32> to vector<32x32xf32>
    %20 = arith.mulf %15, %19 : vector<32x32xf32>
    %21 = vector.broadcast %1 : vector<1x32xf32> to vector<32x32xf32>
    %22 = arith.mulf %20, %21 : vector<32x32xf32>
    %23 = vector.broadcast %2 : vector<1x32xf32> to vector<32x32xf32>
    %24 = arith.addf %22, %23 : vector<32x32xf32>
    %c0_9 = arith.constant 0 : index
    %c0_10 = arith.constant 0 : index
    %25 = vector.load %arg5[%c0_9, %c0_10] : memref<32x32xbf16, #tpu.memory_space<vmem>>, vector<32x32xbf16>
    %26 = arith.truncf %24 : vector<32x32xf32> to vector<32x32xbf16>
    %cst_11 = arith.constant dense<0.000000e+00> : vector<32x32xf32>
    %27 = tpu.matmul %26, %25, %cst_11 {dimension_numbers = #tpu.dot_dimension_numbers<[1], [0], [0], [1], [0, 0, 1, 1], [], []>} : vector<32x32xbf16>, vector<32x32xbf16>, vector<32x32xf32> -> vector<32x32xf32>
    %c0_12 = arith.constant 0 : index
    %c0_13 = arith.constant 0 : index
    %28 = vector.load %arg6[%c0_12, %c0_13] : memref<1x32xf32, #tpu.memory_space<vmem>>, vector<1x32xf32>
    %29 = vector.broadcast %28 : vector<1x32xf32> to vector<32x32xf32>
    %30 = arith.addf %27, %29 : vector<32x32xf32>
    %c0_14 = arith.constant 0 : index
    %c0_15 = arith.constant 0 : index
    %31 = vector.load %arg7[%c0_14, %c0_15] : memref<32x32xbf16, #tpu.memory_space<vmem>>, vector<32x32xbf16>
    %32 = arith.truncf %24 : vector<32x32xf32> to vector<32x32xbf16>
    %cst_16 = arith.constant dense<0.000000e+00> : vector<32x32xf32>
    %33 = tpu.matmul %32, %31, %cst_16 {dimension_numbers = #tpu.dot_dimension_numbers<[1], [0], [0], [1], [0, 0, 1, 1], [], []>} : vector<32x32xbf16>, vector<32x32xbf16>, vector<32x32xf32> -> vector<32x32xf32>
    %c0_17 = arith.constant 0 : index
    %c0_18 = arith.constant 0 : index
    %34 = vector.load %arg8[%c0_17, %c0_18] : memref<1x32xf32, #tpu.memory_space<vmem>>, vector<1x32xf32>
    %35 = vector.broadcast %34 : vector<1x32xf32> to vector<32x32xf32>
    %36 = arith.addf %33, %35 : vector<32x32xf32>
    %37 = arith.negf %36 : vector<32x32xf32>
    %38 = math.exp %37 : vector<32x32xf32>
    %cst_19 = arith.constant 1.000000e+00 : f32
    %39 = vector.broadcast %cst_19 : f32 to vector<32x32xf32>
    %40 = arith.addf %39, %38 : vector<32x32xf32>
    %41 = arith.divf %39, %40 : vector<32x32xf32>
    %42 = arith.mulf %30, %41 : vector<32x32xf32>
    %43 = arith.truncf %42 : vector<32x32xf32> to vector<32x32xbf16>
    %c0_20 = arith.constant 0 : index
    %c0_21 = arith.constant 0 : index
    %44 = vector.load %arg9[%c0_20, %c0_21] : memref<32x32xbf16, #tpu.memory_space<vmem>>, vector<32x32xbf16>
    tpu.vector_store %arg9[%c0_20, %c0_21], %43 {strides = array<i32>} : memref<32x32xbf16, #tpu.memory_space<vmem>>, vector<32x32xbf16>,
    return
  }
  func.func @transform_0(%arg0: i32, %arg1: i32) -> (i32, i32) {
    %c0_i32 = arith.constant 0 : i32
    %c0_i32_0 = arith.constant 0 : i32
    return %arg0, %c0_i32 : i32, i32
  }
  func.func @transform_1(%arg0: i32, %arg1: i32) -> (i32, i32) {
    %c0_i32 = arith.constant 0 : i32
    %c0_i32_0 = arith.constant 0 : i32
    %c0_i32_1 = arith.constant 0 : i32
    return %c0_i32, %c0_i32_0 : i32, i32
  }
  func.func @transform_2(%arg0: i32, %arg1: i32) -> (i32, i32) {
    %c0_i32 = arith.constant 0 : i32
    %c0_i32_0 = arith.constant 0 : i32
    %c0_i32_1 = arith.constant 0 : i32
    return %c0_i32, %c0_i32_0 : i32, i32
  }
  func.func @transform_3(%arg0: i32, %arg1: i32) -> (i32, i32) {
    %c0_i32 = arith.constant 0 : i32
    %c0_i32_0 = arith.constant 0 : i32
    return %c0_i32, %arg1 : i32, i32
  }
  func.func @transform_4(%arg0: i32, %arg1: i32) -> (i32, i32) {
    %c0_i32 = arith.constant 0 : i32
    %c0_i32_0 = arith.constant 0 : i32
    return %c0_i32, %arg1 : i32, i32
  }
  func.func @transform_5(%arg0: i32, %arg1: i32) -> (i32, i32) {
    %c0_i32 = arith.constant 0 : i32
    %c0_i32_0 = arith.constant 0 : i32
    return %c0_i32, %arg1 : i32, i32
  }
  func.func @transform_6(%arg0: i32, %arg1: i32) -> (i32, i32) {
    %c0_i32 = arith.constant 0 : i32
    %c0_i32_0 = arith.constant 0 : i32
    return %c0_i32, %arg1 : i32, i32
  }
  func.func @transform_7(%arg0: i32, %arg1: i32) -> (i32, i32) {
    %c0_i32 = arith.constant 0 : i32
    return %arg0, %arg1 : i32, i32
  }
}

module attributes {stable_mosaic.version = 11 : i64} {
  func.func @_dwconv_bn_swish_kernel(%arg0: i32, %arg1: memref<1x16x32xbf16, #tpu.memory_space<vmem>>, %arg2: memref<7x32xf32, #tpu.memory_space<vmem>>, %arg3: memref<1x32xf32, #tpu.memory_space<vmem>>, %arg4: memref<1x32xf32, #tpu.memory_space<vmem>>, %arg5: memref<1x16x32xbf16, #tpu.memory_space<vmem>>) attributes {dimension_semantics = [#tpu.dimension_semantics<parallel>], iteration_bounds = array<i64: 2>, scalar_prefetch = 0 : i64, scratch_operands = 0 : i64, tpu.core_type = #tpu.core_type<tc>, window_params = [{transform_indices = @transform_0, window_bounds = array<i64: 1, 16, 32>}, {pipeline_mode = #tpu.pipeline_mode<synchronous>, transform_indices = @transform_1, window_bounds = array<i64: 7, 32>}, {pipeline_mode = #tpu.pipeline_mode<synchronous>, transform_indices = @transform_2, window_bounds = array<i64: 1, 32>}, {pipeline_mode = #tpu.pipeline_mode<synchronous>, transform_indices = @transform_3, window_bounds = array<i64: 1, 32>}, {transform_indices = @transform_4, window_bounds = array<i64: 1, 16, 32>}]} {
    %c0 = arith.constant 0 : index
    %c0_0 = arith.constant 0 : index
    %c0_1 = arith.constant 0 : index
    %0 = vector.load %arg1[%c0, %c0_0, %c0_1] : memref<1x16x32xbf16, #tpu.memory_space<vmem>>, vector<1x16x32xbf16>
    %1 = vector.shape_cast %0 : vector<1x16x32xbf16> to vector<16x32xbf16>
    %2 = arith.extf %1 : vector<16x32xbf16> to vector<16x32xf32>
    %3 = tpu.iota {dimensions = array<i32: 0>} : vector<16x32xi32>
    %cst = arith.constant 0.000000e+00 : f32
    %4 = vector.broadcast %cst : f32 to vector<16x32xf32>
    %c3_i32 = arith.constant 3 : i32
    %5 = tpu.dynamic_rotate %2 by %c3_i32 dim 0 : vector<16x32xf32>, i32 -> vector<16x32xf32>
    %c3_i32_2 = arith.constant 3 : i32
    %6 = vector.broadcast %c3_i32_2 : i32 to vector<16x32xi32>
    %7 = arith.cmpi sge, %3, %6 : vector<16x32xi32>
    %c19_i32 = arith.constant 19 : i32
    %8 = vector.broadcast %c19_i32 : i32 to vector<16x32xi32>
    %9 = arith.cmpi slt, %3, %8 : vector<16x32xi32>
    %10 = arith.andi %7, %9 : vector<16x32xi1>
    %cst_3 = arith.constant 0.000000e+00 : f32
    %11 = vector.broadcast %cst_3 : f32 to vector<16x32xf32>
    %12 = arith.select %10, %5, %11 : vector<16x32xi1>, vector<16x32xf32>
    %c0_4 = arith.constant 0 : index
    %c0_5 = arith.constant 0 : index
    %13 = vector.load %arg2[%c0_4, %c0_5] : memref<7x32xf32, #tpu.memory_space<vmem>>, vector<1x32xf32>
    %14 = vector.broadcast %13 : vector<1x32xf32> to vector<16x32xf32>
    %15 = arith.mulf %12, %14 : vector<16x32xf32>
    %16 = arith.addf %4, %15 : vector<16x32xf32>
    %c2_i32 = arith.constant 2 : i32
    %17 = tpu.dynamic_rotate %2 by %c2_i32 dim 0 : vector<16x32xf32>, i32 -> vector<16x32xf32>
    %c2_i32_6 = arith.constant 2 : i32
    %18 = vector.broadcast %c2_i32_6 : i32 to vector<16x32xi32>
    %19 = arith.cmpi sge, %3, %18 : vector<16x32xi32>
    %c18_i32 = arith.constant 18 : i32
    %20 = vector.broadcast %c18_i32 : i32 to vector<16x32xi32>
    %21 = arith.cmpi slt, %3, %20 : vector<16x32xi32>
    %22 = arith.andi %19, %21 : vector<16x32xi1>
    %cst_7 = arith.constant 0.000000e+00 : f32
    %23 = vector.broadcast %cst_7 : f32 to vector<16x32xf32>
    %24 = arith.select %22, %17, %23 : vector<16x32xi1>, vector<16x32xf32>
    %c1 = arith.constant 1 : index
    %c0_8 = arith.constant 0 : index
    %25 = vector.load %arg2[%c1, %c0_8] : memref<7x32xf32, #tpu.memory_space<vmem>>, vector<1x32xf32>
    %26 = vector.broadcast %25 : vector<1x32xf32> to vector<16x32xf32>
    %27 = arith.mulf %24, %26 : vector<16x32xf32>
    %28 = arith.addf %16, %27 : vector<16x32xf32>
    %c1_i32 = arith.constant 1 : i32
    %29 = tpu.dynamic_rotate %2 by %c1_i32 dim 0 : vector<16x32xf32>, i32 -> vector<16x32xf32>
    %c1_i32_9 = arith.constant 1 : i32
    %30 = vector.broadcast %c1_i32_9 : i32 to vector<16x32xi32>
    %31 = arith.cmpi sge, %3, %30 : vector<16x32xi32>
    %c17_i32 = arith.constant 17 : i32
    %32 = vector.broadcast %c17_i32 : i32 to vector<16x32xi32>
    %33 = arith.cmpi slt, %3, %32 : vector<16x32xi32>
    %34 = arith.andi %31, %33 : vector<16x32xi1>
    %cst_10 = arith.constant 0.000000e+00 : f32
    %35 = vector.broadcast %cst_10 : f32 to vector<16x32xf32>
    %36 = arith.select %34, %29, %35 : vector<16x32xi1>, vector<16x32xf32>
    %c2 = arith.constant 2 : index
    %c0_11 = arith.constant 0 : index
    %37 = vector.load %arg2[%c2, %c0_11] : memref<7x32xf32, #tpu.memory_space<vmem>>, vector<1x32xf32>
    %38 = vector.broadcast %37 : vector<1x32xf32> to vector<16x32xf32>
    %39 = arith.mulf %36, %38 : vector<16x32xf32>
    %40 = arith.addf %28, %39 : vector<16x32xf32>
    %c0_i32 = arith.constant 0 : i32
    %41 = vector.broadcast %c0_i32 : i32 to vector<16x32xi32>
    %42 = arith.cmpi sge, %3, %41 : vector<16x32xi32>
    %c16_i32 = arith.constant 16 : i32
    %43 = vector.broadcast %c16_i32 : i32 to vector<16x32xi32>
    %44 = arith.cmpi slt, %3, %43 : vector<16x32xi32>
    %45 = arith.andi %42, %44 : vector<16x32xi1>
    %cst_12 = arith.constant 0.000000e+00 : f32
    %46 = vector.broadcast %cst_12 : f32 to vector<16x32xf32>
    %47 = arith.select %45, %2, %46 : vector<16x32xi1>, vector<16x32xf32>
    %c3 = arith.constant 3 : index
    %c0_13 = arith.constant 0 : index
    %48 = vector.load %arg2[%c3, %c0_13] : memref<7x32xf32, #tpu.memory_space<vmem>>, vector<1x32xf32>
    %49 = vector.broadcast %48 : vector<1x32xf32> to vector<16x32xf32>
    %50 = arith.mulf %47, %49 : vector<16x32xf32>
    %51 = arith.addf %40, %50 : vector<16x32xf32>
    %c15_i32 = arith.constant 15 : i32
    %52 = tpu.dynamic_rotate %2 by %c15_i32 dim 0 : vector<16x32xf32>, i32 -> vector<16x32xf32>
    %c-1_i32 = arith.constant -1 : i32
    %53 = vector.broadcast %c-1_i32 : i32 to vector<16x32xi32>
    %54 = arith.cmpi sge, %3, %53 : vector<16x32xi32>
    %c15_i32_14 = arith.constant 15 : i32
    %55 = vector.broadcast %c15_i32_14 : i32 to vector<16x32xi32>
    %56 = arith.cmpi slt, %3, %55 : vector<16x32xi32>
    %57 = arith.andi %54, %56 : vector<16x32xi1>
    %cst_15 = arith.constant 0.000000e+00 : f32
    %58 = vector.broadcast %cst_15 : f32 to vector<16x32xf32>
    %59 = arith.select %57, %52, %58 : vector<16x32xi1>, vector<16x32xf32>
    %c4 = arith.constant 4 : index
    %c0_16 = arith.constant 0 : index
    %60 = vector.load %arg2[%c4, %c0_16] : memref<7x32xf32, #tpu.memory_space<vmem>>, vector<1x32xf32>
    %61 = vector.broadcast %60 : vector<1x32xf32> to vector<16x32xf32>
    %62 = arith.mulf %59, %61 : vector<16x32xf32>
    %63 = arith.addf %51, %62 : vector<16x32xf32>
    %c14_i32 = arith.constant 14 : i32
    %64 = tpu.dynamic_rotate %2 by %c14_i32 dim 0 : vector<16x32xf32>, i32 -> vector<16x32xf32>
    %c-2_i32 = arith.constant -2 : i32
    %65 = vector.broadcast %c-2_i32 : i32 to vector<16x32xi32>
    %66 = arith.cmpi sge, %3, %65 : vector<16x32xi32>
    %c14_i32_17 = arith.constant 14 : i32
    %67 = vector.broadcast %c14_i32_17 : i32 to vector<16x32xi32>
    %68 = arith.cmpi slt, %3, %67 : vector<16x32xi32>
    %69 = arith.andi %66, %68 : vector<16x32xi1>
    %cst_18 = arith.constant 0.000000e+00 : f32
    %70 = vector.broadcast %cst_18 : f32 to vector<16x32xf32>
    %71 = arith.select %69, %64, %70 : vector<16x32xi1>, vector<16x32xf32>
    %c5 = arith.constant 5 : index
    %c0_19 = arith.constant 0 : index
    %72 = vector.load %arg2[%c5, %c0_19] : memref<7x32xf32, #tpu.memory_space<vmem>>, vector<1x32xf32>
    %73 = vector.broadcast %72 : vector<1x32xf32> to vector<16x32xf32>
    %74 = arith.mulf %71, %73 : vector<16x32xf32>
    %75 = arith.addf %63, %74 : vector<16x32xf32>
    %c13_i32 = arith.constant 13 : i32
    %76 = tpu.dynamic_rotate %2 by %c13_i32 dim 0 : vector<16x32xf32>, i32 -> vector<16x32xf32>
    %c-3_i32 = arith.constant -3 : i32
    %77 = vector.broadcast %c-3_i32 : i32 to vector<16x32xi32>
    %78 = arith.cmpi sge, %3, %77 : vector<16x32xi32>
    %c13_i32_20 = arith.constant 13 : i32
    %79 = vector.broadcast %c13_i32_20 : i32 to vector<16x32xi32>
    %80 = arith.cmpi slt, %3, %79 : vector<16x32xi32>
    %81 = arith.andi %78, %80 : vector<16x32xi1>
    %cst_21 = arith.constant 0.000000e+00 : f32
    %82 = vector.broadcast %cst_21 : f32 to vector<16x32xf32>
    %83 = arith.select %81, %76, %82 : vector<16x32xi1>, vector<16x32xf32>
    %c6 = arith.constant 6 : index
    %c0_22 = arith.constant 0 : index
    %84 = vector.load %arg2[%c6, %c0_22] : memref<7x32xf32, #tpu.memory_space<vmem>>, vector<1x32xf32>
    %85 = vector.broadcast %84 : vector<1x32xf32> to vector<16x32xf32>
    %86 = arith.mulf %83, %85 : vector<16x32xf32>
    %87 = arith.addf %75, %86 : vector<16x32xf32>
    %c0_23 = arith.constant 0 : index
    %c0_24 = arith.constant 0 : index
    %88 = vector.load %arg3[%c0_23, %c0_24] : memref<1x32xf32, #tpu.memory_space<vmem>>, vector<1x32xf32>
    %89 = vector.broadcast %88 : vector<1x32xf32> to vector<16x32xf32>
    %90 = arith.mulf %87, %89 : vector<16x32xf32>
    %c0_25 = arith.constant 0 : index
    %c0_26 = arith.constant 0 : index
    %91 = vector.load %arg4[%c0_25, %c0_26] : memref<1x32xf32, #tpu.memory_space<vmem>>, vector<1x32xf32>
    %92 = vector.broadcast %91 : vector<1x32xf32> to vector<16x32xf32>
    %93 = arith.addf %90, %92 : vector<16x32xf32>
    %94 = arith.negf %93 : vector<16x32xf32>
    %95 = math.exp %94 : vector<16x32xf32>
    %cst_27 = arith.constant 1.000000e+00 : f32
    %96 = vector.broadcast %cst_27 : f32 to vector<16x32xf32>
    %97 = arith.addf %96, %95 : vector<16x32xf32>
    %98 = arith.divf %96, %97 : vector<16x32xf32>
    %99 = arith.mulf %93, %98 : vector<16x32xf32>
    %100 = arith.truncf %99 : vector<16x32xf32> to vector<16x32xbf16>
    %c0_28 = arith.constant 0 : index
    %c0_29 = arith.constant 0 : index
    %c0_30 = arith.constant 0 : index
    %101 = vector.load %arg5[%c0_28, %c0_29, %c0_30] : memref<1x16x32xbf16, #tpu.memory_space<vmem>>, vector<1x16x32xbf16>
    %102 = vector.shape_cast %101 : vector<1x16x32xbf16> to vector<16x32xbf16>
    %103 = vector.shape_cast %100 : vector<16x32xbf16> to vector<1x16x32xbf16>
    tpu.vector_store %arg5[%c0_28, %c0_29, %c0_30], %103 {strides = array<i32>} : memref<1x16x32xbf16, #tpu.memory_space<vmem>>, vector<1x16x32xbf16>,
    return
  }
  func.func @transform_0(%arg0: i32) -> (i32, i32, i32) {
    %c0_i32 = arith.constant 0 : i32
    %c0_i32_0 = arith.constant 0 : i32
    %c0_i32_1 = arith.constant 0 : i32
    return %arg0, %c0_i32, %c0_i32_0 : i32, i32, i32
  }
  func.func @transform_1(%arg0: i32) -> (i32, i32) {
    %c0_i32 = arith.constant 0 : i32
    %c0_i32_0 = arith.constant 0 : i32
    %c0_i32_1 = arith.constant 0 : i32
    return %c0_i32, %c0_i32_0 : i32, i32
  }
  func.func @transform_2(%arg0: i32) -> (i32, i32) {
    %c0_i32 = arith.constant 0 : i32
    %c0_i32_0 = arith.constant 0 : i32
    %c0_i32_1 = arith.constant 0 : i32
    return %c0_i32, %c0_i32_0 : i32, i32
  }
  func.func @transform_3(%arg0: i32) -> (i32, i32) {
    %c0_i32 = arith.constant 0 : i32
    %c0_i32_0 = arith.constant 0 : i32
    %c0_i32_1 = arith.constant 0 : i32
    return %c0_i32, %c0_i32_0 : i32, i32
  }
  func.func @transform_4(%arg0: i32) -> (i32, i32, i32) {
    %c0_i32 = arith.constant 0 : i32
    %c0_i32_0 = arith.constant 0 : i32
    %c0_i32_1 = arith.constant 0 : i32
    return %arg0, %c0_i32, %c0_i32_0 : i32, i32, i32
  }
}

module attributes {stable_mosaic.version = 11 : i64} {
  func.func @_linear_add_ln_kernel(%arg0: i32, %arg1: memref<32x128xbf16, #tpu.memory_space<vmem>>, %arg2: memref<128x32xbf16, #tpu.memory_space<vmem>>, %arg3: memref<1x32xf32, #tpu.memory_space<vmem>>, %arg4: memref<32x32xf32, #tpu.memory_space<vmem>>, %arg5: memref<1x32xf32, #tpu.memory_space<vmem>>, %arg6: memref<1x32xf32, #tpu.memory_space<vmem>>, %arg7: memref<32x32xf32, #tpu.memory_space<vmem>>) attributes {dimension_semantics = [#tpu.dimension_semantics<parallel>], iteration_bounds = array<i64: 1>, scalar_prefetch = 0 : i64, scratch_operands = 0 : i64, tpu.core_type = #tpu.core_type<tc>, window_params = [{transform_indices = @transform_0, window_bounds = array<i64: 32, 128>}, {pipeline_mode = #tpu.pipeline_mode<synchronous>, transform_indices = @transform_1, window_bounds = array<i64: 128, 32>}, {pipeline_mode = #tpu.pipeline_mode<synchronous>, transform_indices = @transform_2, window_bounds = array<i64: 1, 32>}, {transform_indices = @transform_3, window_bounds = array<i64: 32, 32>}, {pipeline_mode = #tpu.pipeline_mode<synchronous>, transform_indices = @transform_4, window_bounds = array<i64: 1, 32>}, {pipeline_mode = #tpu.pipeline_mode<synchronous>, transform_indices = @transform_5, window_bounds = array<i64: 1, 32>}, {transform_indices = @transform_6, window_bounds = array<i64: 32, 32>}]} {
    %c0 = arith.constant 0 : index
    %c0_0 = arith.constant 0 : index
    %0 = vector.load %arg1[%c0, %c0_0] : memref<32x128xbf16, #tpu.memory_space<vmem>>, vector<32x128xbf16>
    %c0_1 = arith.constant 0 : index
    %c0_2 = arith.constant 0 : index
    %1 = vector.load %arg2[%c0_1, %c0_2] : memref<128x32xbf16, #tpu.memory_space<vmem>>, vector<128x32xbf16>
    %cst = arith.constant dense<0.000000e+00> : vector<32x32xf32>
    %2 = tpu.matmul %0, %1, %cst {dimension_numbers = #tpu.dot_dimension_numbers<[1], [0], [0], [1], [0, 0, 1, 1], [], []>} : vector<32x128xbf16>, vector<128x32xbf16>, vector<32x32xf32> -> vector<32x32xf32>
    %c0_3 = arith.constant 0 : index
    %c0_4 = arith.constant 0 : index
    %3 = vector.load %arg3[%c0_3, %c0_4] : memref<1x32xf32, #tpu.memory_space<vmem>>, vector<1x32xf32>
    %4 = vector.broadcast %3 : vector<1x32xf32> to vector<32x32xf32>
    %5 = arith.addf %2, %4 : vector<32x32xf32>
    %c0_5 = arith.constant 0 : index
    %c0_6 = arith.constant 0 : index
    %6 = vector.load %arg4[%c0_5, %c0_6] : memref<32x32xf32, #tpu.memory_space<vmem>>, vector<32x32xf32>
    %cst_7 = arith.constant 5.000000e-01 : f32
    %7 = vector.broadcast %cst_7 : f32 to vector<32x32xf32>
    %8 = arith.mulf %7, %5 : vector<32x32xf32>
    %9 = arith.addf %6, %8 : vector<32x32xf32>
    %c0_8 = arith.constant 0 : index
    %c0_9 = arith.constant 0 : index
    %10 = vector.load %arg5[%c0_8, %c0_9] : memref<1x32xf32, #tpu.memory_space<vmem>>, vector<1x32xf32>
    %c0_10 = arith.constant 0 : index
    %c0_11 = arith.constant 0 : index
    %11 = vector.load %arg6[%c0_10, %c0_11] : memref<1x32xf32, #tpu.memory_space<vmem>>, vector<1x32xf32>
    %cst_12 = arith.constant dense<0.000000e+00> : vector<32xf32>
    %12 = vector.multi_reduction <add>, %9, %cst_12 [1] : vector<32x32xf32> to vector<32xf32>
    %13 = vector.shape_cast %12 : vector<32xf32> to vector<32x1xf32>
    %cst_13 = arith.constant 3.200000e+01 : f32
    %14 = vector.broadcast %cst_13 : f32 to vector<32x1xf32>
    %15 = arith.divf %13, %14 : vector<32x1xf32>
    %16 = vector.broadcast %15 : vector<32x1xf32> to vector<32x32xf32>
    %17 = arith.subf %9, %16 : vector<32x32xf32>
    %18 = arith.mulf %17, %17 : vector<32x32xf32>
    %cst_14 = arith.constant dense<0.000000e+00> : vector<32xf32>
    %19 = vector.multi_reduction <add>, %18, %cst_14 [1] : vector<32x32xf32> to vector<32xf32>
    %20 = vector.shape_cast %19 : vector<32xf32> to vector<32x1xf32>
    %cst_15 = arith.constant 3.200000e+01 : f32
    %21 = vector.broadcast %cst_15 : f32 to vector<32x1xf32>
    %22 = arith.divf %20, %21 : vector<32x1xf32>
    %23 = vector.broadcast %15 : vector<32x1xf32> to vector<32x32xf32>
    %24 = arith.subf %9, %23 : vector<32x32xf32>
    %cst_16 = arith.constant 9.99999974E-6 : f32
    %25 = vector.broadcast %cst_16 : f32 to vector<32x1xf32>
    %26 = arith.addf %22, %25 : vector<32x1xf32>
    %27 = math.rsqrt %26 : vector<32x1xf32>
    %28 = vector.broadcast %27 : vector<32x1xf32> to vector<32x32xf32>
    %29 = arith.mulf %24, %28 : vector<32x32xf32>
    %30 = vector.broadcast %10 : vector<1x32xf32> to vector<32x32xf32>
    %31 = arith.mulf %29, %30 : vector<32x32xf32>
    %32 = vector.broadcast %11 : vector<1x32xf32> to vector<32x32xf32>
    %33 = arith.addf %31, %32 : vector<32x32xf32>
    %c0_17 = arith.constant 0 : index
    %c0_18 = arith.constant 0 : index
    %34 = vector.load %arg7[%c0_17, %c0_18] : memref<32x32xf32, #tpu.memory_space<vmem>>, vector<32x32xf32>
    tpu.vector_store %arg7[%c0_17, %c0_18], %33 {strides = array<i32>} : memref<32x32xf32, #tpu.memory_space<vmem>>, vector<32x32xf32>,
    return
  }
  func.func @transform_0(%arg0: i32) -> (i32, i32) {
    %c0_i32 = arith.constant 0 : i32
    %c0_i32_0 = arith.constant 0 : i32
    return %arg0, %c0_i32 : i32, i32
  }
  func.func @transform_1(%arg0: i32) -> (i32, i32) {
    %c0_i32 = arith.constant 0 : i32
    %c0_i32_0 = arith.constant 0 : i32
    %c0_i32_1 = arith.constant 0 : i32
    return %c0_i32, %c0_i32_0 : i32, i32
  }
  func.func @transform_2(%arg0: i32) -> (i32, i32) {
    %c0_i32 = arith.constant 0 : i32
    %c0_i32_0 = arith.constant 0 : i32
    %c0_i32_1 = arith.constant 0 : i32
    return %c0_i32, %c0_i32_0 : i32, i32
  }
  func.func @transform_3(%arg0: i32) -> (i32, i32) {
    %c0_i32 = arith.constant 0 : i32
    %c0_i32_0 = arith.constant 0 : i32
    return %arg0, %c0_i32 : i32, i32
  }
  func.func @transform_4(%arg0: i32) -> (i32, i32) {
    %c0_i32 = arith.constant 0 : i32
    %c0_i32_0 = arith.constant 0 : i32
    %c0_i32_1 = arith.constant 0 : i32
    return %c0_i32, %c0_i32_0 : i32, i32
  }
  func.func @transform_5(%arg0: i32) -> (i32, i32) {
    %c0_i32 = arith.constant 0 : i32
    %c0_i32_0 = arith.constant 0 : i32
    %c0_i32_1 = arith.constant 0 : i32
    return %c0_i32, %c0_i32_0 : i32, i32
  }
  func.func @transform_6(%arg0: i32) -> (i32, i32) {
    %c0_i32 = arith.constant 0 : i32
    %c0_i32_0 = arith.constant 0 : i32
    return %arg0, %c0_i32 : i32, i32
  }
}

module attributes {stable_mosaic.version = 11 : i64} {
  func.func @_linear_kernel(%arg0: i32, %arg1: i32, %arg2: memref<32x32xf32, #tpu.memory_space<vmem>>, %arg3: memref<32x64xbf16, #tpu.memory_space<vmem>>, %arg4: memref<1x64xf32, #tpu.memory_space<vmem>>, %arg5: memref<32x64xf32, #tpu.memory_space<vmem>>) attributes {dimension_semantics = [#tpu.dimension_semantics<parallel>, #tpu.dimension_semantics<parallel>], iteration_bounds = array<i64: 1, 1>, scalar_prefetch = 0 : i64, scratch_operands = 0 : i64, tpu.core_type = #tpu.core_type<tc>, window_params = [{transform_indices = @transform_0, window_bounds = array<i64: 32, 32>}, {transform_indices = @transform_1, window_bounds = array<i64: 32, 64>}, {transform_indices = @transform_2, window_bounds = array<i64: 1, 64>}, {transform_indices = @transform_3, window_bounds = array<i64: 32, 64>}]} {
    %c0 = arith.constant 0 : index
    %c0_0 = arith.constant 0 : index
    %0 = vector.load %arg2[%c0, %c0_0] : memref<32x32xf32, #tpu.memory_space<vmem>>, vector<32x32xf32>
    %c0_1 = arith.constant 0 : index
    %c0_2 = arith.constant 0 : index
    %1 = vector.load %arg3[%c0_1, %c0_2] : memref<32x64xbf16, #tpu.memory_space<vmem>>, vector<32x64xbf16>
    %2 = arith.truncf %0 : vector<32x32xf32> to vector<32x32xbf16>
    %cst = arith.constant dense<0.000000e+00> : vector<32x64xf32>
    %3 = tpu.matmul %2, %1, %cst {dimension_numbers = #tpu.dot_dimension_numbers<[1], [0], [0], [1], [0, 0, 1, 1], [], []>} : vector<32x32xbf16>, vector<32x64xbf16>, vector<32x64xf32> -> vector<32x64xf32>
    %c0_3 = arith.constant 0 : index
    %c0_4 = arith.constant 0 : index
    %4 = vector.load %arg4[%c0_3, %c0_4] : memref<1x64xf32, #tpu.memory_space<vmem>>, vector<1x64xf32>
    %5 = vector.broadcast %4 : vector<1x64xf32> to vector<32x64xf32>
    %6 = arith.addf %3, %5 : vector<32x64xf32>
    %c0_5 = arith.constant 0 : index
    %c0_6 = arith.constant 0 : index
    %7 = vector.load %arg5[%c0_5, %c0_6] : memref<32x64xf32, #tpu.memory_space<vmem>>, vector<32x64xf32>
    tpu.vector_store %arg5[%c0_5, %c0_6], %6 {strides = array<i32>} : memref<32x64xf32, #tpu.memory_space<vmem>>, vector<32x64xf32>,
    return
  }
  func.func @transform_0(%arg0: i32, %arg1: i32) -> (i32, i32) {
    %c0_i32 = arith.constant 0 : i32
    %c0_i32_0 = arith.constant 0 : i32
    return %arg1, %c0_i32 : i32, i32
  }
  func.func @transform_1(%arg0: i32, %arg1: i32) -> (i32, i32) {
    %c0_i32 = arith.constant 0 : i32
    %c0_i32_0 = arith.constant 0 : i32
    return %c0_i32, %arg0 : i32, i32
  }
  func.func @transform_2(%arg0: i32, %arg1: i32) -> (i32, i32) {
    %c0_i32 = arith.constant 0 : i32
    %c0_i32_0 = arith.constant 0 : i32
    return %c0_i32, %arg0 : i32, i32
  }
  func.func @transform_3(%arg0: i32, %arg1: i32) -> (i32, i32) {
    %c0_i32 = arith.constant 0 : i32
    return %arg1, %arg0 : i32, i32
  }
}

module attributes {stable_mosaic.version = 11 : i64} {
  func.func @_linear_kernel(%arg0: i32, %arg1: i32, %arg2: memref<32x64xf32, #tpu.memory_space<vmem>>, %arg3: memref<64x192xbf16, #tpu.memory_space<vmem>>, %arg4: memref<1x192xf32, #tpu.memory_space<vmem>>, %arg5: memref<32x192xbf16, #tpu.memory_space<vmem>>) attributes {dimension_semantics = [#tpu.dimension_semantics<parallel>, #tpu.dimension_semantics<parallel>], iteration_bounds = array<i64: 1, 1>, scalar_prefetch = 0 : i64, scratch_operands = 0 : i64, tpu.core_type = #tpu.core_type<tc>, window_params = [{transform_indices = @transform_0, window_bounds = array<i64: 32, 64>}, {transform_indices = @transform_1, window_bounds = array<i64: 64, 192>}, {transform_indices = @transform_2, window_bounds = array<i64: 1, 192>}, {transform_indices = @transform_3, window_bounds = array<i64: 32, 192>}]} {
    %c0 = arith.constant 0 : index
    %c0_0 = arith.constant 0 : index
    %0 = vector.load %arg2[%c0, %c0_0] : memref<32x64xf32, #tpu.memory_space<vmem>>, vector<32x64xf32>
    %c0_1 = arith.constant 0 : index
    %c0_2 = arith.constant 0 : index
    %1 = vector.load %arg3[%c0_1, %c0_2] : memref<64x192xbf16, #tpu.memory_space<vmem>>, vector<64x192xbf16>
    %2 = arith.truncf %0 : vector<32x64xf32> to vector<32x64xbf16>
    %cst = arith.constant dense<0.000000e+00> : vector<32x192xf32>
    %3 = tpu.matmul %2, %1, %cst {dimension_numbers = #tpu.dot_dimension_numbers<[1], [0], [0], [1], [0, 0, 1, 1], [], []>} : vector<32x64xbf16>, vector<64x192xbf16>, vector<32x192xf32> -> vector<32x192xf32>
    %c0_3 = arith.constant 0 : index
    %c0_4 = arith.constant 0 : index
    %4 = vector.load %arg4[%c0_3, %c0_4] : memref<1x192xf32, #tpu.memory_space<vmem>>, vector<1x192xf32>
    %5 = vector.broadcast %4 : vector<1x192xf32> to vector<32x192xf32>
    %6 = arith.addf %3, %5 : vector<32x192xf32>
    %7 = arith.truncf %6 : vector<32x192xf32> to vector<32x192xbf16>
    %c0_5 = arith.constant 0 : index
    %c0_6 = arith.constant 0 : index
    %8 = vector.load %arg5[%c0_5, %c0_6] : memref<32x192xbf16, #tpu.memory_space<vmem>>, vector<32x192xbf16>
    tpu.vector_store %arg5[%c0_5, %c0_6], %7 {strides = array<i32>} : memref<32x192xbf16, #tpu.memory_space<vmem>>, vector<32x192xbf16>,
    return
  }
  func.func @transform_0(%arg0: i32, %arg1: i32) -> (i32, i32) {
    %c0_i32 = arith.constant 0 : i32
    %c0_i32_0 = arith.constant 0 : i32
    return %arg1, %c0_i32 : i32, i32
  }
  func.func @transform_1(%arg0: i32, %arg1: i32) -> (i32, i32) {
    %c0_i32 = arith.constant 0 : i32
    %c0_i32_0 = arith.constant 0 : i32
    return %c0_i32, %arg0 : i32, i32
  }
  func.func @transform_2(%arg0: i32, %arg1: i32) -> (i32, i32) {
    %c0_i32 = arith.constant 0 : i32
    %c0_i32_0 = arith.constant 0 : i32
    return %c0_i32, %arg0 : i32, i32
  }
  func.func @transform_3(%arg0: i32, %arg1: i32) -> (i32, i32) {
    %c0_i32 = arith.constant 0 : i32
    return %arg1, %arg0 : i32, i32
  }
}

module attributes {stable_mosaic.version = 11 : i64} {
  func.func @_linear_add_ln_kernel(%arg0: i32, %arg1: memref<32x64xbf16, #tpu.memory_space<vmem>>, %arg2: memref<64x64xbf16, #tpu.memory_space<vmem>>, %arg3: memref<1x64xf32, #tpu.memory_space<vmem>>, %arg4: memref<32x64xf32, #tpu.memory_space<vmem>>, %arg5: memref<1x64xf32, #tpu.memory_space<vmem>>, %arg6: memref<1x64xf32, #tpu.memory_space<vmem>>, %arg7: memref<32x64xf32, #tpu.memory_space<vmem>>) attributes {dimension_semantics = [#tpu.dimension_semantics<parallel>], iteration_bounds = array<i64: 1>, scalar_prefetch = 0 : i64, scratch_operands = 0 : i64, tpu.core_type = #tpu.core_type<tc>, window_params = [{transform_indices = @transform_0, window_bounds = array<i64: 32, 64>}, {pipeline_mode = #tpu.pipeline_mode<synchronous>, transform_indices = @transform_1, window_bounds = array<i64: 64, 64>}, {pipeline_mode = #tpu.pipeline_mode<synchronous>, transform_indices = @transform_2, window_bounds = array<i64: 1, 64>}, {transform_indices = @transform_3, window_bounds = array<i64: 32, 64>}, {pipeline_mode = #tpu.pipeline_mode<synchronous>, transform_indices = @transform_4, window_bounds = array<i64: 1, 64>}, {pipeline_mode = #tpu.pipeline_mode<synchronous>, transform_indices = @transform_5, window_bounds = array<i64: 1, 64>}, {transform_indices = @transform_6, window_bounds = array<i64: 32, 64>}]} {
    %c0 = arith.constant 0 : index
    %c0_0 = arith.constant 0 : index
    %0 = vector.load %arg1[%c0, %c0_0] : memref<32x64xbf16, #tpu.memory_space<vmem>>, vector<32x64xbf16>
    %c0_1 = arith.constant 0 : index
    %c0_2 = arith.constant 0 : index
    %1 = vector.load %arg2[%c0_1, %c0_2] : memref<64x64xbf16, #tpu.memory_space<vmem>>, vector<64x64xbf16>
    %cst = arith.constant dense<0.000000e+00> : vector<32x64xf32>
    %2 = tpu.matmul %0, %1, %cst {dimension_numbers = #tpu.dot_dimension_numbers<[1], [0], [0], [1], [0, 0, 1, 1], [], []>} : vector<32x64xbf16>, vector<64x64xbf16>, vector<32x64xf32> -> vector<32x64xf32>
    %c0_3 = arith.constant 0 : index
    %c0_4 = arith.constant 0 : index
    %3 = vector.load %arg3[%c0_3, %c0_4] : memref<1x64xf32, #tpu.memory_space<vmem>>, vector<1x64xf32>
    %4 = vector.broadcast %3 : vector<1x64xf32> to vector<32x64xf32>
    %5 = arith.addf %2, %4 : vector<32x64xf32>
    %c0_5 = arith.constant 0 : index
    %c0_6 = arith.constant 0 : index
    %6 = vector.load %arg4[%c0_5, %c0_6] : memref<32x64xf32, #tpu.memory_space<vmem>>, vector<32x64xf32>
    %cst_7 = arith.constant 1.000000e+00 : f32
    %7 = vector.broadcast %cst_7 : f32 to vector<32x64xf32>
    %8 = arith.mulf %7, %5 : vector<32x64xf32>
    %9 = arith.addf %6, %8 : vector<32x64xf32>
    %c0_8 = arith.constant 0 : index
    %c0_9 = arith.constant 0 : index
    %10 = vector.load %arg5[%c0_8, %c0_9] : memref<1x64xf32, #tpu.memory_space<vmem>>, vector<1x64xf32>
    %c0_10 = arith.constant 0 : index
    %c0_11 = arith.constant 0 : index
    %11 = vector.load %arg6[%c0_10, %c0_11] : memref<1x64xf32, #tpu.memory_space<vmem>>, vector<1x64xf32>
    %cst_12 = arith.constant dense<0.000000e+00> : vector<32xf32>
    %12 = vector.multi_reduction <add>, %9, %cst_12 [1] : vector<32x64xf32> to vector<32xf32>
    %13 = vector.shape_cast %12 : vector<32xf32> to vector<32x1xf32>
    %cst_13 = arith.constant 6.400000e+01 : f32
    %14 = vector.broadcast %cst_13 : f32 to vector<32x1xf32>
    %15 = arith.divf %13, %14 : vector<32x1xf32>
    %16 = vector.broadcast %15 : vector<32x1xf32> to vector<32x64xf32>
    %17 = arith.subf %9, %16 : vector<32x64xf32>
    %18 = arith.mulf %17, %17 : vector<32x64xf32>
    %cst_14 = arith.constant dense<0.000000e+00> : vector<32xf32>
    %19 = vector.multi_reduction <add>, %18, %cst_14 [1] : vector<32x64xf32> to vector<32xf32>
    %20 = vector.shape_cast %19 : vector<32xf32> to vector<32x1xf32>
    %cst_15 = arith.constant 6.400000e+01 : f32
    %21 = vector.broadcast %cst_15 : f32 to vector<32x1xf32>
    %22 = arith.divf %20, %21 : vector<32x1xf32>
    %23 = vector.broadcast %15 : vector<32x1xf32> to vector<32x64xf32>
    %24 = arith.subf %9, %23 : vector<32x64xf32>
    %cst_16 = arith.constant 9.99999974E-6 : f32
    %25 = vector.broadcast %cst_16 : f32 to vector<32x1xf32>
    %26 = arith.addf %22, %25 : vector<32x1xf32>
    %27 = math.rsqrt %26 : vector<32x1xf32>
    %28 = vector.broadcast %27 : vector<32x1xf32> to vector<32x64xf32>
    %29 = arith.mulf %24, %28 : vector<32x64xf32>
    %30 = vector.broadcast %10 : vector<1x64xf32> to vector<32x64xf32>
    %31 = arith.mulf %29, %30 : vector<32x64xf32>
    %32 = vector.broadcast %11 : vector<1x64xf32> to vector<32x64xf32>
    %33 = arith.addf %31, %32 : vector<32x64xf32>
    %c0_17 = arith.constant 0 : index
    %c0_18 = arith.constant 0 : index
    %34 = vector.load %arg7[%c0_17, %c0_18] : memref<32x64xf32, #tpu.memory_space<vmem>>, vector<32x64xf32>
    tpu.vector_store %arg7[%c0_17, %c0_18], %33 {strides = array<i32>} : memref<32x64xf32, #tpu.memory_space<vmem>>, vector<32x64xf32>,
    return
  }
  func.func @transform_0(%arg0: i32) -> (i32, i32) {
    %c0_i32 = arith.constant 0 : i32
    %c0_i32_0 = arith.constant 0 : i32
    return %arg0, %c0_i32 : i32, i32
  }
  func.func @transform_1(%arg0: i32) -> (i32, i32) {
    %c0_i32 = arith.constant 0 : i32
    %c0_i32_0 = arith.constant 0 : i32
    %c0_i32_1 = arith.constant 0 : i32
    return %c0_i32, %c0_i32_0 : i32, i32
  }
  func.func @transform_2(%arg0: i32) -> (i32, i32) {
    %c0_i32 = arith.constant 0 : i32
    %c0_i32_0 = arith.constant 0 : i32
    %c0_i32_1 = arith.constant 0 : i32
    return %c0_i32, %c0_i32_0 : i32, i32
  }
  func.func @transform_3(%arg0: i32) -> (i32, i32) {
    %c0_i32 = arith.constant 0 : i32
    %c0_i32_0 = arith.constant 0 : i32
    return %arg0, %c0_i32 : i32, i32
  }
  func.func @transform_4(%arg0: i32) -> (i32, i32) {
    %c0_i32 = arith.constant 0 : i32
    %c0_i32_0 = arith.constant 0 : i32
    %c0_i32_1 = arith.constant 0 : i32
    return %c0_i32, %c0_i32_0 : i32, i32
  }
  func.func @transform_5(%arg0: i32) -> (i32, i32) {
    %c0_i32 = arith.constant 0 : i32
    %c0_i32_0 = arith.constant 0 : i32
    %c0_i32_1 = arith.constant 0 : i32
    return %c0_i32, %c0_i32_0 : i32, i32
  }
  func.func @transform_6(%arg0: i32) -> (i32, i32) {
    %c0_i32 = arith.constant 0 : i32
    %c0_i32_0 = arith.constant 0 : i32
    return %arg0, %c0_i32 : i32, i32
  }
}

module attributes {stable_mosaic.version = 11 : i64} {
  func.func @_mha_kernel(%arg0: i32, %arg1: memref<1x16x192xbf16, #tpu.memory_space<vmem>>, %arg2: memref<1x16x64xbf16, #tpu.memory_space<vmem>>) attributes {dimension_semantics = [#tpu.dimension_semantics<parallel>], iteration_bounds = array<i64: 2>, scalar_prefetch = 0 : i64, scratch_operands = 0 : i64, tpu.core_type = #tpu.core_type<tc>, window_params = [{transform_indices = @transform_0, window_bounds = array<i64: 1, 16, 192>}, {transform_indices = @transform_1, window_bounds = array<i64: 1, 16, 64>}]} {
    %c0 = arith.constant 0 : index
    %c0_0 = arith.constant 0 : index
    %c0_1 = arith.constant 0 : index
    %0 = vector.load %arg1[%c0, %c0_0, %c0_1] : memref<1x16x192xbf16, #tpu.memory_space<vmem>>, vector<1x16x8xbf16>
    %1 = vector.shape_cast %0 : vector<1x16x8xbf16> to vector<16x8xbf16>
    %cst = arith.constant 3.535160e-01 : bf16
    %2 = vector.broadcast %cst : bf16 to vector<16x8xbf16>
    %3 = arith.mulf %1, %2 : vector<16x8xbf16>
    %c0_2 = arith.constant 0 : index
    %c0_3 = arith.constant 0 : index
    %c64 = arith.constant 64 : index
    %4 = vector.load %arg1[%c0_2, %c0_3, %c64] : memref<1x16x192xbf16, #tpu.memory_space<vmem>>, vector<1x16x8xbf16>
    %5 = vector.shape_cast %4 : vector<1x16x8xbf16> to vector<16x8xbf16>
    %c0_4 = arith.constant 0 : index
    %c0_5 = arith.constant 0 : index
    %c128 = arith.constant 128 : index
    %6 = vector.load %arg1[%c0_4, %c0_5, %c128] : memref<1x16x192xbf16, #tpu.memory_space<vmem>>, vector<1x16x8xbf16>
    %7 = vector.shape_cast %6 : vector<1x16x8xbf16> to vector<16x8xbf16>
    %cst_6 = arith.constant dense<0.000000e+00> : vector<16x16xf32>
    %8 = tpu.matmul %3, %5, %cst_6 {dimension_numbers = #tpu.dot_dimension_numbers<[1], [1], [0], [0], [0, 0, 1, 0], [], []>} : vector<16x8xbf16>, vector<16x8xbf16>, vector<16x16xf32> -> vector<16x16xf32>
    %cst_7 = arith.constant dense<0xFF800000> : vector<16xf32>
    %9 = vector.multi_reduction <maximumf>, %8, %cst_7 [1] : vector<16x16xf32> to vector<16xf32>
    %10 = vector.shape_cast %9 : vector<16xf32> to vector<16x1xf32>
    %11 = vector.broadcast %10 : vector<16x1xf32> to vector<16x16xf32>
    %12 = arith.subf %8, %11 : vector<16x16xf32>
    %13 = math.exp %12 : vector<16x16xf32>
    %cst_8 = arith.constant dense<0.000000e+00> : vector<16xf32>
    %14 = vector.multi_reduction <add>, %13, %cst_8 [1] : vector<16x16xf32> to vector<16xf32>
    %15 = vector.shape_cast %14 : vector<16xf32> to vector<16x1xf32>
    %16 = tpu.reciprocal %15 {approx = true} : vector<16x1xf32> -> vector<16x1xf32>
    %17 = vector.broadcast %16 : vector<16x1xf32> to vector<16x16xf32>
    %18 = arith.mulf %13, %17 : vector<16x16xf32>
    %19 = arith.truncf %18 : vector<16x16xf32> to vector<16x16xbf16>
    %cst_9 = arith.constant dense<0.000000e+00> : vector<16x8xf32>
    %20 = tpu.matmul %19, %7, %cst_9 {dimension_numbers = #tpu.dot_dimension_numbers<[1], [0], [0], [1], [0, 0, 1, 1], [], []>} : vector<16x16xbf16>, vector<16x8xbf16>, vector<16x8xf32> -> vector<16x8xf32>
    %21 = arith.truncf %20 : vector<16x8xf32> to vector<16x8xbf16>
    %c0_10 = arith.constant 0 : index
    %c0_11 = arith.constant 0 : index
    %c0_12 = arith.constant 0 : index
    %22 = vector.load %arg2[%c0_10, %c0_11, %c0_12] : memref<1x16x64xbf16, #tpu.memory_space<vmem>>, vector<1x16x8xbf16>
    %23 = vector.shape_cast %22 : vector<1x16x8xbf16> to vector<16x8xbf16>
    %24 = vector.shape_cast %21 : vector<16x8xbf16> to vector<1x16x8xbf16>
    tpu.vector_store %arg2[%c0_10, %c0_11, %c0_12], %24 {strides = array<i32>} : memref<1x16x64xbf16, #tpu.memory_space<vmem>>, vector<1x16x8xbf16>,
    %c0_13 = arith.constant 0 : index
    %c0_14 = arith.constant 0 : index
    %c8 = arith.constant 8 : index
    %25 = vector.load %arg1[%c0_13, %c0_14, %c8] : memref<1x16x192xbf16, #tpu.memory_space<vmem>>, vector<1x16x8xbf16>
    %26 = vector.shape_cast %25 : vector<1x16x8xbf16> to vector<16x8xbf16>
    %cst_15 = arith.constant 3.535160e-01 : bf16
    %27 = vector.broadcast %cst_15 : bf16 to vector<16x8xbf16>
    %28 = arith.mulf %26, %27 : vector<16x8xbf16>
    %c0_16 = arith.constant 0 : index
    %c0_17 = arith.constant 0 : index
    %c72 = arith.constant 72 : index
    %29 = vector.load %arg1[%c0_16, %c0_17, %c72] : memref<1x16x192xbf16, #tpu.memory_space<vmem>>, vector<1x16x8xbf16>
    %30 = vector.shape_cast %29 : vector<1x16x8xbf16> to vector<16x8xbf16>
    %c0_18 = arith.constant 0 : index
    %c0_19 = arith.constant 0 : index
    %c136 = arith.constant 136 : index
    %31 = vector.load %arg1[%c0_18, %c0_19, %c136] : memref<1x16x192xbf16, #tpu.memory_space<vmem>>, vector<1x16x8xbf16>
    %32 = vector.shape_cast %31 : vector<1x16x8xbf16> to vector<16x8xbf16>
    %cst_20 = arith.constant dense<0.000000e+00> : vector<16x16xf32>
    %33 = tpu.matmul %28, %30, %cst_20 {dimension_numbers = #tpu.dot_dimension_numbers<[1], [1], [0], [0], [0, 0, 1, 0], [], []>} : vector<16x8xbf16>, vector<16x8xbf16>, vector<16x16xf32> -> vector<16x16xf32>
    %cst_21 = arith.constant dense<0xFF800000> : vector<16xf32>
    %34 = vector.multi_reduction <maximumf>, %33, %cst_21 [1] : vector<16x16xf32> to vector<16xf32>
    %35 = vector.shape_cast %34 : vector<16xf32> to vector<16x1xf32>
    %36 = vector.broadcast %35 : vector<16x1xf32> to vector<16x16xf32>
    %37 = arith.subf %33, %36 : vector<16x16xf32>
    %38 = math.exp %37 : vector<16x16xf32>
    %cst_22 = arith.constant dense<0.000000e+00> : vector<16xf32>
    %39 = vector.multi_reduction <add>, %38, %cst_22 [1] : vector<16x16xf32> to vector<16xf32>
    %40 = vector.shape_cast %39 : vector<16xf32> to vector<16x1xf32>
    %41 = tpu.reciprocal %40 {approx = true} : vector<16x1xf32> -> vector<16x1xf32>
    %42 = vector.broadcast %41 : vector<16x1xf32> to vector<16x16xf32>
    %43 = arith.mulf %38, %42 : vector<16x16xf32>
    %44 = arith.truncf %43 : vector<16x16xf32> to vector<16x16xbf16>
    %cst_23 = arith.constant dense<0.000000e+00> : vector<16x8xf32>
    %45 = tpu.matmul %44, %32, %cst_23 {dimension_numbers = #tpu.dot_dimension_numbers<[1], [0], [0], [1], [0, 0, 1, 1], [], []>} : vector<16x16xbf16>, vector<16x8xbf16>, vector<16x8xf32> -> vector<16x8xf32>
    %46 = arith.truncf %45 : vector<16x8xf32> to vector<16x8xbf16>
    %c0_24 = arith.constant 0 : index
    %c0_25 = arith.constant 0 : index
    %c8_26 = arith.constant 8 : index
    %47 = vector.load %arg2[%c0_24, %c0_25, %c8_26] : memref<1x16x64xbf16, #tpu.memory_space<vmem>>, vector<1x16x8xbf16>
    %48 = vector.shape_cast %47 : vector<1x16x8xbf16> to vector<16x8xbf16>
    %49 = vector.shape_cast %46 : vector<16x8xbf16> to vector<1x16x8xbf16>
    tpu.vector_store %arg2[%c0_24, %c0_25, %c8_26], %49 {strides = array<i32>} : memref<1x16x64xbf16, #tpu.memory_space<vmem>>, vector<1x16x8xbf16>,
    %c0_27 = arith.constant 0 : index
    %c0_28 = arith.constant 0 : index
    %c16 = arith.constant 16 : index
    %50 = vector.load %arg1[%c0_27, %c0_28, %c16] : memref<1x16x192xbf16, #tpu.memory_space<vmem>>, vector<1x16x8xbf16>
    %51 = vector.shape_cast %50 : vector<1x16x8xbf16> to vector<16x8xbf16>
    %cst_29 = arith.constant 3.535160e-01 : bf16
    %52 = vector.broadcast %cst_29 : bf16 to vector<16x8xbf16>
    %53 = arith.mulf %51, %52 : vector<16x8xbf16>
    %c0_30 = arith.constant 0 : index
    %c0_31 = arith.constant 0 : index
    %c80 = arith.constant 80 : index
    %54 = vector.load %arg1[%c0_30, %c0_31, %c80] : memref<1x16x192xbf16, #tpu.memory_space<vmem>>, vector<1x16x8xbf16>
    %55 = vector.shape_cast %54 : vector<1x16x8xbf16> to vector<16x8xbf16>
    %c0_32 = arith.constant 0 : index
    %c0_33 = arith.constant 0 : index
    %c144 = arith.constant 144 : index
    %56 = vector.load %arg1[%c0_32, %c0_33, %c144] : memref<1x16x192xbf16, #tpu.memory_space<vmem>>, vector<1x16x8xbf16>
    %57 = vector.shape_cast %56 : vector<1x16x8xbf16> to vector<16x8xbf16>
    %cst_34 = arith.constant dense<0.000000e+00> : vector<16x16xf32>
    %58 = tpu.matmul %53, %55, %cst_34 {dimension_numbers = #tpu.dot_dimension_numbers<[1], [1], [0], [0], [0, 0, 1, 0], [], []>} : vector<16x8xbf16>, vector<16x8xbf16>, vector<16x16xf32> -> vector<16x16xf32>
    %cst_35 = arith.constant dense<0xFF800000> : vector<16xf32>
    %59 = vector.multi_reduction <maximumf>, %58, %cst_35 [1] : vector<16x16xf32> to vector<16xf32>
    %60 = vector.shape_cast %59 : vector<16xf32> to vector<16x1xf32>
    %61 = vector.broadcast %60 : vector<16x1xf32> to vector<16x16xf32>
    %62 = arith.subf %58, %61 : vector<16x16xf32>
    %63 = math.exp %62 : vector<16x16xf32>
    %cst_36 = arith.constant dense<0.000000e+00> : vector<16xf32>
    %64 = vector.multi_reduction <add>, %63, %cst_36 [1] : vector<16x16xf32> to vector<16xf32>
    %65 = vector.shape_cast %64 : vector<16xf32> to vector<16x1xf32>
    %66 = tpu.reciprocal %65 {approx = true} : vector<16x1xf32> -> vector<16x1xf32>
    %67 = vector.broadcast %66 : vector<16x1xf32> to vector<16x16xf32>
    %68 = arith.mulf %63, %67 : vector<16x16xf32>
    %69 = arith.truncf %68 : vector<16x16xf32> to vector<16x16xbf16>
    %cst_37 = arith.constant dense<0.000000e+00> : vector<16x8xf32>
    %70 = tpu.matmul %69, %57, %cst_37 {dimension_numbers = #tpu.dot_dimension_numbers<[1], [0], [0], [1], [0, 0, 1, 1], [], []>} : vector<16x16xbf16>, vector<16x8xbf16>, vector<16x8xf32> -> vector<16x8xf32>
    %71 = arith.truncf %70 : vector<16x8xf32> to vector<16x8xbf16>
    %c0_38 = arith.constant 0 : index
    %c0_39 = arith.constant 0 : index
    %c16_40 = arith.constant 16 : index
    %72 = vector.load %arg2[%c0_38, %c0_39, %c16_40] : memref<1x16x64xbf16, #tpu.memory_space<vmem>>, vector<1x16x8xbf16>
    %73 = vector.shape_cast %72 : vector<1x16x8xbf16> to vector<16x8xbf16>
    %74 = vector.shape_cast %71 : vector<16x8xbf16> to vector<1x16x8xbf16>
    tpu.vector_store %arg2[%c0_38, %c0_39, %c16_40], %74 {strides = array<i32>} : memref<1x16x64xbf16, #tpu.memory_space<vmem>>, vector<1x16x8xbf16>,
    %c0_41 = arith.constant 0 : index
    %c0_42 = arith.constant 0 : index
    %c24 = arith.constant 24 : index
    %75 = vector.load %arg1[%c0_41, %c0_42, %c24] : memref<1x16x192xbf16, #tpu.memory_space<vmem>>, vector<1x16x8xbf16>
    %76 = vector.shape_cast %75 : vector<1x16x8xbf16> to vector<16x8xbf16>
    %cst_43 = arith.constant 3.535160e-01 : bf16
    %77 = vector.broadcast %cst_43 : bf16 to vector<16x8xbf16>
    %78 = arith.mulf %76, %77 : vector<16x8xbf16>
    %c0_44 = arith.constant 0 : index
    %c0_45 = arith.constant 0 : index
    %c88 = arith.constant 88 : index
    %79 = vector.load %arg1[%c0_44, %c0_45, %c88] : memref<1x16x192xbf16, #tpu.memory_space<vmem>>, vector<1x16x8xbf16>
    %80 = vector.shape_cast %79 : vector<1x16x8xbf16> to vector<16x8xbf16>
    %c0_46 = arith.constant 0 : index
    %c0_47 = arith.constant 0 : index
    %c152 = arith.constant 152 : index
    %81 = vector.load %arg1[%c0_46, %c0_47, %c152] : memref<1x16x192xbf16, #tpu.memory_space<vmem>>, vector<1x16x8xbf16>
    %82 = vector.shape_cast %81 : vector<1x16x8xbf16> to vector<16x8xbf16>
    %cst_48 = arith.constant dense<0.000000e+00> : vector<16x16xf32>
    %83 = tpu.matmul %78, %80, %cst_48 {dimension_numbers = #tpu.dot_dimension_numbers<[1], [1], [0], [0], [0, 0, 1, 0], [], []>} : vector<16x8xbf16>, vector<16x8xbf16>, vector<16x16xf32> -> vector<16x16xf32>
    %cst_49 = arith.constant dense<0xFF800000> : vector<16xf32>
    %84 = vector.multi_reduction <maximumf>, %83, %cst_49 [1] : vector<16x16xf32> to vector<16xf32>
    %85 = vector.shape_cast %84 : vector<16xf32> to vector<16x1xf32>
    %86 = vector.broadcast %85 : vector<16x1xf32> to vector<16x16xf32>
    %87 = arith.subf %83, %86 : vector<16x16xf32>
    %88 = math.exp %87 : vector<16x16xf32>
    %cst_50 = arith.constant dense<0.000000e+00> : vector<16xf32>
    %89 = vector.multi_reduction <add>, %88, %cst_50 [1] : vector<16x16xf32> to vector<16xf32>
    %90 = vector.shape_cast %89 : vector<16xf32> to vector<16x1xf32>
    %91 = tpu.reciprocal %90 {approx = true} : vector<16x1xf32> -> vector<16x1xf32>
    %92 = vector.broadcast %91 : vector<16x1xf32> to vector<16x16xf32>
    %93 = arith.mulf %88, %92 : vector<16x16xf32>
    %94 = arith.truncf %93 : vector<16x16xf32> to vector<16x16xbf16>
    %cst_51 = arith.constant dense<0.000000e+00> : vector<16x8xf32>
    %95 = tpu.matmul %94, %82, %cst_51 {dimension_numbers = #tpu.dot_dimension_numbers<[1], [0], [0], [1], [0, 0, 1, 1], [], []>} : vector<16x16xbf16>, vector<16x8xbf16>, vector<16x8xf32> -> vector<16x8xf32>
    %96 = arith.truncf %95 : vector<16x8xf32> to vector<16x8xbf16>
    %c0_52 = arith.constant 0 : index
    %c0_53 = arith.constant 0 : index
    %c24_54 = arith.constant 24 : index
    %97 = vector.load %arg2[%c0_52, %c0_53, %c24_54] : memref<1x16x64xbf16, #tpu.memory_space<vmem>>, vector<1x16x8xbf16>
    %98 = vector.shape_cast %97 : vector<1x16x8xbf16> to vector<16x8xbf16>
    %99 = vector.shape_cast %96 : vector<16x8xbf16> to vector<1x16x8xbf16>
    tpu.vector_store %arg2[%c0_52, %c0_53, %c24_54], %99 {strides = array<i32>} : memref<1x16x64xbf16, #tpu.memory_space<vmem>>, vector<1x16x8xbf16>,
    %c0_55 = arith.constant 0 : index
    %c0_56 = arith.constant 0 : index
    %c32 = arith.constant 32 : index
    %100 = vector.load %arg1[%c0_55, %c0_56, %c32] : memref<1x16x192xbf16, #tpu.memory_space<vmem>>, vector<1x16x8xbf16>
    %101 = vector.shape_cast %100 : vector<1x16x8xbf16> to vector<16x8xbf16>
    %cst_57 = arith.constant 3.535160e-01 : bf16
    %102 = vector.broadcast %cst_57 : bf16 to vector<16x8xbf16>
    %103 = arith.mulf %101, %102 : vector<16x8xbf16>
    %c0_58 = arith.constant 0 : index
    %c0_59 = arith.constant 0 : index
    %c96 = arith.constant 96 : index
    %104 = vector.load %arg1[%c0_58, %c0_59, %c96] : memref<1x16x192xbf16, #tpu.memory_space<vmem>>, vector<1x16x8xbf16>
    %105 = vector.shape_cast %104 : vector<1x16x8xbf16> to vector<16x8xbf16>
    %c0_60 = arith.constant 0 : index
    %c0_61 = arith.constant 0 : index
    %c160 = arith.constant 160 : index
    %106 = vector.load %arg1[%c0_60, %c0_61, %c160] : memref<1x16x192xbf16, #tpu.memory_space<vmem>>, vector<1x16x8xbf16>
    %107 = vector.shape_cast %106 : vector<1x16x8xbf16> to vector<16x8xbf16>
    %cst_62 = arith.constant dense<0.000000e+00> : vector<16x16xf32>
    %108 = tpu.matmul %103, %105, %cst_62 {dimension_numbers = #tpu.dot_dimension_numbers<[1], [1], [0], [0], [0, 0, 1, 0], [], []>} : vector<16x8xbf16>, vector<16x8xbf16>, vector<16x16xf32> -> vector<16x16xf32>
    %cst_63 = arith.constant dense<0xFF800000> : vector<16xf32>
    %109 = vector.multi_reduction <maximumf>, %108, %cst_63 [1] : vector<16x16xf32> to vector<16xf32>
    %110 = vector.shape_cast %109 : vector<16xf32> to vector<16x1xf32>
    %111 = vector.broadcast %110 : vector<16x1xf32> to vector<16x16xf32>
    %112 = arith.subf %108, %111 : vector<16x16xf32>
    %113 = math.exp %112 : vector<16x16xf32>
    %cst_64 = arith.constant dense<0.000000e+00> : vector<16xf32>
    %114 = vector.multi_reduction <add>, %113, %cst_64 [1] : vector<16x16xf32> to vector<16xf32>
    %115 = vector.shape_cast %114 : vector<16xf32> to vector<16x1xf32>
    %116 = tpu.reciprocal %115 {approx = true} : vector<16x1xf32> -> vector<16x1xf32>
    %117 = vector.broadcast %116 : vector<16x1xf32> to vector<16x16xf32>
    %118 = arith.mulf %113, %117 : vector<16x16xf32>
    %119 = arith.truncf %118 : vector<16x16xf32> to vector<16x16xbf16>
    %cst_65 = arith.constant dense<0.000000e+00> : vector<16x8xf32>
    %120 = tpu.matmul %119, %107, %cst_65 {dimension_numbers = #tpu.dot_dimension_numbers<[1], [0], [0], [1], [0, 0, 1, 1], [], []>} : vector<16x16xbf16>, vector<16x8xbf16>, vector<16x8xf32> -> vector<16x8xf32>
    %121 = arith.truncf %120 : vector<16x8xf32> to vector<16x8xbf16>
    %c0_66 = arith.constant 0 : index
    %c0_67 = arith.constant 0 : index
    %c32_68 = arith.constant 32 : index
    %122 = vector.load %arg2[%c0_66, %c0_67, %c32_68] : memref<1x16x64xbf16, #tpu.memory_space<vmem>>, vector<1x16x8xbf16>
    %123 = vector.shape_cast %122 : vector<1x16x8xbf16> to vector<16x8xbf16>
    %124 = vector.shape_cast %121 : vector<16x8xbf16> to vector<1x16x8xbf16>
    tpu.vector_store %arg2[%c0_66, %c0_67, %c32_68], %124 {strides = array<i32>} : memref<1x16x64xbf16, #tpu.memory_space<vmem>>, vector<1x16x8xbf16>,
    %c0_69 = arith.constant 0 : index
    %c0_70 = arith.constant 0 : index
    %c40 = arith.constant 40 : index
    %125 = vector.load %arg1[%c0_69, %c0_70, %c40] : memref<1x16x192xbf16, #tpu.memory_space<vmem>>, vector<1x16x8xbf16>
    %126 = vector.shape_cast %125 : vector<1x16x8xbf16> to vector<16x8xbf16>
    %cst_71 = arith.constant 3.535160e-01 : bf16
    %127 = vector.broadcast %cst_71 : bf16 to vector<16x8xbf16>
    %128 = arith.mulf %126, %127 : vector<16x8xbf16>
    %c0_72 = arith.constant 0 : index
    %c0_73 = arith.constant 0 : index
    %c104 = arith.constant 104 : index
    %129 = vector.load %arg1[%c0_72, %c0_73, %c104] : memref<1x16x192xbf16, #tpu.memory_space<vmem>>, vector<1x16x8xbf16>
    %130 = vector.shape_cast %129 : vector<1x16x8xbf16> to vector<16x8xbf16>
    %c0_74 = arith.constant 0 : index
    %c0_75 = arith.constant 0 : index
    %c168 = arith.constant 168 : index
    %131 = vector.load %arg1[%c0_74, %c0_75, %c168] : memref<1x16x192xbf16, #tpu.memory_space<vmem>>, vector<1x16x8xbf16>
    %132 = vector.shape_cast %131 : vector<1x16x8xbf16> to vector<16x8xbf16>
    %cst_76 = arith.constant dense<0.000000e+00> : vector<16x16xf32>
    %133 = tpu.matmul %128, %130, %cst_76 {dimension_numbers = #tpu.dot_dimension_numbers<[1], [1], [0], [0], [0, 0, 1, 0], [], []>} : vector<16x8xbf16>, vector<16x8xbf16>, vector<16x16xf32> -> vector<16x16xf32>
    %cst_77 = arith.constant dense<0xFF800000> : vector<16xf32>
    %134 = vector.multi_reduction <maximumf>, %133, %cst_77 [1] : vector<16x16xf32> to vector<16xf32>
    %135 = vector.shape_cast %134 : vector<16xf32> to vector<16x1xf32>
    %136 = vector.broadcast %135 : vector<16x1xf32> to vector<16x16xf32>
    %137 = arith.subf %133, %136 : vector<16x16xf32>
    %138 = math.exp %137 : vector<16x16xf32>
    %cst_78 = arith.constant dense<0.000000e+00> : vector<16xf32>
    %139 = vector.multi_reduction <add>, %138, %cst_78 [1] : vector<16x16xf32> to vector<16xf32>
    %140 = vector.shape_cast %139 : vector<16xf32> to vector<16x1xf32>
    %141 = tpu.reciprocal %140 {approx = true} : vector<16x1xf32> -> vector<16x1xf32>
    %142 = vector.broadcast %141 : vector<16x1xf32> to vector<16x16xf32>
    %143 = arith.mulf %138, %142 : vector<16x16xf32>
    %144 = arith.truncf %143 : vector<16x16xf32> to vector<16x16xbf16>
    %cst_79 = arith.constant dense<0.000000e+00> : vector<16x8xf32>
    %145 = tpu.matmul %144, %132, %cst_79 {dimension_numbers = #tpu.dot_dimension_numbers<[1], [0], [0], [1], [0, 0, 1, 1], [], []>} : vector<16x16xbf16>, vector<16x8xbf16>, vector<16x8xf32> -> vector<16x8xf32>
    %146 = arith.truncf %145 : vector<16x8xf32> to vector<16x8xbf16>
    %c0_80 = arith.constant 0 : index
    %c0_81 = arith.constant 0 : index
    %c40_82 = arith.constant 40 : index
    %147 = vector.load %arg2[%c0_80, %c0_81, %c40_82] : memref<1x16x64xbf16, #tpu.memory_space<vmem>>, vector<1x16x8xbf16>
    %148 = vector.shape_cast %147 : vector<1x16x8xbf16> to vector<16x8xbf16>
    %149 = vector.shape_cast %146 : vector<16x8xbf16> to vector<1x16x8xbf16>
    tpu.vector_store %arg2[%c0_80, %c0_81, %c40_82], %149 {strides = array<i32>} : memref<1x16x64xbf16, #tpu.memory_space<vmem>>, vector<1x16x8xbf16>,
    %c0_83 = arith.constant 0 : index
    %c0_84 = arith.constant 0 : index
    %c48 = arith.constant 48 : index
    %150 = vector.load %arg1[%c0_83, %c0_84, %c48] : memref<1x16x192xbf16, #tpu.memory_space<vmem>>, vector<1x16x8xbf16>
    %151 = vector.shape_cast %150 : vector<1x16x8xbf16> to vector<16x8xbf16>
    %cst_85 = arith.constant 3.535160e-01 : bf16
    %152 = vector.broadcast %cst_85 : bf16 to vector<16x8xbf16>
    %153 = arith.mulf %151, %152 : vector<16x8xbf16>
    %c0_86 = arith.constant 0 : index
    %c0_87 = arith.constant 0 : index
    %c112 = arith.constant 112 : index
    %154 = vector.load %arg1[%c0_86, %c0_87, %c112] : memref<1x16x192xbf16, #tpu.memory_space<vmem>>, vector<1x16x8xbf16>
    %155 = vector.shape_cast %154 : vector<1x16x8xbf16> to vector<16x8xbf16>
    %c0_88 = arith.constant 0 : index
    %c0_89 = arith.constant 0 : index
    %c176 = arith.constant 176 : index
    %156 = vector.load %arg1[%c0_88, %c0_89, %c176] : memref<1x16x192xbf16, #tpu.memory_space<vmem>>, vector<1x16x8xbf16>
    %157 = vector.shape_cast %156 : vector<1x16x8xbf16> to vector<16x8xbf16>
    %cst_90 = arith.constant dense<0.000000e+00> : vector<16x16xf32>
    %158 = tpu.matmul %153, %155, %cst_90 {dimension_numbers = #tpu.dot_dimension_numbers<[1], [1], [0], [0], [0, 0, 1, 0], [], []>} : vector<16x8xbf16>, vector<16x8xbf16>, vector<16x16xf32> -> vector<16x16xf32>
    %cst_91 = arith.constant dense<0xFF800000> : vector<16xf32>
    %159 = vector.multi_reduction <maximumf>, %158, %cst_91 [1] : vector<16x16xf32> to vector<16xf32>
    %160 = vector.shape_cast %159 : vector<16xf32> to vector<16x1xf32>
    %161 = vector.broadcast %160 : vector<16x1xf32> to vector<16x16xf32>
    %162 = arith.subf %158, %161 : vector<16x16xf32>
    %163 = math.exp %162 : vector<16x16xf32>
    %cst_92 = arith.constant dense<0.000000e+00> : vector<16xf32>
    %164 = vector.multi_reduction <add>, %163, %cst_92 [1] : vector<16x16xf32> to vector<16xf32>
    %165 = vector.shape_cast %164 : vector<16xf32> to vector<16x1xf32>
    %166 = tpu.reciprocal %165 {approx = true} : vector<16x1xf32> -> vector<16x1xf32>
    %167 = vector.broadcast %166 : vector<16x1xf32> to vector<16x16xf32>
    %168 = arith.mulf %163, %167 : vector<16x16xf32>
    %169 = arith.truncf %168 : vector<16x16xf32> to vector<16x16xbf16>
    %cst_93 = arith.constant dense<0.000000e+00> : vector<16x8xf32>
    %170 = tpu.matmul %169, %157, %cst_93 {dimension_numbers = #tpu.dot_dimension_numbers<[1], [0], [0], [1], [0, 0, 1, 1], [], []>} : vector<16x16xbf16>, vector<16x8xbf16>, vector<16x8xf32> -> vector<16x8xf32>
    %171 = arith.truncf %170 : vector<16x8xf32> to vector<16x8xbf16>
    %c0_94 = arith.constant 0 : index
    %c0_95 = arith.constant 0 : index
    %c48_96 = arith.constant 48 : index
    %172 = vector.load %arg2[%c0_94, %c0_95, %c48_96] : memref<1x16x64xbf16, #tpu.memory_space<vmem>>, vector<1x16x8xbf16>
    %173 = vector.shape_cast %172 : vector<1x16x8xbf16> to vector<16x8xbf16>
    %174 = vector.shape_cast %171 : vector<16x8xbf16> to vector<1x16x8xbf16>
    tpu.vector_store %arg2[%c0_94, %c0_95, %c48_96], %174 {strides = array<i32>} : memref<1x16x64xbf16, #tpu.memory_space<vmem>>, vector<1x16x8xbf16>,
    %c0_97 = arith.constant 0 : index
    %c0_98 = arith.constant 0 : index
    %c56 = arith.constant 56 : index
    %175 = vector.load %arg1[%c0_97, %c0_98, %c56] : memref<1x16x192xbf16, #tpu.memory_space<vmem>>, vector<1x16x8xbf16>
    %176 = vector.shape_cast %175 : vector<1x16x8xbf16> to vector<16x8xbf16>
    %cst_99 = arith.constant 3.535160e-01 : bf16
    %177 = vector.broadcast %cst_99 : bf16 to vector<16x8xbf16>
    %178 = arith.mulf %176, %177 : vector<16x8xbf16>
    %c0_100 = arith.constant 0 : index
    %c0_101 = arith.constant 0 : index
    %c120 = arith.constant 120 : index
    %179 = vector.load %arg1[%c0_100, %c0_101, %c120] : memref<1x16x192xbf16, #tpu.memory_space<vmem>>, vector<1x16x8xbf16>
    %180 = vector.shape_cast %179 : vector<1x16x8xbf16> to vector<16x8xbf16>
    %c0_102 = arith.constant 0 : index
    %c0_103 = arith.constant 0 : index
    %c184 = arith.constant 184 : index
    %181 = vector.load %arg1[%c0_102, %c0_103, %c184] : memref<1x16x192xbf16, #tpu.memory_space<vmem>>, vector<1x16x8xbf16>
    %182 = vector.shape_cast %181 : vector<1x16x8xbf16> to vector<16x8xbf16>
    %cst_104 = arith.constant dense<0.000000e+00> : vector<16x16xf32>
    %183 = tpu.matmul %178, %180, %cst_104 {dimension_numbers = #tpu.dot_dimension_numbers<[1], [1], [0], [0], [0, 0, 1, 0], [], []>} : vector<16x8xbf16>, vector<16x8xbf16>, vector<16x16xf32> -> vector<16x16xf32>
    %cst_105 = arith.constant dense<0xFF800000> : vector<16xf32>
    %184 = vector.multi_reduction <maximumf>, %183, %cst_105 [1] : vector<16x16xf32> to vector<16xf32>
    %185 = vector.shape_cast %184 : vector<16xf32> to vector<16x1xf32>
    %186 = vector.broadcast %185 : vector<16x1xf32> to vector<16x16xf32>
    %187 = arith.subf %183, %186 : vector<16x16xf32>
    %188 = math.exp %187 : vector<16x16xf32>
    %cst_106 = arith.constant dense<0.000000e+00> : vector<16xf32>
    %189 = vector.multi_reduction <add>, %188, %cst_106 [1] : vector<16x16xf32> to vector<16xf32>
    %190 = vector.shape_cast %189 : vector<16xf32> to vector<16x1xf32>
    %191 = tpu.reciprocal %190 {approx = true} : vector<16x1xf32> -> vector<16x1xf32>
    %192 = vector.broadcast %191 : vector<16x1xf32> to vector<16x16xf32>
    %193 = arith.mulf %188, %192 : vector<16x16xf32>
    %194 = arith.truncf %193 : vector<16x16xf32> to vector<16x16xbf16>
    %cst_107 = arith.constant dense<0.000000e+00> : vector<16x8xf32>
    %195 = tpu.matmul %194, %182, %cst_107 {dimension_numbers = #tpu.dot_dimension_numbers<[1], [0], [0], [1], [0, 0, 1, 1], [], []>} : vector<16x16xbf16>, vector<16x8xbf16>, vector<16x8xf32> -> vector<16x8xf32>
    %196 = arith.truncf %195 : vector<16x8xf32> to vector<16x8xbf16>
    %c0_108 = arith.constant 0 : index
    %c0_109 = arith.constant 0 : index
    %c56_110 = arith.constant 56 : index
    %197 = vector.load %arg2[%c0_108, %c0_109, %c56_110] : memref<1x16x64xbf16, #tpu.memory_space<vmem>>, vector<1x16x8xbf16>
    %198 = vector.shape_cast %197 : vector<1x16x8xbf16> to vector<16x8xbf16>
    %199 = vector.shape_cast %196 : vector<16x8xbf16> to vector<1x16x8xbf16>
    tpu.vector_store %arg2[%c0_108, %c0_109, %c56_110], %199 {strides = array<i32>} : memref<1x16x64xbf16, #tpu.memory_space<vmem>>, vector<1x16x8xbf16>,
    return
  }
  func.func @transform_0(%arg0: i32) -> (i32, i32, i32) {
    %c0_i32 = arith.constant 0 : i32
    %c0_i32_0 = arith.constant 0 : i32
    %c0_i32_1 = arith.constant 0 : i32
    return %arg0, %c0_i32, %c0_i32_0 : i32, i32, i32
  }
  func.func @transform_1(%arg0: i32) -> (i32, i32, i32) {
    %c0_i32 = arith.constant 0 : i32
    %c0_i32_0 = arith.constant 0 : i32
    %c0_i32_1 = arith.constant 0 : i32
    return %arg0, %c0_i32, %c0_i32_0 : i32, i32, i32
  }
}

module attributes {stable_mosaic.version = 11 : i64} {
  func.func @_linear_kernel(%arg0: i32, %arg1: i32, %arg2: memref<32x64xf32, #tpu.memory_space<vmem>>, %arg3: memref<64x128xbf16, #tpu.memory_space<vmem>>, %arg4: memref<1x128xf32, #tpu.memory_space<vmem>>, %arg5: memref<32x128xbf16, #tpu.memory_space<vmem>>) attributes {dimension_semantics = [#tpu.dimension_semantics<parallel>, #tpu.dimension_semantics<parallel>], iteration_bounds = array<i64: 1, 1>, scalar_prefetch = 0 : i64, scratch_operands = 0 : i64, tpu.core_type = #tpu.core_type<tc>, window_params = [{transform_indices = @transform_0, window_bounds = array<i64: 32, 64>}, {transform_indices = @transform_1, window_bounds = array<i64: 64, 128>}, {transform_indices = @transform_2, window_bounds = array<i64: 1, 128>}, {transform_indices = @transform_3, window_bounds = array<i64: 32, 128>}]} {
    %c0 = arith.constant 0 : index
    %c0_0 = arith.constant 0 : index
    %0 = vector.load %arg2[%c0, %c0_0] : memref<32x64xf32, #tpu.memory_space<vmem>>, vector<32x64xf32>
    %c0_1 = arith.constant 0 : index
    %c0_2 = arith.constant 0 : index
    %1 = vector.load %arg3[%c0_1, %c0_2] : memref<64x128xbf16, #tpu.memory_space<vmem>>, vector<64x128xbf16>
    %2 = arith.truncf %0 : vector<32x64xf32> to vector<32x64xbf16>
    %cst = arith.constant dense<0.000000e+00> : vector<32x128xf32>
    %3 = tpu.matmul %2, %1, %cst {dimension_numbers = #tpu.dot_dimension_numbers<[1], [0], [0], [1], [0, 0, 1, 1], [], []>} : vector<32x64xbf16>, vector<64x128xbf16>, vector<32x128xf32> -> vector<32x128xf32>
    %c0_3 = arith.constant 0 : index
    %c0_4 = arith.constant 0 : index
    %4 = vector.load %arg4[%c0_3, %c0_4] : memref<1x128xf32, #tpu.memory_space<vmem>>, vector<1x128xf32>
    %5 = vector.broadcast %4 : vector<1x128xf32> to vector<32x128xf32>
    %6 = arith.addf %3, %5 : vector<32x128xf32>
    %cst_5 = arith.constant 0.000000e+00 : f32
    %7 = vector.broadcast %cst_5 : f32 to vector<32x128xf32>
    %8 = arith.maximumf %6, %7 : vector<32x128xf32>
    %9 = arith.truncf %8 : vector<32x128xf32> to vector<32x128xbf16>
    %c0_6 = arith.constant 0 : index
    %c0_7 = arith.constant 0 : index
    %10 = vector.load %arg5[%c0_6, %c0_7] : memref<32x128xbf16, #tpu.memory_space<vmem>>, vector<32x128xbf16>
    tpu.vector_store %arg5[%c0_6, %c0_7], %9 {strides = array<i32>} : memref<32x128xbf16, #tpu.memory_space<vmem>>, vector<32x128xbf16>,
    return
  }
  func.func @transform_0(%arg0: i32, %arg1: i32) -> (i32, i32) {
    %c0_i32 = arith.constant 0 : i32
    %c0_i32_0 = arith.constant 0 : i32
    return %arg1, %c0_i32 : i32, i32
  }
  func.func @transform_1(%arg0: i32, %arg1: i32) -> (i32, i32) {
    %c0_i32 = arith.constant 0 : i32
    %c0_i32_0 = arith.constant 0 : i32
    return %c0_i32, %arg0 : i32, i32
  }
  func.func @transform_2(%arg0: i32, %arg1: i32) -> (i32, i32) {
    %c0_i32 = arith.constant 0 : i32
    %c0_i32_0 = arith.constant 0 : i32
    return %c0_i32, %arg0 : i32, i32
  }
  func.func @transform_3(%arg0: i32, %arg1: i32) -> (i32, i32) {
    %c0_i32 = arith.constant 0 : i32
    return %arg1, %arg0 : i32, i32
  }
}

module attributes {stable_mosaic.version = 11 : i64} {
  func.func @_linear_add_ln_kernel(%arg0: i32, %arg1: memref<32x128xbf16, #tpu.memory_space<vmem>>, %arg2: memref<128x64xbf16, #tpu.memory_space<vmem>>, %arg3: memref<1x64xf32, #tpu.memory_space<vmem>>, %arg4: memref<32x64xf32, #tpu.memory_space<vmem>>, %arg5: memref<1x64xf32, #tpu.memory_space<vmem>>, %arg6: memref<1x64xf32, #tpu.memory_space<vmem>>, %arg7: memref<32x64xf32, #tpu.memory_space<vmem>>) attributes {dimension_semantics = [#tpu.dimension_semantics<parallel>], iteration_bounds = array<i64: 1>, scalar_prefetch = 0 : i64, scratch_operands = 0 : i64, tpu.core_type = #tpu.core_type<tc>, window_params = [{transform_indices = @transform_0, window_bounds = array<i64: 32, 128>}, {pipeline_mode = #tpu.pipeline_mode<synchronous>, transform_indices = @transform_1, window_bounds = array<i64: 128, 64>}, {pipeline_mode = #tpu.pipeline_mode<synchronous>, transform_indices = @transform_2, window_bounds = array<i64: 1, 64>}, {transform_indices = @transform_3, window_bounds = array<i64: 32, 64>}, {pipeline_mode = #tpu.pipeline_mode<synchronous>, transform_indices = @transform_4, window_bounds = array<i64: 1, 64>}, {pipeline_mode = #tpu.pipeline_mode<synchronous>, transform_indices = @transform_5, window_bounds = array<i64: 1, 64>}, {transform_indices = @transform_6, window_bounds = array<i64: 32, 64>}]} {
    %c0 = arith.constant 0 : index
    %c0_0 = arith.constant 0 : index
    %0 = vector.load %arg1[%c0, %c0_0] : memref<32x128xbf16, #tpu.memory_space<vmem>>, vector<32x128xbf16>
    %c0_1 = arith.constant 0 : index
    %c0_2 = arith.constant 0 : index
    %1 = vector.load %arg2[%c0_1, %c0_2] : memref<128x64xbf16, #tpu.memory_space<vmem>>, vector<128x64xbf16>
    %cst = arith.constant dense<0.000000e+00> : vector<32x64xf32>
    %2 = tpu.matmul %0, %1, %cst {dimension_numbers = #tpu.dot_dimension_numbers<[1], [0], [0], [1], [0, 0, 1, 1], [], []>} : vector<32x128xbf16>, vector<128x64xbf16>, vector<32x64xf32> -> vector<32x64xf32>
    %c0_3 = arith.constant 0 : index
    %c0_4 = arith.constant 0 : index
    %3 = vector.load %arg3[%c0_3, %c0_4] : memref<1x64xf32, #tpu.memory_space<vmem>>, vector<1x64xf32>
    %4 = vector.broadcast %3 : vector<1x64xf32> to vector<32x64xf32>
    %5 = arith.addf %2, %4 : vector<32x64xf32>
    %c0_5 = arith.constant 0 : index
    %c0_6 = arith.constant 0 : index
    %6 = vector.load %arg4[%c0_5, %c0_6] : memref<32x64xf32, #tpu.memory_space<vmem>>, vector<32x64xf32>
    %cst_7 = arith.constant 1.000000e+00 : f32
    %7 = vector.broadcast %cst_7 : f32 to vector<32x64xf32>
    %8 = arith.mulf %7, %5 : vector<32x64xf32>
    %9 = arith.addf %6, %8 : vector<32x64xf32>
    %c0_8 = arith.constant 0 : index
    %c0_9 = arith.constant 0 : index
    %10 = vector.load %arg5[%c0_8, %c0_9] : memref<1x64xf32, #tpu.memory_space<vmem>>, vector<1x64xf32>
    %c0_10 = arith.constant 0 : index
    %c0_11 = arith.constant 0 : index
    %11 = vector.load %arg6[%c0_10, %c0_11] : memref<1x64xf32, #tpu.memory_space<vmem>>, vector<1x64xf32>
    %cst_12 = arith.constant dense<0.000000e+00> : vector<32xf32>
    %12 = vector.multi_reduction <add>, %9, %cst_12 [1] : vector<32x64xf32> to vector<32xf32>
    %13 = vector.shape_cast %12 : vector<32xf32> to vector<32x1xf32>
    %cst_13 = arith.constant 6.400000e+01 : f32
    %14 = vector.broadcast %cst_13 : f32 to vector<32x1xf32>
    %15 = arith.divf %13, %14 : vector<32x1xf32>
    %16 = vector.broadcast %15 : vector<32x1xf32> to vector<32x64xf32>
    %17 = arith.subf %9, %16 : vector<32x64xf32>
    %18 = arith.mulf %17, %17 : vector<32x64xf32>
    %cst_14 = arith.constant dense<0.000000e+00> : vector<32xf32>
    %19 = vector.multi_reduction <add>, %18, %cst_14 [1] : vector<32x64xf32> to vector<32xf32>
    %20 = vector.shape_cast %19 : vector<32xf32> to vector<32x1xf32>
    %cst_15 = arith.constant 6.400000e+01 : f32
    %21 = vector.broadcast %cst_15 : f32 to vector<32x1xf32>
    %22 = arith.divf %20, %21 : vector<32x1xf32>
    %23 = vector.broadcast %15 : vector<32x1xf32> to vector<32x64xf32>
    %24 = arith.subf %9, %23 : vector<32x64xf32>
    %cst_16 = arith.constant 9.99999974E-6 : f32
    %25 = vector.broadcast %cst_16 : f32 to vector<32x1xf32>
    %26 = arith.addf %22, %25 : vector<32x1xf32>
    %27 = math.rsqrt %26 : vector<32x1xf32>
    %28 = vector.broadcast %27 : vector<32x1xf32> to vector<32x64xf32>
    %29 = arith.mulf %24, %28 : vector<32x64xf32>
    %30 = vector.broadcast %10 : vector<1x64xf32> to vector<32x64xf32>
    %31 = arith.mulf %29, %30 : vector<32x64xf32>
    %32 = vector.broadcast %11 : vector<1x64xf32> to vector<32x64xf32>
    %33 = arith.addf %31, %32 : vector<32x64xf32>
    %c0_17 = arith.constant 0 : index
    %c0_18 = arith.constant 0 : index
    %34 = vector.load %arg7[%c0_17, %c0_18] : memref<32x64xf32, #tpu.memory_space<vmem>>, vector<32x64xf32>
    tpu.vector_store %arg7[%c0_17, %c0_18], %33 {strides = array<i32>} : memref<32x64xf32, #tpu.memory_space<vmem>>, vector<32x64xf32>,
    return
  }
  func.func @transform_0(%arg0: i32) -> (i32, i32) {
    %c0_i32 = arith.constant 0 : i32
    %c0_i32_0 = arith.constant 0 : i32
    return %arg0, %c0_i32 : i32, i32
  }
  func.func @transform_1(%arg0: i32) -> (i32, i32) {
    %c0_i32 = arith.constant 0 : i32
    %c0_i32_0 = arith.constant 0 : i32
    %c0_i32_1 = arith.constant 0 : i32
    return %c0_i32, %c0_i32_0 : i32, i32
  }
  func.func @transform_2(%arg0: i32) -> (i32, i32) {
    %c0_i32 = arith.constant 0 : i32
    %c0_i32_0 = arith.constant 0 : i32
    %c0_i32_1 = arith.constant 0 : i32
    return %c0_i32, %c0_i32_0 : i32, i32
  }
  func.func @transform_3(%arg0: i32) -> (i32, i32) {
    %c0_i32 = arith.constant 0 : i32
    %c0_i32_0 = arith.constant 0 : i32
    return %arg0, %c0_i32 : i32, i32
  }
  func.func @transform_4(%arg0: i32) -> (i32, i32) {
    %c0_i32 = arith.constant 0 : i32
    %c0_i32_0 = arith.constant 0 : i32
    %c0_i32_1 = arith.constant 0 : i32
    return %c0_i32, %c0_i32_0 : i32, i32
  }
  func.func @transform_5(%arg0: i32) -> (i32, i32) {
    %c0_i32 = arith.constant 0 : i32
    %c0_i32_0 = arith.constant 0 : i32
    %c0_i32_1 = arith.constant 0 : i32
    return %c0_i32, %c0_i32_0 : i32, i32
  }
  func.func @transform_6(%arg0: i32) -> (i32, i32) {
    %c0_i32 = arith.constant 0 : i32
    %c0_i32_0 = arith.constant 0 : i32
    return %arg0, %c0_i32 : i32, i32
  }
}

module attributes {stable_mosaic.version = 11 : i64} {
  func.func @_pool_pred_kernel(%arg0: i32, %arg1: memref<2x16x64xf32, #tpu.memory_space<vmem>>, %arg2: memref<64x64xbf16, #tpu.memory_space<vmem>>, %arg3: memref<1x64xf32, #tpu.memory_space<vmem>>, %arg4: memref<1x64xf32, #tpu.memory_space<vmem>>, %arg5: memref<1x64xf32, #tpu.memory_space<vmem>>, %arg6: memref<64x10xbf16, #tpu.memory_space<vmem>>, %arg7: memref<1x10xf32, #tpu.memory_space<vmem>>, %arg8: memref<2x10xf32, #tpu.memory_space<vmem>>) attributes {dimension_semantics = [#tpu.dimension_semantics<parallel>], iteration_bounds = array<i64: 1>, scalar_prefetch = 0 : i64, scratch_operands = 0 : i64, tpu.core_type = #tpu.core_type<tc>, window_params = [{transform_indices = @transform_0, window_bounds = array<i64: 2, 16, 64>}, {pipeline_mode = #tpu.pipeline_mode<synchronous>, transform_indices = @transform_1, window_bounds = array<i64: 64, 64>}, {pipeline_mode = #tpu.pipeline_mode<synchronous>, transform_indices = @transform_2, window_bounds = array<i64: 1, 64>}, {pipeline_mode = #tpu.pipeline_mode<synchronous>, transform_indices = @transform_3, window_bounds = array<i64: 1, 64>}, {pipeline_mode = #tpu.pipeline_mode<synchronous>, transform_indices = @transform_4, window_bounds = array<i64: 1, 64>}, {pipeline_mode = #tpu.pipeline_mode<synchronous>, transform_indices = @transform_5, window_bounds = array<i64: 64, 10>}, {pipeline_mode = #tpu.pipeline_mode<synchronous>, transform_indices = @transform_6, window_bounds = array<i64: 1, 10>}, {transform_indices = @transform_7, window_bounds = array<i64: 2, 10>}]} {
    %c0 = arith.constant 0 : index
    %c0_0 = arith.constant 0 : index
    %c0_1 = arith.constant 0 : index
    %0 = vector.load %arg1[%c0, %c0_0, %c0_1] : memref<2x16x64xf32, #tpu.memory_space<vmem>>, vector<2x16x64xf32>
    %cst = arith.constant dense<0.000000e+00> : vector<2x64xf32>
    %1 = vector.multi_reduction <add>, %0, %cst [1] : vector<2x16x64xf32> to vector<2x64xf32>
    %cst_2 = arith.constant 1.600000e+01 : f32
    %2 = vector.broadcast %cst_2 : f32 to vector<2x64xf32>
    %3 = arith.divf %1, %2 : vector<2x64xf32>
    %c0_3 = arith.constant 0 : index
    %c0_4 = arith.constant 0 : index
    %4 = vector.load %arg2[%c0_3, %c0_4] : memref<64x64xbf16, #tpu.memory_space<vmem>>, vector<64x64xbf16>
    %5 = arith.truncf %3 : vector<2x64xf32> to vector<2x64xbf16>
    %cst_5 = arith.constant dense<0.000000e+00> : vector<2x64xf32>
    %6 = tpu.matmul %5, %4, %cst_5 {dimension_numbers = #tpu.dot_dimension_numbers<[1], [0], [0], [1], [0, 0, 1, 1], [], []>} : vector<2x64xbf16>, vector<64x64xbf16>, vector<2x64xf32> -> vector<2x64xf32>
    %c0_6 = arith.constant 0 : index
    %c0_7 = arith.constant 0 : index
    %7 = vector.load %arg3[%c0_6, %c0_7] : memref<1x64xf32, #tpu.memory_space<vmem>>, vector<1x64xf32>
    %8 = vector.broadcast %7 : vector<1x64xf32> to vector<2x64xf32>
    %9 = arith.addf %6, %8 : vector<2x64xf32>
    %c0_8 = arith.constant 0 : index
    %c0_9 = arith.constant 0 : index
    %10 = vector.load %arg4[%c0_8, %c0_9] : memref<1x64xf32, #tpu.memory_space<vmem>>, vector<1x64xf32>
    %11 = vector.broadcast %10 : vector<1x64xf32> to vector<2x64xf32>
    %12 = arith.mulf %9, %11 : vector<2x64xf32>
    %c0_10 = arith.constant 0 : index
    %c0_11 = arith.constant 0 : index
    %13 = vector.load %arg5[%c0_10, %c0_11] : memref<1x64xf32, #tpu.memory_space<vmem>>, vector<1x64xf32>
    %14 = vector.broadcast %13 : vector<1x64xf32> to vector<2x64xf32>
    %15 = arith.addf %12, %14 : vector<2x64xf32>
    %cst_12 = arith.constant 0.000000e+00 : f32
    %16 = vector.broadcast %cst_12 : f32 to vector<2x64xf32>
    %17 = arith.maximumf %15, %16 : vector<2x64xf32>
    %c0_13 = arith.constant 0 : index
    %c0_14 = arith.constant 0 : index
    %18 = vector.load %arg6[%c0_13, %c0_14] : memref<64x10xbf16, #tpu.memory_space<vmem>>, vector<64x10xbf16>
    %19 = arith.truncf %17 : vector<2x64xf32> to vector<2x64xbf16>
    %cst_15 = arith.constant dense<0.000000e+00> : vector<2x10xf32>
    %20 = tpu.matmul %19, %18, %cst_15 {dimension_numbers = #tpu.dot_dimension_numbers<[1], [0], [0], [1], [0, 0, 1, 1], [], []>} : vector<2x64xbf16>, vector<64x10xbf16>, vector<2x10xf32> -> vector<2x10xf32>
    %c0_16 = arith.constant 0 : index
    %c0_17 = arith.constant 0 : index
    %21 = vector.load %arg7[%c0_16, %c0_17] : memref<1x10xf32, #tpu.memory_space<vmem>>, vector<1x10xf32>
    %22 = vector.broadcast %21 : vector<1x10xf32> to vector<2x10xf32>
    %23 = arith.addf %20, %22 : vector<2x10xf32>
    %c0_18 = arith.constant 0 : index
    %c0_19 = arith.constant 0 : index
    %24 = vector.load %arg8[%c0_18, %c0_19] : memref<2x10xf32, #tpu.memory_space<vmem>>, vector<2x10xf32>
    tpu.vector_store %arg8[%c0_18, %c0_19], %23 {strides = array<i32>} : memref<2x10xf32, #tpu.memory_space<vmem>>, vector<2x10xf32>,
    return
  }
  func.func @transform_0(%arg0: i32) -> (i32, i32, i32) {
    %c0_i32 = arith.constant 0 : i32
    %c0_i32_0 = arith.constant 0 : i32
    %c0_i32_1 = arith.constant 0 : i32
    return %arg0, %c0_i32, %c0_i32_0 : i32, i32, i32
  }
  func.func @transform_1(%arg0: i32) -> (i32, i32) {
    %c0_i32 = arith.constant 0 : i32
    %c0_i32_0 = arith.constant 0 : i32
    %c0_i32_1 = arith.constant 0 : i32
    return %c0_i32, %c0_i32_0 : i32, i32
  }
  func.func @transform_2(%arg0: i32) -> (i32, i32) {
    %c0_i32 = arith.constant 0 : i32
    %c0_i32_0 = arith.constant 0 : i32
    %c0_i32_1 = arith.constant 0 : i32
    return %c0_i32, %c0_i32_0 : i32, i32
  }
  func.func @transform_3(%arg0: i32) -> (i32, i32) {
    %c0_i32 = arith.constant 0 : i32
    %c0_i32_0 = arith.constant 0 : i32
    %c0_i32_1 = arith.constant 0 : i32
    return %c0_i32, %c0_i32_0 : i32, i32
  }
  func.func @transform_4(%arg0: i32) -> (i32, i32) {
    %c0_i32 = arith.constant 0 : i32
    %c0_i32_0 = arith.constant 0 : i32
    %c0_i32_1 = arith.constant 0 : i32
    return %c0_i32, %c0_i32_0 : i32, i32
  }
  func.func @transform_5(%arg0: i32) -> (i32, i32) {
    %c0_i32 = arith.constant 0 : i32
    %c0_i32_0 = arith.constant 0 : i32
    %c0_i32_1 = arith.constant 0 : i32
    return %c0_i32, %c0_i32_0 : i32, i32
  }
  func.func @transform_6(%arg0: i32) -> (i32, i32) {
    %c0_i32 = arith.constant 0 : i32
    %c0_i32_0 = arith.constant 0 : i32
    %c0_i32_1 = arith.constant 0 : i32
    return %c0_i32, %c0_i32_0 : i32, i32
  }
  func.func @transform_7(%arg0: i32) -> (i32, i32) {
    %c0_i32 = arith.constant 0 : i32
    %c0_i32_0 = arith.constant 0 : i32
    return %arg0, %c0_i32 : i32, i32
  }
}

</mosaic_0001>

<llo_original>
// kernel: classifier3_forward.36
$region0: #{classifier3_forward.36}
  #allocation0 [shape = 'u32[]', space=smem, size = 0x4, offset = 0x4, fixed_abs, tag = 'smem constant byte address 0x4 - core index']
  #allocation1 [shape = 'u32[144,128]{1,0:T(1,128)}', space=vmem, size = 0x12000, scoped, tag = 'internal scratch']
  %s0 = inlined_call_operand.vmem [shape: f32[32,32], index: 0, kind: input, shape index: {}]
  %s1 = inlined_call_operand.vmem [shape: f32[1,32], index: 1, kind: input, shape index: {}]
  %s2 = inlined_call_operand.vmem [shape: f32[1,32], index: 2, kind: input, shape index: {}]
  %s3 = inlined_call_operand.vmem [shape: bf16[32,128], index: 3, kind: input, shape index: {}]
  %s4 = inlined_call_operand.vmem [shape: f32[1,128], index: 4, kind: input, shape index: {}]
  %s5 = inlined_call_operand.vmem [shape: bf16[32,128], index: 5, kind: output, shape index: {}]
  %s6 = sld [smem:[#allocation0]]
  $region30: #{classifier3_forward.36} parent=0
    _
  %s8 = ssub.s32 1, %s6
  %s9 = scalar_select 0, %s8, %s6
  // Predicated region
  $region2: #{classifier3_forward.36} parent=0 // pred_check
    _
  $region3: #{classifier3_forward.36} parent=0 // pred_check_branch
    %11 = sbr.rel (0) target = $region5
  $region4: #{classifier3_forward.36} parent=0 // pred_region
    _
  $region5: #{classifier3_forward.36} parent=0 // pred_fallthru
    _
  // Predicated region
  $region6: #{classifier3_forward.36} parent=0 // pred_check
    _
  $region7: #{classifier3_forward.36} parent=0 // pred_check_branch
    %13 = sbr.rel (0) target = $region9
  $region8: #{classifier3_forward.36} parent=0 // pred_region
    _
  $region9: #{classifier3_forward.36} parent=0 // pred_fallthru
    _
  // Predicated region
  $region10: #{classifier3_forward.36} parent=0 // pred_check
    _
  $region11: #{classifier3_forward.36} parent=0 // pred_check_branch
    %15 = sbr.rel (0) target = $region13
  $region12: #{classifier3_forward.36} parent=0 // pred_region
    _
  $region13: #{classifier3_forward.36} parent=0 // pred_fallthru
    _
  // Predicated region
  $region14: #{classifier3_forward.36} parent=0 // pred_check
    _
  $region15: #{classifier3_forward.36} parent=0 // pred_check_branch
    %17 = sbr.rel (0) target = $region17
  $region16: #{classifier3_forward.36} parent=0 // pred_region
    _
  $region17: #{classifier3_forward.36} parent=0 // pred_fallthru
    _
  // Predicated region
  $region18: #{classifier3_forward.36} parent=0 // pred_check
    _
  $region19: #{classifier3_forward.36} parent=0 // pred_check_branch
    %19 = sbr.rel (0) target = $region21
  $region20: #{classifier3_forward.36} parent=0 // pred_region
    _
  $region21: #{classifier3_forward.36} parent=0 // pred_fallthru
    _
  %v21 = vld [vmem:[%s0] sm:$0xff]
  %v22 = vld [vmem:[%s0 + $0x8] sm:$0xff]
  %v23 = vld [vmem:[%s0 + $0x10] sm:$0xff]
  %v24 = vld [vmem:[%s0 + $0x18] sm:$0xff]
  %v25 = vld [vmem:[%s1] sm:$0x1]
  %v26 = vld [vmem:[%s2] sm:$0x1]
  %vm27 = vcmask 261120
  %v28 = vsel %vm27, %v21, 0.0
  %29 = vadd.xlane.f32.xlu0 %v28
  %v30 = vpop.xlane.xlu0 %29
  %v31 = vsel %vm27, %v22, 0.0
  %32 = vadd.xlane.f32.xlu0 %v31
  %v33 = vpop.xlane.xlu0 %32
  %v34 = vsel %vm27, %v23, 0.0
  %35 = vadd.xlane.f32.xlu0 %v34
  %v36 = vpop.xlane.xlu0 %35
  %v37 = vsel %vm27, %v24, 0.0
  %38 = vadd.xlane.f32.xlu0 %v37
  %v39 = vpop.xlane.xlu0 %38
  %v40 = vrcp.pop 32.0
  %v41 = vmul.f32 %v30, %v40
  %v42 = vmul.f32 %v33, %v40
  %v43 = vmul.f32 %v36, %v40
  %v44 = vmul.f32 %v39, %v40
  %v45 = vsub.f32 %v21, %v41
  %v46 = vsub.f32 %v22, %v42
  %v47 = vsub.f32 %v23, %v43
  %v48 = vsub.f32 %v24, %v44
  %v49 = vmul.f32 %v45, %v45
  %v50 = vmul.f32 %v46, %v46
  %v51 = vmul.f32 %v47, %v47
  %v52 = vmul.f32 %v48, %v48
  %v53 = vsel %vm27, %v49, 0.0
  %54 = vadd.xlane.f32.xlu0 %v53
  %v55 = vpop.xlane.xlu0 %54
  %v56 = vsel %vm27, %v50, 0.0
  %57 = vadd.xlane.f32.xlu0 %v56
  %v58 = vpop.xlane.xlu0 %57
  %v59 = vsel %vm27, %v51, 0.0
  %60 = vadd.xlane.f32.xlu0 %v59
  %v61 = vpop.xlane.xlu0 %60
  %v62 = vsel %vm27, %v52, 0.0
  %63 = vadd.xlane.f32.xlu0 %v62
  %v64 = vpop.xlane.xlu0 %63
  %v65 = vmul.f32 %v55, %v40
  %v66 = vmul.f32 %v58, %v40
  %v67 = vmul.f32 %v61, %v40
  %v68 = vmul.f32 %v64, %v40
  %v69 = vadd.f32 %v65, 1e-05
  %v70 = vadd.f32 %v66, 1e-05
  %v71 = vadd.f32 %v67, 1e-05
  %v72 = vadd.f32 %v68, 1e-05
  %v73 = vrsqrt.pop %v69
  %v74 = vrsqrt.pop %v70
  %v75 = vrsqrt.pop %v71
  %v76 = vrsqrt.pop %v72
  %v77 = vmul.f32 %v45, %v73
  %v78 = vmul.f32 %v46, %v74
  %v79 = vmul.f32 %v47, %v75
  %v80 = vmul.f32 %v48, %v76
  %v82 = vlaneseq
  %v83 = vshrl.u32 %v82, 7
  %v84 = vsub.s32 0, %v83
  %v85 = vrot.slane %v25, %v84
  %v87 = vmul.f32 %v77, %v85
  %v88 = vmul.f32 %v78, %v85
  %v89 = vmul.f32 %v79, %v85
  %v90 = vmul.f32 %v80, %v85
  %v92 = vlaneseq
  %v93 = vshrl.u32 %v92, 7
  %v94 = vsub.s32 0, %v93
  %v95 = vrot.slane %v26, %v94
  %v97 = vadd.f32 %v87, %v95
  %v98 = vadd.f32 %v88, %v95
  %v99 = vadd.f32 %v89, %v95
  %v100 = vadd.f32 %v90, %v95
  %v101 = vld [vmem:[%s3] sm:$0xf]
  %v102 = vld [vmem:[%s3 + $0x4] sm:$0xf]
  %v103 = vld [vmem:[%s3 + $0x8] sm:$0xf]
  %v104 = vld [vmem:[%s3 + $0xc] sm:$0xf]
  %v105 = vpack.c.bf16 %v98, %v97
  %v106 = vpack.c.bf16 %v100, %v99
  %v107 = vld [vmem:[%s4] sm:$0x1]
  %v109 = vlaneseq
  %v110 = vshrl.u32 %v109, 7
  %v111 = vsub.s32 0, %v110
  %v112 = vrot.slane %v107, %v111
  %v118 = vunpack.c.l.b16 %v101
  %v119 = vunpack.c.l.b16 %v102
  %v120 = vunpack.c.l.b16 %v103
  %v121 = vunpack.c.l.b16 %v104
  %v122 = vpack.c.b16 %v119, %v118
  %v123 = vpack.c.b16 %v121, %v120
  %v127 = vsel %vm27, %v105, 0
  %v130 = vsel %vm27, %v106, 0
  %132 = vmatprep.subr.bf16.mxu0 0
  %133 = vmatpush1.bf16.msra.mxu0 %v122
  %134 = vmatprep.subr.bf16.mxu0 0
  %135 = vmatpush1.bf16.msra.mxu0 %v123
  %136 = vmatprep.subr.bf16.mxu0 0
  %137 = vmatpush1.bf16.msra.mxu0 0
  %138 = vmatprep.subr.bf16.mxu0 0
  %139 = vmatpush1.bf16.msra.mxu0 0
  %140 = vmatprep.subr.bf16.mxu0 0
  %141 = vmatpush1.bf16.msra.mxu0 0
  %142 = vmatprep.subr.bf16.mxu0 0
  %143 = vmatpush1.bf16.msra.mxu0 0
  %144 = vmatprep.subr.bf16.mxu0 0
  %145 = vmatpush1.bf16.msra.mxu0 0
  %146 = vmatprep.subr.bf16.mxu0 0
  %147 = vmatpush1.bf16.msra.mxu0 0
  %148 = vmatprep.subr.bf16.mxu0 0
  %149 = vmatpush1.bf16.msra.mxu0 0
  %150 = vmatprep.subr.bf16.mxu0 0
  %151 = vmatpush1.bf16.msra.mxu0 0
  %152 = vmatprep.subr.bf16.mxu0 0
  %153 = vmatpush1.bf16.msra.mxu0 0
  %154 = vmatprep.subr.bf16.mxu0 0
  %155 = vmatpush1.bf16.msra.mxu0 0
  %156 = vmatprep.subr.bf16.mxu0 0
  %157 = vmatpush1.bf16.msra.mxu0 0
  %158 = vmatprep.subr.bf16.mxu0 0
  %159 = vmatpush1.bf16.msra.mxu0 0
  %160 = vmatprep.subr.bf16.mxu0 0
  %161 = vmatpush1.bf16.msra.mxu0 0
  %162 = vmatprep.subr.bf16.mxu0 0
  %163 = vmatpush1.bf16.msra.mxu0 0
  %164 = vmatprep.mubr.bf16.mxu0 0
  %165 = vmatmul.mubr.bf16.gmra.mrb[0].mxu0 %v127
  %v166 = vpop.f32.mrb[0].mxu0
  %v167 = vadd.f32 %v112, %v166
  %v168 = vpop.f32.mrb[0].mxu0
  %v169 = vpop.f32.mrb[0].mxu0
  %v170 = vadd.f32 %v112, %v169
  %v171 = vpop.f32.mrb[0].mxu0
  %172 = vmatprep.mubr.bf16.mxu0 0
  %173 = vmatmul.mubr.bf16.gmra.mrb[0].mxu0 %v130
  %v174 = vpop.f32.mrb[0].mxu0
  %v175 = vadd.f32 %v112, %v174
  %v176 = vpop.f32.mrb[0].mxu0
  %v177 = vpop.f32.mrb[0].mxu0
  %v178 = vadd.f32 %v112, %v177
  %v179 = vpop.f32.mrb[0].mxu0
  %180 = vdwg.mxu0
  %v181 = vxor.u32 %v167, 2147483648
  %v182 = vxor.u32 %v170, 2147483648
  %v183 = vxor.u32 %v175, 2147483648
  %v184 = vxor.u32 %v178, 2147483648
  %v185 = vmul.f32 %v181, 1.442695
  %v186 = vpow.pop %v185
  %v187 = vmul.f32 %v182, 1.442695
  %v188 = vpow.pop %v187
  %v189 = vmul.f32 %v183, 1.442695
  %v190 = vpow.pop %v189
  %v191 = vmul.f32 %v184, 1.442695
  %v192 = vpow.pop %v191
  %v193 = vadd.f32 %v186, 1.0
  %v194 = vadd.f32 %v188, 1.0
  %v195 = vadd.f32 %v190, 1.0
  %v196 = vadd.f32 %v192, 1.0
  %v197 = vrcp.pop %v193
  %v198 = vmul.f32 1.0, %v197
  %v199 = vrcp.pop %v194
  %v200 = vmul.f32 1.0, %v199
  %v201 = vrcp.pop %v195
  %v202 = vmul.f32 1.0, %v201
  %v203 = vrcp.pop %v196
  %v204 = vmul.f32 1.0, %v203
  %v205 = vmul.f32 %v167, %v198
  %v206 = vmul.f32 %v170, %v200
  %v207 = vmul.f32 %v175, %v202
  %v208 = vmul.f32 %v178, %v204
  %v209 = vpack.c.bf16 %v206, %v205
  %v210 = vpack.c.bf16 %v208, %v207
  %v213 = vunpack.c.l.b16 %v209
  %v214 = vunpack.c.h.b16 %v209
  %v215 = vunpack.c.l.b16 %v210
  %v216 = vunpack.c.h.b16 %v210
  %v217 = vpack.c.b16 %v213, %v213
  %v218 = vpack.c.b16 %v214, %v214
  %v219 = vpack.c.b16 %v215, %v215
  %v220 = vpack.c.b16 %v216, %v216
  %225 = vst [vmem:[%s5] sm:$0xf] %v217
  %226 = vst [vmem:[%s5 + $0x4] sm:$0xf] %v218
  %227 = vst [vmem:[%s5 + $0x8] sm:$0xf] %v219
  %228 = vst [vmem:[%s5 + $0xc] sm:$0xf] %v220
  // Predicated region
  $region22: #{classifier3_forward.36} parent=0 // pred_check
    _
  $region23: #{classifier3_forward.36} parent=0 // pred_check_branch
    %230 = sbr.rel (0) target = $region25
  $region24: #{classifier3_forward.36} parent=0 // pred_region
    _
  $region25: #{classifier3_forward.36} parent=0 // pred_fallthru
    _
  // Predicated region
  $region26: #{classifier3_forward.36} parent=0 // pred_check
    _
  $region27: #{classifier3_forward.36} parent=0 // pred_check_branch
    %232 = sbr.rel (0) target = $region29
  $region28: #{classifier3_forward.36} parent=0 // pred_region
    _
  $region29: #{classifier3_forward.36} parent=0 // pred_fallthru
    _

// kernel: classifier3_forward.34
$region0: #{classifier3_forward.34}
  #allocation0 [shape = 'u32[]', space=smem, size = 0x4, offset = 0x4, fixed_abs, tag = 'smem constant byte address 0x4 - core index']
  #allocation1 [shape = 'u32[144,128]{1,0:T(1,128)}', space=vmem, size = 0x12000, scoped, tag = 'internal scratch']
  %s0 = inlined_call_operand.vmem [shape: f32[32,40], index: 0, kind: input, shape index: {}]
  %s1 = inlined_call_operand.vmem [shape: bf16[40,64], index: 1, kind: input, shape index: {}]
  %s2 = inlined_call_operand.vmem [shape: f32[1,64], index: 2, kind: input, shape index: {}]
  %s3 = inlined_call_operand.vmem [shape: bf16[32,64], index: 3, kind: output, shape index: {}]
  %s4 = sld [smem:[#allocation0]]
  $region22: #{classifier3_forward.34} parent=0
    _
  %s6 = ssub.s32 1, %s4
  %s7 = scalar_select 0, %s6, %s4
  // Predicated region
  $region2: #{classifier3_forward.34} parent=0 // pred_check
    _
  $region3: #{classifier3_forward.34} parent=0 // pred_check_branch
    %9 = sbr.rel (0) target = $region5
  $region4: #{classifier3_forward.34} parent=0 // pred_region
    _
  $region5: #{classifier3_forward.34} parent=0 // pred_fallthru
    _
  // Predicated region
  $region6: #{classifier3_forward.34} parent=0 // pred_check
    _
  $region7: #{classifier3_forward.34} parent=0 // pred_check_branch
    %11 = sbr.rel (0) target = $region9
  $region8: #{classifier3_forward.34} parent=0 // pred_region
    _
  $region9: #{classifier3_forward.34} parent=0 // pred_fallthru
    _
  // Predicated region
  $region10: #{classifier3_forward.34} parent=0 // pred_check
    _
  $region11: #{classifier3_forward.34} parent=0 // pred_check_branch
    %13 = sbr.rel (0) target = $region13
  $region12: #{classifier3_forward.34} parent=0 // pred_region
    _
  $region13: #{classifier3_forward.34} parent=0 // pred_fallthru
    _
  %v15 = vld [vmem:[%s0] sm:$0xff]
  %v16 = vld [vmem:[%s0 + $0x8] sm:$0xff]
  %v17 = vld [vmem:[%s0 + $0x10] sm:$0xff]
  %v18 = vld [vmem:[%s0 + $0x18] sm:$0xff]
  %v19 = vld [vmem:[%s1] sm:$0xf]
  %v20 = vld [vmem:[%s1 + $0x4] sm:$0xf]
  %v21 = vld [vmem:[%s1 + $0x8] sm:$0xf]
  %v22 = vld [vmem:[%s1 + $0xc] sm:$0xf]
  %v23 = vld [vmem:[%s1 + $0x10] sm:$0xf]
  %v24 = vpack.c.bf16 %v16, %v15
  %v25 = vpack.c.bf16 %v18, %v17
  %v26 = vld [vmem:[%s2] sm:$0x1]
  %v28 = vlaneseq
  %v29 = vshrl.u32 %v28, 7
  %v30 = vsub.s32 0, %v29
  %v31 = vrot.slane %v26, %v30
  %v38 = vunpack.c.l.b16 %v19
  %v39 = vunpack.c.l.b16 %v20
  %v40 = vunpack.c.l.b16 %v21
  %v41 = vunpack.c.l.b16 %v22
  %v42 = vunpack.c.l.b16 %v23
  %v43 = vpack.c.b16 %v39, %v38
  %v44 = vpack.c.b16 %v41, %v40
  %v45 = vpack.c.b16 %v42, %v42
  %vm48 = vcmask 326656
  %v50 = vsel %vm48, %v24, 0
  %v53 = vsel %vm48, %v25, 0
  %vm55 = vcmask 1043456
  %v57 = vsel %vm55, %v45, 0
  %59 = vmatprep.subr.bf16.mxu0 0
  %60 = vmatpush1.bf16.msra.mxu0 %v43
  %61 = vmatprep.subr.bf16.mxu0 0
  %62 = vmatpush1.bf16.msra.mxu0 %v44
  %63 = vmatprep.subr.bf16.mxu0 0
  %64 = vmatpush1.bf16.msra.mxu0 %v57
  %65 = vmatprep.subr.bf16.mxu0 0
  %66 = vmatpush1.bf16.msra.mxu0 0
  %67 = vmatprep.subr.bf16.mxu0 0
  %68 = vmatpush1.bf16.msra.mxu0 0
  %69 = vmatprep.subr.bf16.mxu0 0
  %70 = vmatpush1.bf16.msra.mxu0 0
  %71 = vmatprep.subr.bf16.mxu0 0
  %72 = vmatpush1.bf16.msra.mxu0 0
  %73 = vmatprep.subr.bf16.mxu0 0
  %74 = vmatpush1.bf16.msra.mxu0 0
  %75 = vmatprep.subr.bf16.mxu0 0
  %76 = vmatpush1.bf16.msra.mxu0 0
  %77 = vmatprep.subr.bf16.mxu0 0
  %78 = vmatpush1.bf16.msra.mxu0 0
  %79 = vmatprep.subr.bf16.mxu0 0
  %80 = vmatpush1.bf16.msra.mxu0 0
  %81 = vmatprep.subr.bf16.mxu0 0
  %82 = vmatpush1.bf16.msra.mxu0 0
  %83 = vmatprep.subr.bf16.mxu0 0
  %84 = vmatpush1.bf16.msra.mxu0 0
  %85 = vmatprep.subr.bf16.mxu0 0
  %86 = vmatpush1.bf16.msra.mxu0 0
  %87 = vmatprep.subr.bf16.mxu0 0
  %88 = vmatpush1.bf16.msra.mxu0 0
  %89 = vmatprep.subr.bf16.mxu0 0
  %90 = vmatpush1.bf16.msra.mxu0 0
  %91 = vmatprep.mubr.bf16.mxu0 0
  %92 = vmatmul.mubr.bf16.gmra.mrb[0].mxu0 %v50
  %v93 = vpop.f32.mrb[0].mxu0
  %v94 = vadd.f32 %v31, %v93
  %v95 = vpop.f32.mrb[0].mxu0
  %v96 = vpop.f32.mrb[0].mxu0
  %v97 = vadd.f32 %v31, %v96
  %v98 = vpop.f32.mrb[0].mxu0
  %99 = vmatprep.mubr.bf16.mxu0 0
  %100 = vmatmul.mubr.bf16.gmra.mrb[0].mxu0 %v53
  %v101 = vpop.f32.mrb[0].mxu0
  %v102 = vadd.f32 %v31, %v101
  %v103 = vpop.f32.mrb[0].mxu0
  %v104 = vpop.f32.mrb[0].mxu0
  %v105 = vadd.f32 %v31, %v104
  %v106 = vpop.f32.mrb[0].mxu0
  %107 = vdwg.mxu0
  %v108 = vpack.c.bf16 %v97, %v94
  %v109 = vpack.c.bf16 %v105, %v102
  %v112 = vunpack.c.l.b16 %v108
  %v113 = vunpack.c.h.b16 %v108
  %v114 = vunpack.c.l.b16 %v109
  %v115 = vunpack.c.h.b16 %v109
  %v116 = vpack.c.b16 %v112, %v112
  %v117 = vpack.c.b16 %v113, %v113
  %v118 = vpack.c.b16 %v114, %v114
  %v119 = vpack.c.b16 %v115, %v115
  %vm124 = vcmask 519168
  %125 = vst.msk [vmem:[%s3] sm:$0xf] %vm124, %v116
  %126 = vst.msk [vmem:[%s3 + $0x4] sm:$0xf] %vm124, %v117
  %127 = vst.msk [vmem:[%s3 + $0x8] sm:$0xf] %vm124, %v118
  %128 = vst.msk [vmem:[%s3 + $0xc] sm:$0xf] %vm124, %v119
  // Predicated region
  $region14: #{classifier3_forward.34} parent=0 // pred_check
    _
  $region15: #{classifier3_forward.34} parent=0 // pred_check_branch
    %130 = sbr.rel (0) target = $region17
  $region16: #{classifier3_forward.34} parent=0 // pred_region
    _
  $region17: #{classifier3_forward.34} parent=0 // pred_fallthru
    _
  // Predicated region
  $region18: #{classifier3_forward.34} parent=0 // pred_check
    _
  $region19: #{classifier3_forward.34} parent=0 // pred_check_branch
    %132 = sbr.rel (0) target = $region21
  $region20: #{classifier3_forward.34} parent=0 // pred_region
    _
  $region21: #{classifier3_forward.34} parent=0 // pred_fallthru
    _

// kernel: classifier3_forward.35
$region0: #{classifier3_forward.35}
  #allocation0 [shape = 'u32[]', space=smem, size = 0x4, offset = 0x4, fixed_abs, tag = 'smem constant byte address 0x4 - core index']
  #allocation1 [shape = 'u32[144,128]{1,0:T(1,128)}', space=vmem, size = 0x12000, scoped, tag = 'internal scratch']
  %s0 = inlined_call_operand.vmem [shape: bf16[32,64], index: 0, kind: input, shape index: {}]
  %s1 = inlined_call_operand.vmem [shape: bf16[64,32], index: 1, kind: input, shape index: {}]
  %s2 = inlined_call_operand.vmem [shape: f32[1,32], index: 2, kind: input, shape index: {}]
  %s3 = inlined_call_operand.vmem [shape: f32[32,32], index: 3, kind: output, shape index: {}]
  %s4 = sld [smem:[#allocation0]]
  $region22: #{classifier3_forward.35} parent=0
    _
  %s6 = ssub.s32 1, %s4
  %s7 = scalar_select 0, %s6, %s4
  // Predicated region
  $region2: #{classifier3_forward.35} parent=0 // pred_check
    _
  $region3: #{classifier3_forward.35} parent=0 // pred_check_branch
    %9 = sbr.rel (0) target = $region5
  $region4: #{classifier3_forward.35} parent=0 // pred_region
    _
  $region5: #{classifier3_forward.35} parent=0 // pred_fallthru
    _
  // Predicated region
  $region6: #{classifier3_forward.35} parent=0 // pred_check
    _
  $region7: #{classifier3_forward.35} parent=0 // pred_check_branch
    %11 = sbr.rel (0) target = $region9
  $region8: #{classifier3_forward.35} parent=0 // pred_region
    _
  $region9: #{classifier3_forward.35} parent=0 // pred_fallthru
    _
  // Predicated region
  $region10: #{classifier3_forward.35} parent=0 // pred_check
    _
  $region11: #{classifier3_forward.35} parent=0 // pred_check_branch
    %13 = sbr.rel (0) target = $region13
  $region12: #{classifier3_forward.35} parent=0 // pred_region
    _
  $region13: #{classifier3_forward.35} parent=0 // pred_fallthru
    _
  %v15 = vld [vmem:[%s0] sm:$0xf]
  %v16 = vld [vmem:[%s0 + $0x4] sm:$0xf]
  %v17 = vld [vmem:[%s0 + $0x8] sm:$0xf]
  %v18 = vld [vmem:[%s0 + $0xc] sm:$0xf]
  %v19 = vld [vmem:[%s1] sm:$0xf]
  %v20 = vld [vmem:[%s1 + $0x4] sm:$0xf]
  %v21 = vld [vmem:[%s1 + $0x8] sm:$0xf]
  %v22 = vld [vmem:[%s1 + $0xc] sm:$0xf]
  %v23 = vld [vmem:[%s1 + $0x10] sm:$0xf]
  %v24 = vld [vmem:[%s1 + $0x14] sm:$0xf]
  %v25 = vld [vmem:[%s1 + $0x18] sm:$0xf]
  %v26 = vld [vmem:[%s1 + $0x1c] sm:$0xf]
  %v27 = vld [vmem:[%s2] sm:$0x1]
  %v29 = vlaneseq
  %v30 = vshrl.u32 %v29, 7
  %v31 = vsub.s32 0, %v30
  %v32 = vrot.slane %v27, %v31
  %v38 = vunpack.c.l.b16 %v15
  %v39 = vunpack.c.l.b16 %v16
  %v40 = vunpack.c.l.b16 %v17
  %v41 = vunpack.c.l.b16 %v18
  %v42 = vpack.c.b16 %v39, %v38
  %v43 = vpack.c.b16 %v41, %v40
  %v52 = vunpack.c.l.b16 %v19
  %v53 = vunpack.c.l.b16 %v20
  %v54 = vunpack.c.l.b16 %v21
  %v55 = vunpack.c.l.b16 %v22
  %v56 = vunpack.c.l.b16 %v23
  %v57 = vunpack.c.l.b16 %v24
  %v58 = vunpack.c.l.b16 %v25
  %v59 = vunpack.c.l.b16 %v26
  %v60 = vpack.c.b16 %v53, %v52
  %v61 = vpack.c.b16 %v55, %v54
  %v62 = vpack.c.b16 %v57, %v56
  %v63 = vpack.c.b16 %v59, %v58
  %vm68 = vcmask 523264
  %v70 = vsel %vm68, %v42, 0
  %v73 = vsel %vm68, %v43, 0
  %75 = vmatprep.subr.bf16.mxu0 0
  %76 = vmatpush1.bf16.msra.mxu0 %v60
  %77 = vmatprep.subr.bf16.mxu0 0
  %78 = vmatpush1.bf16.msra.mxu0 %v61
  %79 = vmatprep.subr.bf16.mxu0 0
  %80 = vmatpush1.bf16.msra.mxu0 %v62
  %81 = vmatprep.subr.bf16.mxu0 0
  %82 = vmatpush1.bf16.msra.mxu0 %v63
  %83 = vmatprep.subr.bf16.mxu0 0
  %84 = vmatpush1.bf16.msra.mxu0 0
  %85 = vmatprep.subr.bf16.mxu0 0
  %86 = vmatpush1.bf16.msra.mxu0 0
  %87 = vmatprep.subr.bf16.mxu0 0
  %88 = vmatpush1.bf16.msra.mxu0 0
  %89 = vmatprep.subr.bf16.mxu0 0
  %90 = vmatpush1.bf16.msra.mxu0 0
  %91 = vmatprep.subr.bf16.mxu0 0
  %92 = vmatpush1.bf16.msra.mxu0 0
  %93 = vmatprep.subr.bf16.mxu0 0
  %94 = vmatpush1.bf16.msra.mxu0 0
  %95 = vmatprep.subr.bf16.mxu0 0
  %96 = vmatpush1.bf16.msra.mxu0 0
  %97 = vmatprep.subr.bf16.mxu0 0
  %98 = vmatpush1.bf16.msra.mxu0 0
  %99 = vmatprep.subr.bf16.mxu0 0
  %100 = vmatpush1.bf16.msra.mxu0 0
  %101 = vmatprep.subr.bf16.mxu0 0
  %102 = vmatpush1.bf16.msra.mxu0 0
  %103 = vmatprep.subr.bf16.mxu0 0
  %104 = vmatpush1.bf16.msra.mxu0 0
  %105 = vmatprep.subr.bf16.mxu0 0
  %106 = vmatpush1.bf16.msra.mxu0 0
  %107 = vmatprep.mubr.bf16.mxu0 0
  %108 = vmatmul.mubr.bf16.gmra.mrb[0].mxu0 %v70
  %v109 = vpop.f32.mrb[0].mxu0
  %v110 = vadd.f32 %v32, %v109
  %v111 = vpop.f32.mrb[0].mxu0
  %v112 = vpop.f32.mrb[0].mxu0
  %v113 = vadd.f32 %v32, %v112
  %v114 = vpop.f32.mrb[0].mxu0
  %115 = vmatprep.mubr.bf16.mxu0 0
  %116 = vmatmul.mubr.bf16.gmra.mrb[0].mxu0 %v73
  %v117 = vpop.f32.mrb[0].mxu0
  %v118 = vadd.f32 %v32, %v117
  %v119 = vpop.f32.mrb[0].mxu0
  %v120 = vpop.f32.mrb[0].mxu0
  %v121 = vadd.f32 %v32, %v120
  %v122 = vpop.f32.mrb[0].mxu0
  %123 = vdwg.mxu0
  %vm124 = vcmask 261120
  %125 = vst.msk [vmem:[%s3] sm:$0xff] %vm124, %v110
  %126 = vst.msk [vmem:[%s3 + $0x8] sm:$0xff] %vm124, %v113
  %127 = vst.msk [vmem:[%s3 + $0x10] sm:$0xff] %vm124, %v118
  %128 = vst.msk [vmem:[%s3 + $0x18] sm:$0xff] %vm124, %v121
  // Predicated region
  $region14: #{classifier3_forward.35} parent=0 // pred_check
    _
  $region15: #{classifier3_forward.35} parent=0 // pred_check_branch
    %130 = sbr.rel (0) target = $region17
  $region16: #{classifier3_forward.35} parent=0 // pred_region
    _
  $region17: #{classifier3_forward.35} parent=0 // pred_fallthru
    _
  // Predicated region
  $region18: #{classifier3_forward.35} parent=0 // pred_check
    _
  $region19: #{classifier3_forward.35} parent=0 // pred_check_branch
    %132 = sbr.rel (0) target = $region21
  $region20: #{classifier3_forward.35} parent=0 // pred_region
    _
  $region21: #{classifier3_forward.35} parent=0 // pred_fallthru
    _

// kernel: classifier3_forward.40
$region0: #{classifier3_forward.40}
  #allocation0 [shape = 'u32[]', space=smem, size = 0x4, offset = 0x4, fixed_abs, tag = 'smem constant byte address 0x4 - core index']
  #allocation1 [shape = 'u32[144,128]{1,0:T(1,128)}', space=vmem, size = 0x12000, scoped, tag = 'internal scratch']
  %s0 = inlined_call_operand.vmem [shape: bf16[32,32], index: 0, kind: input, shape index: {}]
  %s1 = inlined_call_operand.vmem [shape: bf16[32,32], index: 1, kind: input, shape index: {}]
  %s2 = inlined_call_operand.vmem [shape: f32[1,32], index: 2, kind: input, shape index: {}]
  %s3 = inlined_call_operand.vmem [shape: f32[32,32], index: 3, kind: input, shape index: {}]
  %s4 = inlined_call_operand.vmem [shape: f32[32,32], index: 4, kind: output, shape index: {}]
  %s5 = sld [smem:[#allocation0]]
  $region26: #{classifier3_forward.40} parent=0
    _
  %s7 = ssub.s32 1, %s5
  %s8 = scalar_select 0, %s7, %s5
  // Predicated region
  $region2: #{classifier3_forward.40} parent=0 // pred_check
    _
  $region3: #{classifier3_forward.40} parent=0 // pred_check_branch
    %10 = sbr.rel (0) target = $region5
  $region4: #{classifier3_forward.40} parent=0 // pred_region
    _
  $region5: #{classifier3_forward.40} parent=0 // pred_fallthru
    _
  // Predicated region
  $region6: #{classifier3_forward.40} parent=0 // pred_check
    _
  $region7: #{classifier3_forward.40} parent=0 // pred_check_branch
    %12 = sbr.rel (0) target = $region9
  $region8: #{classifier3_forward.40} parent=0 // pred_region
    _
  $region9: #{classifier3_forward.40} parent=0 // pred_fallthru
    _
  // Predicated region
  $region10: #{classifier3_forward.40} parent=0 // pred_check
    _
  $region11: #{classifier3_forward.40} parent=0 // pred_check_branch
    %14 = sbr.rel (0) target = $region13
  $region12: #{classifier3_forward.40} parent=0 // pred_region
    _
  $region13: #{classifier3_forward.40} parent=0 // pred_fallthru
    _
  // Predicated region
  $region14: #{classifier3_forward.40} parent=0 // pred_check
    _
  $region15: #{classifier3_forward.40} parent=0 // pred_check_branch
    %16 = sbr.rel (0) target = $region17
  $region16: #{classifier3_forward.40} parent=0 // pred_region
    _
  $region17: #{classifier3_forward.40} parent=0 // pred_fallthru
    _
  %v18 = vld [vmem:[%s0] sm:$0xf]
  %v19 = vld [vmem:[%s0 + $0x4] sm:$0xf]
  %v20 = vld [vmem:[%s0 + $0x8] sm:$0xf]
  %v21 = vld [vmem:[%s0 + $0xc] sm:$0xf]
  %v22 = vld [vmem:[%s1] sm:$0xf]
  %v23 = vld [vmem:[%s1 + $0x4] sm:$0xf]
  %v24 = vld [vmem:[%s1 + $0x8] sm:$0xf]
  %v25 = vld [vmem:[%s1 + $0xc] sm:$0xf]
  %v26 = vld [vmem:[%s2] sm:$0x1]
  %v28 = vlaneseq
  %v29 = vshrl.u32 %v28, 7
  %v30 = vsub.s32 0, %v29
  %v31 = vrot.slane %v26, %v30
  %v37 = vunpack.c.l.b16 %v18
  %v38 = vunpack.c.l.b16 %v19
  %v39 = vunpack.c.l.b16 %v20
  %v40 = vunpack.c.l.b16 %v21
  %v41 = vpack.c.b16 %v38, %v37
  %v42 = vpack.c.b16 %v40, %v39
  %v47 = vunpack.c.l.b16 %v22
  %v48 = vunpack.c.l.b16 %v23
  %v49 = vunpack.c.l.b16 %v24
  %v50 = vunpack.c.l.b16 %v25
  %v51 = vpack.c.b16 %v48, %v47
  %v52 = vpack.c.b16 %v50, %v49
  %vm55 = vcmask 261120
  %v57 = vsel %vm55, %v41, 0
  %v60 = vsel %vm55, %v42, 0
  %62 = vmatprep.subr.bf16.mxu0 0
  %63 = vmatpush1.bf16.msra.mxu0 %v51
  %64 = vmatprep.subr.bf16.mxu0 0
  %65 = vmatpush1.bf16.msra.mxu0 %v52
  %66 = vmatprep.subr.bf16.mxu0 0
  %67 = vmatpush1.bf16.msra.mxu0 0
  %68 = vmatprep.subr.bf16.mxu0 0
  %69 = vmatpush1.bf16.msra.mxu0 0
  %70 = vmatprep.subr.bf16.mxu0 0
  %71 = vmatpush1.bf16.msra.mxu0 0
  %72 = vmatprep.subr.bf16.mxu0 0
  %73 = vmatpush1.bf16.msra.mxu0 0
  %74 = vmatprep.subr.bf16.mxu0 0
  %75 = vmatpush1.bf16.msra.mxu0 0
  %76 = vmatprep.subr.bf16.mxu0 0
  %77 = vmatpush1.bf16.msra.mxu0 0
  %78 = vmatprep.subr.bf16.mxu0 0
  %79 = vmatpush1.bf16.msra.mxu0 0
  %80 = vmatprep.subr.bf16.mxu0 0
  %81 = vmatpush1.bf16.msra.mxu0 0
  %82 = vmatprep.subr.bf16.mxu0 0
  %83 = vmatpush1.bf16.msra.mxu0 0
  %84 = vmatprep.subr.bf16.mxu0 0
  %85 = vmatpush1.bf16.msra.mxu0 0
  %86 = vmatprep.subr.bf16.mxu0 0
  %87 = vmatpush1.bf16.msra.mxu0 0
  %88 = vmatprep.subr.bf16.mxu0 0
  %89 = vmatpush1.bf16.msra.mxu0 0
  %90 = vmatprep.subr.bf16.mxu0 0
  %91 = vmatpush1.bf16.msra.mxu0 0
  %92 = vmatprep.subr.bf16.mxu0 0
  %93 = vmatpush1.bf16.msra.mxu0 0
  %94 = vmatprep.mubr.bf16.mxu0 0
  %95 = vmatmul.mubr.bf16.gmra.mrb[0].mxu0 %v57
  %v96 = vpop.f32.mrb[0].mxu0
  %v97 = vadd.f32 %v31, %v96
  %v98 = vpop.f32.mrb[0].mxu0
  %v99 = vpop.f32.mrb[0].mxu0
  %v100 = vadd.f32 %v31, %v99
  %v101 = vpop.f32.mrb[0].mxu0
  %102 = vmatprep.mubr.bf16.mxu0 0
  %103 = vmatmul.mubr.bf16.gmra.mrb[0].mxu0 %v60
  %v104 = vpop.f32.mrb[0].mxu0
  %v105 = vadd.f32 %v31, %v104
  %v106 = vpop.f32.mrb[0].mxu0
  %v107 = vpop.f32.mrb[0].mxu0
  %v108 = vadd.f32 %v31, %v107
  %v109 = vpop.f32.mrb[0].mxu0
  %110 = vdwg.mxu0
  %v111 = vld [vmem:[%s3] sm:$0xff]
  %v112 = vld [vmem:[%s3 + $0x8] sm:$0xff]
  %v113 = vld [vmem:[%s3 + $0x10] sm:$0xff]
  %v114 = vld [vmem:[%s3 + $0x18] sm:$0xff]
  %v115 = vadd.f32 %v111, %v97
  %v116 = vadd.f32 %v112, %v100
  %v117 = vadd.f32 %v113, %v105
  %v118 = vadd.f32 %v114, %v108
  %119 = vst.msk [vmem:[%s4] sm:$0xff] %vm55, %v115
  %120 = vst.msk [vmem:[%s4 + $0x8] sm:$0xff] %vm55, %v116
  %121 = vst.msk [vmem:[%s4 + $0x10] sm:$0xff] %vm55, %v117
  %122 = vst.msk [vmem:[%s4 + $0x18] sm:$0xff] %vm55, %v118
  // Predicated region
  $region18: #{classifier3_forward.40} parent=0 // pred_check
    _
  $region19: #{classifier3_forward.40} parent=0 // pred_check_branch
    %124 = sbr.rel (0) target = $region21
  $region20: #{classifier3_forward.40} parent=0 // pred_region
    _
  $region21: #{classifier3_forward.40} parent=0 // pred_fallthru
    _
  // Predicated region
  $region22: #{classifier3_forward.40} parent=0 // pred_check
    _
  $region23: #{classifier3_forward.40} parent=0 // pred_check_branch
    %126 = sbr.rel (0) target = $region25
  $region24: #{classifier3_forward.40} parent=0 // pred_region
    _
  $region25: #{classifier3_forward.40} parent=0 // pred_fallthru
    _

// kernel: classifier3_forward.38
$region0: #{classifier3_forward.38}
  #allocation0 [shape = 'u32[]', space=smem, size = 0x4, offset = 0x4, fixed_abs, tag = 'smem constant byte address 0x4 - core index']
  #allocation1 [shape = 'u32[144,128]{1,0:T(1,128)}', space=vmem, size = 0x12000, scoped, tag = 'internal scratch']
  %s0 = inlined_call_operand.vmem [shape: f32[32,32], index: 0, kind: input, shape index: {}]
  %s1 = inlined_call_operand.vmem [shape: f32[1,32], index: 1, kind: input, shape index: {}]
  %s2 = inlined_call_operand.vmem [shape: f32[1,32], index: 2, kind: input, shape index: {}]
  %s3 = inlined_call_operand.vmem [shape: bf16[32,96], index: 3, kind: input, shape index: {}]
  %s4 = inlined_call_operand.vmem [shape: f32[1,96], index: 4, kind: input, shape index: {}]
  %s5 = inlined_call_operand.vmem [shape: bf16[32,96], index: 5, kind: output, shape index: {}]
  %s6 = sld [smem:[#allocation0]]
  $region30: #{classifier3_forward.38} parent=0
    _
  %s8 = ssub.s32 1, %s6
  %s9 = scalar_select 0, %s8, %s6
  // Predicated region
  $region2: #{classifier3_forward.38} parent=0 // pred_check
    _
  $region3: #{classifier3_forward.38} parent=0 // pred_check_branch
    %11 = sbr.rel (0) target = $region5
  $region4: #{classifier3_forward.38} parent=0 // pred_region
    _
  $region5: #{classifier3_forward.38} parent=0 // pred_fallthru
    _
  // Predicated region
  $region6: #{classifier3_forward.38} parent=0 // pred_check
    _
  $region7: #{classifier3_forward.38} parent=0 // pred_check_branch
    %13 = sbr.rel (0) target = $region9
  $region8: #{classifier3_forward.38} parent=0 // pred_region
    _
  $region9: #{classifier3_forward.38} parent=0 // pred_fallthru
    _
  // Predicated region
  $region10: #{classifier3_forward.38} parent=0 // pred_check
    _
  $region11: #{classifier3_forward.38} parent=0 // pred_check_branch
    %15 = sbr.rel (0) target = $region13
  $region12: #{classifier3_forward.38} parent=0 // pred_region
    _
  $region13: #{classifier3_forward.38} parent=0 // pred_fallthru
    _
  // Predicated region
  $region14: #{classifier3_forward.38} parent=0 // pred_check
    _
  $region15: #{classifier3_forward.38} parent=0 // pred_check_branch
    %17 = sbr.rel (0) target = $region17
  $region16: #{classifier3_forward.38} parent=0 // pred_region
    _
  $region17: #{classifier3_forward.38} parent=0 // pred_fallthru
    _
  // Predicated region
  $region18: #{classifier3_forward.38} parent=0 // pred_check
    _
  $region19: #{classifier3_forward.38} parent=0 // pred_check_branch
    %19 = sbr.rel (0) target = $region21
  $region20: #{classifier3_forward.38} parent=0 // pred_region
    _
  $region21: #{classifier3_forward.38} parent=0 // pred_fallthru
    _
  %v21 = vld [vmem:[%s0] sm:$0xff]
  %v22 = vld [vmem:[%s0 + $0x8] sm:$0xff]
  %v23 = vld [vmem:[%s0 + $0x10] sm:$0xff]
  %v24 = vld [vmem:[%s0 + $0x18] sm:$0xff]
  %v25 = vld [vmem:[%s1] sm:$0x1]
  %v26 = vld [vmem:[%s2] sm:$0x1]
  %vm27 = vcmask 261120
  %v28 = vsel %vm27, %v21, 0.0
  %29 = vadd.xlane.f32.xlu0 %v28
  %v30 = vpop.xlane.xlu0 %29
  %v31 = vsel %vm27, %v22, 0.0
  %32 = vadd.xlane.f32.xlu0 %v31
  %v33 = vpop.xlane.xlu0 %32
  %v34 = vsel %vm27, %v23, 0.0
  %35 = vadd.xlane.f32.xlu0 %v34
  %v36 = vpop.xlane.xlu0 %35
  %v37 = vsel %vm27, %v24, 0.0
  %38 = vadd.xlane.f32.xlu0 %v37
  %v39 = vpop.xlane.xlu0 %38
  %v40 = vrcp.pop 32.0
  %v41 = vmul.f32 %v30, %v40
  %v42 = vmul.f32 %v33, %v40
  %v43 = vmul.f32 %v36, %v40
  %v44 = vmul.f32 %v39, %v40
  %v45 = vsub.f32 %v21, %v41
  %v46 = vsub.f32 %v22, %v42
  %v47 = vsub.f32 %v23, %v43
  %v48 = vsub.f32 %v24, %v44
  %v49 = vmul.f32 %v45, %v45
  %v50 = vmul.f32 %v46, %v46
  %v51 = vmul.f32 %v47, %v47
  %v52 = vmul.f32 %v48, %v48
  %v53 = vsel %vm27, %v49, 0.0
  %54 = vadd.xlane.f32.xlu0 %v53
  %v55 = vpop.xlane.xlu0 %54
  %v56 = vsel %vm27, %v50, 0.0
  %57 = vadd.xlane.f32.xlu0 %v56
  %v58 = vpop.xlane.xlu0 %57
  %v59 = vsel %vm27, %v51, 0.0
  %60 = vadd.xlane.f32.xlu0 %v59
  %v61 = vpop.xlane.xlu0 %60
  %v62 = vsel %vm27, %v52, 0.0
  %63 = vadd.xlane.f32.xlu0 %v62
  %v64 = vpop.xlane.xlu0 %63
  %v65 = vmul.f32 %v55, %v40
  %v66 = vmul.f32 %v58, %v40
  %v67 = vmul.f32 %v61, %v40
  %v68 = vmul.f32 %v64, %v40
  %v69 = vadd.f32 %v65, 1e-05
  %v70 = vadd.f32 %v66, 1e-05
  %v71 = vadd.f32 %v67, 1e-05
  %v72 = vadd.f32 %v68, 1e-05
  %v73 = vrsqrt.pop %v69
  %v74 = vrsqrt.pop %v70
  %v75 = vrsqrt.pop %v71
  %v76 = vrsqrt.pop %v72
  %v77 = vmul.f32 %v45, %v73
  %v78 = vmul.f32 %v46, %v74
  %v79 = vmul.f32 %v47, %v75
  %v80 = vmul.f32 %v48, %v76
  %v82 = vlaneseq
  %v83 = vshrl.u32 %v82, 7
  %v84 = vsub.s32 0, %v83
  %v85 = vrot.slane %v25, %v84
  %v87 = vmul.f32 %v77, %v85
  %v88 = vmul.f32 %v78, %v85
  %v89 = vmul.f32 %v79, %v85
  %v90 = vmul.f32 %v80, %v85
  %v92 = vlaneseq
  %v93 = vshrl.u32 %v92, 7
  %v94 = vsub.s32 0, %v93
  %v95 = vrot.slane %v26, %v94
  %v97 = vadd.f32 %v87, %v95
  %v98 = vadd.f32 %v88, %v95
  %v99 = vadd.f32 %v89, %v95
  %v100 = vadd.f32 %v90, %v95
  %v101 = vld [vmem:[%s3] sm:$0xf]
  %v102 = vld [vmem:[%s3 + $0x4] sm:$0xf]
  %v103 = vld [vmem:[%s3 + $0x8] sm:$0xf]
  %v104 = vld [vmem:[%s3 + $0xc] sm:$0xf]
  %v105 = vpack.c.bf16 %v98, %v97
  %v106 = vpack.c.bf16 %v100, %v99
  %v107 = vld [vmem:[%s4] sm:$0x1]
  %v109 = vlaneseq
  %v110 = vshrl.u32 %v109, 7
  %v111 = vsub.s32 0, %v110
  %v112 = vrot.slane %v107, %v111
  %v118 = vunpack.c.l.b16 %v101
  %v119 = vunpack.c.l.b16 %v102
  %v120 = vunpack.c.l.b16 %v103
  %v121 = vunpack.c.l.b16 %v104
  %v122 = vpack.c.b16 %v119, %v118
  %v123 = vpack.c.b16 %v121, %v120
  %v127 = vsel %vm27, %v105, 0
  %v130 = vsel %vm27, %v106, 0
  %132 = vmatprep.subr.bf16.mxu0 0
  %133 = vmatpush1.bf16.msra.mxu0 %v122
  %134 = vmatprep.subr.bf16.mxu0 0
  %135 = vmatpush1.bf16.msra.mxu0 %v123
  %136 = vmatprep.subr.bf16.mxu0 0
  %137 = vmatpush1.bf16.msra.mxu0 0
  %138 = vmatprep.subr.bf16.mxu0 0
  %139 = vmatpush1.bf16.msra.mxu0 0
  %140 = vmatprep.subr.bf16.mxu0 0
  %141 = vmatpush1.bf16.msra.mxu0 0
  %142 = vmatprep.subr.bf16.mxu0 0
  %143 = vmatpush1.bf16.msra.mxu0 0
  %144 = vmatprep.subr.bf16.mxu0 0
  %145 = vmatpush1.bf16.msra.mxu0 0
  %146 = vmatprep.subr.bf16.mxu0 0
  %147 = vmatpush1.bf16.msra.mxu0 0
  %148 = vmatprep.subr.bf16.mxu0 0
  %149 = vmatpush1.bf16.msra.mxu0 0
  %150 = vmatprep.subr.bf16.mxu0 0
  %151 = vmatpush1.bf16.msra.mxu0 0
  %152 = vmatprep.subr.bf16.mxu0 0
  %153 = vmatpush1.bf16.msra.mxu0 0
  %154 = vmatprep.subr.bf16.mxu0 0
  %155 = vmatpush1.bf16.msra.mxu0 0
  %156 = vmatprep.subr.bf16.mxu0 0
  %157 = vmatpush1.bf16.msra.mxu0 0
  %158 = vmatprep.subr.bf16.mxu0 0
  %159 = vmatpush1.bf16.msra.mxu0 0
  %160 = vmatprep.subr.bf16.mxu0 0
  %161 = vmatpush1.bf16.msra.mxu0 0
  %162 = vmatprep.subr.bf16.mxu0 0
  %163 = vmatpush1.bf16.msra.mxu0 0
  %164 = vmatprep.mubr.bf16.mxu0 0
  %165 = vmatmul.mubr.bf16.gmra.mrb[0].mxu0 %v127
  %v166 = vpop.f32.mrb[0].mxu0
  %v167 = vadd.f32 %v112, %v166
  %v168 = vpop.f32.mrb[0].mxu0
  %v169 = vpop.f32.mrb[0].mxu0
  %v170 = vadd.f32 %v112, %v169
  %v171 = vpop.f32.mrb[0].mxu0
  %172 = vmatprep.mubr.bf16.mxu0 0
  %173 = vmatmul.mubr.bf16.gmra.mrb[0].mxu0 %v130
  %v174 = vpop.f32.mrb[0].mxu0
  %v175 = vadd.f32 %v112, %v174
  %v176 = vpop.f32.mrb[0].mxu0
  %v177 = vpop.f32.mrb[0].mxu0
  %v178 = vadd.f32 %v112, %v177
  %v179 = vpop.f32.mrb[0].mxu0
  %180 = vdwg.mxu0
  %v181 = vpack.c.bf16 %v170, %v167
  %v182 = vpack.c.bf16 %v178, %v175
  %v185 = vunpack.c.l.b16 %v181
  %v186 = vunpack.c.h.b16 %v181
  %v187 = vunpack.c.l.b16 %v182
  %v188 = vunpack.c.h.b16 %v182
  %v189 = vpack.c.b16 %v185, %v185
  %v190 = vpack.c.b16 %v186, %v186
  %v191 = vpack.c.b16 %v187, %v187
  %v192 = vpack.c.b16 %v188, %v188
  %vm197 = vcmask 781312
  %198 = vst.msk [vmem:[%s5] sm:$0xf] %vm197, %v189
  %199 = vst.msk [vmem:[%s5 + $0x4] sm:$0xf] %vm197, %v190
  %200 = vst.msk [vmem:[%s5 + $0x8] sm:$0xf] %vm197, %v191
  %201 = vst.msk [vmem:[%s5 + $0xc] sm:$0xf] %vm197, %v192
  // Predicated region
  $region22: #{classifier3_forward.38} parent=0 // pred_check
    _
  $region23: #{classifier3_forward.38} parent=0 // pred_check_branch
    %203 = sbr.rel (0) target = $region25
  $region24: #{classifier3_forward.38} parent=0 // pred_region
    _
  $region25: #{classifier3_forward.38} parent=0 // pred_fallthru
    _
  // Predicated region
  $region26: #{classifier3_forward.38} parent=0 // pred_check
    _
  $region27: #{classifier3_forward.38} parent=0 // pred_check_branch
    %205 = sbr.rel (0) target = $region29
  $region28: #{classifier3_forward.38} parent=0 // pred_region
    _
  $region29: #{classifier3_forward.38} parent=0 // pred_fallthru
    _

// kernel: classifier3_forward.37
$region0: #{classifier3_forward.37}
  #allocation0 [shape = 'u32[]', space=smem, size = 0x4, offset = 0x4, fixed_abs, tag = 'smem constant byte address 0x4 - core index']
  #allocation1 [shape = 'u32[144,128]{1,0:T(1,128)}', space=vmem, size = 0x12000, scoped, tag = 'internal scratch']
  %s0 = inlined_call_operand.vmem [shape: bf16[32,128], index: 0, kind: input, shape index: {}]
  %s1 = inlined_call_operand.vmem [shape: bf16[128,32], index: 1, kind: input, shape index: {}]
  %s2 = inlined_call_operand.vmem [shape: f32[1,32], index: 2, kind: input, shape index: {}]
  %s3 = inlined_call_operand.vmem [shape: f32[32,32], index: 3, kind: input, shape index: {}]
  %s4 = inlined_call_operand.vmem [shape: f32[32,32], index: 4, kind: output, shape index: {}]
  %s5 = sld [smem:[#allocation0]]
  $region26: #{classifier3_forward.37} parent=0
    _
  %s7 = ssub.s32 1, %s5
  %s8 = scalar_select 0, %s7, %s5
  // Predicated region
  $region2: #{classifier3_forward.37} parent=0 // pred_check
    _
  $region3: #{classifier3_forward.37} parent=0 // pred_check_branch
    %10 = sbr.rel (0) target = $region5
  $region4: #{classifier3_forward.37} parent=0 // pred_region
    _
  $region5: #{classifier3_forward.37} parent=0 // pred_fallthru
    _
  // Predicated region
  $region6: #{classifier3_forward.37} parent=0 // pred_check
    _
  $region7: #{classifier3_forward.37} parent=0 // pred_check_branch
    %12 = sbr.rel (0) target = $region9
  $region8: #{classifier3_forward.37} parent=0 // pred_region
    _
  $region9: #{classifier3_forward.37} parent=0 // pred_fallthru
    _
  // Predicated region
  $region10: #{classifier3_forward.37} parent=0 // pred_check
    _
  $region11: #{classifier3_forward.37} parent=0 // pred_check_branch
    %14 = sbr.rel (0) target = $region13
  $region12: #{classifier3_forward.37} parent=0 // pred_region
    _
  $region13: #{classifier3_forward.37} parent=0 // pred_fallthru
    _
  // Predicated region
  $region14: #{classifier3_forward.37} parent=0 // pred_check
    _
  $region15: #{classifier3_forward.37} parent=0 // pred_check_branch
    %16 = sbr.rel (0) target = $region17
  $region16: #{classifier3_forward.37} parent=0 // pred_region
    _
  $region17: #{classifier3_forward.37} parent=0 // pred_fallthru
    _
  %v18 = vld [vmem:[%s0] sm:$0xf]
  %v19 = vld [vmem:[%s0 + $0x4] sm:$0xf]
  %v20 = vld [vmem:[%s0 + $0x8] sm:$0xf]
  %v21 = vld [vmem:[%s0 + $0xc] sm:$0xf]
  %v22 = vld [vmem:[%s1] sm:$0xf]
  %v23 = vld [vmem:[%s1 + $0x4] sm:$0xf]
  %v24 = vld [vmem:[%s1 + $0x8] sm:$0xf]
  %v25 = vld [vmem:[%s1 + $0xc] sm:$0xf]
  %v26 = vld [vmem:[%s1 + $0x10] sm:$0xf]
  %v27 = vld [vmem:[%s1 + $0x14] sm:$0xf]
  %v28 = vld [vmem:[%s1 + $0x18] sm:$0xf]
  %v29 = vld [vmem:[%s1 + $0x1c] sm:$0xf]
  %v30 = vld [vmem:[%s1 + $0x20] sm:$0xf]
  %v31 = vld [vmem:[%s1 + $0x24] sm:$0xf]
  %v32 = vld [vmem:[%s1 + $0x28] sm:$0xf]
  %v33 = vld [vmem:[%s1 + $0x2c] sm:$0xf]
  %v34 = vld [vmem:[%s1 + $0x30] sm:$0xf]
  %v35 = vld [vmem:[%s1 + $0x34] sm:$0xf]
  %v36 = vld [vmem:[%s1 + $0x38] sm:$0xf]
  %v37 = vld [vmem:[%s1 + $0x3c] sm:$0xf]
  %v38 = vld [vmem:[%s2] sm:$0x1]
  %v40 = vlaneseq
  %v41 = vshrl.u32 %v40, 7
  %v42 = vsub.s32 0, %v41
  %v43 = vrot.slane %v38, %v42
  %v49 = vunpack.c.l.b16 %v18
  %v50 = vunpack.c.l.b16 %v19
  %v51 = vunpack.c.l.b16 %v20
  %v52 = vunpack.c.l.b16 %v21
  %v53 = vpack.c.b16 %v50, %v49
  %v54 = vpack.c.b16 %v52, %v51
  %v73 = vunpack.c.l.b16 %v22
  %v74 = vunpack.c.l.b16 %v23
  %v75 = vunpack.c.l.b16 %v24
  %v76 = vunpack.c.l.b16 %v25
  %v77 = vunpack.c.l.b16 %v26
  %v78 = vunpack.c.l.b16 %v27
  %v79 = vunpack.c.l.b16 %v28
  %v80 = vunpack.c.l.b16 %v29
  %v81 = vunpack.c.l.b16 %v30
  %v82 = vunpack.c.l.b16 %v31
  %v83 = vunpack.c.l.b16 %v32
  %v84 = vunpack.c.l.b16 %v33
  %v85 = vunpack.c.l.b16 %v34
  %v86 = vunpack.c.l.b16 %v35
  %v87 = vunpack.c.l.b16 %v36
  %v88 = vunpack.c.l.b16 %v37
  %v89 = vpack.c.b16 %v74, %v73
  %v90 = vpack.c.b16 %v76, %v75
  %v91 = vpack.c.b16 %v78, %v77
  %v92 = vpack.c.b16 %v80, %v79
  %v93 = vpack.c.b16 %v82, %v81
  %v94 = vpack.c.b16 %v84, %v83
  %v95 = vpack.c.b16 %v86, %v85
  %v96 = vpack.c.b16 %v88, %v87
  %105 = vmatprep.subr.bf16.mxu0 0
  %106 = vmatpush1.bf16.msra.mxu0 %v89
  %107 = vmatprep.subr.bf16.mxu0 0
  %108 = vmatpush1.bf16.msra.mxu0 %v90
  %109 = vmatprep.subr.bf16.mxu0 0
  %110 = vmatpush1.bf16.msra.mxu0 %v91
  %111 = vmatprep.subr.bf16.mxu0 0
  %112 = vmatpush1.bf16.msra.mxu0 %v92
  %113 = vmatprep.subr.bf16.mxu0 0
  %114 = vmatpush1.bf16.msra.mxu0 %v93
  %115 = vmatprep.subr.bf16.mxu0 0
  %116 = vmatpush1.bf16.msra.mxu0 %v94
  %117 = vmatprep.subr.bf16.mxu0 0
  %118 = vmatpush1.bf16.msra.mxu0 %v95
  %119 = vmatprep.subr.bf16.mxu0 0
  %120 = vmatpush1.bf16.msra.mxu0 %v96
  %121 = vmatprep.subr.bf16.mxu0 0
  %122 = vmatpush1.bf16.msra.mxu0 0
  %123 = vmatprep.subr.bf16.mxu0 0
  %124 = vmatpush1.bf16.msra.mxu0 0
  %125 = vmatprep.subr.bf16.mxu0 0
  %126 = vmatpush1.bf16.msra.mxu0 0
  %127 = vmatprep.subr.bf16.mxu0 0
  %128 = vmatpush1.bf16.msra.mxu0 0
  %129 = vmatprep.subr.bf16.mxu0 0
  %130 = vmatpush1.bf16.msra.mxu0 0
  %131 = vmatprep.subr.bf16.mxu0 0
  %132 = vmatpush1.bf16.msra.mxu0 0
  %133 = vmatprep.subr.bf16.mxu0 0
  %134 = vmatpush1.bf16.msra.mxu0 0
  %135 = vmatprep.subr.bf16.mxu0 0
  %136 = vmatpush1.bf16.msra.mxu0 0
  %137 = vmatprep.mubr.bf16.mxu0 0
  %138 = vmatmul.mubr.bf16.gmra.mrb[0].mxu0 %v53
  %v139 = vpop.f32.mrb[0].mxu0
  %v140 = vadd.f32 %v43, %v139
  %v141 = vpop.f32.mrb[0].mxu0
  %v142 = vpop.f32.mrb[0].mxu0
  %v143 = vadd.f32 %v43, %v142
  %v144 = vpop.f32.mrb[0].mxu0
  %145 = vmatprep.mubr.bf16.mxu0 0
  %146 = vmatmul.mubr.bf16.gmra.mrb[0].mxu0 %v54
  %v147 = vpop.f32.mrb[0].mxu0
  %v148 = vadd.f32 %v43, %v147
  %v149 = vpop.f32.mrb[0].mxu0
  %v150 = vpop.f32.mrb[0].mxu0
  %v151 = vadd.f32 %v43, %v150
  %v152 = vpop.f32.mrb[0].mxu0
  %153 = vdwg.mxu0
  %v154 = vld [vmem:[%s3] sm:$0xff]
  %v155 = vld [vmem:[%s3 + $0x8] sm:$0xff]
  %v156 = vld [vmem:[%s3 + $0x10] sm:$0xff]
  %v157 = vld [vmem:[%s3 + $0x18] sm:$0xff]
  %v158 = vmul.f32 %v140, 0.5
  %v159 = vmul.f32 %v143, 0.5
  %v160 = vmul.f32 %v148, 0.5
  %v161 = vmul.f32 %v151, 0.5
  %v162 = vadd.f32 %v154, %v158
  %v163 = vadd.f32 %v155, %v159
  %v164 = vadd.f32 %v156, %v160
  %v165 = vadd.f32 %v157, %v161
  %vm166 = vcmask 261120
  %167 = vst.msk [vmem:[%s4] sm:$0xff] %vm166, %v162
  %168 = vst.msk [vmem:[%s4 + $0x8] sm:$0xff] %vm166, %v163
  %169 = vst.msk [vmem:[%s4 + $0x10] sm:$0xff] %vm166, %v164
  %170 = vst.msk [vmem:[%s4 + $0x18] sm:$0xff] %vm166, %v165
  // Predicated region
  $region18: #{classifier3_forward.37} parent=0 // pred_check
    _
  $region19: #{classifier3_forward.37} parent=0 // pred_check_branch
    %172 = sbr.rel (0) target = $region21
  $region20: #{classifier3_forward.37} parent=0 // pred_region
    _
  $region21: #{classifier3_forward.37} parent=0 // pred_fallthru
    _
  // Predicated region
  $region22: #{classifier3_forward.37} parent=0 // pred_check
    _
  $region23: #{classifier3_forward.37} parent=0 // pred_check_branch
    %174 = sbr.rel (0) target = $region25
  $region24: #{classifier3_forward.37} parent=0 // pred_region
    _
  $region25: #{classifier3_forward.37} parent=0 // pred_fallthru
    _

// kernel: classifier3_forward.39
$region0: #{classifier3_forward.39}
  #allocation0 [shape = 'u32[]', space=smem, size = 0x4, offset = 0x4, fixed_abs, tag = 'smem constant byte address 0x4 - core index']
  #allocation1 [shape = 'u32[144,128]{1,0:T(1,128)}', space=vmem, size = 0x12000, scoped, tag = 'internal scratch']
  %s0 = inlined_call_operand.vmem [shape: bf16[2,16,96], index: 0, kind: input, shape index: {}]
  %s1 = inlined_call_operand.vmem [shape: bf16[2,16,32], index: 1, kind: output, shape index: {}]
  %s2 = sld [smem:[#allocation0]]
  $region37: #{classifier3_forward.39} parent=0
    _
  %s4 = ssub.s32 1, %s2
  %s5 = scalar_select 0, %s4, %s2
  loop: start=0, step=1, limit=4
  $region2: #{classifier3_forward.39} parent=0 // loop_pre_header
    _
  $region3: #{classifier3_forward.39} parent=0 // loop_header
    %s7 = sphi 0, %s11
    %p8 = scmp.ge.s32.totalorder %s7, 4
    %s17 = sphi 0, %s19
    %s20 = sphi 0, %s17
    %s21 = sphi 0, %s20
    %s37 = sphi 0, %s21
    %s43 = sphi 0, %s45
    %s46 = sphi 0, %s43
    %s47 = sphi 0, %s46
    %s63 = sphi 0, %s47
  $region4: #{classifier3_forward.39} parent=0 // loop_header_branch
    %10 = sbr.rel (%p8) target = $region8
  $region5: #{classifier3_forward.39} parent=0 // loop_body
    %s12 = ssub.s32 %s7, 1
    %s13 = ssub.s32 %s7, 2
    %s14 = sadd.s32 %s7, 1
    %s15 = ssub.s32 %s7, %s14
    %p16 = scmp.eq.s32.totalorder %s15, 0
    %s18 = sadd.s32 %s17, 1
    %s19 = scalar_select %p16, %s17, %s18
    %p22 = pneg %p16
    %p23 = scmp.eq.s32.totalorder %s7, 1
    %p24 = por %p22, %p23
    %p25 = scmp.ne.s32.totalorder %s17, %s20
    %p26 = scmp.eq.s32.totalorder %s7, 0
    %p27 = por %p25, %p26
    %p28 = scmp.ne.s32.totalorder %s17, %s20
    %p29 = scmp.eq.s32.totalorder %s12, 1
    %p30 = por %p28, %p29
    %p31 = scmp.ne.s32.totalorder %s20, %s21
    %p32 = scmp.eq.s32.totalorder %s12, 0
    %p33 = por %p31, %p32
    %p34 = scmp.ne.s32.totalorder %s20, %s21
    %p35 = scmp.eq.s32.totalorder %s13, 1
    %p36 = por %p34, %p35
    %p38 = scmp.ne.s32.totalorder %s21, %s37
    %p39 = scmp.eq.s32.totalorder %s13, 0
    %p40 = por %p38, %p39
    %s41 = ssub.s32 %s7, %s14
    %p42 = scmp.eq.s32.totalorder %s41, 0
    %s44 = sadd.s32 %s43, 1
    %s45 = scalar_select %p42, %s43, %s44
    %p48 = pneg %p42
    %p49 = scmp.eq.s32.totalorder %s7, 1
    %p50 = por %p48, %p49
    %p51 = scmp.ne.s32.totalorder %s43, %s46
    %p52 = scmp.eq.s32.totalorder %s7, 0
    %p53 = por %p51, %p52
    %p54 = scmp.ne.s32.totalorder %s43, %s46
    %p55 = scmp.eq.s32.totalorder %s12, 1
    %p56 = por %p54, %p55
    %p57 = scmp.ne.s32.totalorder %s46, %s47
    %p58 = scmp.eq.s32.totalorder %s12, 0
    %p59 = por %p57, %p58
    %p60 = scmp.ne.s32.totalorder %s46, %s47
    %p61 = scmp.eq.s32.totalorder %s13, 1
    %p62 = por %p60, %p61
    %p64 = scmp.ne.s32.totalorder %s47, %s63
    %p65 = scmp.eq.s32.totalorder %s13, 0
    %p66 = por %p64, %p65
    %p67 = scmp.le.s32.totalorder 1, %s7
    %p68 = scmp.lt.s32.totalorder %s7, 3
    %p69 = pnand %p67, %p68
    %p70 = pneg %p69
    // Predicated region
    $region9: #{classifier3_forward.39} parent=5 // pred_check
      _
    $region10: #{classifier3_forward.39} parent=5 // pred_check_branch
      %72 = sbr.rel (%p69) target = $region12
    $region11: #{classifier3_forward.39} parent=5 // pred_region
      %s73 = ssub.s32 %s7, 1
    $region12: #{classifier3_forward.39} parent=5 // pred_fallthru
      _
    %p74 = scmp.lt.s32.totalorder %s7, 2
    // Predicated region
    $region13: #{classifier3_forward.39} parent=5 // pred_check
      %p75 = pneg %p74
    $region14: #{classifier3_forward.39} parent=5 // pred_check_branch
      %77 = sbr.rel (%p75) target = $region16
    $region15: #{classifier3_forward.39} parent=5 // pred_region
      // Predicated region
      $region17: #{classifier3_forward.39} parent=15 // pred_check
        %p78 = pneg %p27
      $region18: #{classifier3_forward.39} parent=15 // pred_check_branch
        %80 = sbr.rel (%p78) target = $region20
      $region19: #{classifier3_forward.39} parent=15 // pred_region
        %p81 = scmp.lt.s32.totalorder %s7, 1
        %s82 = scalar_select %p81, %s7, 1
        %s83 = smul.addr %s82, 2
        %s84 = smul.addr %s83, 4
        %s85 = scalar_lea.vmem %s0, %s84
      $region20: #{classifier3_forward.39} parent=15 // pred_fallthru
        _
    $region16: #{classifier3_forward.39} parent=5 // pred_fallthru
      _
    %p86 = scmp.le.s32.totalorder 1, %s7
    %p87 = scmp.lt.s32.totalorder %s7, 3
    %p88 = pnand %p86, %p87
    %p89 = pneg %p88
    // Predicated region
    $region21: #{classifier3_forward.39} parent=5 // pred_check
      _
    $region22: #{classifier3_forward.39} parent=5 // pred_check_branch
      %91 = sbr.rel (%p88) target = $region24
    $region23: #{classifier3_forward.39} parent=5 // pred_region
      %s92 = ssub.s32 %s7, 1
      %p93 = scmp.lt.s32.totalorder %s12, 1
      %s94 = scalar_select %p93, %s12, 1
      %s95 = smul.addr %s94, 2
      %s96 = smul.addr %s95, 4
      %s97 = scalar_lea.vmem %s0, %s96
      %p98 = pneg %p33
      %p99 = pneg %p30
      %p100 = pneg %p59
      %p101 = pneg %p56
      %p102 = scmp.lt.s32.totalorder %s12, 1
      %s103 = scalar_select %p102, %s12, 1
      %s104 = smul.addr %s103, 2
      %s105 = smul.addr %s104, 4
      %s106 = scalar_lea.vmem %s1, %s105
      %p107 = scmp.lt.s32.totalorder %s12, 1
      %s108 = scalar_select %p107, %s12, 1
      %s109 = smul.addr %s108, 2
      %s110 = smul.addr %s109, 4
      %s111 = scalar_lea.vmem %s0, %s110
      %p112 = scmp.lt.s32.totalorder %s12, 1
      %s113 = scalar_select %p112, %s12, 1
      %s114 = smul.addr %s113, 2
      %s115 = smul.addr %s114, 4
      %s116 = scalar_lea.vmem %s1, %s115
      %v119 = vld [vmem:[%s111] sm:$0xf]
      %v120 = vld [vmem:[%s111 + $0x4] sm:$0xf]
      %v121 = vmul.bf16 %v119, 1052065461
      %v122 = vmul.bf16 %v120, 1052065461
      %v125 = vunpack.c.l.b16 %v121
      %v126 = vunpack.c.l.b16 %v122
      %v127 = vpack.c.b16 %v126, %v125
      %v130 = vunpack.c.l.b16 %v119
      %v131 = vunpack.c.l.b16 %v120
      %v132 = vpack.c.b16 %v131, %v130
      %133 = vrot.lane.b32.xlu0 %v132, 96
      %v134 = vpop.permute.xlu0 %133
      %vm135 = vcmask 64512
      %v137 = vsel %vm135, %v127, 0
      %v140 = vsel %vm135, %v134, 0
      %142 = vmatprep.subr.bf16.mxu0 0
      %143 = vmatpush1.bf16.xpose.msra.mxu0 %v140
      %144 = vmatprep.subr.bf16.mxu0 0
      %145 = vmatpush1.bf16.xpose.msra.mxu0 0
      %146 = vmatprep.subr.bf16.mxu0 0
      %147 = vmatpush1.bf16.xpose.msra.mxu0 0
      %148 = vmatprep.subr.bf16.mxu0 0
      %149 = vmatpush1.bf16.xpose.msra.mxu0 0
      %150 = vmatprep.subr.bf16.mxu0 0
      %151 = vmatpush1.bf16.xpose.msra.mxu0 0
      %152 = vmatprep.subr.bf16.mxu0 0
      %153 = vmatpush1.bf16.xpose.msra.mxu0 0
      %154 = vmatprep.subr.bf16.mxu0 0
      %155 = vmatpush1.bf16.xpose.msra.mxu0 0
      %156 = vmatprep.subr.bf16.mxu0 0
      %157 = vmatpush1.bf16.xpose.msra.mxu0 0
      %158 = vmatprep.subr.bf16.mxu0 0
      %159 = vmatpush1.bf16.xpose.msra.mxu0 0
      %160 = vmatprep.subr.bf16.mxu0 0
      %161 = vmatpush1.bf16.xpose.msra.mxu0 0
      %162 = vmatprep.subr.bf16.mxu0 0
      %163 = vmatpush1.bf16.xpose.msra.mxu0 0
      %164 = vmatprep.subr.bf16.mxu0 0
      %165 = vmatpush1.bf16.xpose.msra.mxu0 0
      %166 = vmatprep.subr.bf16.mxu0 0
      %167 = vmatpush1.bf16.xpose.msra.mxu0 0
      %168 = vmatprep.subr.bf16.mxu0 0
      %169 = vmatpush1.bf16.xpose.msra.mxu0 0
      %170 = vmatprep.subr.bf16.mxu0 0
      %171 = vmatpush1.bf16.xpose.msra.mxu0 0
      %172 = vmatprep.subr.bf16.mxu0 0
      %173 = vmatpush1.bf16.xpose.msra.mxu0 0
      %174 = vmatprep.mubr.bf16.mxu0 0
      %175 = vmatmul.mubr.bf16.gmra.mrb[0].mxu0 %v137
      %v176 = vpop.f32.mrb[0].mxu0
      %v177 = vadd.f32 0.0, %v176
      %v178 = vpop.f32.mrb[0].mxu0
      %v179 = vpop.f32.mrb[0].mxu0
      %v180 = vadd.f32 0.0, %v179
      %v181 = vpop.f32.mrb[0].mxu0
      %182 = vdwg.mxu0
      %vm183 = vcmask 130048
      %v184 = vsel %vm183, %v177, -inf
      %185 = vmax.xlane.f32.xlu0 %v184
      %v186 = vpop.xlane.xlu0 %185
      %v187 = vsel %vm183, %v180, -inf
      %188 = vmax.xlane.f32.xlu0 %v187
      %v189 = vpop.xlane.xlu0 %188
      %v190 = vsub.f32 %v177, %v186
      %v191 = vsub.f32 %v180, %v189
      %v192 = vmul.f32 %v190, 1.442695
      %v193 = vpow.pop %v192
      %v194 = vmul.f32 %v191, 1.442695
      %v195 = vpow.pop %v194
      %v196 = vsel %vm183, %v193, 0.0
      %197 = vadd.xlane.f32.xlu0 %v196
      %v198 = vpop.xlane.xlu0 %197
      %v199 = vsel %vm183, %v195, 0.0
      %200 = vadd.xlane.f32.xlu0 %v199
      %v201 = vpop.xlane.xlu0 %200
      %v202 = vrcp.pop %v198
      %v203 = vrcp.pop %v201
      %v204 = vmul.f32 %v193, %v202
      %v205 = vmul.f32 %v195, %v203
      %v206 = vpack.c.bf16 %v205, %v204
      %207 = vrot.lane.b32.xlu0 %v132, 64
      %v208 = vpop.permute.xlu0 %207
      %v211 = vsel %vm183, %v206, 0
      %213 = vmatprep.subr.bf16.mxu0 0
      %214 = vmatpush1.bf16.msra.mxu0 %v208
      %215 = vmatprep.subr.bf16.mxu0 0
      %216 = vmatpush1.bf16.msra.mxu0 0
      %217 = vmatprep.subr.bf16.mxu0 0
      %218 = vmatpush1.bf16.msra.mxu0 0
      %219 = vmatprep.subr.bf16.mxu0 0
      %220 = vmatpush1.bf16.msra.mxu0 0
      %221 = vmatprep.subr.bf16.mxu0 0
      %222 = vmatpush1.bf16.msra.mxu0 0
      %223 = vmatprep.subr.bf16.mxu0 0
      %224 = vmatpush1.bf16.msra.mxu0 0
      %225 = vmatprep.subr.bf16.mxu0 0
      %226 = vmatpush1.bf16.msra.mxu0 0
      %227 = vmatprep.subr.bf16.mxu0 0
      %228 = vmatpush1.bf16.msra.mxu0 0
      %229 = vmatprep.subr.bf16.mxu0 0
      %230 = vmatpush1.bf16.msra.mxu0 0
      %231 = vmatprep.subr.bf16.mxu0 0
      %232 = vmatpush1.bf16.msra.mxu0 0
      %233 = vmatprep.subr.bf16.mxu0 0
      %234 = vmatpush1.bf16.msra.mxu0 0
      %235 = vmatprep.subr.bf16.mxu0 0
      %236 = vmatpush1.bf16.msra.mxu0 0
      %237 = vmatprep.subr.bf16.mxu0 0
      %238 = vmatpush1.bf16.msra.mxu0 0
      %239 = vmatprep.subr.bf16.mxu0 0
      %240 = vmatpush1.bf16.msra.mxu0 0
      %241 = vmatprep.subr.bf16.mxu0 0
      %242 = vmatpush1.bf16.msra.mxu0 0
      %243 = vmatprep.subr.bf16.mxu0 0
      %244 = vmatpush1.bf16.msra.mxu0 0
      %245 = vmatprep.mubr.bf16.mxu0 0
      %246 = vmatmul.mubr.bf16.gmra.mrb[0].mxu0 %v211
      %v247 = vpop.f32.mrb[0].mxu0
      %v248 = vadd.f32 0.0, %v247
      %v249 = vpop.f32.mrb[0].mxu0
      %v250 = vpop.f32.mrb[0].mxu0
      %v251 = vadd.f32 0.0, %v250
      %v252 = vpop.f32.mrb[0].mxu0
      %253 = vdwg.mxu0
      %v254 = vpack.c.bf16 %v251, %v248
      %v256 = vunpack.c.l.b16 %v254
      %v257 = vunpack.c.h.b16 %v254
      %v258 = vpack.c.b16 %v256, %v256
      %v259 = vpack.c.b16 %v257, %v257
      %vm262 = vcmask 60416
      %263 = vst.msk [vmem:[%s116] sm:$0xf] %vm262, %v258
      %264 = vst.msk [vmem:[%s116 + $0x4] sm:$0xf] %vm262, %v259
      %v265 = vld [vmem:[%s111] sm:$0xf]
      %v266 = vld [vmem:[%s111 + $0x4] sm:$0xf]
      %v267 = vmul.bf16 %v265, 1052065461
      %v268 = vmul.bf16 %v266, 1052065461
      %v271 = vunpack.c.l.b16 %v267
      %v272 = vunpack.c.l.b16 %v268
      %v273 = vpack.c.b16 %v272, %v271
      %274 = vrot.lane.b32.xlu0 %v273, 120
      %v275 = vpop.permute.xlu0 %274
      %v278 = vunpack.c.l.b16 %v265
      %v279 = vunpack.c.l.b16 %v266
      %v280 = vpack.c.b16 %v279, %v278
      %281 = vrot.lane.b32.xlu0 %v280, 88
      %v282 = vpop.permute.xlu0 %281
      %v284 = vsel %vm135, %v275, 0
      %v287 = vsel %vm135, %v282, 0
      %289 = vmatprep.subr.bf16.mxu0 0
      %290 = vmatpush1.bf16.xpose.msra.mxu0 %v287
      %291 = vmatprep.subr.bf16.mxu0 0
      %292 = vmatpush1.bf16.xpose.msra.mxu0 0
      %293 = vmatprep.subr.bf16.mxu0 0
      %294 = vmatpush1.bf16.xpose.msra.mxu0 0
      %295 = vmatprep.subr.bf16.mxu0 0
      %296 = vmatpush1.bf16.xpose.msra.mxu0 0
      %297 = vmatprep.subr.bf16.mxu0 0
      %298 = vmatpush1.bf16.xpose.msra.mxu0 0
      %299 = vmatprep.subr.bf16.mxu0 0
      %300 = vmatpush1.bf16.xpose.msra.mxu0 0
      %301 = vmatprep.subr.bf16.mxu0 0
      %302 = vmatpush1.bf16.xpose.msra.mxu0 0
      %303 = vmatprep.subr.bf16.mxu0 0
      %304 = vmatpush1.bf16.xpose.msra.mxu0 0
      %305 = vmatprep.subr.bf16.mxu0 0
      %306 = vmatpush1.bf16.xpose.msra.mxu0 0
      %307 = vmatprep.subr.bf16.mxu0 0
      %308 = vmatpush1.bf16.xpose.msra.mxu0 0
      %309 = vmatprep.subr.bf16.mxu0 0
      %310 = vmatpush1.bf16.xpose.msra.mxu0 0
      %311 = vmatprep.subr.bf16.mxu0 0
      %312 = vmatpush1.bf16.xpose.msra.mxu0 0
      %313 = vmatprep.subr.bf16.mxu0 0
      %314 = vmatpush1.bf16.xpose.msra.mxu0 0
      %315 = vmatprep.subr.bf16.mxu0 0
      %316 = vmatpush1.bf16.xpose.msra.mxu0 0
      %317 = vmatprep.subr.bf16.mxu0 0
      %318 = vmatpush1.bf16.xpose.msra.mxu0 0
      %319 = vmatprep.subr.bf16.mxu0 0
      %320 = vmatpush1.bf16.xpose.msra.mxu0 0
      %321 = vmatprep.mubr.bf16.mxu0 0
      %322 = vmatmul.mubr.bf16.gmra.mrb[0].mxu0 %v284
      %v323 = vpop.f32.mrb[0].mxu0
      %v324 = vadd.f32 0.0, %v323
      %v325 = vpop.f32.mrb[0].mxu0
      %v326 = vpop.f32.mrb[0].mxu0
      %v327 = vadd.f32 0.0, %v326
      %v328 = vpop.f32.mrb[0].mxu0
      %329 = vdwg.mxu0
      %v330 = vsel %vm183, %v324, -inf
      %331 = vmax.xlane.f32.xlu0 %v330
      %v332 = vpop.xlane.xlu0 %331
      %v333 = vsel %vm183, %v327, -inf
      %334 = vmax.xlane.f32.xlu0 %v333
      %v335 = vpop.xlane.xlu0 %334
      %v336 = vsub.f32 %v324, %v332
      %v337 = vsub.f32 %v327, %v335
      %v338 = vmul.f32 %v336, 1.442695
      %v339 = vpow.pop %v338
      %v340 = vmul.f32 %v337, 1.442695
      %v341 = vpow.pop %v340
      %v342 = vsel %vm183, %v339, 0.0
      %343 = vadd.xlane.f32.xlu0 %v342
      %v344 = vpop.xlane.xlu0 %343
      %v345 = vsel %vm183, %v341, 0.0
      %346 = vadd.xlane.f32.xlu0 %v345
      %v347 = vpop.xlane.xlu0 %346
      %v348 = vrcp.pop %v344
      %v349 = vrcp.pop %v347
      %v350 = vmul.f32 %v339, %v348
      %v351 = vmul.f32 %v341, %v349
      %v352 = vpack.c.bf16 %v351, %v350
      %353 = vrot.lane.b32.xlu0 %v280, 56
      %v354 = vpop.permute.xlu0 %353
      %v357 = vsel %vm183, %v352, 0
      %359 = vmatprep.subr.bf16.mxu0 0
      %360 = vmatpush1.bf16.msra.mxu0 %v354
      %361 = vmatprep.subr.bf16.mxu0 0
      %362 = vmatpush1.bf16.msra.mxu0 0
      %363 = vmatprep.subr.bf16.mxu0 0
      %364 = vmatpush1.bf16.msra.mxu0 0
      %365 = vmatprep.subr.bf16.mxu0 0
      %366 = vmatpush1.bf16.msra.mxu0 0
      %367 = vmatprep.subr.bf16.mxu0 0
      %368 = vmatpush1.bf16.msra.mxu0 0
      %369 = vmatprep.subr.bf16.mxu0 0
      %370 = vmatpush1.bf16.msra.mxu0 0
      %371 = vmatprep.subr.bf16.mxu0 0
      %372 = vmatpush1.bf16.msra.mxu0 0
      %373 = vmatprep.subr.bf16.mxu0 0
      %374 = vmatpush1.bf16.msra.mxu0 0
      %375 = vmatprep.subr.bf16.mxu0 0
      %376 = vmatpush1.bf16.msra.mxu0 0
      %377 = vmatprep.subr.bf16.mxu0 0
      %378 = vmatpush1.bf16.msra.mxu0 0
      %379 = vmatprep.subr.bf16.mxu0 0
      %380 = vmatpush1.bf16.msra.mxu0 0
      %381 = vmatprep.subr.bf16.mxu0 0
      %382 = vmatpush1.bf16.msra.mxu0 0
      %383 = vmatprep.subr.bf16.mxu0 0
      %384 = vmatpush1.bf16.msra.mxu0 0
      %385 = vmatprep.subr.bf16.mxu0 0
      %386 = vmatpush1.bf16.msra.mxu0 0
      %387 = vmatprep.subr.bf16.mxu0 0
      %388 = vmatpush1.bf16.msra.mxu0 0
      %389 = vmatprep.subr.bf16.mxu0 0
      %390 = vmatpush1.bf16.msra.mxu0 0
      %391 = vmatprep.mubr.bf16.mxu0 0
      %392 = vmatmul.mubr.bf16.gmra.mrb[0].mxu0 %v357
      %v393 = vpop.f32.mrb[0].mxu0
      %v394 = vadd.f32 0.0, %v393
      %v395 = vpop.f32.mrb[0].mxu0
      %v396 = vpop.f32.mrb[0].mxu0
      %v397 = vadd.f32 0.0, %v396
      %v398 = vpop.f32.mrb[0].mxu0
      %399 = vdwg.mxu0
      %v400 = vpack.c.bf16 %v397, %v394
      %v402 = vunpack.c.l.b16 %v400
      %v403 = vunpack.c.h.b16 %v400
      %v404 = vpack.c.b16 %v402, %v402
      %v405 = vpack.c.b16 %v403, %v403
      %406 = vrot.lane.b32.xlu0 %v404, 8
      %v407 = vpop.permute.xlu0 %406
      %408 = vrot.lane.b32.xlu0 %v405, 8
      %v409 = vpop.permute.xlu0 %408
      %vm412 = vcmask 126016
      %413 = vst.msk [vmem:[%s116] sm:$0xf] %vm412, %v407
      %414 = vst.msk [vmem:[%s116 + $0x4] sm:$0xf] %vm412, %v409
      %v415 = vld [vmem:[%s111] sm:$0xf]
      %v416 = vld [vmem:[%s111 + $0x4] sm:$0xf]
      %v417 = vmul.bf16 %v415, 1052065461
      %v418 = vmul.bf16 %v416, 1052065461
      %v421 = vunpack.c.l.b16 %v417
      %v422 = vunpack.c.l.b16 %v418
      %v423 = vpack.c.b16 %v422, %v421
      %424 = vrot.lane.b32.xlu0 %v423, 112
      %v425 = vpop.permute.xlu0 %424
      %v428 = vunpack.c.l.b16 %v415
      %v429 = vunpack.c.l.b16 %v416
      %v430 = vpack.c.b16 %v429, %v428
      %431 = vrot.lane.b32.xlu0 %v430, 80
      %v432 = vpop.permute.xlu0 %431
      %v434 = vsel %vm135, %v425, 0
      %v437 = vsel %vm135, %v432, 0
      %439 = vmatprep.subr.bf16.mxu0 0
      %440 = vmatpush1.bf16.xpose.msra.mxu0 %v437
      %441 = vmatprep.subr.bf16.mxu0 0
      %442 = vmatpush1.bf16.xpose.msra.mxu0 0
      %443 = vmatprep.subr.bf16.mxu0 0
      %444 = vmatpush1.bf16.xpose.msra.mxu0 0
      %445 = vmatprep.subr.bf16.mxu0 0
      %446 = vmatpush1.bf16.xpose.msra.mxu0 0
      %447 = vmatprep.subr.bf16.mxu0 0
      %448 = vmatpush1.bf16.xpose.msra.mxu0 0
      %449 = vmatprep.subr.bf16.mxu0 0
      %450 = vmatpush1.bf16.xpose.msra.mxu0 0
      %451 = vmatprep.subr.bf16.mxu0 0
      %452 = vmatpush1.bf16.xpose.msra.mxu0 0
      %453 = vmatprep.subr.bf16.mxu0 0
      %454 = vmatpush1.bf16.xpose.msra.mxu0 0
      %455 = vmatprep.subr.bf16.mxu0 0
      %456 = vmatpush1.bf16.xpose.msra.mxu0 0
      %457 = vmatprep.subr.bf16.mxu0 0
      %458 = vmatpush1.bf16.xpose.msra.mxu0 0
      %459 = vmatprep.subr.bf16.mxu0 0
      %460 = vmatpush1.bf16.xpose.msra.mxu0 0
      %461 = vmatprep.subr.bf16.mxu0 0
      %462 = vmatpush1.bf16.xpose.msra.mxu0 0
      %463 = vmatprep.subr.bf16.mxu0 0
      %464 = vmatpush1.bf16.xpose.msra.mxu0 0
      %465 = vmatprep.subr.bf16.mxu0 0
      %466 = vmatpush1.bf16.xpose.msra.mxu0 0
      %467 = vmatprep.subr.bf16.mxu0 0
      %468 = vmatpush1.bf16.xpose.msra.mxu0 0
      %469 = vmatprep.subr.bf16.mxu0 0
      %470 = vmatpush1.bf16.xpose.msra.mxu0 0
      %471 = vmatprep.mubr.bf16.mxu0 0
      %472 = vmatmul.mubr.bf16.gmra.mrb[0].mxu0 %v434
      %v473 = vpop.f32.mrb[0].mxu0
      %v474 = vadd.f32 0.0, %v473
      %v475 = vpop.f32.mrb[0].mxu0
      %v476 = vpop.f32.mrb[0].mxu0
      %v477 = vadd.f32 0.0, %v476
      %v478 = vpop.f32.mrb[0].mxu0
      %479 = vdwg.mxu0
      %v480 = vsel %vm183, %v474, -inf
      %481 = vmax.xlane.f32.xlu0 %v480
      %v482 = vpop.xlane.xlu0 %481
      %v483 = vsel %vm183, %v477, -inf
      %484 = vmax.xlane.f32.xlu0 %v483
      %v485 = vpop.xlane.xlu0 %484
      %v486 = vsub.f32 %v474, %v482
      %v487 = vsub.f32 %v477, %v485
      %v488 = vmul.f32 %v486, 1.442695
      %v489 = vpow.pop %v488
      %v490 = vmul.f32 %v487, 1.442695
      %v491 = vpow.pop %v490
      %v492 = vsel %vm183, %v489, 0.0
      %493 = vadd.xlane.f32.xlu0 %v492
      %v494 = vpop.xlane.xlu0 %493
      %v495 = vsel %vm183, %v491, 0.0
      %496 = vadd.xlane.f32.xlu0 %v495
      %v497 = vpop.xlane.xlu0 %496
      %v498 = vrcp.pop %v494
      %v499 = vrcp.pop %v497
      %v500 = vmul.f32 %v489, %v498
      %v501 = vmul.f32 %v491, %v499
      %v502 = vpack.c.bf16 %v501, %v500
      %503 = vrot.lane.b32.xlu0 %v430, 48
      %v504 = vpop.permute.xlu0 %503
      %v507 = vsel %vm183, %v502, 0
      %509 = vmatprep.subr.bf16.mxu0 0
      %510 = vmatpush1.bf16.msra.mxu0 %v504
      %511 = vmatprep.subr.bf16.mxu0 0
      %512 = vmatpush1.bf16.msra.mxu0 0
      %513 = vmatprep.subr.bf16.mxu0 0
      %514 = vmatpush1.bf16.msra.mxu0 0
      %515 = vmatprep.subr.bf16.mxu0 0
      %516 = vmatpush1.bf16.msra.mxu0 0
      %517 = vmatprep.subr.bf16.mxu0 0
      %518 = vmatpush1.bf16.msra.mxu0 0
      %519 = vmatprep.subr.bf16.mxu0 0
      %520 = vmatpush1.bf16.msra.mxu0 0
      %521 = vmatprep.subr.bf16.mxu0 0
      %522 = vmatpush1.bf16.msra.mxu0 0
      %523 = vmatprep.subr.bf16.mxu0 0
      %524 = vmatpush1.bf16.msra.mxu0 0
      %525 = vmatprep.subr.bf16.mxu0 0
      %526 = vmatpush1.bf16.msra.mxu0 0
      %527 = vmatprep.subr.bf16.mxu0 0
      %528 = vmatpush1.bf16.msra.mxu0 0
      %529 = vmatprep.subr.bf16.mxu0 0
      %530 = vmatpush1.bf16.msra.mxu0 0
      %531 = vmatprep.subr.bf16.mxu0 0
      %532 = vmatpush1.bf16.msra.mxu0 0
      %533 = vmatprep.subr.bf16.mxu0 0
      %534 = vmatpush1.bf16.msra.mxu0 0
      %535 = vmatprep.subr.bf16.mxu0 0
      %536 = vmatpush1.bf16.msra.mxu0 0
      %537 = vmatprep.subr.bf16.mxu0 0
      %538 = vmatpush1.bf16.msra.mxu0 0
      %539 = vmatprep.subr.bf16.mxu0 0
      %540 = vmatpush1.bf16.msra.mxu0 0
      %541 = vmatprep.mubr.bf16.mxu0 0
      %542 = vmatmul.mubr.bf16.gmra.mrb[0].mxu0 %v507
      %v543 = vpop.f32.mrb[0].mxu0
      %v544 = vadd.f32 0.0, %v543
      %v545 = vpop.f32.mrb[0].mxu0
      %v546 = vpop.f32.mrb[0].mxu0
      %v547 = vadd.f32 0.0, %v546
      %v548 = vpop.f32.mrb[0].mxu0
      %549 = vdwg.mxu0
      %v550 = vpack.c.bf16 %v547, %v544
      %v552 = vunpack.c.l.b16 %v550
      %v553 = vunpack.c.h.b16 %v550
      %v554 = vpack.c.b16 %v552, %v552
      %v555 = vpack.c.b16 %v553, %v553
      %556 = vrot.lane.b32.xlu0 %v554, 16
      %v557 = vpop.permute.xlu0 %556
      %558 = vrot.lane.b32.xlu0 %v555, 16
      %v559 = vpop.permute.xlu0 %558
      %vm562 = vcmask 191616
      %563 = vst.msk [vmem:[%s116] sm:$0xf] %vm562, %v557
      %564 = vst.msk [vmem:[%s116 + $0x4] sm:$0xf] %vm562, %v559
      %v565 = vld [vmem:[%s111] sm:$0xf]
      %v566 = vld [vmem:[%s111 + $0x4] sm:$0xf]
      %v567 = vmul.bf16 %v565, 1052065461
      %v568 = vmul.bf16 %v566, 1052065461
      %v571 = vunpack.c.l.b16 %v567
      %v572 = vunpack.c.l.b16 %v568
      %v573 = vpack.c.b16 %v572, %v571
      %574 = vrot.lane.b32.xlu0 %v573, 104
      %v575 = vpop.permute.xlu0 %574
      %v578 = vunpack.c.l.b16 %v565
      %v579 = vunpack.c.l.b16 %v566
      %v580 = vpack.c.b16 %v579, %v578
      %581 = vrot.lane.b32.xlu0 %v580, 72
      %v582 = vpop.permute.xlu0 %581
      %v584 = vsel %vm135, %v575, 0
      %v587 = vsel %vm135, %v582, 0
      %589 = vmatprep.subr.bf16.mxu0 0
      %590 = vmatpush1.bf16.xpose.msra.mxu0 %v587
      %591 = vmatprep.subr.bf16.mxu0 0
      %592 = vmatpush1.bf16.xpose.msra.mxu0 0
      %593 = vmatprep.subr.bf16.mxu0 0
      %594 = vmatpush1.bf16.xpose.msra.mxu0 0
      %595 = vmatprep.subr.bf16.mxu0 0
      %596 = vmatpush1.bf16.xpose.msra.mxu0 0
      %597 = vmatprep.subr.bf16.mxu0 0
      %598 = vmatpush1.bf16.xpose.msra.mxu0 0
      %599 = vmatprep.subr.bf16.mxu0 0
      %600 = vmatpush1.bf16.xpose.msra.mxu0 0
      %601 = vmatprep.subr.bf16.mxu0 0
      %602 = vmatpush1.bf16.xpose.msra.mxu0 0
      %603 = vmatprep.subr.bf16.mxu0 0
      %604 = vmatpush1.bf16.xpose.msra.mxu0 0
      %605 = vmatprep.subr.bf16.mxu0 0
      %606 = vmatpush1.bf16.xpose.msra.mxu0 0
      %607 = vmatprep.subr.bf16.mxu0 0
      %608 = vmatpush1.bf16.xpose.msra.mxu0 0
      %609 = vmatprep.subr.bf16.mxu0 0
      %610 = vmatpush1.bf16.xpose.msra.mxu0 0
      %611 = vmatprep.subr.bf16.mxu0 0
      %612 = vmatpush1.bf16.xpose.msra.mxu0 0
      %613 = vmatprep.subr.bf16.mxu0 0
      %614 = vmatpush1.bf16.xpose.msra.mxu0 0
      %615 = vmatprep.subr.bf16.mxu0 0
      %616 = vmatpush1.bf16.xpose.msra.mxu0 0
      %617 = vmatprep.subr.bf16.mxu0 0
      %618 = vmatpush1.bf16.xpose.msra.mxu0 0
      %619 = vmatprep.subr.bf16.mxu0 0
      %620 = vmatpush1.bf16.xpose.msra.mxu0 0
      %621 = vmatprep.mubr.bf16.mxu0 0
      %622 = vmatmul.mubr.bf16.gmra.mrb[0].mxu0 %v584
      %v623 = vpop.f32.mrb[0].mxu0
      %v624 = vadd.f32 0.0, %v623
      %v625 = vpop.f32.mrb[0].mxu0
      %v626 = vpop.f32.mrb[0].mxu0
      %v627 = vadd.f32 0.0, %v626
      %v628 = vpop.f32.mrb[0].mxu0
      %629 = vdwg.mxu0
      %v630 = vsel %vm183, %v624, -inf
      %631 = vmax.xlane.f32.xlu0 %v630
      %v632 = vpop.xlane.xlu0 %631
      %v633 = vsel %vm183, %v627, -inf
      %634 = vmax.xlane.f32.xlu0 %v633
      %v635 = vpop.xlane.xlu0 %634
      %v636 = vsub.f32 %v624, %v632
      %v637 = vsub.f32 %v627, %v635
      %v638 = vmul.f32 %v636, 1.442695
      %v639 = vpow.pop %v638
      %v640 = vmul.f32 %v637, 1.442695
      %v641 = vpow.pop %v640
      %v642 = vsel %vm183, %v639, 0.0
      %643 = vadd.xlane.f32.xlu0 %v642
      %v644 = vpop.xlane.xlu0 %643
      %v645 = vsel %vm183, %v641, 0.0
      %646 = vadd.xlane.f32.xlu0 %v645
      %v647 = vpop.xlane.xlu0 %646
      %v648 = vrcp.pop %v644
      %v649 = vrcp.pop %v647
      %v650 = vmul.f32 %v639, %v648
      %v651 = vmul.f32 %v641, %v649
      %v652 = vpack.c.bf16 %v651, %v650
      %653 = vrot.lane.b32.xlu0 %v580, 40
      %v654 = vpop.permute.xlu0 %653
      %v657 = vsel %vm183, %v652, 0
      %659 = vmatprep.subr.bf16.mxu0 0
      %660 = vmatpush1.bf16.msra.mxu0 %v654
      %661 = vmatprep.subr.bf16.mxu0 0
      %662 = vmatpush1.bf16.msra.mxu0 0
      %663 = vmatprep.subr.bf16.mxu0 0
      %664 = vmatpush1.bf16.msra.mxu0 0
      %665 = vmatprep.subr.bf16.mxu0 0
      %666 = vmatpush1.bf16.msra.mxu0 0
      %667 = vmatprep.subr.bf16.mxu0 0
      %668 = vmatpush1.bf16.msra.mxu0 0
      %669 = vmatprep.subr.bf16.mxu0 0
      %670 = vmatpush1.bf16.msra.mxu0 0
      %671 = vmatprep.subr.bf16.mxu0 0
      %672 = vmatpush1.bf16.msra.mxu0 0
      %673 = vmatprep.subr.bf16.mxu0 0
      %674 = vmatpush1.bf16.msra.mxu0 0
      %675 = vmatprep.subr.bf16.mxu0 0
      %676 = vmatpush1.bf16.msra.mxu0 0
      %677 = vmatprep.subr.bf16.mxu0 0
      %678 = vmatpush1.bf16.msra.mxu0 0
      %679 = vmatprep.subr.bf16.mxu0 0
      %680 = vmatpush1.bf16.msra.mxu0 0
      %681 = vmatprep.subr.bf16.mxu0 0
      %682 = vmatpush1.bf16.msra.mxu0 0
      %683 = vmatprep.subr.bf16.mxu0 0
      %684 = vmatpush1.bf16.msra.mxu0 0
      %685 = vmatprep.subr.bf16.mxu0 0
      %686 = vmatpush1.bf16.msra.mxu0 0
      %687 = vmatprep.subr.bf16.mxu0 0
      %688 = vmatpush1.bf16.msra.mxu0 0
      %689 = vmatprep.subr.bf16.mxu0 0
      %690 = vmatpush1.bf16.msra.mxu0 0
      %691 = vmatprep.mubr.bf16.mxu0 0
      %692 = vmatmul.mubr.bf16.gmra.mrb[0].mxu0 %v657
      %v693 = vpop.f32.mrb[0].mxu0
      %v694 = vadd.f32 0.0, %v693
      %v695 = vpop.f32.mrb[0].mxu0
      %v696 = vpop.f32.mrb[0].mxu0
      %v697 = vadd.f32 0.0, %v696
      %v698 = vpop.f32.mrb[0].mxu0
      %699 = vdwg.mxu0
      %v700 = vpack.c.bf16 %v697, %v694
      %v702 = vunpack.c.l.b16 %v700
      %v703 = vunpack.c.h.b16 %v700
      %v704 = vpack.c.b16 %v702, %v702
      %v705 = vpack.c.b16 %v703, %v703
      %706 = vrot.lane.b32.xlu0 %v704, 24
      %v707 = vpop.permute.xlu0 %706
      %708 = vrot.lane.b32.xlu0 %v705, 24
      %v709 = vpop.permute.xlu0 %708
      %vm712 = vcmask 257216
      %713 = vst.msk [vmem:[%s116] sm:$0xf] %vm712, %v707
      %714 = vst.msk [vmem:[%s116 + $0x4] sm:$0xf] %vm712, %v709
      %p715 = scmp.lt.s32.totalorder %s12, 1
      %s716 = scalar_select %p715, %s12, 1
      %s717 = smul.addr %s716, 2
      %s718 = smul.addr %s717, 4
      %s719 = scalar_lea.vmem %s1, %s718
      // Predicated region
      $region25: #{classifier3_forward.39} parent=23 // pred_check
        %p720 = pneg %p56
      $region26: #{classifier3_forward.39} parent=23 // pred_check_branch
        %722 = sbr.rel (%p720) target = $region28
      $region27: #{classifier3_forward.39} parent=23 // pred_region
        _
      $region28: #{classifier3_forward.39} parent=23 // pred_fallthru
        _
    $region24: #{classifier3_forward.39} parent=5 // pred_fallthru
      _
    %p723 = scmp.le.s32.totalorder 2, %s7
    // Predicated region
    $region29: #{classifier3_forward.39} parent=5 // pred_check
      %p724 = pneg %p723
    $region30: #{classifier3_forward.39} parent=5 // pred_check_branch
      %726 = sbr.rel (%p724) target = $region32
    $region31: #{classifier3_forward.39} parent=5 // pred_region
      %s727 = ssub.s32 %s7, 2
      // Predicated region
      $region33: #{classifier3_forward.39} parent=31 // pred_check
        %p728 = pneg %p62
      $region34: #{classifier3_forward.39} parent=31 // pred_check_branch
        %730 = sbr.rel (%p728) target = $region36
      $region35: #{classifier3_forward.39} parent=31 // pred_region
        %p731 = scmp.lt.s32.totalorder %s13, 1
        %s732 = scalar_select %p731, %s13, 1
        %s733 = smul.addr %s732, 2
        %s734 = smul.addr %s733, 4
        %s735 = scalar_lea.vmem %s1, %s734
      $region36: #{classifier3_forward.39} parent=31 // pred_fallthru
        _
    $region32: #{classifier3_forward.39} parent=5 // pred_fallthru
      _
  $region6: #{classifier3_forward.39} parent=0 // loop_footer
    %s11 = sadd.s32 1, %s7
  $region7: #{classifier3_forward.39} parent=0 // loop_footer_branch
    %6 = sbr.rel target = $region3
  $region8: #{classifier3_forward.39} parent=0 // loop_exit
    _

// kernel: classifier3_forward.41
$region0: #{classifier3_forward.41}
  #allocation0 [shape = 'u32[]', space=smem, size = 0x4, offset = 0x4, fixed_abs, tag = 'smem constant byte address 0x4 - core index']
  #allocation1 [shape = 'u32[144,128]{1,0:T(1,128)}', space=vmem, size = 0x12000, scoped, tag = 'internal scratch']
  %s0 = inlined_call_operand.vmem [shape: f32[32,32], index: 0, kind: input, shape index: {}]
  %s1 = inlined_call_operand.vmem [shape: f32[1,32], index: 1, kind: input, shape index: {}]
  %s2 = inlined_call_operand.vmem [shape: f32[1,32], index: 2, kind: input, shape index: {}]
  %s3 = inlined_call_operand.vmem [shape: bf16[32,32], index: 3, kind: input, shape index: {}]
  %s4 = inlined_call_operand.vmem [shape: f32[1,32], index: 4, kind: input, shape index: {}]
  %s5 = inlined_call_operand.vmem [shape: bf16[32,32], index: 5, kind: input, shape index: {}]
  %s6 = inlined_call_operand.vmem [shape: f32[1,32], index: 6, kind: input, shape index: {}]
  %s7 = inlined_call_operand.vmem [shape: bf16[32,32], index: 7, kind: output, shape index: {}]
  %s8 = sld [smem:[#allocation0]]
  $region38: #{classifier3_forward.41} parent=0
    _
  %s10 = ssub.s32 1, %s8
  %s11 = scalar_select 0, %s10, %s8
  // Predicated region
  $region2: #{classifier3_forward.41} parent=0 // pred_check
    _
  $region3: #{classifier3_forward.41} parent=0 // pred_check_branch
    %13 = sbr.rel (0) target = $region5
  $region4: #{classifier3_forward.41} parent=0 // pred_region
    _
  $region5: #{classifier3_forward.41} parent=0 // pred_fallthru
    _
  // Predicated region
  $region6: #{classifier3_forward.41} parent=0 // pred_check
    _
  $region7: #{classifier3_forward.41} parent=0 // pred_check_branch
    %15 = sbr.rel (0) target = $region9
  $region8: #{classifier3_forward.41} parent=0 // pred_region
    _
  $region9: #{classifier3_forward.41} parent=0 // pred_fallthru
    _
  // Predicated region
  $region10: #{classifier3_forward.41} parent=0 // pred_check
    _
  $region11: #{classifier3_forward.41} parent=0 // pred_check_branch
    %17 = sbr.rel (0) target = $region13
  $region12: #{classifier3_forward.41} parent=0 // pred_region
    _
  $region13: #{classifier3_forward.41} parent=0 // pred_fallthru
    _
  // Predicated region
  $region14: #{classifier3_forward.41} parent=0 // pred_check
    _
  $region15: #{classifier3_forward.41} parent=0 // pred_check_branch
    %19 = sbr.rel (0) target = $region17
  $region16: #{classifier3_forward.41} parent=0 // pred_region
    _
  $region17: #{classifier3_forward.41} parent=0 // pred_fallthru
    _
  // Predicated region
  $region18: #{classifier3_forward.41} parent=0 // pred_check
    _
  $region19: #{classifier3_forward.41} parent=0 // pred_check_branch
    %21 = sbr.rel (0) target = $region21
  $region20: #{classifier3_forward.41} parent=0 // pred_region
    _
  $region21: #{classifier3_forward.41} parent=0 // pred_fallthru
    _
  // Predicated region
  $region22: #{classifier3_forward.41} parent=0 // pred_check
    _
  $region23: #{classifier3_forward.41} parent=0 // pred_check_branch
    %23 = sbr.rel (0) target = $region25
  $region24: #{classifier3_forward.41} parent=0 // pred_region
    _
  $region25: #{classifier3_forward.41} parent=0 // pred_fallthru
    _
  // Predicated region
  $region26: #{classifier3_forward.41} parent=0 // pred_check
    _
  $region27: #{classifier3_forward.41} parent=0 // pred_check_branch
    %25 = sbr.rel (0) target = $region29
  $region28: #{classifier3_forward.41} parent=0 // pred_region
    _
  $region29: #{classifier3_forward.41} parent=0 // pred_fallthru
    _
  %v27 = vld [vmem:[%s0] sm:$0xff]
  %v28 = vld [vmem:[%s0 + $0x8] sm:$0xff]
  %v29 = vld [vmem:[%s0 + $0x10] sm:$0xff]
  %v30 = vld [vmem:[%s0 + $0x18] sm:$0xff]
  %v31 = vld [vmem:[%s1] sm:$0x1]
  %v32 = vld [vmem:[%s2] sm:$0x1]
  %vm33 = vcmask 261120
  %v34 = vsel %vm33, %v27, 0.0
  %35 = vadd.xlane.f32.xlu0 %v34
  %v36 = vpop.xlane.xlu0 %35
  %v37 = vsel %vm33, %v28, 0.0
  %38 = vadd.xlane.f32.xlu0 %v37
  %v39 = vpop.xlane.xlu0 %38
  %v40 = vsel %vm33, %v29, 0.0
  %41 = vadd.xlane.f32.xlu0 %v40
  %v42 = vpop.xlane.xlu0 %41
  %v43 = vsel %vm33, %v30, 0.0
  %44 = vadd.xlane.f32.xlu0 %v43
  %v45 = vpop.xlane.xlu0 %44
  %v46 = vrcp.pop 32.0
  %v47 = vmul.f32 %v36, %v46
  %v48 = vmul.f32 %v39, %v46
  %v49 = vmul.f32 %v42, %v46
  %v50 = vmul.f32 %v45, %v46
  %v51 = vsub.f32 %v27, %v47
  %v52 = vsub.f32 %v28, %v48
  %v53 = vsub.f32 %v29, %v49
  %v54 = vsub.f32 %v30, %v50
  %v55 = vmul.f32 %v51, %v51
  %v56 = vmul.f32 %v52, %v52
  %v57 = vmul.f32 %v53, %v53
  %v58 = vmul.f32 %v54, %v54
  %v59 = vsel %vm33, %v55, 0.0
  %60 = vadd.xlane.f32.xlu0 %v59
  %v61 = vpop.xlane.xlu0 %60
  %v62 = vsel %vm33, %v56, 0.0
  %63 = vadd.xlane.f32.xlu0 %v62
  %v64 = vpop.xlane.xlu0 %63
  %v65 = vsel %vm33, %v57, 0.0
  %66 = vadd.xlane.f32.xlu0 %v65
  %v67 = vpop.xlane.xlu0 %66
  %v68 = vsel %vm33, %v58, 0.0
  %69 = vadd.xlane.f32.xlu0 %v68
  %v70 = vpop.xlane.xlu0 %69
  %v71 = vmul.f32 %v61, %v46
  %v72 = vmul.f32 %v64, %v46
  %v73 = vmul.f32 %v67, %v46
  %v74 = vmul.f32 %v70, %v46
  %v75 = vadd.f32 %v71, 1e-05
  %v76 = vadd.f32 %v72, 1e-05
  %v77 = vadd.f32 %v73, 1e-05
  %v78 = vadd.f32 %v74, 1e-05
  %v79 = vrsqrt.pop %v75
  %v80 = vrsqrt.pop %v76
  %v81 = vrsqrt.pop %v77
  %v82 = vrsqrt.pop %v78
  %v83 = vmul.f32 %v51, %v79
  %v84 = vmul.f32 %v52, %v80
  %v85 = vmul.f32 %v53, %v81
  %v86 = vmul.f32 %v54, %v82
  %v88 = vlaneseq
  %v89 = vshrl.u32 %v88, 7
  %v90 = vsub.s32 0, %v89
  %v91 = vrot.slane %v31, %v90
  %v93 = vmul.f32 %v83, %v91
  %v94 = vmul.f32 %v84, %v91
  %v95 = vmul.f32 %v85, %v91
  %v96 = vmul.f32 %v86, %v91
  %v98 = vlaneseq
  %v99 = vshrl.u32 %v98, 7
  %v100 = vsub.s32 0, %v99
  %v101 = vrot.slane %v32, %v100
  %v103 = vadd.f32 %v93, %v101
  %v104 = vadd.f32 %v94, %v101
  %v105 = vadd.f32 %v95, %v101
  %v106 = vadd.f32 %v96, %v101
  %v107 = vld [vmem:[%s3] sm:$0xf]
  %v108 = vld [vmem:[%s3 + $0x4] sm:$0xf]
  %v109 = vld [vmem:[%s3 + $0x8] sm:$0xf]
  %v110 = vld [vmem:[%s3 + $0xc] sm:$0xf]
  %v111 = vpack.c.bf16 %v104, %v103
  %v112 = vpack.c.bf16 %v106, %v105
  %v113 = vld [vmem:[%s4] sm:$0x1]
  %v115 = vlaneseq
  %v116 = vshrl.u32 %v115, 7
  %v117 = vsub.s32 0, %v116
  %v118 = vrot.slane %v113, %v117
  %v124 = vunpack.c.l.b16 %v107
  %v125 = vunpack.c.l.b16 %v108
  %v126 = vunpack.c.l.b16 %v109
  %v127 = vunpack.c.l.b16 %v110
  %v128 = vpack.c.b16 %v125, %v124
  %v129 = vpack.c.b16 %v127, %v126
  %v133 = vsel %vm33, %v111, 0
  %v136 = vsel %vm33, %v112, 0
  %138 = vmatprep.subr.bf16.mxu0 0
  %139 = vmatpush1.bf16.msra.mxu0 %v128
  %140 = vmatprep.subr.bf16.mxu0 0
  %141 = vmatpush1.bf16.msra.mxu0 %v129
  %142 = vmatprep.subr.bf16.mxu0 0
  %143 = vmatpush1.bf16.msra.mxu0 0
  %144 = vmatprep.subr.bf16.mxu0 0
  %145 = vmatpush1.bf16.msra.mxu0 0
  %146 = vmatprep.subr.bf16.mxu0 0
  %147 = vmatpush1.bf16.msra.mxu0 0
  %148 = vmatprep.subr.bf16.mxu0 0
  %149 = vmatpush1.bf16.msra.mxu0 0
  %150 = vmatprep.subr.bf16.mxu0 0
  %151 = vmatpush1.bf16.msra.mxu0 0
  %152 = vmatprep.subr.bf16.mxu0 0
  %153 = vmatpush1.bf16.msra.mxu0 0
  %154 = vmatprep.subr.bf16.mxu0 0
  %155 = vmatpush1.bf16.msra.mxu0 0
  %156 = vmatprep.subr.bf16.mxu0 0
  %157 = vmatpush1.bf16.msra.mxu0 0
  %158 = vmatprep.subr.bf16.mxu0 0
  %159 = vmatpush1.bf16.msra.mxu0 0
  %160 = vmatprep.subr.bf16.mxu0 0
  %161 = vmatpush1.bf16.msra.mxu0 0
  %162 = vmatprep.subr.bf16.mxu0 0
  %163 = vmatpush1.bf16.msra.mxu0 0
  %164 = vmatprep.subr.bf16.mxu0 0
  %165 = vmatpush1.bf16.msra.mxu0 0
  %166 = vmatprep.subr.bf16.mxu0 0
  %167 = vmatpush1.bf16.msra.mxu0 0
  %168 = vmatprep.subr.bf16.mxu0 0
  %169 = vmatpush1.bf16.msra.mxu0 0
  %170 = vmatprep.mubr.bf16.mxu0 0
  %171 = vmatmul.mubr.bf16.gmra.mrb[0].mxu0 %v133
  %v172 = vpop.f32.mrb[0].mxu0
  %v173 = vadd.f32 %v118, %v172
  %v174 = vpop.f32.mrb[0].mxu0
  %v175 = vpop.f32.mrb[0].mxu0
  %v176 = vadd.f32 %v118, %v175
  %v177 = vpop.f32.mrb[0].mxu0
  %178 = vmatprep.mubr.bf16.mxu0 0
  %179 = vmatmul.mubr.bf16.gmra.mrb[0].mxu0 %v136
  %v180 = vpop.f32.mrb[0].mxu0
  %v181 = vadd.f32 %v118, %v180
  %v182 = vpop.f32.mrb[0].mxu0
  %v183 = vpop.f32.mrb[0].mxu0
  %v184 = vadd.f32 %v118, %v183
  %v185 = vpop.f32.mrb[0].mxu0
  %186 = vdwg.mxu0
  %v187 = vld [vmem:[%s5] sm:$0xf]
  %v188 = vld [vmem:[%s5 + $0x4] sm:$0xf]
  %v189 = vld [vmem:[%s5 + $0x8] sm:$0xf]
  %v190 = vld [vmem:[%s5 + $0xc] sm:$0xf]
  %v191 = vld [vmem:[%s6] sm:$0x1]
  %v193 = vlaneseq
  %v194 = vshrl.u32 %v193, 7
  %v195 = vsub.s32 0, %v194
  %v196 = vrot.slane %v191, %v195
  %v202 = vunpack.c.l.b16 %v187
  %v203 = vunpack.c.l.b16 %v188
  %v204 = vunpack.c.l.b16 %v189
  %v205 = vunpack.c.l.b16 %v190
  %v206 = vpack.c.b16 %v203, %v202
  %v207 = vpack.c.b16 %v205, %v204
  %210 = vmatprep.subr.bf16.mxu0 0
  %211 = vmatpush1.bf16.msra.mxu0 %v206
  %212 = vmatprep.subr.bf16.mxu0 0
  %213 = vmatpush1.bf16.msra.mxu0 %v207
  %214 = vmatprep.subr.bf16.mxu0 0
  %215 = vmatpush1.bf16.msra.mxu0 0
  %216 = vmatprep.subr.bf16.mxu0 0
  %217 = vmatpush1.bf16.msra.mxu0 0
  %218 = vmatprep.subr.bf16.mxu0 0
  %219 = vmatpush1.bf16.msra.mxu0 0
  %220 = vmatprep.subr.bf16.mxu0 0
  %221 = vmatpush1.bf16.msra.mxu0 0
  %222 = vmatprep.subr.bf16.mxu0 0
  %223 = vmatpush1.bf16.msra.mxu0 0
  %224 = vmatprep.subr.bf16.mxu0 0
  %225 = vmatpush1.bf16.msra.mxu0 0
  %226 = vmatprep.subr.bf16.mxu0 0
  %227 = vmatpush1.bf16.msra.mxu0 0
  %228 = vmatprep.subr.bf16.mxu0 0
  %229 = vmatpush1.bf16.msra.mxu0 0
  %230 = vmatprep.subr.bf16.mxu0 0
  %231 = vmatpush1.bf16.msra.mxu0 0
  %232 = vmatprep.subr.bf16.mxu0 0
  %233 = vmatpush1.bf16.msra.mxu0 0
  %234 = vmatprep.subr.bf16.mxu0 0
  %235 = vmatpush1.bf16.msra.mxu0 0
  %236 = vmatprep.subr.bf16.mxu0 0
  %237 = vmatpush1.bf16.msra.mxu0 0
  %238 = vmatprep.subr.bf16.mxu0 0
  %239 = vmatpush1.bf16.msra.mxu0 0
  %240 = vmatprep.subr.bf16.mxu0 0
  %241 = vmatpush1.bf16.msra.mxu0 0
  %242 = vmatprep.mubr.bf16.mxu0 0
  %243 = vmatmul.mubr.bf16.gmra.mrb[0].mxu0 %v133
  %v244 = vpop.f32.mrb[0].mxu0
  %v245 = vadd.f32 %v196, %v244
  %v246 = vpop.f32.mrb[0].mxu0
  %v247 = vpop.f32.mrb[0].mxu0
  %v248 = vadd.f32 %v196, %v247
  %v249 = vpop.f32.mrb[0].mxu0
  %250 = vmatprep.mubr.bf16.mxu0 0
  %251 = vmatmul.mubr.bf16.gmra.mrb[0].mxu0 %v136
  %v252 = vpop.f32.mrb[0].mxu0
  %v253 = vadd.f32 %v196, %v252
  %v254 = vpop.f32.mrb[0].mxu0
  %v255 = vpop.f32.mrb[0].mxu0
  %v256 = vadd.f32 %v196, %v255
  %v257 = vpop.f32.mrb[0].mxu0
  %258 = vdwg.mxu0
  %v259 = vxor.u32 %v245, 2147483648
  %v260 = vxor.u32 %v248, 2147483648
  %v261 = vxor.u32 %v253, 2147483648
  %v262 = vxor.u32 %v256, 2147483648
  %v263 = vmul.f32 %v259, 1.442695
  %v264 = vpow.pop %v263
  %v265 = vmul.f32 %v260, 1.442695
  %v266 = vpow.pop %v265
  %v267 = vmul.f32 %v261, 1.442695
  %v268 = vpow.pop %v267
  %v269 = vmul.f32 %v262, 1.442695
  %v270 = vpow.pop %v269
  %v271 = vadd.f32 %v264, 1.0
  %v272 = vadd.f32 %v266, 1.0
  %v273 = vadd.f32 %v268, 1.0
  %v274 = vadd.f32 %v270, 1.0
  %v275 = vrcp.pop %v271
  %v276 = vmul.f32 1.0, %v275
  %v277 = vrcp.pop %v272
  %v278 = vmul.f32 1.0, %v277
  %v279 = vrcp.pop %v273
  %v280 = vmul.f32 1.0, %v279
  %v281 = vrcp.pop %v274
  %v282 = vmul.f32 1.0, %v281
  %v283 = vmul.f32 %v173, %v276
  %v284 = vmul.f32 %v176, %v278
  %v285 = vmul.f32 %v181, %v280
  %v286 = vmul.f32 %v184, %v282
  %v287 = vpack.c.bf16 %v284, %v283
  %v288 = vpack.c.bf16 %v286, %v285
  %v291 = vunpack.c.l.b16 %v287
  %v292 = vunpack.c.h.b16 %v287
  %v293 = vunpack.c.l.b16 %v288
  %v294 = vunpack.c.h.b16 %v288
  %v295 = vpack.c.b16 %v291, %v291
  %v296 = vpack.c.b16 %v292, %v292
  %v297 = vpack.c.b16 %v293, %v293
  %v298 = vpack.c.b16 %v294, %v294
  %vm303 = vcmask 257024
  %304 = vst.msk [vmem:[%s7] sm:$0xf] %vm303, %v295
  %305 = vst.msk [vmem:[%s7 + $0x4] sm:$0xf] %vm303, %v296
  %306 = vst.msk [vmem:[%s7 + $0x8] sm:$0xf] %vm303, %v297
  %307 = vst.msk [vmem:[%s7 + $0xc] sm:$0xf] %vm303, %v298
  // Predicated region
  $region30: #{classifier3_forward.41} parent=0 // pred_check
    _
  $region31: #{classifier3_forward.41} parent=0 // pred_check_branch
    %309 = sbr.rel (0) target = $region33
  $region32: #{classifier3_forward.41} parent=0 // pred_region
    _
  $region33: #{classifier3_forward.41} parent=0 // pred_fallthru
    _
  // Predicated region
  $region34: #{classifier3_forward.41} parent=0 // pred_check
    _
  $region35: #{classifier3_forward.41} parent=0 // pred_check_branch
    %311 = sbr.rel (0) target = $region37
  $region36: #{classifier3_forward.41} parent=0 // pred_region
    _
  $region37: #{classifier3_forward.41} parent=0 // pred_fallthru
    _

// kernel: classifier3_forward.42
$region0: #{classifier3_forward.42}
  #allocation0 [shape = 'u32[]', space=smem, size = 0x4, offset = 0x4, fixed_abs, tag = 'smem constant byte address 0x4 - core index']
  #allocation1 [shape = 'u32[144,128]{1,0:T(1,128)}', space=vmem, size = 0x12000, scoped, tag = 'internal scratch']
  %s0 = inlined_call_operand.vmem [shape: bf16[2,16,32], index: 0, kind: input, shape index: {}]
  %s1 = inlined_call_operand.vmem [shape: f32[7,32], index: 1, kind: input, shape index: {}]
  %s2 = inlined_call_operand.vmem [shape: f32[1,32], index: 2, kind: input, shape index: {}]
  %s3 = inlined_call_operand.vmem [shape: f32[1,32], index: 3, kind: input, shape index: {}]
  %s4 = inlined_call_operand.vmem [shape: bf16[2,16,32], index: 4, kind: output, shape index: {}]
  %s5 = sld [smem:[#allocation0]]
  $region49: #{classifier3_forward.42} parent=0
    _
  %s7 = ssub.s32 1, %s5
  %s8 = scalar_select 0, %s7, %s5
  loop: start=0, step=1, limit=4
  $region2: #{classifier3_forward.42} parent=0 // loop_pre_header
    _
  $region3: #{classifier3_forward.42} parent=0 // loop_header
    %s10 = sphi 0, %s14
    %p11 = scmp.ge.s32.totalorder %s10, 4
    %s20 = sphi 0, %s22
    %s23 = sphi 0, %s20
    %s24 = sphi 0, %s23
    %s40 = sphi 0, %s24
    %s44 = sphi 0, %s44
    %s46 = sphi 0, %s44
    %s47 = sphi 0, %s46
    %s61 = sphi 0, %s47
    %s65 = sphi 0, %s65
    %s67 = sphi 0, %s65
    %s68 = sphi 0, %s67
    %s82 = sphi 0, %s68
    %s86 = sphi 0, %s86
    %s88 = sphi 0, %s86
    %s89 = sphi 0, %s88
    %s103 = sphi 0, %s89
    %s109 = sphi 0, %s111
    %s112 = sphi 0, %s109
    %s113 = sphi 0, %s112
    %s129 = sphi 0, %s113
  $region4: #{classifier3_forward.42} parent=0 // loop_header_branch
    %13 = sbr.rel (%p11) target = $region8
  $region5: #{classifier3_forward.42} parent=0 // loop_body
    %s15 = ssub.s32 %s10, 1
    %s16 = ssub.s32 %s10, 2
    %s17 = sadd.s32 %s10, 1
    %s18 = ssub.s32 %s10, %s17
    %p19 = scmp.eq.s32.totalorder %s18, 0
    %s21 = sadd.s32 %s20, 1
    %s22 = scalar_select %p19, %s20, %s21
    %p25 = pneg %p19
    %p26 = scmp.eq.s32.totalorder %s10, 1
    %p27 = por %p25, %p26
    %p28 = scmp.ne.s32.totalorder %s20, %s23
    %p29 = scmp.eq.s32.totalorder %s10, 0
    %p30 = por %p28, %p29
    %p31 = scmp.ne.s32.totalorder %s20, %s23
    %p32 = scmp.eq.s32.totalorder %s15, 1
    %p33 = por %p31, %p32
    %p34 = scmp.ne.s32.totalorder %s23, %s24
    %p35 = scmp.eq.s32.totalorder %s15, 0
    %p36 = por %p34, %p35
    %p37 = scmp.ne.s32.totalorder %s23, %s24
    %p38 = scmp.eq.s32.totalorder %s16, 1
    %p39 = por %p37, %p38
    %p41 = scmp.ne.s32.totalorder %s24, %s40
    %p42 = scmp.eq.s32.totalorder %s16, 0
    %p43 = por %p41, %p42
    %s45 = sadd.s32 %s44, 1
    %p48 = scmp.eq.s32.totalorder %s10, 1
    %p49 = scmp.ne.s32.totalorder %s44, %s46
    %p50 = scmp.eq.s32.totalorder %s10, 0
    %p51 = por %p49, %p50
    %p52 = scmp.ne.s32.totalorder %s44, %s46
    %p53 = scmp.eq.s32.totalorder %s15, 1
    %p54 = por %p52, %p53
    %p55 = scmp.ne.s32.totalorder %s46, %s47
    %p56 = scmp.eq.s32.totalorder %s15, 0
    %p57 = por %p55, %p56
    %p58 = scmp.ne.s32.totalorder %s46, %s47
    %p59 = scmp.eq.s32.totalorder %s16, 1
    %p60 = por %p58, %p59
    %p62 = scmp.ne.s32.totalorder %s47, %s61
    %p63 = scmp.eq.s32.totalorder %s16, 0
    %p64 = por %p62, %p63
    %s66 = sadd.s32 %s65, 1
    %p69 = scmp.eq.s32.totalorder %s10, 1
    %p70 = scmp.ne.s32.totalorder %s65, %s67
    %p71 = scmp.eq.s32.totalorder %s10, 0
    %p72 = por %p70, %p71
    %p73 = scmp.ne.s32.totalorder %s65, %s67
    %p74 = scmp.eq.s32.totalorder %s15, 1
    %p75 = por %p73, %p74
    %p76 = scmp.ne.s32.totalorder %s67, %s68
    %p77 = scmp.eq.s32.totalorder %s15, 0
    %p78 = por %p76, %p77
    %p79 = scmp.ne.s32.totalorder %s67, %s68
    %p80 = scmp.eq.s32.totalorder %s16, 1
    %p81 = por %p79, %p80
    %p83 = scmp.ne.s32.totalorder %s68, %s82
    %p84 = scmp.eq.s32.totalorder %s16, 0
    %p85 = por %p83, %p84
    %s87 = sadd.s32 %s86, 1
    %p90 = scmp.eq.s32.totalorder %s10, 1
    %p91 = scmp.ne.s32.totalorder %s86, %s88
    %p92 = scmp.eq.s32.totalorder %s10, 0
    %p93 = por %p91, %p92
    %p94 = scmp.ne.s32.totalorder %s86, %s88
    %p95 = scmp.eq.s32.totalorder %s15, 1
    %p96 = por %p94, %p95
    %p97 = scmp.ne.s32.totalorder %s88, %s89
    %p98 = scmp.eq.s32.totalorder %s15, 0
    %p99 = por %p97, %p98
    %p100 = scmp.ne.s32.totalorder %s88, %s89
    %p101 = scmp.eq.s32.totalorder %s16, 1
    %p102 = por %p100, %p101
    %p104 = scmp.ne.s32.totalorder %s89, %s103
    %p105 = scmp.eq.s32.totalorder %s16, 0
    %p106 = por %p104, %p105
    %s107 = ssub.s32 %s10, %s17
    %p108 = scmp.eq.s32.totalorder %s107, 0
    %s110 = sadd.s32 %s109, 1
    %s111 = scalar_select %p108, %s109, %s110
    %p114 = pneg %p108
    %p115 = scmp.eq.s32.totalorder %s10, 1
    %p116 = por %p114, %p115
    %p117 = scmp.ne.s32.totalorder %s109, %s112
    %p118 = scmp.eq.s32.totalorder %s10, 0
    %p119 = por %p117, %p118
    %p120 = scmp.ne.s32.totalorder %s109, %s112
    %p121 = scmp.eq.s32.totalorder %s15, 1
    %p122 = por %p120, %p121
    %p123 = scmp.ne.s32.totalorder %s112, %s113
    %p124 = scmp.eq.s32.totalorder %s15, 0
    %p125 = por %p123, %p124
    %p126 = scmp.ne.s32.totalorder %s112, %s113
    %p127 = scmp.eq.s32.totalorder %s16, 1
    %p128 = por %p126, %p127
    %p130 = scmp.ne.s32.totalorder %s113, %s129
    %p131 = scmp.eq.s32.totalorder %s16, 0
    %p132 = por %p130, %p131
    %p133 = scmp.le.s32.totalorder 1, %s10
    %p134 = scmp.lt.s32.totalorder %s10, 3
    %p135 = pnand %p133, %p134
    %p136 = pneg %p135
    // Predicated region
    $region9: #{classifier3_forward.42} parent=5 // pred_check
      _
    $region10: #{classifier3_forward.42} parent=5 // pred_check_branch
      %138 = sbr.rel (%p135) target = $region12
    $region11: #{classifier3_forward.42} parent=5 // pred_region
      %s139 = ssub.s32 %s10, 1
      // Predicated region
      $region13: #{classifier3_forward.42} parent=11 // pred_check
        %p140 = pneg %p57
      $region14: #{classifier3_forward.42} parent=11 // pred_check_branch
        %142 = sbr.rel (%p140) target = $region16
      $region15: #{classifier3_forward.42} parent=11 // pred_region
        _
      $region16: #{classifier3_forward.42} parent=11 // pred_fallthru
        _
      // Predicated region
      $region17: #{classifier3_forward.42} parent=11 // pred_check
        %p143 = pneg %p78
      $region18: #{classifier3_forward.42} parent=11 // pred_check_branch
        %145 = sbr.rel (%p143) target = $region20
      $region19: #{classifier3_forward.42} parent=11 // pred_region
        _
      $region20: #{classifier3_forward.42} parent=11 // pred_fallthru
        _
      // Predicated region
      $region21: #{classifier3_forward.42} parent=11 // pred_check
        %p146 = pneg %p99
      $region22: #{classifier3_forward.42} parent=11 // pred_check_branch
        %148 = sbr.rel (%p146) target = $region24
      $region23: #{classifier3_forward.42} parent=11 // pred_region
        _
      $region24: #{classifier3_forward.42} parent=11 // pred_fallthru
        _
    $region12: #{classifier3_forward.42} parent=5 // pred_fallthru
      _
    %p149 = scmp.lt.s32.totalorder %s10, 2
    // Predicated region
    $region25: #{classifier3_forward.42} parent=5 // pred_check
      %p150 = pneg %p149
    $region26: #{classifier3_forward.42} parent=5 // pred_check_branch
      %152 = sbr.rel (%p150) target = $region28
    $region27: #{classifier3_forward.42} parent=5 // pred_region
      // Predicated region
      $region29: #{classifier3_forward.42} parent=27 // pred_check
        %p153 = pneg %p30
      $region30: #{classifier3_forward.42} parent=27 // pred_check_branch
        %155 = sbr.rel (%p153) target = $region32
      $region31: #{classifier3_forward.42} parent=27 // pred_region
        %p156 = scmp.lt.s32.totalorder %s10, 1
        %s157 = scalar_select %p156, %s10, 1
        %s158 = smul.addr %s157, 2
        %s159 = smul.addr %s158, 4
        %s160 = scalar_lea.vmem %s0, %s159
      $region32: #{classifier3_forward.42} parent=27 // pred_fallthru
        _
    $region28: #{classifier3_forward.42} parent=5 // pred_fallthru
      _
    %p161 = scmp.le.s32.totalorder 1, %s10
    %p162 = scmp.lt.s32.totalorder %s10, 3
    %p163 = pnand %p161, %p162
    %p164 = pneg %p163
    // Predicated region
    $region33: #{classifier3_forward.42} parent=5 // pred_check
      _
    $region34: #{classifier3_forward.42} parent=5 // pred_check_branch
      %166 = sbr.rel (%p163) target = $region36
    $region35: #{classifier3_forward.42} parent=5 // pred_region
      %s167 = ssub.s32 %s10, 1
      %p168 = scmp.lt.s32.totalorder %s15, 1
      %s169 = scalar_select %p168, %s15, 1
      %s170 = smul.addr %s169, 2
      %s171 = smul.addr %s170, 4
      %s172 = scalar_lea.vmem %s0, %s171
      %p173 = pneg %p36
      %p174 = pneg %p33
      %p175 = pneg %p57
      %p176 = pneg %p54
      %p177 = pneg %p78
      %p178 = pneg %p75
      %p179 = pneg %p99
      %p180 = pneg %p96
      %p181 = pneg %p125
      %p182 = pneg %p122
      %p183 = scmp.lt.s32.totalorder %s15, 1
      %s184 = scalar_select %p183, %s15, 1
      %s185 = smul.addr %s184, 2
      %s186 = smul.addr %s185, 4
      %s187 = scalar_lea.vmem %s4, %s186
      %p188 = scmp.lt.s32.totalorder %s15, 1
      %s189 = scalar_select %p188, %s15, 1
      %s190 = smul.addr %s189, 2
      %s191 = smul.addr %s190, 4
      %s192 = scalar_lea.vmem %s0, %s191
      %p193 = scmp.lt.s32.totalorder %s15, 1
      %s194 = scalar_select %p193, %s15, 1
      %s195 = smul.addr %s194, 2
      %s196 = smul.addr %s195, 4
      %s197 = scalar_lea.vmem %s4, %s196
      %v198 = vld [vmem:[%s192] sm:$0xf]
      %v199 = vld [vmem:[%s192 + $0x4] sm:$0xf]
      %v200 = vunpack.c.l.bf16 %v198
      %v201 = vunpack.c.l.bf16 %v199
      %v202 = vlaneseq
      %v203 = vshrl.u32 %v202, 7
      %v204 = vadd.s32 %v203, 8
      %v205 = vrot.slane %v200, 5
      %v206 = vrot.slane %v201, 5
      %vm207 = vcmp.lt.s32.totalorder %v203, 3
      %v208 = vsel %vm207, %v205, %v206
      %v209 = vsel %vm207, %v206, %v205
      %vm210 = vcmp.ge.s32.totalorder %v203, 3
      %vm211 = vcmp.ge.s32.totalorder %v204, 3
      %vm212 = vcmp.lt.s32.totalorder %v203, 19
      %vm213 = vcmp.lt.s32.totalorder %v204, 19
      %vm214 = vmand %vm210, %vm212
      %vm215 = vmand %vm211, %vm213
      %v216 = vsel %vm214, %v209, 0.0
      %v217 = vsel %vm215, %v208, 0.0
      %v218 = vld [vmem:[%s1] sm:$0x1]
      %v219 = vlaneseq
      %v220 = vshrl.u32 %v219, 7
      %v221 = vsub.s32 0, %v220
      %v222 = vrot.slane %v218, %v221
      %v223 = vmul.f32 %v216, %v222
      %v224 = vmul.f32 %v217, %v222
      %v225 = vadd.f32 %v223, 0.0
      %v226 = vadd.f32 %v224, 0.0
      %v227 = vrot.slane %v200, 6
      %v228 = vrot.slane %v201, 6
      %vm229 = vcmp.lt.s32.totalorder %v203, 2
      %v230 = vsel %vm229, %v227, %v228
      %v231 = vsel %vm229, %v228, %v227
      %vm232 = vcmp.ge.s32.totalorder %v203, 2
      %vm233 = vcmp.ge.s32.totalorder %v204, 2
      %vm234 = vcmp.lt.s32.totalorder %v203, 18
      %vm235 = vcmp.lt.s32.totalorder %v204, 18
      %vm236 = vmand %vm232, %vm234
      %vm237 = vmand %vm233, %vm235
      %v238 = vsel %vm236, %v231, 0.0
      %v239 = vsel %vm237, %v230, 0.0
      %v240 = vld [vmem:[%s1 + $0x1] sm:$0x1]
      %v241 = vlaneseq
      %v242 = vshrl.u32 %v241, 7
      %v243 = vsub.s32 0, %v242
      %v244 = vrot.slane %v240, %v243
      %v245 = vmul.f32 %v238, %v244
      %v246 = vmul.f32 %v239, %v244
      %v247 = vadd.f32 %v225, %v245
      %v248 = vadd.f32 %v226, %v246
      %v249 = vrot.slane %v200, 7
      %v250 = vrot.slane %v201, 7
      %vm251 = vcmp.lt.s32.totalorder %v203, 1
      %v252 = vsel %vm251, %v249, %v250
      %v253 = vsel %vm251, %v250, %v249
      %vm254 = vcmp.ge.s32.totalorder %v203, 1
      %vm255 = vcmp.ge.s32.totalorder %v204, 1
      %vm256 = vcmp.lt.s32.totalorder %v203, 17
      %vm257 = vcmp.lt.s32.totalorder %v204, 17
      %vm258 = vmand %vm254, %vm256
      %vm259 = vmand %vm255, %vm257
      %v260 = vsel %vm258, %v253, 0.0
      %v261 = vsel %vm259, %v252, 0.0
      %v262 = vld [vmem:[%s1 + $0x2] sm:$0x1]
      %v263 = vlaneseq
      %v264 = vshrl.u32 %v263, 7
      %v265 = vsub.s32 0, %v264
      %v266 = vrot.slane %v262, %v265
      %v267 = vmul.f32 %v260, %v266
      %v268 = vmul.f32 %v261, %v266
      %v269 = vadd.f32 %v247, %v267
      %v270 = vadd.f32 %v248, %v268
      %vm271 = vcmp.ge.s32.totalorder %v203, 0
      %vm272 = vcmp.ge.s32.totalorder %v204, 0
      %vm273 = vcmp.lt.s32.totalorder %v203, 16
      %vm274 = vcmp.lt.s32.totalorder %v204, 16
      %vm275 = vmand %vm271, %vm273
      %vm276 = vmand %vm272, %vm274
      %v277 = vsel %vm275, %v200, 0.0
      %v278 = vsel %vm276, %v201, 0.0
      %v279 = vld [vmem:[%s1 + $0x3] sm:$0x1]
      %v280 = vlaneseq
      %v281 = vshrl.u32 %v280, 7
      %v282 = vsub.s32 0, %v281
      %v283 = vrot.slane %v279, %v282
      %v284 = vmul.f32 %v277, %v283
      %v285 = vmul.f32 %v278, %v283
      %v286 = vadd.f32 %v269, %v284
      %v287 = vadd.f32 %v270, %v285
      %v288 = vrot.slane %v200, 1
      %v289 = vrot.slane %v201, 1
      %vm290 = vcmp.lt.s32.totalorder %v203, 7
      %v291 = vsel %vm290, %v288, %v289
      %v292 = vsel %vm290, %v289, %v288
      %vm293 = vcmp.ge.s32.totalorder %v203, 4294967295
      %vm294 = vcmp.ge.s32.totalorder %v204, 4294967295
      %vm295 = vcmp.lt.s32.totalorder %v203, 15
      %vm296 = vcmp.lt.s32.totalorder %v204, 15
      %vm297 = vmand %vm293, %vm295
      %vm298 = vmand %vm294, %vm296
      %v299 = vsel %vm297, %v291, 0.0
      %v300 = vsel %vm298, %v292, 0.0
      %v301 = vld [vmem:[%s1 + $0x4] sm:$0x1]
      %v302 = vlaneseq
      %v303 = vshrl.u32 %v302, 7
      %v304 = vsub.s32 0, %v303
      %v305 = vrot.slane %v301, %v304
      %v306 = vmul.f32 %v299, %v305
      %v307 = vmul.f32 %v300, %v305
      %v308 = vadd.f32 %v286, %v306
      %v309 = vadd.f32 %v287, %v307
      %v310 = vrot.slane %v200, 2
      %v311 = vrot.slane %v201, 2
      %vm312 = vcmp.lt.s32.totalorder %v203, 6
      %v313 = vsel %vm312, %v310, %v311
      %v314 = vsel %vm312, %v311, %v310
      %vm315 = vcmp.ge.s32.totalorder %v203, 4294967294
      %vm316 = vcmp.ge.s32.totalorder %v204, 4294967294
      %vm317 = vcmp.lt.s32.totalorder %v203, 14
      %vm318 = vcmp.lt.s32.totalorder %v204, 14
      %vm319 = vmand %vm315, %vm317
      %vm320 = vmand %vm316, %vm318
      %v321 = vsel %vm319, %v313, 0.0
      %v322 = vsel %vm320, %v314, 0.0
      %v323 = vld [vmem:[%s1 + $0x5] sm:$0x1]
      %v324 = vlaneseq
      %v325 = vshrl.u32 %v324, 7
      %v326 = vsub.s32 0, %v325
      %v327 = vrot.slane %v323, %v326
      %v328 = vmul.f32 %v321, %v327
      %v329 = vmul.f32 %v322, %v327
      %v330 = vadd.f32 %v308, %v328
      %v331 = vadd.f32 %v309, %v329
      %v332 = vrot.slane %v200, 3
      %v333 = vrot.slane %v201, 3
      %vm334 = vcmp.lt.s32.totalorder %v203, 5
      %v335 = vsel %vm334, %v332, %v333
      %v336 = vsel %vm334, %v333, %v332
      %vm337 = vcmp.ge.s32.totalorder %v203, 4294967293
      %vm338 = vcmp.ge.s32.totalorder %v204, 4294967293
      %vm339 = vcmp.lt.s32.totalorder %v203, 13
      %vm340 = vcmp.lt.s32.totalorder %v204, 13
      %vm341 = vmand %vm337, %vm339
      %vm342 = vmand %vm338, %vm340
      %v343 = vsel %vm341, %v335, 0.0
      %v344 = vsel %vm342, %v336, 0.0
      %v345 = vld [vmem:[%s1 + $0x6] sm:$0x1]
      %v346 = vlaneseq
      %v347 = vshrl.u32 %v346, 7
      %v348 = vsub.s32 0, %v347
      %v349 = vrot.slane %v345, %v348
      %v350 = vmul.f32 %v343, %v349
      %v351 = vmul.f32 %v344, %v349
      %v352 = vadd.f32 %v330, %v350
      %v353 = vadd.f32 %v331, %v351
      %v354 = vld [vmem:[%s2] sm:$0x1]
      %v356 = vlaneseq
      %v357 = vshrl.u32 %v356, 7
      %v358 = vsub.s32 0, %v357
      %v359 = vrot.slane %v354, %v358
      %v361 = vmul.f32 %v352, %v359
      %v362 = vmul.f32 %v353, %v359
      %v363 = vld [vmem:[%s3] sm:$0x1]
      %v365 = vlaneseq
      %v366 = vshrl.u32 %v365, 7
      %v367 = vsub.s32 0, %v366
      %v368 = vrot.slane %v363, %v367
      %v370 = vadd.f32 %v361, %v368
      %v371 = vadd.f32 %v362, %v368
      %v372 = vxor.u32 %v370, 2147483648
      %v373 = vxor.u32 %v371, 2147483648
      %v374 = vmul.f32 %v372, 1.442695
      %v375 = vpow.pop %v374
      %v376 = vmul.f32 %v373, 1.442695
      %v377 = vpow.pop %v376
      %v378 = vadd.f32 %v375, 1.0
      %v379 = vadd.f32 %v377, 1.0
      %v380 = vrcp.pop %v378
      %v381 = vmul.f32 1.0, %v380
      %v382 = vrcp.pop %v379
      %v383 = vmul.f32 1.0, %v382
      %v384 = vmul.f32 %v370, %v381
      %v385 = vmul.f32 %v371, %v383
      %v386 = vpack.c.bf16 %v385, %v384
      %v388 = vunpack.c.l.b16 %v386
      %v389 = vunpack.c.h.b16 %v386
      %v390 = vpack.c.b16 %v388, %v388
      %v391 = vpack.c.b16 %v389, %v389
      %vm394 = vcmask 257024
      %395 = vst.msk [vmem:[%s197] sm:$0xf] %vm394, %v390
      %396 = vst.msk [vmem:[%s197 + $0x4] sm:$0xf] %vm394, %v391
      %p397 = scmp.lt.s32.totalorder %s15, 1
      %s398 = scalar_select %p397, %s15, 1
      %s399 = smul.addr %s398, 2
      %s400 = smul.addr %s399, 4
      %s401 = scalar_lea.vmem %s4, %s400
      // Predicated region
      $region37: #{classifier3_forward.42} parent=35 // pred_check
        %p402 = pneg %p122
      $region38: #{classifier3_forward.42} parent=35 // pred_check_branch
        %404 = sbr.rel (%p402) target = $region40
      $region39: #{classifier3_forward.42} parent=35 // pred_region
        _
      $region40: #{classifier3_forward.42} parent=35 // pred_fallthru
        _
    $region36: #{classifier3_forward.42} parent=5 // pred_fallthru
      _
    %p405 = scmp.le.s32.totalorder 2, %s10
    // Predicated region
    $region41: #{classifier3_forward.42} parent=5 // pred_check
      %p406 = pneg %p405
    $region42: #{classifier3_forward.42} parent=5 // pred_check_branch
      %408 = sbr.rel (%p406) target = $region44
    $region43: #{classifier3_forward.42} parent=5 // pred_region
      %s409 = ssub.s32 %s10, 2
      // Predicated region
      $region45: #{classifier3_forward.42} parent=43 // pred_check
        %p410 = pneg %p128
      $region46: #{classifier3_forward.42} parent=43 // pred_check_branch
        %412 = sbr.rel (%p410) target = $region48
      $region47: #{classifier3_forward.42} parent=43 // pred_region
        %p413 = scmp.lt.s32.totalorder %s16, 1
        %s414 = scalar_select %p413, %s16, 1
        %s415 = smul.addr %s414, 2
        %s416 = smul.addr %s415, 4
        %s417 = scalar_lea.vmem %s4, %s416
      $region48: #{classifier3_forward.42} parent=43 // pred_fallthru
        _
    $region44: #{classifier3_forward.42} parent=5 // pred_fallthru
      _
  $region6: #{classifier3_forward.42} parent=0 // loop_footer
    %s14 = sadd.s32 1, %s10
  $region7: #{classifier3_forward.42} parent=0 // loop_footer_branch
    %9 = sbr.rel target = $region3
  $region8: #{classifier3_forward.42} parent=0 // loop_exit
    _

// kernel: classifier3_forward.45
$region0: #{classifier3_forward.45}
  #allocation0 [shape = 'u32[]', space=smem, size = 0x4, offset = 0x4, fixed_abs, tag = 'smem constant byte address 0x4 - core index']
  #allocation1 [shape = 'u32[144,128]{1,0:T(1,128)}', space=vmem, size = 0x12000, scoped, tag = 'internal scratch']
  %s0 = inlined_call_operand.vmem [shape: bf16[32,128], index: 0, kind: input, shape index: {}]
  %s1 = inlined_call_operand.vmem [shape: bf16[128,32], index: 1, kind: input, shape index: {}]
  %s2 = inlined_call_operand.vmem [shape: f32[1,32], index: 2, kind: input, shape index: {}]
  %s3 = inlined_call_operand.vmem [shape: f32[32,32], index: 3, kind: input, shape index: {}]
  %s4 = inlined_call_operand.vmem [shape: f32[1,32], index: 4, kind: input, shape index: {}]
  %s5 = inlined_call_operand.vmem [shape: f32[1,32], index: 5, kind: input, shape index: {}]
  %s6 = inlined_call_operand.vmem [shape: f32[32,32], index: 6, kind: output, shape index: {}]
  %s7 = sld [smem:[#allocation0]]
  $region34: #{classifier3_forward.45} parent=0
    _
  %s9 = ssub.s32 1, %s7
  %s10 = scalar_select 0, %s9, %s7
  // Predicated region
  $region2: #{classifier3_forward.45} parent=0 // pred_check
    _
  $region3: #{classifier3_forward.45} parent=0 // pred_check_branch
    %12 = sbr.rel (0) target = $region5
  $region4: #{classifier3_forward.45} parent=0 // pred_region
    _
  $region5: #{classifier3_forward.45} parent=0 // pred_fallthru
    _
  // Predicated region
  $region6: #{classifier3_forward.45} parent=0 // pred_check
    _
  $region7: #{classifier3_forward.45} parent=0 // pred_check_branch
    %14 = sbr.rel (0) target = $region9
  $region8: #{classifier3_forward.45} parent=0 // pred_region
    _
  $region9: #{classifier3_forward.45} parent=0 // pred_fallthru
    _
  // Predicated region
  $region10: #{classifier3_forward.45} parent=0 // pred_check
    _
  $region11: #{classifier3_forward.45} parent=0 // pred_check_branch
    %16 = sbr.rel (0) target = $region13
  $region12: #{classifier3_forward.45} parent=0 // pred_region
    _
  $region13: #{classifier3_forward.45} parent=0 // pred_fallthru
    _
  // Predicated region
  $region14: #{classifier3_forward.45} parent=0 // pred_check
    _
  $region15: #{classifier3_forward.45} parent=0 // pred_check_branch
    %18 = sbr.rel (0) target = $region17
  $region16: #{classifier3_forward.45} parent=0 // pred_region
    _
  $region17: #{classifier3_forward.45} parent=0 // pred_fallthru
    _
  // Predicated region
  $region18: #{classifier3_forward.45} parent=0 // pred_check
    _
  $region19: #{classifier3_forward.45} parent=0 // pred_check_branch
    %20 = sbr.rel (0) target = $region21
  $region20: #{classifier3_forward.45} parent=0 // pred_region
    _
  $region21: #{classifier3_forward.45} parent=0 // pred_fallthru
    _
  // Predicated region
  $region22: #{classifier3_forward.45} parent=0 // pred_check
    _
  $region23: #{classifier3_forward.45} parent=0 // pred_check_branch
    %22 = sbr.rel (0) target = $region25
  $region24: #{classifier3_forward.45} parent=0 // pred_region
    _
  $region25: #{classifier3_forward.45} parent=0 // pred_fallthru
    _
  %v24 = vld [vmem:[%s0] sm:$0xf]
  %v25 = vld [vmem:[%s0 + $0x4] sm:$0xf]
  %v26 = vld [vmem:[%s0 + $0x8] sm:$0xf]
  %v27 = vld [vmem:[%s0 + $0xc] sm:$0xf]
  %v28 = vld [vmem:[%s1] sm:$0xf]
  %v29 = vld [vmem:[%s1 + $0x4] sm:$0xf]
  %v30 = vld [vmem:[%s1 + $0x8] sm:$0xf]
  %v31 = vld [vmem:[%s1 + $0xc] sm:$0xf]
  %v32 = vld [vmem:[%s1 + $0x10] sm:$0xf]
  %v33 = vld [vmem:[%s1 + $0x14] sm:$0xf]
  %v34 = vld [vmem:[%s1 + $0x18] sm:$0xf]
  %v35 = vld [vmem:[%s1 + $0x1c] sm:$0xf]
  %v36 = vld [vmem:[%s1 + $0x20] sm:$0xf]
  %v37 = vld [vmem:[%s1 + $0x24] sm:$0xf]
  %v38 = vld [vmem:[%s1 + $0x28] sm:$0xf]
  %v39 = vld [vmem:[%s1 + $0x2c] sm:$0xf]
  %v40 = vld [vmem:[%s1 + $0x30] sm:$0xf]
  %v41 = vld [vmem:[%s1 + $0x34] sm:$0xf]
  %v42 = vld [vmem:[%s1 + $0x38] sm:$0xf]
  %v43 = vld [vmem:[%s1 + $0x3c] sm:$0xf]
  %v44 = vld [vmem:[%s2] sm:$0x1]
  %v46 = vlaneseq
  %v47 = vshrl.u32 %v46, 7
  %v48 = vsub.s32 0, %v47
  %v49 = vrot.slane %v44, %v48
  %v55 = vunpack.c.l.b16 %v24
  %v56 = vunpack.c.l.b16 %v25
  %v57 = vunpack.c.l.b16 %v26
  %v58 = vunpack.c.l.b16 %v27
  %v59 = vpack.c.b16 %v56, %v55
  %v60 = vpack.c.b16 %v58, %v57
  %v79 = vunpack.c.l.b16 %v28
  %v80 = vunpack.c.l.b16 %v29
  %v81 = vunpack.c.l.b16 %v30
  %v82 = vunpack.c.l.b16 %v31
  %v83 = vunpack.c.l.b16 %v32
  %v84 = vunpack.c.l.b16 %v33
  %v85 = vunpack.c.l.b16 %v34
  %v86 = vunpack.c.l.b16 %v35
  %v87 = vunpack.c.l.b16 %v36
  %v88 = vunpack.c.l.b16 %v37
  %v89 = vunpack.c.l.b16 %v38
  %v90 = vunpack.c.l.b16 %v39
  %v91 = vunpack.c.l.b16 %v40
  %v92 = vunpack.c.l.b16 %v41
  %v93 = vunpack.c.l.b16 %v42
  %v94 = vunpack.c.l.b16 %v43
  %v95 = vpack.c.b16 %v80, %v79
  %v96 = vpack.c.b16 %v82, %v81
  %v97 = vpack.c.b16 %v84, %v83
  %v98 = vpack.c.b16 %v86, %v85
  %v99 = vpack.c.b16 %v88, %v87
  %v100 = vpack.c.b16 %v90, %v89
  %v101 = vpack.c.b16 %v92, %v91
  %v102 = vpack.c.b16 %v94, %v93
  %111 = vmatprep.subr.bf16.mxu0 0
  %112 = vmatpush1.bf16.msra.mxu0 %v95
  %113 = vmatprep.subr.bf16.mxu0 0
  %114 = vmatpush1.bf16.msra.mxu0 %v96
  %115 = vmatprep.subr.bf16.mxu0 0
  %116 = vmatpush1.bf16.msra.mxu0 %v97
  %117 = vmatprep.subr.bf16.mxu0 0
  %118 = vmatpush1.bf16.msra.mxu0 %v98
  %119 = vmatprep.subr.bf16.mxu0 0
  %120 = vmatpush1.bf16.msra.mxu0 %v99
  %121 = vmatprep.subr.bf16.mxu0 0
  %122 = vmatpush1.bf16.msra.mxu0 %v100
  %123 = vmatprep.subr.bf16.mxu0 0
  %124 = vmatpush1.bf16.msra.mxu0 %v101
  %125 = vmatprep.subr.bf16.mxu0 0
  %126 = vmatpush1.bf16.msra.mxu0 %v102
  %127 = vmatprep.subr.bf16.mxu0 0
  %128 = vmatpush1.bf16.msra.mxu0 0
  %129 = vmatprep.subr.bf16.mxu0 0
  %130 = vmatpush1.bf16.msra.mxu0 0
  %131 = vmatprep.subr.bf16.mxu0 0
  %132 = vmatpush1.bf16.msra.mxu0 0
  %133 = vmatprep.subr.bf16.mxu0 0
  %134 = vmatpush1.bf16.msra.mxu0 0
  %135 = vmatprep.subr.bf16.mxu0 0
  %136 = vmatpush1.bf16.msra.mxu0 0
  %137 = vmatprep.subr.bf16.mxu0 0
  %138 = vmatpush1.bf16.msra.mxu0 0
  %139 = vmatprep.subr.bf16.mxu0 0
  %140 = vmatpush1.bf16.msra.mxu0 0
  %141 = vmatprep.subr.bf16.mxu0 0
  %142 = vmatpush1.bf16.msra.mxu0 0
  %143 = vmatprep.mubr.bf16.mxu0 0
  %144 = vmatmul.mubr.bf16.gmra.mrb[0].mxu0 %v59
  %v145 = vpop.f32.mrb[0].mxu0
  %v146 = vadd.f32 %v49, %v145
  %v147 = vpop.f32.mrb[0].mxu0
  %v148 = vpop.f32.mrb[0].mxu0
  %v149 = vadd.f32 %v49, %v148
  %v150 = vpop.f32.mrb[0].mxu0
  %151 = vmatprep.mubr.bf16.mxu0 0
  %152 = vmatmul.mubr.bf16.gmra.mrb[0].mxu0 %v60
  %v153 = vpop.f32.mrb[0].mxu0
  %v154 = vadd.f32 %v49, %v153
  %v155 = vpop.f32.mrb[0].mxu0
  %v156 = vpop.f32.mrb[0].mxu0
  %v157 = vadd.f32 %v49, %v156
  %v158 = vpop.f32.mrb[0].mxu0
  %159 = vdwg.mxu0
  %v160 = vld [vmem:[%s3] sm:$0xff]
  %v161 = vld [vmem:[%s3 + $0x8] sm:$0xff]
  %v162 = vld [vmem:[%s3 + $0x10] sm:$0xff]
  %v163 = vld [vmem:[%s3 + $0x18] sm:$0xff]
  %v164 = vmul.f32 %v146, 0.5
  %v165 = vmul.f32 %v149, 0.5
  %v166 = vmul.f32 %v154, 0.5
  %v167 = vmul.f32 %v157, 0.5
  %v168 = vadd.f32 %v160, %v164
  %v169 = vadd.f32 %v161, %v165
  %v170 = vadd.f32 %v162, %v166
  %v171 = vadd.f32 %v163, %v167
  %v172 = vld [vmem:[%s4] sm:$0x1]
  %v173 = vld [vmem:[%s5] sm:$0x1]
  %vm174 = vcmask 261120
  %v175 = vsel %vm174, %v168, 0.0
  %176 = vadd.xlane.f32.xlu0 %v175
  %v177 = vpop.xlane.xlu0 %176
  %v178 = vsel %vm174, %v169, 0.0
  %179 = vadd.xlane.f32.xlu0 %v178
  %v180 = vpop.xlane.xlu0 %179
  %v181 = vsel %vm174, %v170, 0.0
  %182 = vadd.xlane.f32.xlu0 %v181
  %v183 = vpop.xlane.xlu0 %182
  %v184 = vsel %vm174, %v171, 0.0
  %185 = vadd.xlane.f32.xlu0 %v184
  %v186 = vpop.xlane.xlu0 %185
  %v187 = vrcp.pop 32.0
  %v188 = vmul.f32 %v177, %v187
  %v189 = vmul.f32 %v180, %v187
  %v190 = vmul.f32 %v183, %v187
  %v191 = vmul.f32 %v186, %v187
  %v192 = vsub.f32 %v168, %v188
  %v193 = vsub.f32 %v169, %v189
  %v194 = vsub.f32 %v170, %v190
  %v195 = vsub.f32 %v171, %v191
  %v196 = vmul.f32 %v192, %v192
  %v197 = vmul.f32 %v193, %v193
  %v198 = vmul.f32 %v194, %v194
  %v199 = vmul.f32 %v195, %v195
  %v200 = vsel %vm174, %v196, 0.0
  %201 = vadd.xlane.f32.xlu0 %v200
  %v202 = vpop.xlane.xlu0 %201
  %v203 = vsel %vm174, %v197, 0.0
  %204 = vadd.xlane.f32.xlu0 %v203
  %v205 = vpop.xlane.xlu0 %204
  %v206 = vsel %vm174, %v198, 0.0
  %207 = vadd.xlane.f32.xlu0 %v206
  %v208 = vpop.xlane.xlu0 %207
  %v209 = vsel %vm174, %v199, 0.0
  %210 = vadd.xlane.f32.xlu0 %v209
  %v211 = vpop.xlane.xlu0 %210
  %v212 = vmul.f32 %v202, %v187
  %v213 = vmul.f32 %v205, %v187
  %v214 = vmul.f32 %v208, %v187
  %v215 = vmul.f32 %v211, %v187
  %v216 = vadd.f32 %v212, 1e-05
  %v217 = vadd.f32 %v213, 1e-05
  %v218 = vadd.f32 %v214, 1e-05
  %v219 = vadd.f32 %v215, 1e-05
  %v220 = vrsqrt.pop %v216
  %v221 = vrsqrt.pop %v217
  %v222 = vrsqrt.pop %v218
  %v223 = vrsqrt.pop %v219
  %v224 = vmul.f32 %v192, %v220
  %v225 = vmul.f32 %v193, %v221
  %v226 = vmul.f32 %v194, %v222
  %v227 = vmul.f32 %v195, %v223
  %v229 = vlaneseq
  %v230 = vshrl.u32 %v229, 7
  %v231 = vsub.s32 0, %v230
  %v232 = vrot.slane %v172, %v231
  %v234 = vmul.f32 %v224, %v232
  %v235 = vmul.f32 %v225, %v232
  %v236 = vmul.f32 %v226, %v232
  %v237 = vmul.f32 %v227, %v232
  %v239 = vlaneseq
  %v240 = vshrl.u32 %v239, 7
  %v241 = vsub.s32 0, %v240
  %v242 = vrot.slane %v173, %v241
  %v244 = vadd.f32 %v234, %v242
  %v245 = vadd.f32 %v235, %v242
  %v246 = vadd.f32 %v236, %v242
  %v247 = vadd.f32 %v237, %v242
  %248 = vst.msk [vmem:[%s6] sm:$0xff] %vm174, %v244
  %249 = vst.msk [vmem:[%s6 + $0x8] sm:$0xff] %vm174, %v245
  %250 = vst.msk [vmem:[%s6 + $0x10] sm:$0xff] %vm174, %v246
  %251 = vst.msk [vmem:[%s6 + $0x18] sm:$0xff] %vm174, %v247
  // Predicated region
  $region26: #{classifier3_forward.45} parent=0 // pred_check
    _
  $region27: #{classifier3_forward.45} parent=0 // pred_check_branch
    %253 = sbr.rel (0) target = $region29
  $region28: #{classifier3_forward.45} parent=0 // pred_region
    _
  $region29: #{classifier3_forward.45} parent=0 // pred_fallthru
    _
  // Predicated region
  $region30: #{classifier3_forward.45} parent=0 // pred_check
    _
  $region31: #{classifier3_forward.45} parent=0 // pred_check_branch
    %255 = sbr.rel (0) target = $region33
  $region32: #{classifier3_forward.45} parent=0 // pred_region
    _
  $region33: #{classifier3_forward.45} parent=0 // pred_fallthru
    _

// kernel: classifier3_forward.56
$region0: #{classifier3_forward.56}
  #allocation0 [shape = 'u32[]', space=smem, size = 0x4, offset = 0x4, fixed_abs, tag = 'smem constant byte address 0x4 - core index']
  #allocation1 [shape = 'u32[144,128]{1,0:T(1,128)}', space=vmem, size = 0x12000, scoped, tag = 'internal scratch']
  %s0 = inlined_call_operand.vmem [shape: f32[32,32], index: 0, kind: input, shape index: {}]
  %s1 = inlined_call_operand.vmem [shape: bf16[32,64], index: 1, kind: input, shape index: {}]
  %s2 = inlined_call_operand.vmem [shape: f32[1,64], index: 2, kind: input, shape index: {}]
  %s3 = inlined_call_operand.vmem [shape: f32[32,64], index: 3, kind: output, shape index: {}]
  %s4 = sld [smem:[#allocation0]]
  $region22: #{classifier3_forward.56} parent=0
    _
  %s6 = ssub.s32 1, %s4
  %s7 = scalar_select 0, %s6, %s4
  // Predicated region
  $region2: #{classifier3_forward.56} parent=0 // pred_check
    _
  $region3: #{classifier3_forward.56} parent=0 // pred_check_branch
    %9 = sbr.rel (0) target = $region5
  $region4: #{classifier3_forward.56} parent=0 // pred_region
    _
  $region5: #{classifier3_forward.56} parent=0 // pred_fallthru
    _
  // Predicated region
  $region6: #{classifier3_forward.56} parent=0 // pred_check
    _
  $region7: #{classifier3_forward.56} parent=0 // pred_check_branch
    %11 = sbr.rel (0) target = $region9
  $region8: #{classifier3_forward.56} parent=0 // pred_region
    _
  $region9: #{classifier3_forward.56} parent=0 // pred_fallthru
    _
  // Predicated region
  $region10: #{classifier3_forward.56} parent=0 // pred_check
    _
  $region11: #{classifier3_forward.56} parent=0 // pred_check_branch
    %13 = sbr.rel (0) target = $region13
  $region12: #{classifier3_forward.56} parent=0 // pred_region
    _
  $region13: #{classifier3_forward.56} parent=0 // pred_fallthru
    _
  %v15 = vld [vmem:[%s0] sm:$0xff]
  %v16 = vld [vmem:[%s0 + $0x8] sm:$0xff]
  %v17 = vld [vmem:[%s0 + $0x10] sm:$0xff]
  %v18 = vld [vmem:[%s0 + $0x18] sm:$0xff]
  %v19 = vld [vmem:[%s1] sm:$0xf]
  %v20 = vld [vmem:[%s1 + $0x4] sm:$0xf]
  %v21 = vld [vmem:[%s1 + $0x8] sm:$0xf]
  %v22 = vld [vmem:[%s1 + $0xc] sm:$0xf]
  %v23 = vpack.c.bf16 %v16, %v15
  %v24 = vpack.c.bf16 %v18, %v17
  %v25 = vld [vmem:[%s2] sm:$0x1]
  %v27 = vlaneseq
  %v28 = vshrl.u32 %v27, 7
  %v29 = vsub.s32 0, %v28
  %v30 = vrot.slane %v25, %v29
  %v36 = vunpack.c.l.b16 %v19
  %v37 = vunpack.c.l.b16 %v20
  %v38 = vunpack.c.l.b16 %v21
  %v39 = vunpack.c.l.b16 %v22
  %v40 = vpack.c.b16 %v37, %v36
  %v41 = vpack.c.b16 %v39, %v38
  %vm44 = vcmask 261120
  %v46 = vsel %vm44, %v23, 0
  %v49 = vsel %vm44, %v24, 0
  %51 = vmatprep.subr.bf16.mxu0 0
  %52 = vmatpush1.bf16.msra.mxu0 %v40
  %53 = vmatprep.subr.bf16.mxu0 0
  %54 = vmatpush1.bf16.msra.mxu0 %v41
  %55 = vmatprep.subr.bf16.mxu0 0
  %56 = vmatpush1.bf16.msra.mxu0 0
  %57 = vmatprep.subr.bf16.mxu0 0
  %58 = vmatpush1.bf16.msra.mxu0 0
  %59 = vmatprep.subr.bf16.mxu0 0
  %60 = vmatpush1.bf16.msra.mxu0 0
  %61 = vmatprep.subr.bf16.mxu0 0
  %62 = vmatpush1.bf16.msra.mxu0 0
  %63 = vmatprep.subr.bf16.mxu0 0
  %64 = vmatpush1.bf16.msra.mxu0 0
  %65 = vmatprep.subr.bf16.mxu0 0
  %66 = vmatpush1.bf16.msra.mxu0 0
  %67 = vmatprep.subr.bf16.mxu0 0
  %68 = vmatpush1.bf16.msra.mxu0 0
  %69 = vmatprep.subr.bf16.mxu0 0
  %70 = vmatpush1.bf16.msra.mxu0 0
  %71 = vmatprep.subr.bf16.mxu0 0
  %72 = vmatpush1.bf16.msra.mxu0 0
  %73 = vmatprep.subr.bf16.mxu0 0
  %74 = vmatpush1.bf16.msra.mxu0 0
  %75 = vmatprep.subr.bf16.mxu0 0
  %76 = vmatpush1.bf16.msra.mxu0 0
  %77 = vmatprep.subr.bf16.mxu0 0
  %78 = vmatpush1.bf16.msra.mxu0 0
  %79 = vmatprep.subr.bf16.mxu0 0
  %80 = vmatpush1.bf16.msra.mxu0 0
  %81 = vmatprep.subr.bf16.mxu0 0
  %82 = vmatpush1.bf16.msra.mxu0 0
  %83 = vmatprep.mubr.bf16.mxu0 0
  %84 = vmatmul.mubr.bf16.gmra.mrb[0].mxu0 %v46
  %v85 = vpop.f32.mrb[0].mxu0
  %v86 = vadd.f32 %v30, %v85
  %v87 = vpop.f32.mrb[0].mxu0
  %v88 = vpop.f32.mrb[0].mxu0
  %v89 = vadd.f32 %v30, %v88
  %v90 = vpop.f32.mrb[0].mxu0
  %91 = vmatprep.mubr.bf16.mxu0 0
  %92 = vmatmul.mubr.bf16.gmra.mrb[0].mxu0 %v49
  %v93 = vpop.f32.mrb[0].mxu0
  %v94 = vadd.f32 %v30, %v93
  %v95 = vpop.f32.mrb[0].mxu0
  %v96 = vpop.f32.mrb[0].mxu0
  %v97 = vadd.f32 %v30, %v96
  %v98 = vpop.f32.mrb[0].mxu0
  %99 = vdwg.mxu0
  %vm100 = vcmask 523264
  %101 = vst.msk [vmem:[%s3] sm:$0xff] %vm100, %v86
  %102 = vst.msk [vmem:[%s3 + $0x8] sm:$0xff] %vm100, %v89
  %103 = vst.msk [vmem:[%s3 + $0x10] sm:$0xff] %vm100, %v94
  %104 = vst.msk [vmem:[%s3 + $0x18] sm:$0xff] %vm100, %v97
  // Predicated region
  $region14: #{classifier3_forward.56} parent=0 // pred_check
    _
  $region15: #{classifier3_forward.56} parent=0 // pred_check_branch
    %106 = sbr.rel (0) target = $region17
  $region16: #{classifier3_forward.56} parent=0 // pred_region
    _
  $region17: #{classifier3_forward.56} parent=0 // pred_fallthru
    _
  // Predicated region
  $region18: #{classifier3_forward.56} parent=0 // pred_check
    _
  $region19: #{classifier3_forward.56} parent=0 // pred_check_branch
    %108 = sbr.rel (0) target = $region21
  $region20: #{classifier3_forward.56} parent=0 // pred_region
    _
  $region21: #{classifier3_forward.56} parent=0 // pred_fallthru
    _

// kernel: classifier3_forward.57
$region0: #{classifier3_forward.57}
  #allocation0 [shape = 'u32[]', space=smem, size = 0x4, offset = 0x4, fixed_abs, tag = 'smem constant byte address 0x4 - core index']
  #allocation1 [shape = 'u32[144,128]{1,0:T(1,128)}', space=vmem, size = 0x12000, scoped, tag = 'internal scratch']
  %s0 = inlined_call_operand.vmem [shape: f32[32,64], index: 0, kind: input, shape index: {}]
  %s1 = inlined_call_operand.vmem [shape: bf16[64,192], index: 1, kind: input, shape index: {}]
  %s2 = inlined_call_operand.vmem [shape: f32[1,192], index: 2, kind: input, shape index: {}]
  %s3 = inlined_call_operand.vmem [shape: bf16[32,192], index: 3, kind: output, shape index: {}]
  %s4 = sld [smem:[#allocation0]]
  $region22: #{classifier3_forward.57} parent=0
    _
  %s6 = ssub.s32 1, %s4
  %s7 = scalar_select 0, %s6, %s4
  // Predicated region
  $region2: #{classifier3_forward.57} parent=0 // pred_check
    _
  $region3: #{classifier3_forward.57} parent=0 // pred_check_branch
    %9 = sbr.rel (0) target = $region5
  $region4: #{classifier3_forward.57} parent=0 // pred_region
    _
  $region5: #{classifier3_forward.57} parent=0 // pred_fallthru
    _
  // Predicated region
  $region6: #{classifier3_forward.57} parent=0 // pred_check
    _
  $region7: #{classifier3_forward.57} parent=0 // pred_check_branch
    %11 = sbr.rel (0) target = $region9
  $region8: #{classifier3_forward.57} parent=0 // pred_region
    _
  $region9: #{classifier3_forward.57} parent=0 // pred_fallthru
    _
  // Predicated region
  $region10: #{classifier3_forward.57} parent=0 // pred_check
    _
  $region11: #{classifier3_forward.57} parent=0 // pred_check_branch
    %13 = sbr.rel (0) target = $region13
  $region12: #{classifier3_forward.57} parent=0 // pred_region
    _
  $region13: #{classifier3_forward.57} parent=0 // pred_fallthru
    _
  %v15 = vld [vmem:[%s0] sm:$0xff]
  %v16 = vld [vmem:[%s0 + $0x8] sm:$0xff]
  %v17 = vld [vmem:[%s0 + $0x10] sm:$0xff]
  %v18 = vld [vmem:[%s0 + $0x18] sm:$0xff]
  %v19 = vld [vmem:[%s1] sm:$0xff]
  %v20 = vld [vmem:[%s1 + $0x8] sm:$0xff]
  %v21 = vld [vmem:[%s1 + $0x10] sm:$0xff]
  %v22 = vld [vmem:[%s1 + $0x18] sm:$0xff]
  %v23 = vld [vmem:[%s1 + $0x20] sm:$0xff]
  %v24 = vld [vmem:[%s1 + $0x28] sm:$0xff]
  %v25 = vld [vmem:[%s1 + $0x30] sm:$0xff]
  %v26 = vld [vmem:[%s1 + $0x38] sm:$0xff]
  %v27 = vpack.c.bf16 %v16, %v15
  %v28 = vpack.c.bf16 %v18, %v17
  %v29 = vld [vmem:[%s2] sm:$0x3]
  %v31 = vlaneseq
  %v32 = vshrl.u32 %v31, 7
  %v33 = vsub.s32 0, %v32
  %v34 = vrot.slane %v29, %v33
  %v35 = vlaneseq
  %v36 = vshrl.u32 %v35, 7
  %v37 = vsub.s32 1, %v36
  %v38 = vrot.slane %v29, %v37
  %v49 = vunpack.c.l.b16 %v19
  %v50 = vunpack.c.h.b16 %v19
  %v51 = vunpack.c.l.b16 %v20
  %v52 = vunpack.c.h.b16 %v20
  %v53 = vunpack.c.l.b16 %v21
  %v54 = vunpack.c.h.b16 %v21
  %v55 = vunpack.c.l.b16 %v22
  %v56 = vunpack.c.h.b16 %v22
  %v57 = vunpack.c.l.b16 %v23
  %v58 = vunpack.c.h.b16 %v23
  %v59 = vunpack.c.l.b16 %v24
  %v60 = vunpack.c.h.b16 %v24
  %v61 = vunpack.c.l.b16 %v25
  %v62 = vunpack.c.h.b16 %v25
  %v63 = vunpack.c.l.b16 %v26
  %v64 = vunpack.c.h.b16 %v26
  %v65 = vpack.c.b16 %v51, %v49
  %v66 = vpack.c.b16 %v52, %v50
  %v67 = vpack.c.b16 %v55, %v53
  %v68 = vpack.c.b16 %v56, %v54
  %v69 = vpack.c.b16 %v59, %v57
  %v70 = vpack.c.b16 %v60, %v58
  %v71 = vpack.c.b16 %v63, %v61
  %v72 = vpack.c.b16 %v64, %v62
  %vm81 = vcmask 523264
  %v83 = vsel %vm81, %v27, 0
  %v86 = vsel %vm81, %v28, 0
  %88 = vmatprep.subr.bf16.mxu0 %v66
  %89 = vmatpush1.bf16.msra.mxu0 %v65
  %90 = vmatprep.subr.bf16.mxu0 %v68
  %91 = vmatpush1.bf16.msra.mxu0 %v67
  %92 = vmatprep.subr.bf16.mxu0 %v70
  %93 = vmatpush1.bf16.msra.mxu0 %v69
  %94 = vmatprep.subr.bf16.mxu0 %v72
  %95 = vmatpush1.bf16.msra.mxu0 %v71
  %96 = vmatprep.subr.bf16.mxu0 0
  %97 = vmatpush1.bf16.msra.mxu0 0
  %98 = vmatprep.subr.bf16.mxu0 0
  %99 = vmatpush1.bf16.msra.mxu0 0
  %100 = vmatprep.subr.bf16.mxu0 0
  %101 = vmatpush1.bf16.msra.mxu0 0
  %102 = vmatprep.subr.bf16.mxu0 0
  %103 = vmatpush1.bf16.msra.mxu0 0
  %104 = vmatprep.subr.bf16.mxu0 0
  %105 = vmatpush1.bf16.msra.mxu0 0
  %106 = vmatprep.subr.bf16.mxu0 0
  %107 = vmatpush1.bf16.msra.mxu0 0
  %108 = vmatprep.subr.bf16.mxu0 0
  %109 = vmatpush1.bf16.msra.mxu0 0
  %110 = vmatprep.subr.bf16.mxu0 0
  %111 = vmatpush1.bf16.msra.mxu0 0
  %112 = vmatprep.subr.bf16.mxu0 0
  %113 = vmatpush1.bf16.msra.mxu0 0
  %114 = vmatprep.subr.bf16.mxu0 0
  %115 = vmatpush1.bf16.msra.mxu0 0
  %116 = vmatprep.subr.bf16.mxu0 0
  %117 = vmatpush1.bf16.msra.mxu0 0
  %118 = vmatprep.subr.bf16.mxu0 0
  %119 = vmatpush1.bf16.msra.mxu0 0
  %120 = vmatprep.mubr.bf16.mxu0 0
  %121 = vmatmul.mubr.bf16.gmra.mrb[0].mxu0 %v83
  %v122 = vpop.f32.mrb[0].mxu0
  %v123 = vadd.f32 %v34, %v122
  %v124 = vpop.f32.mrb[0].mxu0
  %v125 = vadd.f32 %v38, %v124
  %v126 = vpop.f32.mrb[0].mxu0
  %v127 = vadd.f32 %v34, %v126
  %v128 = vpop.f32.mrb[0].mxu0
  %v129 = vadd.f32 %v38, %v128
  %130 = vmatprep.mubr.bf16.mxu0 0
  %131 = vmatmul.mubr.bf16.gmra.mrb[0].mxu0 %v86
  %v132 = vpop.f32.mrb[0].mxu0
  %v133 = vadd.f32 %v34, %v132
  %v134 = vpop.f32.mrb[0].mxu0
  %v135 = vadd.f32 %v38, %v134
  %v136 = vpop.f32.mrb[0].mxu0
  %v137 = vadd.f32 %v34, %v136
  %v138 = vpop.f32.mrb[0].mxu0
  %v139 = vadd.f32 %v38, %v138
  %140 = vdwg.mxu0
  %v141 = vpack.c.bf16 %v127, %v123
  %v142 = vpack.c.bf16 %v129, %v125
  %v143 = vpack.c.bf16 %v137, %v133
  %v144 = vpack.c.bf16 %v139, %v135
  %v149 = vunpack.c.l.b16 %v141
  %v150 = vunpack.c.l.b16 %v142
  %v151 = vunpack.c.h.b16 %v141
  %v152 = vunpack.c.h.b16 %v142
  %v153 = vunpack.c.l.b16 %v143
  %v154 = vunpack.c.l.b16 %v144
  %v155 = vunpack.c.h.b16 %v143
  %v156 = vunpack.c.h.b16 %v144
  %v157 = vpack.c.b16 %v150, %v149
  %v158 = vpack.c.b16 %v152, %v151
  %v159 = vpack.c.b16 %v154, %v153
  %v160 = vpack.c.b16 %v156, %v155
  %vm165 = vcmask 1043456
  %vm166 = vcmask 523268
  %vm167 = vmor %vm166, %vm165
  %168 = vst.msk [vmem:[%s3] sm:$0xff] %vm167, %v157
  %169 = vst.msk [vmem:[%s3 + $0x8] sm:$0xff] %vm167, %v158
  %170 = vst.msk [vmem:[%s3 + $0x10] sm:$0xff] %vm167, %v159
  %171 = vst.msk [vmem:[%s3 + $0x18] sm:$0xff] %vm167, %v160
  // Predicated region
  $region14: #{classifier3_forward.57} parent=0 // pred_check
    _
  $region15: #{classifier3_forward.57} parent=0 // pred_check_branch
    %173 = sbr.rel (0) target = $region17
  $region16: #{classifier3_forward.57} parent=0 // pred_region
    _
  $region17: #{classifier3_forward.57} parent=0 // pred_fallthru
    _
  // Predicated region
  $region18: #{classifier3_forward.57} parent=0 // pred_check
    _
  $region19: #{classifier3_forward.57} parent=0 // pred_check_branch
    %175 = sbr.rel (0) target = $region21
  $region20: #{classifier3_forward.57} parent=0 // pred_region
    _
  $region21: #{classifier3_forward.57} parent=0 // pred_fallthru
    _

// kernel: classifier3_forward.59
$region0: #{classifier3_forward.59}
  #allocation0 [shape = 'u32[]', space=smem, size = 0x4, offset = 0x4, fixed_abs, tag = 'smem constant byte address 0x4 - core index']
  #allocation1 [shape = 'u32[144,128]{1,0:T(1,128)}', space=vmem, size = 0x12000, scoped, tag = 'internal scratch']
  %s0 = inlined_call_operand.vmem [shape: bf16[32,64], index: 0, kind: input, shape index: {}]
  %s1 = inlined_call_operand.vmem [shape: bf16[64,64], index: 1, kind: input, shape index: {}]
  %s2 = inlined_call_operand.vmem [shape: f32[1,64], index: 2, kind: input, shape index: {}]
  %s3 = inlined_call_operand.vmem [shape: f32[32,64], index: 3, kind: input, shape index: {}]
  %s4 = inlined_call_operand.vmem [shape: f32[1,64], index: 4, kind: input, shape index: {}]
  %s5 = inlined_call_operand.vmem [shape: f32[1,64], index: 5, kind: input, shape index: {}]
  %s6 = inlined_call_operand.vmem [shape: f32[32,64], index: 6, kind: output, shape index: {}]
  %s7 = sld [smem:[#allocation0]]
  $region34: #{classifier3_forward.59} parent=0
    _
  %s9 = ssub.s32 1, %s7
  %s10 = scalar_select 0, %s9, %s7
  // Predicated region
  $region2: #{classifier3_forward.59} parent=0 // pred_check
    _
  $region3: #{classifier3_forward.59} parent=0 // pred_check_branch
    %12 = sbr.rel (0) target = $region5
  $region4: #{classifier3_forward.59} parent=0 // pred_region
    _
  $region5: #{classifier3_forward.59} parent=0 // pred_fallthru
    _
  // Predicated region
  $region6: #{classifier3_forward.59} parent=0 // pred_check
    _
  $region7: #{classifier3_forward.59} parent=0 // pred_check_branch
    %14 = sbr.rel (0) target = $region9
  $region8: #{classifier3_forward.59} parent=0 // pred_region
    _
  $region9: #{classifier3_forward.59} parent=0 // pred_fallthru
    _
  // Predicated region
  $region10: #{classifier3_forward.59} parent=0 // pred_check
    _
  $region11: #{classifier3_forward.59} parent=0 // pred_check_branch
    %16 = sbr.rel (0) target = $region13
  $region12: #{classifier3_forward.59} parent=0 // pred_region
    _
  $region13: #{classifier3_forward.59} parent=0 // pred_fallthru
    _
  // Predicated region
  $region14: #{classifier3_forward.59} parent=0 // pred_check
    _
  $region15: #{classifier3_forward.59} parent=0 // pred_check_branch
    %18 = sbr.rel (0) target = $region17
  $region16: #{classifier3_forward.59} parent=0 // pred_region
    _
  $region17: #{classifier3_forward.59} parent=0 // pred_fallthru
    _
  // Predicated region
  $region18: #{classifier3_forward.59} parent=0 // pred_check
    _
  $region19: #{classifier3_forward.59} parent=0 // pred_check_branch
    %20 = sbr.rel (0) target = $region21
  $region20: #{classifier3_forward.59} parent=0 // pred_region
    _
  $region21: #{classifier3_forward.59} parent=0 // pred_fallthru
    _
  // Predicated region
  $region22: #{classifier3_forward.59} parent=0 // pred_check
    _
  $region23: #{classifier3_forward.59} parent=0 // pred_check_branch
    %22 = sbr.rel (0) target = $region25
  $region24: #{classifier3_forward.59} parent=0 // pred_region
    _
  $region25: #{classifier3_forward.59} parent=0 // pred_fallthru
    _
  %v24 = vld [vmem:[%s0] sm:$0xf]
  %v25 = vld [vmem:[%s0 + $0x4] sm:$0xf]
  %v26 = vld [vmem:[%s0 + $0x8] sm:$0xf]
  %v27 = vld [vmem:[%s0 + $0xc] sm:$0xf]
  %v28 = vld [vmem:[%s1] sm:$0xf]
  %v29 = vld [vmem:[%s1 + $0x4] sm:$0xf]
  %v30 = vld [vmem:[%s1 + $0x8] sm:$0xf]
  %v31 = vld [vmem:[%s1 + $0xc] sm:$0xf]
  %v32 = vld [vmem:[%s1 + $0x10] sm:$0xf]
  %v33 = vld [vmem:[%s1 + $0x14] sm:$0xf]
  %v34 = vld [vmem:[%s1 + $0x18] sm:$0xf]
  %v35 = vld [vmem:[%s1 + $0x1c] sm:$0xf]
  %v36 = vld [vmem:[%s2] sm:$0x1]
  %v38 = vlaneseq
  %v39 = vshrl.u32 %v38, 7
  %v40 = vsub.s32 0, %v39
  %v41 = vrot.slane %v36, %v40
  %v47 = vunpack.c.l.b16 %v24
  %v48 = vunpack.c.l.b16 %v25
  %v49 = vunpack.c.l.b16 %v26
  %v50 = vunpack.c.l.b16 %v27
  %v51 = vpack.c.b16 %v48, %v47
  %v52 = vpack.c.b16 %v50, %v49
  %v61 = vunpack.c.l.b16 %v28
  %v62 = vunpack.c.l.b16 %v29
  %v63 = vunpack.c.l.b16 %v30
  %v64 = vunpack.c.l.b16 %v31
  %v65 = vunpack.c.l.b16 %v32
  %v66 = vunpack.c.l.b16 %v33
  %v67 = vunpack.c.l.b16 %v34
  %v68 = vunpack.c.l.b16 %v35
  %v69 = vpack.c.b16 %v62, %v61
  %v70 = vpack.c.b16 %v64, %v63
  %v71 = vpack.c.b16 %v66, %v65
  %v72 = vpack.c.b16 %v68, %v67
  %vm77 = vcmask 523264
  %v79 = vsel %vm77, %v51, 0
  %v82 = vsel %vm77, %v52, 0
  %84 = vmatprep.subr.bf16.mxu0 0
  %85 = vmatpush1.bf16.msra.mxu0 %v69
  %86 = vmatprep.subr.bf16.mxu0 0
  %87 = vmatpush1.bf16.msra.mxu0 %v70
  %88 = vmatprep.subr.bf16.mxu0 0
  %89 = vmatpush1.bf16.msra.mxu0 %v71
  %90 = vmatprep.subr.bf16.mxu0 0
  %91 = vmatpush1.bf16.msra.mxu0 %v72
  %92 = vmatprep.subr.bf16.mxu0 0
  %93 = vmatpush1.bf16.msra.mxu0 0
  %94 = vmatprep.subr.bf16.mxu0 0
  %95 = vmatpush1.bf16.msra.mxu0 0
  %96 = vmatprep.subr.bf16.mxu0 0
  %97 = vmatpush1.bf16.msra.mxu0 0
  %98 = vmatprep.subr.bf16.mxu0 0
  %99 = vmatpush1.bf16.msra.mxu0 0
  %100 = vmatprep.subr.bf16.mxu0 0
  %101 = vmatpush1.bf16.msra.mxu0 0
  %102 = vmatprep.subr.bf16.mxu0 0
  %103 = vmatpush1.bf16.msra.mxu0 0
  %104 = vmatprep.subr.bf16.mxu0 0
  %105 = vmatpush1.bf16.msra.mxu0 0
  %106 = vmatprep.subr.bf16.mxu0 0
  %107 = vmatpush1.bf16.msra.mxu0 0
  %108 = vmatprep.subr.bf16.mxu0 0
  %109 = vmatpush1.bf16.msra.mxu0 0
  %110 = vmatprep.subr.bf16.mxu0 0
  %111 = vmatpush1.bf16.msra.mxu0 0
  %112 = vmatprep.subr.bf16.mxu0 0
  %113 = vmatpush1.bf16.msra.mxu0 0
  %114 = vmatprep.subr.bf16.mxu0 0
  %115 = vmatpush1.bf16.msra.mxu0 0
  %116 = vmatprep.mubr.bf16.mxu0 0
  %117 = vmatmul.mubr.bf16.gmra.mrb[0].mxu0 %v79
  %v118 = vpop.f32.mrb[0].mxu0
  %v119 = vadd.f32 %v41, %v118
  %v120 = vpop.f32.mrb[0].mxu0
  %v121 = vpop.f32.mrb[0].mxu0
  %v122 = vadd.f32 %v41, %v121
  %v123 = vpop.f32.mrb[0].mxu0
  %124 = vmatprep.mubr.bf16.mxu0 0
  %125 = vmatmul.mubr.bf16.gmra.mrb[0].mxu0 %v82
  %v126 = vpop.f32.mrb[0].mxu0
  %v127 = vadd.f32 %v41, %v126
  %v128 = vpop.f32.mrb[0].mxu0
  %v129 = vpop.f32.mrb[0].mxu0
  %v130 = vadd.f32 %v41, %v129
  %v131 = vpop.f32.mrb[0].mxu0
  %132 = vdwg.mxu0
  %v133 = vld [vmem:[%s3] sm:$0xff]
  %v134 = vld [vmem:[%s3 + $0x8] sm:$0xff]
  %v135 = vld [vmem:[%s3 + $0x10] sm:$0xff]
  %v136 = vld [vmem:[%s3 + $0x18] sm:$0xff]
  %v137 = vadd.f32 %v133, %v119
  %v138 = vadd.f32 %v134, %v122
  %v139 = vadd.f32 %v135, %v127
  %v140 = vadd.f32 %v136, %v130
  %v141 = vld [vmem:[%s4] sm:$0x1]
  %v142 = vld [vmem:[%s5] sm:$0x1]
  %v143 = vsel %vm77, %v137, 0.0
  %144 = vadd.xlane.f32.xlu0 %v143
  %v145 = vpop.xlane.xlu0 %144
  %v146 = vsel %vm77, %v138, 0.0
  %147 = vadd.xlane.f32.xlu0 %v146
  %v148 = vpop.xlane.xlu0 %147
  %v149 = vsel %vm77, %v139, 0.0
  %150 = vadd.xlane.f32.xlu0 %v149
  %v151 = vpop.xlane.xlu0 %150
  %v152 = vsel %vm77, %v140, 0.0
  %153 = vadd.xlane.f32.xlu0 %v152
  %v154 = vpop.xlane.xlu0 %153
  %v155 = vrcp.pop 64.0
  %v156 = vmul.f32 %v145, %v155
  %v157 = vmul.f32 %v148, %v155
  %v158 = vmul.f32 %v151, %v155
  %v159 = vmul.f32 %v154, %v155
  %v160 = vsub.f32 %v137, %v156
  %v161 = vsub.f32 %v138, %v157
  %v162 = vsub.f32 %v139, %v158
  %v163 = vsub.f32 %v140, %v159
  %v164 = vmul.f32 %v160, %v160
  %v165 = vmul.f32 %v161, %v161
  %v166 = vmul.f32 %v162, %v162
  %v167 = vmul.f32 %v163, %v163
  %v168 = vsel %vm77, %v164, 0.0
  %169 = vadd.xlane.f32.xlu0 %v168
  %v170 = vpop.xlane.xlu0 %169
  %v171 = vsel %vm77, %v165, 0.0
  %172 = vadd.xlane.f32.xlu0 %v171
  %v173 = vpop.xlane.xlu0 %172
  %v174 = vsel %vm77, %v166, 0.0
  %175 = vadd.xlane.f32.xlu0 %v174
  %v176 = vpop.xlane.xlu0 %175
  %v177 = vsel %vm77, %v167, 0.0
  %178 = vadd.xlane.f32.xlu0 %v177
  %v179 = vpop.xlane.xlu0 %178
  %v180 = vmul.f32 %v170, %v155
  %v181 = vmul.f32 %v173, %v155
  %v182 = vmul.f32 %v176, %v155
  %v183 = vmul.f32 %v179, %v155
  %v184 = vadd.f32 %v180, 1e-05
  %v185 = vadd.f32 %v181, 1e-05
  %v186 = vadd.f32 %v182, 1e-05
  %v187 = vadd.f32 %v183, 1e-05
  %v188 = vrsqrt.pop %v184
  %v189 = vrsqrt.pop %v185
  %v190 = vrsqrt.pop %v186
  %v191 = vrsqrt.pop %v187
  %v192 = vmul.f32 %v160, %v188
  %v193 = vmul.f32 %v161, %v189
  %v194 = vmul.f32 %v162, %v190
  %v195 = vmul.f32 %v163, %v191
  %v197 = vlaneseq
  %v198 = vshrl.u32 %v197, 7
  %v199 = vsub.s32 0, %v198
  %v200 = vrot.slane %v141, %v199
  %v202 = vmul.f32 %v192, %v200
  %v203 = vmul.f32 %v193, %v200
  %v204 = vmul.f32 %v194, %v200
  %v205 = vmul.f32 %v195, %v200
  %v207 = vlaneseq
  %v208 = vshrl.u32 %v207, 7
  %v209 = vsub.s32 0, %v208
  %v210 = vrot.slane %v142, %v209
  %v212 = vadd.f32 %v202, %v210
  %v213 = vadd.f32 %v203, %v210
  %v214 = vadd.f32 %v204, %v210
  %v215 = vadd.f32 %v205, %v210
  %216 = vst.msk [vmem:[%s6] sm:$0xff] %vm77, %v212
  %217 = vst.msk [vmem:[%s6 + $0x8] sm:$0xff] %vm77, %v213
  %218 = vst.msk [vmem:[%s6 + $0x10] sm:$0xff] %vm77, %v214
  %219 = vst.msk [vmem:[%s6 + $0x18] sm:$0xff] %vm77, %v215
  // Predicated region
  $region26: #{classifier3_forward.59} parent=0 // pred_check
    _
  $region27: #{classifier3_forward.59} parent=0 // pred_check_branch
    %221 = sbr.rel (0) target = $region29
  $region28: #{classifier3_forward.59} parent=0 // pred_region
    _
  $region29: #{classifier3_forward.59} parent=0 // pred_fallthru
    _
  // Predicated region
  $region30: #{classifier3_forward.59} parent=0 // pred_check
    _
  $region31: #{classifier3_forward.59} parent=0 // pred_check_branch
    %223 = sbr.rel (0) target = $region33
  $region32: #{classifier3_forward.59} parent=0 // pred_region
    _
  $region33: #{classifier3_forward.59} parent=0 // pred_fallthru
    _

// kernel: classifier3_forward.60
$region0: #{classifier3_forward.60}
  #allocation0 [shape = 'u32[]', space=smem, size = 0x4, offset = 0x4, fixed_abs, tag = 'smem constant byte address 0x4 - core index']
  #allocation1 [shape = 'u32[144,128]{1,0:T(1,128)}', space=vmem, size = 0x12000, scoped, tag = 'internal scratch']
  %s0 = inlined_call_operand.vmem [shape: f32[32,64], index: 0, kind: input, shape index: {}]
  %s1 = inlined_call_operand.vmem [shape: bf16[64,128], index: 1, kind: input, shape index: {}]
  %s2 = inlined_call_operand.vmem [shape: f32[1,128], index: 2, kind: input, shape index: {}]
  %s3 = inlined_call_operand.vmem [shape: bf16[32,128], index: 3, kind: output, shape index: {}]
  %s4 = sld [smem:[#allocation0]]
  $region22: #{classifier3_forward.60} parent=0
    _
  %s6 = ssub.s32 1, %s4
  %s7 = scalar_select 0, %s6, %s4
  // Predicated region
  $region2: #{classifier3_forward.60} parent=0 // pred_check
    _
  $region3: #{classifier3_forward.60} parent=0 // pred_check_branch
    %9 = sbr.rel (0) target = $region5
  $region4: #{classifier3_forward.60} parent=0 // pred_region
    _
  $region5: #{classifier3_forward.60} parent=0 // pred_fallthru
    _
  // Predicated region
  $region6: #{classifier3_forward.60} parent=0 // pred_check
    _
  $region7: #{classifier3_forward.60} parent=0 // pred_check_branch
    %11 = sbr.rel (0) target = $region9
  $region8: #{classifier3_forward.60} parent=0 // pred_region
    _
  $region9: #{classifier3_forward.60} parent=0 // pred_fallthru
    _
  // Predicated region
  $region10: #{classifier3_forward.60} parent=0 // pred_check
    _
  $region11: #{classifier3_forward.60} parent=0 // pred_check_branch
    %13 = sbr.rel (0) target = $region13
  $region12: #{classifier3_forward.60} parent=0 // pred_region
    _
  $region13: #{classifier3_forward.60} parent=0 // pred_fallthru
    _
  %v15 = vld [vmem:[%s0] sm:$0xff]
  %v16 = vld [vmem:[%s0 + $0x8] sm:$0xff]
  %v17 = vld [vmem:[%s0 + $0x10] sm:$0xff]
  %v18 = vld [vmem:[%s0 + $0x18] sm:$0xff]
  %v19 = vld [vmem:[%s1] sm:$0xf]
  %v20 = vld [vmem:[%s1 + $0x4] sm:$0xf]
  %v21 = vld [vmem:[%s1 + $0x8] sm:$0xf]
  %v22 = vld [vmem:[%s1 + $0xc] sm:$0xf]
  %v23 = vld [vmem:[%s1 + $0x10] sm:$0xf]
  %v24 = vld [vmem:[%s1 + $0x14] sm:$0xf]
  %v25 = vld [vmem:[%s1 + $0x18] sm:$0xf]
  %v26 = vld [vmem:[%s1 + $0x1c] sm:$0xf]
  %v27 = vpack.c.bf16 %v16, %v15
  %v28 = vpack.c.bf16 %v18, %v17
  %v29 = vld [vmem:[%s2] sm:$0x1]
  %v31 = vlaneseq
  %v32 = vshrl.u32 %v31, 7
  %v33 = vsub.s32 0, %v32
  %v34 = vrot.slane %v29, %v33
  %v44 = vunpack.c.l.b16 %v19
  %v45 = vunpack.c.l.b16 %v20
  %v46 = vunpack.c.l.b16 %v21
  %v47 = vunpack.c.l.b16 %v22
  %v48 = vunpack.c.l.b16 %v23
  %v49 = vunpack.c.l.b16 %v24
  %v50 = vunpack.c.l.b16 %v25
  %v51 = vunpack.c.l.b16 %v26
  %v52 = vpack.c.b16 %v45, %v44
  %v53 = vpack.c.b16 %v47, %v46
  %v54 = vpack.c.b16 %v49, %v48
  %v55 = vpack.c.b16 %v51, %v50
  %vm60 = vcmask 523264
  %v62 = vsel %vm60, %v27, 0
  %v65 = vsel %vm60, %v28, 0
  %67 = vmatprep.subr.bf16.mxu0 0
  %68 = vmatpush1.bf16.msra.mxu0 %v52
  %69 = vmatprep.subr.bf16.mxu0 0
  %70 = vmatpush1.bf16.msra.mxu0 %v53
  %71 = vmatprep.subr.bf16.mxu0 0
  %72 = vmatpush1.bf16.msra.mxu0 %v54
  %73 = vmatprep.subr.bf16.mxu0 0
  %74 = vmatpush1.bf16.msra.mxu0 %v55
  %75 = vmatprep.subr.bf16.mxu0 0
  %76 = vmatpush1.bf16.msra.mxu0 0
  %77 = vmatprep.subr.bf16.mxu0 0
  %78 = vmatpush1.bf16.msra.mxu0 0
  %79 = vmatprep.subr.bf16.mxu0 0
  %80 = vmatpush1.bf16.msra.mxu0 0
  %81 = vmatprep.subr.bf16.mxu0 0
  %82 = vmatpush1.bf16.msra.mxu0 0
  %83 = vmatprep.subr.bf16.mxu0 0
  %84 = vmatpush1.bf16.msra.mxu0 0
  %85 = vmatprep.subr.bf16.mxu0 0
  %86 = vmatpush1.bf16.msra.mxu0 0
  %87 = vmatprep.subr.bf16.mxu0 0
  %88 = vmatpush1.bf16.msra.mxu0 0
  %89 = vmatprep.subr.bf16.mxu0 0
  %90 = vmatpush1.bf16.msra.mxu0 0
  %91 = vmatprep.subr.bf16.mxu0 0
  %92 = vmatpush1.bf16.msra.mxu0 0
  %93 = vmatprep.subr.bf16.mxu0 0
  %94 = vmatpush1.bf16.msra.mxu0 0
  %95 = vmatprep.subr.bf16.mxu0 0
  %96 = vmatpush1.bf16.msra.mxu0 0
  %97 = vmatprep.subr.bf16.mxu0 0
  %98 = vmatpush1.bf16.msra.mxu0 0
  %99 = vmatprep.mubr.bf16.mxu0 0
  %100 = vmatmul.mubr.bf16.gmra.mrb[0].mxu0 %v62
  %v101 = vpop.f32.mrb[0].mxu0
  %v102 = vadd.f32 %v34, %v101
  %v103 = vpop.f32.mrb[0].mxu0
  %v104 = vpop.f32.mrb[0].mxu0
  %v105 = vadd.f32 %v34, %v104
  %v106 = vpop.f32.mrb[0].mxu0
  %107 = vmatprep.mubr.bf16.mxu0 0
  %108 = vmatmul.mubr.bf16.gmra.mrb[0].mxu0 %v65
  %v109 = vpop.f32.mrb[0].mxu0
  %v110 = vadd.f32 %v34, %v109
  %v111 = vpop.f32.mrb[0].mxu0
  %v112 = vpop.f32.mrb[0].mxu0
  %v113 = vadd.f32 %v34, %v112
  %v114 = vpop.f32.mrb[0].mxu0
  %115 = vdwg.mxu0
  %v116 = vmax.f32 %v102, 0.0
  %v117 = vmax.f32 %v105, 0.0
  %v118 = vmax.f32 %v110, 0.0
  %v119 = vmax.f32 %v113, 0.0
  %v120 = vpack.c.bf16 %v117, %v116
  %v121 = vpack.c.bf16 %v119, %v118
  %v124 = vunpack.c.l.b16 %v120
  %v125 = vunpack.c.h.b16 %v120
  %v126 = vunpack.c.l.b16 %v121
  %v127 = vunpack.c.h.b16 %v121
  %v128 = vpack.c.b16 %v124, %v124
  %v129 = vpack.c.b16 %v125, %v125
  %v130 = vpack.c.b16 %v126, %v126
  %v131 = vpack.c.b16 %v127, %v127
  %136 = vst [vmem:[%s3] sm:$0xf] %v128
  %137 = vst [vmem:[%s3 + $0x4] sm:$0xf] %v129
  %138 = vst [vmem:[%s3 + $0x8] sm:$0xf] %v130
  %139 = vst [vmem:[%s3 + $0xc] sm:$0xf] %v131
  // Predicated region
  $region14: #{classifier3_forward.60} parent=0 // pred_check
    _
  $region15: #{classifier3_forward.60} parent=0 // pred_check_branch
    %141 = sbr.rel (0) target = $region17
  $region16: #{classifier3_forward.60} parent=0 // pred_region
    _
  $region17: #{classifier3_forward.60} parent=0 // pred_fallthru
    _
  // Predicated region
  $region18: #{classifier3_forward.60} parent=0 // pred_check
    _
  $region19: #{classifier3_forward.60} parent=0 // pred_check_branch
    %143 = sbr.rel (0) target = $region21
  $region20: #{classifier3_forward.60} parent=0 // pred_region
    _
  $region21: #{classifier3_forward.60} parent=0 // pred_fallthru
    _

// kernel: classifier3_forward.61
$region0: #{classifier3_forward.61}
  #allocation0 [shape = 'u32[]', space=smem, size = 0x4, offset = 0x4, fixed_abs, tag = 'smem constant byte address 0x4 - core index']
  #allocation1 [shape = 'u32[144,128]{1,0:T(1,128)}', space=vmem, size = 0x12000, scoped, tag = 'internal scratch']
  %s0 = inlined_call_operand.vmem [shape: bf16[32,128], index: 0, kind: input, shape index: {}]
  %s1 = inlined_call_operand.vmem [shape: bf16[128,64], index: 1, kind: input, shape index: {}]
  %s2 = inlined_call_operand.vmem [shape: f32[1,64], index: 2, kind: input, shape index: {}]
  %s3 = inlined_call_operand.vmem [shape: f32[32,64], index: 3, kind: input, shape index: {}]
  %s4 = inlined_call_operand.vmem [shape: f32[1,64], index: 4, kind: input, shape index: {}]
  %s5 = inlined_call_operand.vmem [shape: f32[1,64], index: 5, kind: input, shape index: {}]
  %s6 = inlined_call_operand.vmem [shape: f32[32,64], index: 6, kind: output, shape index: {}]
  %s7 = sld [smem:[#allocation0]]
  $region34: #{classifier3_forward.61} parent=0
    _
  %s9 = ssub.s32 1, %s7
  %s10 = scalar_select 0, %s9, %s7
  // Predicated region
  $region2: #{classifier3_forward.61} parent=0 // pred_check
    _
  $region3: #{classifier3_forward.61} parent=0 // pred_check_branch
    %12 = sbr.rel (0) target = $region5
  $region4: #{classifier3_forward.61} parent=0 // pred_region
    _
  $region5: #{classifier3_forward.61} parent=0 // pred_fallthru
    _
  // Predicated region
  $region6: #{classifier3_forward.61} parent=0 // pred_check
    _
  $region7: #{classifier3_forward.61} parent=0 // pred_check_branch
    %14 = sbr.rel (0) target = $region9
  $region8: #{classifier3_forward.61} parent=0 // pred_region
    _
  $region9: #{classifier3_forward.61} parent=0 // pred_fallthru
    _
  // Predicated region
  $region10: #{classifier3_forward.61} parent=0 // pred_check
    _
  $region11: #{classifier3_forward.61} parent=0 // pred_check_branch
    %16 = sbr.rel (0) target = $region13
  $region12: #{classifier3_forward.61} parent=0 // pred_region
    _
  $region13: #{classifier3_forward.61} parent=0 // pred_fallthru
    _
  // Predicated region
  $region14: #{classifier3_forward.61} parent=0 // pred_check
    _
  $region15: #{classifier3_forward.61} parent=0 // pred_check_branch
    %18 = sbr.rel (0) target = $region17
  $region16: #{classifier3_forward.61} parent=0 // pred_region
    _
  $region17: #{classifier3_forward.61} parent=0 // pred_fallthru
    _
  // Predicated region
  $region18: #{classifier3_forward.61} parent=0 // pred_check
    _
  $region19: #{classifier3_forward.61} parent=0 // pred_check_branch
    %20 = sbr.rel (0) target = $region21
  $region20: #{classifier3_forward.61} parent=0 // pred_region
    _
  $region21: #{classifier3_forward.61} parent=0 // pred_fallthru
    _
  // Predicated region
  $region22: #{classifier3_forward.61} parent=0 // pred_check
    _
  $region23: #{classifier3_forward.61} parent=0 // pred_check_branch
    %22 = sbr.rel (0) target = $region25
  $region24: #{classifier3_forward.61} parent=0 // pred_region
    _
  $region25: #{classifier3_forward.61} parent=0 // pred_fallthru
    _
  %v24 = vld [vmem:[%s0] sm:$0xf]
  %v25 = vld [vmem:[%s0 + $0x4] sm:$0xf]
  %v26 = vld [vmem:[%s0 + $0x8] sm:$0xf]
  %v27 = vld [vmem:[%s0 + $0xc] sm:$0xf]
  %v28 = vld [vmem:[%s1] sm:$0xf]
  %v29 = vld [vmem:[%s1 + $0x4] sm:$0xf]
  %v30 = vld [vmem:[%s1 + $0x8] sm:$0xf]
  %v31 = vld [vmem:[%s1 + $0xc] sm:$0xf]
  %v32 = vld [vmem:[%s1 + $0x10] sm:$0xf]
  %v33 = vld [vmem:[%s1 + $0x14] sm:$0xf]
  %v34 = vld [vmem:[%s1 + $0x18] sm:$0xf]
  %v35 = vld [vmem:[%s1 + $0x1c] sm:$0xf]
  %v36 = vld [vmem:[%s1 + $0x20] sm:$0xf]
  %v37 = vld [vmem:[%s1 + $0x24] sm:$0xf]
  %v38 = vld [vmem:[%s1 + $0x28] sm:$0xf]
  %v39 = vld [vmem:[%s1 + $0x2c] sm:$0xf]
  %v40 = vld [vmem:[%s1 + $0x30] sm:$0xf]
  %v41 = vld [vmem:[%s1 + $0x34] sm:$0xf]
  %v42 = vld [vmem:[%s1 + $0x38] sm:$0xf]
  %v43 = vld [vmem:[%s1 + $0x3c] sm:$0xf]
  %v44 = vld [vmem:[%s2] sm:$0x1]
  %v46 = vlaneseq
  %v47 = vshrl.u32 %v46, 7
  %v48 = vsub.s32 0, %v47
  %v49 = vrot.slane %v44, %v48
  %v55 = vunpack.c.l.b16 %v24
  %v56 = vunpack.c.l.b16 %v25
  %v57 = vunpack.c.l.b16 %v26
  %v58 = vunpack.c.l.b16 %v27
  %v59 = vpack.c.b16 %v56, %v55
  %v60 = vpack.c.b16 %v58, %v57
  %v79 = vunpack.c.l.b16 %v28
  %v80 = vunpack.c.l.b16 %v29
  %v81 = vunpack.c.l.b16 %v30
  %v82 = vunpack.c.l.b16 %v31
  %v83 = vunpack.c.l.b16 %v32
  %v84 = vunpack.c.l.b16 %v33
  %v85 = vunpack.c.l.b16 %v34
  %v86 = vunpack.c.l.b16 %v35
  %v87 = vunpack.c.l.b16 %v36
  %v88 = vunpack.c.l.b16 %v37
  %v89 = vunpack.c.l.b16 %v38
  %v90 = vunpack.c.l.b16 %v39
  %v91 = vunpack.c.l.b16 %v40
  %v92 = vunpack.c.l.b16 %v41
  %v93 = vunpack.c.l.b16 %v42
  %v94 = vunpack.c.l.b16 %v43
  %v95 = vpack.c.b16 %v80, %v79
  %v96 = vpack.c.b16 %v82, %v81
  %v97 = vpack.c.b16 %v84, %v83
  %v98 = vpack.c.b16 %v86, %v85
  %v99 = vpack.c.b16 %v88, %v87
  %v100 = vpack.c.b16 %v90, %v89
  %v101 = vpack.c.b16 %v92, %v91
  %v102 = vpack.c.b16 %v94, %v93
  %111 = vmatprep.subr.bf16.mxu0 0
  %112 = vmatpush1.bf16.msra.mxu0 %v95
  %113 = vmatprep.subr.bf16.mxu0 0
  %114 = vmatpush1.bf16.msra.mxu0 %v96
  %115 = vmatprep.subr.bf16.mxu0 0
  %116 = vmatpush1.bf16.msra.mxu0 %v97
  %117 = vmatprep.subr.bf16.mxu0 0
  %118 = vmatpush1.bf16.msra.mxu0 %v98
  %119 = vmatprep.subr.bf16.mxu0 0
  %120 = vmatpush1.bf16.msra.mxu0 %v99
  %121 = vmatprep.subr.bf16.mxu0 0
  %122 = vmatpush1.bf16.msra.mxu0 %v100
  %123 = vmatprep.subr.bf16.mxu0 0
  %124 = vmatpush1.bf16.msra.mxu0 %v101
  %125 = vmatprep.subr.bf16.mxu0 0
  %126 = vmatpush1.bf16.msra.mxu0 %v102
  %127 = vmatprep.subr.bf16.mxu0 0
  %128 = vmatpush1.bf16.msra.mxu0 0
  %129 = vmatprep.subr.bf16.mxu0 0
  %130 = vmatpush1.bf16.msra.mxu0 0
  %131 = vmatprep.subr.bf16.mxu0 0
  %132 = vmatpush1.bf16.msra.mxu0 0
  %133 = vmatprep.subr.bf16.mxu0 0
  %134 = vmatpush1.bf16.msra.mxu0 0
  %135 = vmatprep.subr.bf16.mxu0 0
  %136 = vmatpush1.bf16.msra.mxu0 0
  %137 = vmatprep.subr.bf16.mxu0 0
  %138 = vmatpush1.bf16.msra.mxu0 0
  %139 = vmatprep.subr.bf16.mxu0 0
  %140 = vmatpush1.bf16.msra.mxu0 0
  %141 = vmatprep.subr.bf16.mxu0 0
  %142 = vmatpush1.bf16.msra.mxu0 0
  %143 = vmatprep.mubr.bf16.mxu0 0
  %144 = vmatmul.mubr.bf16.gmra.mrb[0].mxu0 %v59
  %v145 = vpop.f32.mrb[0].mxu0
  %v146 = vadd.f32 %v49, %v145
  %v147 = vpop.f32.mrb[0].mxu0
  %v148 = vpop.f32.mrb[0].mxu0
  %v149 = vadd.f32 %v49, %v148
  %v150 = vpop.f32.mrb[0].mxu0
  %151 = vmatprep.mubr.bf16.mxu0 0
  %152 = vmatmul.mubr.bf16.gmra.mrb[0].mxu0 %v60
  %v153 = vpop.f32.mrb[0].mxu0
  %v154 = vadd.f32 %v49, %v153
  %v155 = vpop.f32.mrb[0].mxu0
  %v156 = vpop.f32.mrb[0].mxu0
  %v157 = vadd.f32 %v49, %v156
  %v158 = vpop.f32.mrb[0].mxu0
  %159 = vdwg.mxu0
  %v160 = vld [vmem:[%s3] sm:$0xff]
  %v161 = vld [vmem:[%s3 + $0x8] sm:$0xff]
  %v162 = vld [vmem:[%s3 + $0x10] sm:$0xff]
  %v163 = vld [vmem:[%s3 + $0x18] sm:$0xff]
  %v164 = vadd.f32 %v160, %v146
  %v165 = vadd.f32 %v161, %v149
  %v166 = vadd.f32 %v162, %v154
  %v167 = vadd.f32 %v163, %v157
  %v168 = vld [vmem:[%s4] sm:$0x1]
  %v169 = vld [vmem:[%s5] sm:$0x1]
  %vm170 = vcmask 523264
  %v171 = vsel %vm170, %v164, 0.0
  %172 = vadd.xlane.f32.xlu0 %v171
  %v173 = vpop.xlane.xlu0 %172
  %v174 = vsel %vm170, %v165, 0.0
  %175 = vadd.xlane.f32.xlu0 %v174
  %v176 = vpop.xlane.xlu0 %175
  %v177 = vsel %vm170, %v166, 0.0
  %178 = vadd.xlane.f32.xlu0 %v177
  %v179 = vpop.xlane.xlu0 %178
  %v180 = vsel %vm170, %v167, 0.0
  %181 = vadd.xlane.f32.xlu0 %v180
  %v182 = vpop.xlane.xlu0 %181
  %v183 = vrcp.pop 64.0
  %v184 = vmul.f32 %v173, %v183
  %v185 = vmul.f32 %v176, %v183
  %v186 = vmul.f32 %v179, %v183
  %v187 = vmul.f32 %v182, %v183
  %v188 = vsub.f32 %v164, %v184
  %v189 = vsub.f32 %v165, %v185
  %v190 = vsub.f32 %v166, %v186
  %v191 = vsub.f32 %v167, %v187
  %v192 = vmul.f32 %v188, %v188
  %v193 = vmul.f32 %v189, %v189
  %v194 = vmul.f32 %v190, %v190
  %v195 = vmul.f32 %v191, %v191
  %v196 = vsel %vm170, %v192, 0.0
  %197 = vadd.xlane.f32.xlu0 %v196
  %v198 = vpop.xlane.xlu0 %197
  %v199 = vsel %vm170, %v193, 0.0
  %200 = vadd.xlane.f32.xlu0 %v199
  %v201 = vpop.xlane.xlu0 %200
  %v202 = vsel %vm170, %v194, 0.0
  %203 = vadd.xlane.f32.xlu0 %v202
  %v204 = vpop.xlane.xlu0 %203
  %v205 = vsel %vm170, %v195, 0.0
  %206 = vadd.xlane.f32.xlu0 %v205
  %v207 = vpop.xlane.xlu0 %206
  %v208 = vmul.f32 %v198, %v183
  %v209 = vmul.f32 %v201, %v183
  %v210 = vmul.f32 %v204, %v183
  %v211 = vmul.f32 %v207, %v183
  %v212 = vadd.f32 %v208, 1e-05
  %v213 = vadd.f32 %v209, 1e-05
  %v214 = vadd.f32 %v210, 1e-05
  %v215 = vadd.f32 %v211, 1e-05
  %v216 = vrsqrt.pop %v212
  %v217 = vrsqrt.pop %v213
  %v218 = vrsqrt.pop %v214
  %v219 = vrsqrt.pop %v215
  %v220 = vmul.f32 %v188, %v216
  %v221 = vmul.f32 %v189, %v217
  %v222 = vmul.f32 %v190, %v218
  %v223 = vmul.f32 %v191, %v219
  %v225 = vlaneseq
  %v226 = vshrl.u32 %v225, 7
  %v227 = vsub.s32 0, %v226
  %v228 = vrot.slane %v168, %v227
  %v230 = vmul.f32 %v220, %v228
  %v231 = vmul.f32 %v221, %v228
  %v232 = vmul.f32 %v222, %v228
  %v233 = vmul.f32 %v223, %v228
  %v235 = vlaneseq
  %v236 = vshrl.u32 %v235, 7
  %v237 = vsub.s32 0, %v236
  %v238 = vrot.slane %v169, %v237
  %v240 = vadd.f32 %v230, %v238
  %v241 = vadd.f32 %v231, %v238
  %v242 = vadd.f32 %v232, %v238
  %v243 = vadd.f32 %v233, %v238
  %244 = vst.msk [vmem:[%s6] sm:$0xff] %vm170, %v240
  %245 = vst.msk [vmem:[%s6 + $0x8] sm:$0xff] %vm170, %v241
  %246 = vst.msk [vmem:[%s6 + $0x10] sm:$0xff] %vm170, %v242
  %247 = vst.msk [vmem:[%s6 + $0x18] sm:$0xff] %vm170, %v243
  // Predicated region
  $region26: #{classifier3_forward.61} parent=0 // pred_check
    _
  $region27: #{classifier3_forward.61} parent=0 // pred_check_branch
    %249 = sbr.rel (0) target = $region29
  $region28: #{classifier3_forward.61} parent=0 // pred_region
    _
  $region29: #{classifier3_forward.61} parent=0 // pred_fallthru
    _
  // Predicated region
  $region30: #{classifier3_forward.61} parent=0 // pred_check
    _
  $region31: #{classifier3_forward.61} parent=0 // pred_check_branch
    %251 = sbr.rel (0) target = $region33
  $region32: #{classifier3_forward.61} parent=0 // pred_region
    _
  $region33: #{classifier3_forward.61} parent=0 // pred_fallthru
    _

// kernel: classifier3_forward.58
$region0: #{classifier3_forward.58}
  #allocation0 [shape = 'u32[]', space=smem, size = 0x4, offset = 0x4, fixed_abs, tag = 'smem constant byte address 0x4 - core index']
  #allocation1 [shape = 'u32[144,128]{1,0:T(1,128)}', space=vmem, size = 0x12000, scoped, tag = 'internal scratch']
  %s0 = inlined_call_operand.vmem [shape: bf16[2,16,192], index: 0, kind: input, shape index: {}]
  %s1 = inlined_call_operand.vmem [shape: bf16[2,16,64], index: 1, kind: output, shape index: {}]
  %s2 = sld [smem:[#allocation0]]
  $region37: #{classifier3_forward.58} parent=0
    _
  %s4 = ssub.s32 1, %s2
  %s5 = scalar_select 0, %s4, %s2
  loop: start=0, step=1, limit=4
  $region2: #{classifier3_forward.58} parent=0 // loop_pre_header
    _
  $region3: #{classifier3_forward.58} parent=0 // loop_header
    %s7 = sphi 0, %s11
    %p8 = scmp.ge.s32.totalorder %s7, 4
    %s17 = sphi 0, %s19
    %s20 = sphi 0, %s17
    %s21 = sphi 0, %s20
    %s37 = sphi 0, %s21
    %s43 = sphi 0, %s45
    %s46 = sphi 0, %s43
    %s47 = sphi 0, %s46
    %s63 = sphi 0, %s47
  $region4: #{classifier3_forward.58} parent=0 // loop_header_branch
    %10 = sbr.rel (%p8) target = $region8
  $region5: #{classifier3_forward.58} parent=0 // loop_body
    %s12 = ssub.s32 %s7, 1
    %s13 = ssub.s32 %s7, 2
    %s14 = sadd.s32 %s7, 1
    %s15 = ssub.s32 %s7, %s14
    %p16 = scmp.eq.s32.totalorder %s15, 0
    %s18 = sadd.s32 %s17, 1
    %s19 = scalar_select %p16, %s17, %s18
    %p22 = pneg %p16
    %p23 = scmp.eq.s32.totalorder %s7, 1
    %p24 = por %p22, %p23
    %p25 = scmp.ne.s32.totalorder %s17, %s20
    %p26 = scmp.eq.s32.totalorder %s7, 0
    %p27 = por %p25, %p26
    %p28 = scmp.ne.s32.totalorder %s17, %s20
    %p29 = scmp.eq.s32.totalorder %s12, 1
    %p30 = por %p28, %p29
    %p31 = scmp.ne.s32.totalorder %s20, %s21
    %p32 = scmp.eq.s32.totalorder %s12, 0
    %p33 = por %p31, %p32
    %p34 = scmp.ne.s32.totalorder %s20, %s21
    %p35 = scmp.eq.s32.totalorder %s13, 1
    %p36 = por %p34, %p35
    %p38 = scmp.ne.s32.totalorder %s21, %s37
    %p39 = scmp.eq.s32.totalorder %s13, 0
    %p40 = por %p38, %p39
    %s41 = ssub.s32 %s7, %s14
    %p42 = scmp.eq.s32.totalorder %s41, 0
    %s44 = sadd.s32 %s43, 1
    %s45 = scalar_select %p42, %s43, %s44
    %p48 = pneg %p42
    %p49 = scmp.eq.s32.totalorder %s7, 1
    %p50 = por %p48, %p49
    %p51 = scmp.ne.s32.totalorder %s43, %s46
    %p52 = scmp.eq.s32.totalorder %s7, 0
    %p53 = por %p51, %p52
    %p54 = scmp.ne.s32.totalorder %s43, %s46
    %p55 = scmp.eq.s32.totalorder %s12, 1
    %p56 = por %p54, %p55
    %p57 = scmp.ne.s32.totalorder %s46, %s47
    %p58 = scmp.eq.s32.totalorder %s12, 0
    %p59 = por %p57, %p58
    %p60 = scmp.ne.s32.totalorder %s46, %s47
    %p61 = scmp.eq.s32.totalorder %s13, 1
    %p62 = por %p60, %p61
    %p64 = scmp.ne.s32.totalorder %s47, %s63
    %p65 = scmp.eq.s32.totalorder %s13, 0
    %p66 = por %p64, %p65
    %p67 = scmp.le.s32.totalorder 1, %s7
    %p68 = scmp.lt.s32.totalorder %s7, 3
    %p69 = pnand %p67, %p68
    %p70 = pneg %p69
    // Predicated region
    $region9: #{classifier3_forward.58} parent=5 // pred_check
      _
    $region10: #{classifier3_forward.58} parent=5 // pred_check_branch
      %72 = sbr.rel (%p69) target = $region12
    $region11: #{classifier3_forward.58} parent=5 // pred_region
      %s73 = ssub.s32 %s7, 1
    $region12: #{classifier3_forward.58} parent=5 // pred_fallthru
      _
    %p74 = scmp.lt.s32.totalorder %s7, 2
    // Predicated region
    $region13: #{classifier3_forward.58} parent=5 // pred_check
      %p75 = pneg %p74
    $region14: #{classifier3_forward.58} parent=5 // pred_check_branch
      %77 = sbr.rel (%p75) target = $region16
    $region15: #{classifier3_forward.58} parent=5 // pred_region
      // Predicated region
      $region17: #{classifier3_forward.58} parent=15 // pred_check
        %p78 = pneg %p27
      $region18: #{classifier3_forward.58} parent=15 // pred_check_branch
        %80 = sbr.rel (%p78) target = $region20
      $region19: #{classifier3_forward.58} parent=15 // pred_region
        %p81 = scmp.lt.s32.totalorder %s7, 1
        %s82 = scalar_select %p81, %s7, 1
        %s83 = smul.addr %s82, 4
        %s84 = smul.addr %s83, 4
        %s85 = scalar_lea.vmem %s0, %s84
      $region20: #{classifier3_forward.58} parent=15 // pred_fallthru
        _
    $region16: #{classifier3_forward.58} parent=5 // pred_fallthru
      _
    %p86 = scmp.le.s32.totalorder 1, %s7
    %p87 = scmp.lt.s32.totalorder %s7, 3
    %p88 = pnand %p86, %p87
    %p89 = pneg %p88
    // Predicated region
    $region21: #{classifier3_forward.58} parent=5 // pred_check
      _
    $region22: #{classifier3_forward.58} parent=5 // pred_check_branch
      %91 = sbr.rel (%p88) target = $region24
    $region23: #{classifier3_forward.58} parent=5 // pred_region
      %s92 = ssub.s32 %s7, 1
      %p93 = scmp.lt.s32.totalorder %s12, 1
      %s94 = scalar_select %p93, %s12, 1
      %s95 = smul.addr %s94, 4
      %s96 = smul.addr %s95, 4
      %s97 = scalar_lea.vmem %s0, %s96
      %p98 = pneg %p33
      %p99 = pneg %p30
      %p100 = pneg %p59
      %p101 = pneg %p56
      %p102 = scmp.lt.s32.totalorder %s12, 1
      %s103 = scalar_select %p102, %s12, 1
      %s104 = smul.addr %s103, 2
      %s105 = smul.addr %s104, 4
      %s106 = scalar_lea.vmem %s1, %s105
      %p107 = scmp.lt.s32.totalorder %s12, 1
      %s108 = scalar_select %p107, %s12, 1
      %s109 = smul.addr %s108, 4
      %s110 = smul.addr %s109, 4
      %s111 = scalar_lea.vmem %s0, %s110
      %p112 = scmp.lt.s32.totalorder %s12, 1
      %s113 = scalar_select %p112, %s12, 1
      %s114 = smul.addr %s113, 2
      %s115 = smul.addr %s114, 4
      %s116 = scalar_lea.vmem %s1, %s115
      %v119 = vld [vmem:[%s111] sm:$0xf]
      %v120 = vld [vmem:[%s111 + $0x8] sm:$0xf]
      %v121 = vmul.bf16 %v119, 1052065461
      %v122 = vmul.bf16 %v120, 1052065461
      %v123 = vld [vmem:[%s111 + $0x4] sm:$0xf]
      %v124 = vld [vmem:[%s111 + $0xc] sm:$0xf]
      %v127 = vunpack.c.l.b16 %v121
      %v128 = vunpack.c.l.b16 %v122
      %v129 = vpack.c.b16 %v128, %v127
      %v132 = vunpack.c.l.b16 %v119
      %v133 = vunpack.c.l.b16 %v120
      %v134 = vpack.c.b16 %v133, %v132
      %135 = vrot.lane.b32.xlu0 %v134, 64
      %v136 = vpop.permute.xlu0 %135
      %vm137 = vcmask 64512
      %v139 = vsel %vm137, %v129, 0
      %v142 = vsel %vm137, %v136, 0
      %144 = vmatprep.subr.bf16.mxu0 0
      %145 = vmatpush1.bf16.xpose.msra.mxu0 %v142
      %146 = vmatprep.subr.bf16.mxu0 0
      %147 = vmatpush1.bf16.xpose.msra.mxu0 0
      %148 = vmatprep.subr.bf16.mxu0 0
      %149 = vmatpush1.bf16.xpose.msra.mxu0 0
      %150 = vmatprep.subr.bf16.mxu0 0
      %151 = vmatpush1.bf16.xpose.msra.mxu0 0
      %152 = vmatprep.subr.bf16.mxu0 0
      %153 = vmatpush1.bf16.xpose.msra.mxu0 0
      %154 = vmatprep.subr.bf16.mxu0 0
      %155 = vmatpush1.bf16.xpose.msra.mxu0 0
      %156 = vmatprep.subr.bf16.mxu0 0
      %157 = vmatpush1.bf16.xpose.msra.mxu0 0
      %158 = vmatprep.subr.bf16.mxu0 0
      %159 = vmatpush1.bf16.xpose.msra.mxu0 0
      %160 = vmatprep.subr.bf16.mxu0 0
      %161 = vmatpush1.bf16.xpose.msra.mxu0 0
      %162 = vmatprep.subr.bf16.mxu0 0
      %163 = vmatpush1.bf16.xpose.msra.mxu0 0
      %164 = vmatprep.subr.bf16.mxu0 0
      %165 = vmatpush1.bf16.xpose.msra.mxu0 0
      %166 = vmatprep.subr.bf16.mxu0 0
      %167 = vmatpush1.bf16.xpose.msra.mxu0 0
      %168 = vmatprep.subr.bf16.mxu0 0
      %169 = vmatpush1.bf16.xpose.msra.mxu0 0
      %170 = vmatprep.subr.bf16.mxu0 0
      %171 = vmatpush1.bf16.xpose.msra.mxu0 0
      %172 = vmatprep.subr.bf16.mxu0 0
      %173 = vmatpush1.bf16.xpose.msra.mxu0 0
      %174 = vmatprep.subr.bf16.mxu0 0
      %175 = vmatpush1.bf16.xpose.msra.mxu0 0
      %176 = vmatprep.mubr.bf16.mxu0 0
      %177 = vmatmul.mubr.bf16.gmra.mrb[0].mxu0 %v139
      %v178 = vpop.f32.mrb[0].mxu0
      %v179 = vadd.f32 0.0, %v178
      %v180 = vpop.f32.mrb[0].mxu0
      %v181 = vpop.f32.mrb[0].mxu0
      %v182 = vadd.f32 0.0, %v181
      %v183 = vpop.f32.mrb[0].mxu0
      %184 = vdwg.mxu0
      %vm185 = vcmask 130048
      %v186 = vsel %vm185, %v179, -inf
      %187 = vmax.xlane.f32.xlu0 %v186
      %v188 = vpop.xlane.xlu0 %187
      %v189 = vsel %vm185, %v182, -inf
      %190 = vmax.xlane.f32.xlu0 %v189
      %v191 = vpop.xlane.xlu0 %190
      %v192 = vsub.f32 %v179, %v188
      %v193 = vsub.f32 %v182, %v191
      %v194 = vmul.f32 %v192, 1.442695
      %v195 = vpow.pop %v194
      %v196 = vmul.f32 %v193, 1.442695
      %v197 = vpow.pop %v196
      %v198 = vsel %vm185, %v195, 0.0
      %199 = vadd.xlane.f32.xlu0 %v198
      %v200 = vpop.xlane.xlu0 %199
      %v201 = vsel %vm185, %v197, 0.0
      %202 = vadd.xlane.f32.xlu0 %v201
      %v203 = vpop.xlane.xlu0 %202
      %v204 = vrcp.pop %v200
      %v205 = vrcp.pop %v203
      %v206 = vmul.f32 %v195, %v204
      %v207 = vmul.f32 %v197, %v205
      %v208 = vpack.c.bf16 %v207, %v206
      %v211 = vunpack.c.l.b16 %v123
      %v212 = vunpack.c.l.b16 %v124
      %v213 = vpack.c.b16 %v212, %v211
      %v216 = vsel %vm185, %v208, 0
      %218 = vmatprep.subr.bf16.mxu0 0
      %219 = vmatpush1.bf16.msra.mxu0 %v213
      %220 = vmatprep.subr.bf16.mxu0 0
      %221 = vmatpush1.bf16.msra.mxu0 0
      %222 = vmatprep.subr.bf16.mxu0 0
      %223 = vmatpush1.bf16.msra.mxu0 0
      %224 = vmatprep.subr.bf16.mxu0 0
      %225 = vmatpush1.bf16.msra.mxu0 0
      %226 = vmatprep.subr.bf16.mxu0 0
      %227 = vmatpush1.bf16.msra.mxu0 0
      %228 = vmatprep.subr.bf16.mxu0 0
      %229 = vmatpush1.bf16.msra.mxu0 0
      %230 = vmatprep.subr.bf16.mxu0 0
      %231 = vmatpush1.bf16.msra.mxu0 0
      %232 = vmatprep.subr.bf16.mxu0 0
      %233 = vmatpush1.bf16.msra.mxu0 0
      %234 = vmatprep.subr.bf16.mxu0 0
      %235 = vmatpush1.bf16.msra.mxu0 0
      %236 = vmatprep.subr.bf16.mxu0 0
      %237 = vmatpush1.bf16.msra.mxu0 0
      %238 = vmatprep.subr.bf16.mxu0 0
      %239 = vmatpush1.bf16.msra.mxu0 0
      %240 = vmatprep.subr.bf16.mxu0 0
      %241 = vmatpush1.bf16.msra.mxu0 0
      %242 = vmatprep.subr.bf16.mxu0 0
      %243 = vmatpush1.bf16.msra.mxu0 0
      %244 = vmatprep.subr.bf16.mxu0 0
      %245 = vmatpush1.bf16.msra.mxu0 0
      %246 = vmatprep.subr.bf16.mxu0 0
      %247 = vmatpush1.bf16.msra.mxu0 0
      %248 = vmatprep.subr.bf16.mxu0 0
      %249 = vmatpush1.bf16.msra.mxu0 0
      %250 = vmatprep.mubr.bf16.mxu0 0
      %251 = vmatmul.mubr.bf16.gmra.mrb[0].mxu0 %v216
      %v252 = vpop.f32.mrb[0].mxu0
      %v253 = vadd.f32 0.0, %v252
      %v254 = vpop.f32.mrb[0].mxu0
      %v255 = vpop.f32.mrb[0].mxu0
      %v256 = vadd.f32 0.0, %v255
      %v257 = vpop.f32.mrb[0].mxu0
      %258 = vdwg.mxu0
      %v259 = vpack.c.bf16 %v256, %v253
      %v261 = vunpack.c.l.b16 %v259
      %v262 = vunpack.c.h.b16 %v259
      %v263 = vpack.c.b16 %v261, %v261
      %v264 = vpack.c.b16 %v262, %v262
      %vm267 = vcmask 60416
      %268 = vst.msk [vmem:[%s116] sm:$0xf] %vm267, %v263
      %269 = vst.msk [vmem:[%s116 + $0x4] sm:$0xf] %vm267, %v264
      %v270 = vld [vmem:[%s111] sm:$0xf]
      %v271 = vld [vmem:[%s111 + $0x8] sm:$0xf]
      %v272 = vmul.bf16 %v270, 1052065461
      %v273 = vmul.bf16 %v271, 1052065461
      %v274 = vld [vmem:[%s111 + $0x4] sm:$0xf]
      %v275 = vld [vmem:[%s111 + $0xc] sm:$0xf]
      %v278 = vunpack.c.l.b16 %v272
      %v279 = vunpack.c.l.b16 %v273
      %v280 = vpack.c.b16 %v279, %v278
      %281 = vrot.lane.b32.xlu0 %v280, 120
      %v282 = vpop.permute.xlu0 %281
      %v285 = vunpack.c.l.b16 %v270
      %v286 = vunpack.c.l.b16 %v271
      %v287 = vpack.c.b16 %v286, %v285
      %288 = vrot.lane.b32.xlu0 %v287, 56
      %v289 = vpop.permute.xlu0 %288
      %v291 = vsel %vm137, %v282, 0
      %v294 = vsel %vm137, %v289, 0
      %296 = vmatprep.subr.bf16.mxu0 0
      %297 = vmatpush1.bf16.xpose.msra.mxu0 %v294
      %298 = vmatprep.subr.bf16.mxu0 0
      %299 = vmatpush1.bf16.xpose.msra.mxu0 0
      %300 = vmatprep.subr.bf16.mxu0 0
      %301 = vmatpush1.bf16.xpose.msra.mxu0 0
      %302 = vmatprep.subr.bf16.mxu0 0
      %303 = vmatpush1.bf16.xpose.msra.mxu0 0
      %304 = vmatprep.subr.bf16.mxu0 0
      %305 = vmatpush1.bf16.xpose.msra.mxu0 0
      %306 = vmatprep.subr.bf16.mxu0 0
      %307 = vmatpush1.bf16.xpose.msra.mxu0 0
      %308 = vmatprep.subr.bf16.mxu0 0
      %309 = vmatpush1.bf16.xpose.msra.mxu0 0
      %310 = vmatprep.subr.bf16.mxu0 0
      %311 = vmatpush1.bf16.xpose.msra.mxu0 0
      %312 = vmatprep.subr.bf16.mxu0 0
      %313 = vmatpush1.bf16.xpose.msra.mxu0 0
      %314 = vmatprep.subr.bf16.mxu0 0
      %315 = vmatpush1.bf16.xpose.msra.mxu0 0
      %316 = vmatprep.subr.bf16.mxu0 0
      %317 = vmatpush1.bf16.xpose.msra.mxu0 0
      %318 = vmatprep.subr.bf16.mxu0 0
      %319 = vmatpush1.bf16.xpose.msra.mxu0 0
      %320 = vmatprep.subr.bf16.mxu0 0
      %321 = vmatpush1.bf16.xpose.msra.mxu0 0
      %322 = vmatprep.subr.bf16.mxu0 0
      %323 = vmatpush1.bf16.xpose.msra.mxu0 0
      %324 = vmatprep.subr.bf16.mxu0 0
      %325 = vmatpush1.bf16.xpose.msra.mxu0 0
      %326 = vmatprep.subr.bf16.mxu0 0
      %327 = vmatpush1.bf16.xpose.msra.mxu0 0
      %328 = vmatprep.mubr.bf16.mxu0 0
      %329 = vmatmul.mubr.bf16.gmra.mrb[0].mxu0 %v291
      %v330 = vpop.f32.mrb[0].mxu0
      %v331 = vadd.f32 0.0, %v330
      %v332 = vpop.f32.mrb[0].mxu0
      %v333 = vpop.f32.mrb[0].mxu0
      %v334 = vadd.f32 0.0, %v333
      %v335 = vpop.f32.mrb[0].mxu0
      %336 = vdwg.mxu0
      %v337 = vsel %vm185, %v331, -inf
      %338 = vmax.xlane.f32.xlu0 %v337
      %v339 = vpop.xlane.xlu0 %338
      %v340 = vsel %vm185, %v334, -inf
      %341 = vmax.xlane.f32.xlu0 %v340
      %v342 = vpop.xlane.xlu0 %341
      %v343 = vsub.f32 %v331, %v339
      %v344 = vsub.f32 %v334, %v342
      %v345 = vmul.f32 %v343, 1.442695
      %v346 = vpow.pop %v345
      %v347 = vmul.f32 %v344, 1.442695
      %v348 = vpow.pop %v347
      %v349 = vsel %vm185, %v346, 0.0
      %350 = vadd.xlane.f32.xlu0 %v349
      %v351 = vpop.xlane.xlu0 %350
      %v352 = vsel %vm185, %v348, 0.0
      %353 = vadd.xlane.f32.xlu0 %v352
      %v354 = vpop.xlane.xlu0 %353
      %v355 = vrcp.pop %v351
      %v356 = vrcp.pop %v354
      %v357 = vmul.f32 %v346, %v355
      %v358 = vmul.f32 %v348, %v356
      %v359 = vpack.c.bf16 %v358, %v357
      %v362 = vunpack.c.l.b16 %v274
      %v363 = vunpack.c.l.b16 %v275
      %v364 = vpack.c.b16 %v363, %v362
      %365 = vrot.lane.b32.xlu0 %v364, 120
      %v366 = vpop.permute.xlu0 %365
      %v369 = vsel %vm185, %v359, 0
      %371 = vmatprep.subr.bf16.mxu0 0
      %372 = vmatpush1.bf16.msra.mxu0 %v366
      %373 = vmatprep.subr.bf16.mxu0 0
      %374 = vmatpush1.bf16.msra.mxu0 0
      %375 = vmatprep.subr.bf16.mxu0 0
      %376 = vmatpush1.bf16.msra.mxu0 0
      %377 = vmatprep.subr.bf16.mxu0 0
      %378 = vmatpush1.bf16.msra.mxu0 0
      %379 = vmatprep.subr.bf16.mxu0 0
      %380 = vmatpush1.bf16.msra.mxu0 0
      %381 = vmatprep.subr.bf16.mxu0 0
      %382 = vmatpush1.bf16.msra.mxu0 0
      %383 = vmatprep.subr.bf16.mxu0 0
      %384 = vmatpush1.bf16.msra.mxu0 0
      %385 = vmatprep.subr.bf16.mxu0 0
      %386 = vmatpush1.bf16.msra.mxu0 0
      %387 = vmatprep.subr.bf16.mxu0 0
      %388 = vmatpush1.bf16.msra.mxu0 0
      %389 = vmatprep.subr.bf16.mxu0 0
      %390 = vmatpush1.bf16.msra.mxu0 0
      %391 = vmatprep.subr.bf16.mxu0 0
      %392 = vmatpush1.bf16.msra.mxu0 0
      %393 = vmatprep.subr.bf16.mxu0 0
      %394 = vmatpush1.bf16.msra.mxu0 0
      %395 = vmatprep.subr.bf16.mxu0 0
      %396 = vmatpush1.bf16.msra.mxu0 0
      %397 = vmatprep.subr.bf16.mxu0 0
      %398 = vmatpush1.bf16.msra.mxu0 0
      %399 = vmatprep.subr.bf16.mxu0 0
      %400 = vmatpush1.bf16.msra.mxu0 0
      %401 = vmatprep.subr.bf16.mxu0 0
      %402 = vmatpush1.bf16.msra.mxu0 0
      %403 = vmatprep.mubr.bf16.mxu0 0
      %404 = vmatmul.mubr.bf16.gmra.mrb[0].mxu0 %v369
      %v405 = vpop.f32.mrb[0].mxu0
      %v406 = vadd.f32 0.0, %v405
      %v407 = vpop.f32.mrb[0].mxu0
      %v408 = vpop.f32.mrb[0].mxu0
      %v409 = vadd.f32 0.0, %v408
      %v410 = vpop.f32.mrb[0].mxu0
      %411 = vdwg.mxu0
      %v412 = vpack.c.bf16 %v409, %v406
      %v414 = vunpack.c.l.b16 %v412
      %v415 = vunpack.c.h.b16 %v412
      %v416 = vpack.c.b16 %v414, %v414
      %v417 = vpack.c.b16 %v415, %v415
      %418 = vrot.lane.b32.xlu0 %v416, 8
      %v419 = vpop.permute.xlu0 %418
      %420 = vrot.lane.b32.xlu0 %v417, 8
      %v421 = vpop.permute.xlu0 %420
      %vm424 = vcmask 126016
      %425 = vst.msk [vmem:[%s116] sm:$0xf] %vm424, %v419
      %426 = vst.msk [vmem:[%s116 + $0x4] sm:$0xf] %vm424, %v421
      %v427 = vld [vmem:[%s111] sm:$0xf]
      %v428 = vld [vmem:[%s111 + $0x8] sm:$0xf]
      %v429 = vmul.bf16 %v427, 1052065461
      %v430 = vmul.bf16 %v428, 1052065461
      %v431 = vld [vmem:[%s111 + $0x4] sm:$0xf]
      %v432 = vld [vmem:[%s111 + $0xc] sm:$0xf]
      %v435 = vunpack.c.l.b16 %v429
      %v436 = vunpack.c.l.b16 %v430
      %v437 = vpack.c.b16 %v436, %v435
      %438 = vrot.lane.b32.xlu0 %v437, 112
      %v439 = vpop.permute.xlu0 %438
      %v442 = vunpack.c.l.b16 %v427
      %v443 = vunpack.c.l.b16 %v428
      %v444 = vpack.c.b16 %v443, %v442
      %445 = vrot.lane.b32.xlu0 %v444, 48
      %v446 = vpop.permute.xlu0 %445
      %v448 = vsel %vm137, %v439, 0
      %v451 = vsel %vm137, %v446, 0
      %453 = vmatprep.subr.bf16.mxu0 0
      %454 = vmatpush1.bf16.xpose.msra.mxu0 %v451
      %455 = vmatprep.subr.bf16.mxu0 0
      %456 = vmatpush1.bf16.xpose.msra.mxu0 0
      %457 = vmatprep.subr.bf16.mxu0 0
      %458 = vmatpush1.bf16.xpose.msra.mxu0 0
      %459 = vmatprep.subr.bf16.mxu0 0
      %460 = vmatpush1.bf16.xpose.msra.mxu0 0
      %461 = vmatprep.subr.bf16.mxu0 0
      %462 = vmatpush1.bf16.xpose.msra.mxu0 0
      %463 = vmatprep.subr.bf16.mxu0 0
      %464 = vmatpush1.bf16.xpose.msra.mxu0 0
      %465 = vmatprep.subr.bf16.mxu0 0
      %466 = vmatpush1.bf16.xpose.msra.mxu0 0
      %467 = vmatprep.subr.bf16.mxu0 0
      %468 = vmatpush1.bf16.xpose.msra.mxu0 0
      %469 = vmatprep.subr.bf16.mxu0 0
      %470 = vmatpush1.bf16.xpose.msra.mxu0 0
      %471 = vmatprep.subr.bf16.mxu0 0
      %472 = vmatpush1.bf16.xpose.msra.mxu0 0
      %473 = vmatprep.subr.bf16.mxu0 0
      %474 = vmatpush1.bf16.xpose.msra.mxu0 0
      %475 = vmatprep.subr.bf16.mxu0 0
      %476 = vmatpush1.bf16.xpose.msra.mxu0 0
      %477 = vmatprep.subr.bf16.mxu0 0
      %478 = vmatpush1.bf16.xpose.msra.mxu0 0
      %479 = vmatprep.subr.bf16.mxu0 0
      %480 = vmatpush1.bf16.xpose.msra.mxu0 0
      %481 = vmatprep.subr.bf16.mxu0 0
      %482 = vmatpush1.bf16.xpose.msra.mxu0 0
      %483 = vmatprep.subr.bf16.mxu0 0
      %484 = vmatpush1.bf16.xpose.msra.mxu0 0
      %485 = vmatprep.mubr.bf16.mxu0 0
      %486 = vmatmul.mubr.bf16.gmra.mrb[0].mxu0 %v448
      %v487 = vpop.f32.mrb[0].mxu0
      %v488 = vadd.f32 0.0, %v487
      %v489 = vpop.f32.mrb[0].mxu0
      %v490 = vpop.f32.mrb[0].mxu0
      %v491 = vadd.f32 0.0, %v490
      %v492 = vpop.f32.mrb[0].mxu0
      %493 = vdwg.mxu0
      %v494 = vsel %vm185, %v488, -inf
      %495 = vmax.xlane.f32.xlu0 %v494
      %v496 = vpop.xlane.xlu0 %495
      %v497 = vsel %vm185, %v491, -inf
      %498 = vmax.xlane.f32.xlu0 %v497
      %v499 = vpop.xlane.xlu0 %498
      %v500 = vsub.f32 %v488, %v496
      %v501 = vsub.f32 %v491, %v499
      %v502 = vmul.f32 %v500, 1.442695
      %v503 = vpow.pop %v502
      %v504 = vmul.f32 %v501, 1.442695
      %v505 = vpow.pop %v504
      %v506 = vsel %vm185, %v503, 0.0
      %507 = vadd.xlane.f32.xlu0 %v506
      %v508 = vpop.xlane.xlu0 %507
      %v509 = vsel %vm185, %v505, 0.0
      %510 = vadd.xlane.f32.xlu0 %v509
      %v511 = vpop.xlane.xlu0 %510
      %v512 = vrcp.pop %v508
      %v513 = vrcp.pop %v511
      %v514 = vmul.f32 %v503, %v512
      %v515 = vmul.f32 %v505, %v513
      %v516 = vpack.c.bf16 %v515, %v514
      %v519 = vunpack.c.l.b16 %v431
      %v520 = vunpack.c.l.b16 %v432
      %v521 = vpack.c.b16 %v520, %v519
      %522 = vrot.lane.b32.xlu0 %v521, 112
      %v523 = vpop.permute.xlu0 %522
      %v526 = vsel %vm185, %v516, 0
      %528 = vmatprep.subr.bf16.mxu0 0
      %529 = vmatpush1.bf16.msra.mxu0 %v523
      %530 = vmatprep.subr.bf16.mxu0 0
      %531 = vmatpush1.bf16.msra.mxu0 0
      %532 = vmatprep.subr.bf16.mxu0 0
      %533 = vmatpush1.bf16.msra.mxu0 0
      %534 = vmatprep.subr.bf16.mxu0 0
      %535 = vmatpush1.bf16.msra.mxu0 0
      %536 = vmatprep.subr.bf16.mxu0 0
      %537 = vmatpush1.bf16.msra.mxu0 0
      %538 = vmatprep.subr.bf16.mxu0 0
      %539 = vmatpush1.bf16.msra.mxu0 0
      %540 = vmatprep.subr.bf16.mxu0 0
      %541 = vmatpush1.bf16.msra.mxu0 0
      %542 = vmatprep.subr.bf16.mxu0 0
      %543 = vmatpush1.bf16.msra.mxu0 0
      %544 = vmatprep.subr.bf16.mxu0 0
      %545 = vmatpush1.bf16.msra.mxu0 0
      %546 = vmatprep.subr.bf16.mxu0 0
      %547 = vmatpush1.bf16.msra.mxu0 0
      %548 = vmatprep.subr.bf16.mxu0 0
      %549 = vmatpush1.bf16.msra.mxu0 0
      %550 = vmatprep.subr.bf16.mxu0 0
      %551 = vmatpush1.bf16.msra.mxu0 0
      %552 = vmatprep.subr.bf16.mxu0 0
      %553 = vmatpush1.bf16.msra.mxu0 0
      %554 = vmatprep.subr.bf16.mxu0 0
      %555 = vmatpush1.bf16.msra.mxu0 0
      %556 = vmatprep.subr.bf16.mxu0 0
      %557 = vmatpush1.bf16.msra.mxu0 0
      %558 = vmatprep.subr.bf16.mxu0 0
      %559 = vmatpush1.bf16.msra.mxu0 0
      %560 = vmatprep.mubr.bf16.mxu0 0
      %561 = vmatmul.mubr.bf16.gmra.mrb[0].mxu0 %v526
      %v562 = vpop.f32.mrb[0].mxu0
      %v563 = vadd.f32 0.0, %v562
      %v564 = vpop.f32.mrb[0].mxu0
      %v565 = vpop.f32.mrb[0].mxu0
      %v566 = vadd.f32 0.0, %v565
      %v567 = vpop.f32.mrb[0].mxu0
      %568 = vdwg.mxu0
      %v569 = vpack.c.bf16 %v566, %v563
      %v571 = vunpack.c.l.b16 %v569
      %v572 = vunpack.c.h.b16 %v569
      %v573 = vpack.c.b16 %v571, %v571
      %v574 = vpack.c.b16 %v572, %v572
      %575 = vrot.lane.b32.xlu0 %v573, 16
      %v576 = vpop.permute.xlu0 %575
      %577 = vrot.lane.b32.xlu0 %v574, 16
      %v578 = vpop.permute.xlu0 %577
      %vm581 = vcmask 191616
      %582 = vst.msk [vmem:[%s116] sm:$0xf] %vm581, %v576
      %583 = vst.msk [vmem:[%s116 + $0x4] sm:$0xf] %vm581, %v578
      %v584 = vld [vmem:[%s111] sm:$0xf]
      %v585 = vld [vmem:[%s111 + $0x8] sm:$0xf]
      %v586 = vmul.bf16 %v584, 1052065461
      %v587 = vmul.bf16 %v585, 1052065461
      %v588 = vld [vmem:[%s111 + $0x4] sm:$0xf]
      %v589 = vld [vmem:[%s111 + $0xc] sm:$0xf]
      %v592 = vunpack.c.l.b16 %v586
      %v593 = vunpack.c.l.b16 %v587
      %v594 = vpack.c.b16 %v593, %v592
      %595 = vrot.lane.b32.xlu0 %v594, 104
      %v596 = vpop.permute.xlu0 %595
      %v599 = vunpack.c.l.b16 %v584
      %v600 = vunpack.c.l.b16 %v585
      %v601 = vpack.c.b16 %v600, %v599
      %602 = vrot.lane.b32.xlu0 %v601, 40
      %v603 = vpop.permute.xlu0 %602
      %v605 = vsel %vm137, %v596, 0
      %v608 = vsel %vm137, %v603, 0
      %610 = vmatprep.subr.bf16.mxu0 0
      %611 = vmatpush1.bf16.xpose.msra.mxu0 %v608
      %612 = vmatprep.subr.bf16.mxu0 0
      %613 = vmatpush1.bf16.xpose.msra.mxu0 0
      %614 = vmatprep.subr.bf16.mxu0 0
      %615 = vmatpush1.bf16.xpose.msra.mxu0 0
      %616 = vmatprep.subr.bf16.mxu0 0
      %617 = vmatpush1.bf16.xpose.msra.mxu0 0
      %618 = vmatprep.subr.bf16.mxu0 0
      %619 = vmatpush1.bf16.xpose.msra.mxu0 0
      %620 = vmatprep.subr.bf16.mxu0 0
      %621 = vmatpush1.bf16.xpose.msra.mxu0 0
      %622 = vmatprep.subr.bf16.mxu0 0
      %623 = vmatpush1.bf16.xpose.msra.mxu0 0
      %624 = vmatprep.subr.bf16.mxu0 0
      %625 = vmatpush1.bf16.xpose.msra.mxu0 0
      %626 = vmatprep.subr.bf16.mxu0 0
      %627 = vmatpush1.bf16.xpose.msra.mxu0 0
      %628 = vmatprep.subr.bf16.mxu0 0
      %629 = vmatpush1.bf16.xpose.msra.mxu0 0
      %630 = vmatprep.subr.bf16.mxu0 0
      %631 = vmatpush1.bf16.xpose.msra.mxu0 0
      %632 = vmatprep.subr.bf16.mxu0 0
      %633 = vmatpush1.bf16.xpose.msra.mxu0 0
      %634 = vmatprep.subr.bf16.mxu0 0
      %635 = vmatpush1.bf16.xpose.msra.mxu0 0
      %636 = vmatprep.subr.bf16.mxu0 0
      %637 = vmatpush1.bf16.xpose.msra.mxu0 0
      %638 = vmatprep.subr.bf16.mxu0 0
      %639 = vmatpush1.bf16.xpose.msra.mxu0 0
      %640 = vmatprep.subr.bf16.mxu0 0
      %641 = vmatpush1.bf16.xpose.msra.mxu0 0
      %642 = vmatprep.mubr.bf16.mxu0 0
      %643 = vmatmul.mubr.bf16.gmra.mrb[0].mxu0 %v605
      %v644 = vpop.f32.mrb[0].mxu0
      %v645 = vadd.f32 0.0, %v644
      %v646 = vpop.f32.mrb[0].mxu0
      %v647 = vpop.f32.mrb[0].mxu0
      %v648 = vadd.f32 0.0, %v647
      %v649 = vpop.f32.mrb[0].mxu0
      %650 = vdwg.mxu0
      %v651 = vsel %vm185, %v645, -inf
      %652 = vmax.xlane.f32.xlu0 %v651
      %v653 = vpop.xlane.xlu0 %652
      %v654 = vsel %vm185, %v648, -inf
      %655 = vmax.xlane.f32.xlu0 %v654
      %v656 = vpop.xlane.xlu0 %655
      %v657 = vsub.f32 %v645, %v653
      %v658 = vsub.f32 %v648, %v656
      %v659 = vmul.f32 %v657, 1.442695
      %v660 = vpow.pop %v659
      %v661 = vmul.f32 %v658, 1.442695
      %v662 = vpow.pop %v661
      %v663 = vsel %vm185, %v660, 0.0
      %664 = vadd.xlane.f32.xlu0 %v663
      %v665 = vpop.xlane.xlu0 %664
      %v666 = vsel %vm185, %v662, 0.0
      %667 = vadd.xlane.f32.xlu0 %v666
      %v668 = vpop.xlane.xlu0 %667
      %v669 = vrcp.pop %v665
      %v670 = vrcp.pop %v668
      %v671 = vmul.f32 %v660, %v669
      %v672 = vmul.f32 %v662, %v670
      %v673 = vpack.c.bf16 %v672, %v671
      %v676 = vunpack.c.l.b16 %v588
      %v677 = vunpack.c.l.b16 %v589
      %v678 = vpack.c.b16 %v677, %v676
      %679 = vrot.lane.b32.xlu0 %v678, 104
      %v680 = vpop.permute.xlu0 %679
      %v683 = vsel %vm185, %v673, 0
      %685 = vmatprep.subr.bf16.mxu0 0
      %686 = vmatpush1.bf16.msra.mxu0 %v680
      %687 = vmatprep.subr.bf16.mxu0 0
      %688 = vmatpush1.bf16.msra.mxu0 0
      %689 = vmatprep.subr.bf16.mxu0 0
      %690 = vmatpush1.bf16.msra.mxu0 0
      %691 = vmatprep.subr.bf16.mxu0 0
      %692 = vmatpush1.bf16.msra.mxu0 0
      %693 = vmatprep.subr.bf16.mxu0 0
      %694 = vmatpush1.bf16.msra.mxu0 0
      %695 = vmatprep.subr.bf16.mxu0 0
      %696 = vmatpush1.bf16.msra.mxu0 0
      %697 = vmatprep.subr.bf16.mxu0 0
      %698 = vmatpush1.bf16.msra.mxu0 0
      %699 = vmatprep.subr.bf16.mxu0 0
      %700 = vmatpush1.bf16.msra.mxu0 0
      %701 = vmatprep.subr.bf16.mxu0 0
      %702 = vmatpush1.bf16.msra.mxu0 0
      %703 = vmatprep.subr.bf16.mxu0 0
      %704 = vmatpush1.bf16.msra.mxu0 0
      %705 = vmatprep.subr.bf16.mxu0 0
      %706 = vmatpush1.bf16.msra.mxu0 0
      %707 = vmatprep.subr.bf16.mxu0 0
      %708 = vmatpush1.bf16.msra.mxu0 0
      %709 = vmatprep.subr.bf16.mxu0 0
      %710 = vmatpush1.bf16.msra.mxu0 0
      %711 = vmatprep.subr.bf16.mxu0 0
      %712 = vmatpush1.bf16.msra.mxu0 0
      %713 = vmatprep.subr.bf16.mxu0 0
      %714 = vmatpush1.bf16.msra.mxu0 0
      %715 = vmatprep.subr.bf16.mxu0 0
      %716 = vmatpush1.bf16.msra.mxu0 0
      %717 = vmatprep.mubr.bf16.mxu0 0
      %718 = vmatmul.mubr.bf16.gmra.mrb[0].mxu0 %v683
      %v719 = vpop.f32.mrb[0].mxu0
      %v720 = vadd.f32 0.0, %v719
      %v721 = vpop.f32.mrb[0].mxu0
      %v722 = vpop.f32.mrb[0].mxu0
      %v723 = vadd.f32 0.0, %v722
      %v724 = vpop.f32.mrb[0].mxu0
      %725 = vdwg.mxu0
      %v726 = vpack.c.bf16 %v723, %v720
      %v728 = vunpack.c.l.b16 %v726
      %v729 = vunpack.c.h.b16 %v726
      %v730 = vpack.c.b16 %v728, %v728
      %v731 = vpack.c.b16 %v729, %v729
      %732 = vrot.lane.b32.xlu0 %v730, 24
      %v733 = vpop.permute.xlu0 %732
      %734 = vrot.lane.b32.xlu0 %v731, 24
      %v735 = vpop.permute.xlu0 %734
      %vm738 = vcmask 257216
      %739 = vst.msk [vmem:[%s116] sm:$0xf] %vm738, %v733
      %740 = vst.msk [vmem:[%s116 + $0x4] sm:$0xf] %vm738, %v735
      %v741 = vld [vmem:[%s111] sm:$0xf]
      %v742 = vld [vmem:[%s111 + $0x8] sm:$0xf]
      %v743 = vmul.bf16 %v741, 1052065461
      %v744 = vmul.bf16 %v742, 1052065461
      %v745 = vld [vmem:[%s111 + $0x4] sm:$0xf]
      %v746 = vld [vmem:[%s111 + $0xc] sm:$0xf]
      %v749 = vunpack.c.l.b16 %v743
      %v750 = vunpack.c.l.b16 %v744
      %v751 = vpack.c.b16 %v750, %v749
      %752 = vrot.lane.b32.xlu0 %v751, 96
      %v753 = vpop.permute.xlu0 %752
      %v756 = vunpack.c.l.b16 %v741
      %v757 = vunpack.c.l.b16 %v742
      %v758 = vpack.c.b16 %v757, %v756
      %759 = vrot.lane.b32.xlu0 %v758, 32
      %v760 = vpop.permute.xlu0 %759
      %v762 = vsel %vm137, %v753, 0
      %v765 = vsel %vm137, %v760, 0
      %767 = vmatprep.subr.bf16.mxu0 0
      %768 = vmatpush1.bf16.xpose.msra.mxu0 %v765
      %769 = vmatprep.subr.bf16.mxu0 0
      %770 = vmatpush1.bf16.xpose.msra.mxu0 0
      %771 = vmatprep.subr.bf16.mxu0 0
      %772 = vmatpush1.bf16.xpose.msra.mxu0 0
      %773 = vmatprep.subr.bf16.mxu0 0
      %774 = vmatpush1.bf16.xpose.msra.mxu0 0
      %775 = vmatprep.subr.bf16.mxu0 0
      %776 = vmatpush1.bf16.xpose.msra.mxu0 0
      %777 = vmatprep.subr.bf16.mxu0 0
      %778 = vmatpush1.bf16.xpose.msra.mxu0 0
      %779 = vmatprep.subr.bf16.mxu0 0
      %780 = vmatpush1.bf16.xpose.msra.mxu0 0
      %781 = vmatprep.subr.bf16.mxu0 0
      %782 = vmatpush1.bf16.xpose.msra.mxu0 0
      %783 = vmatprep.subr.bf16.mxu0 0
      %784 = vmatpush1.bf16.xpose.msra.mxu0 0
      %785 = vmatprep.subr.bf16.mxu0 0
      %786 = vmatpush1.bf16.xpose.msra.mxu0 0
      %787 = vmatprep.subr.bf16.mxu0 0
      %788 = vmatpush1.bf16.xpose.msra.mxu0 0
      %789 = vmatprep.subr.bf16.mxu0 0
      %790 = vmatpush1.bf16.xpose.msra.mxu0 0
      %791 = vmatprep.subr.bf16.mxu0 0
      %792 = vmatpush1.bf16.xpose.msra.mxu0 0
      %793 = vmatprep.subr.bf16.mxu0 0
      %794 = vmatpush1.bf16.xpose.msra.mxu0 0
      %795 = vmatprep.subr.bf16.mxu0 0
      %796 = vmatpush1.bf16.xpose.msra.mxu0 0
      %797 = vmatprep.subr.bf16.mxu0 0
      %798 = vmatpush1.bf16.xpose.msra.mxu0 0
      %799 = vmatprep.mubr.bf16.mxu0 0
      %800 = vmatmul.mubr.bf16.gmra.mrb[0].mxu0 %v762
      %v801 = vpop.f32.mrb[0].mxu0
      %v802 = vadd.f32 0.0, %v801
      %v803 = vpop.f32.mrb[0].mxu0
      %v804 = vpop.f32.mrb[0].mxu0
      %v805 = vadd.f32 0.0, %v804
      %v806 = vpop.f32.mrb[0].mxu0
      %807 = vdwg.mxu0
      %v808 = vsel %vm185, %v802, -inf
      %809 = vmax.xlane.f32.xlu0 %v808
      %v810 = vpop.xlane.xlu0 %809
      %v811 = vsel %vm185, %v805, -inf
      %812 = vmax.xlane.f32.xlu0 %v811
      %v813 = vpop.xlane.xlu0 %812
      %v814 = vsub.f32 %v802, %v810
      %v815 = vsub.f32 %v805, %v813
      %v816 = vmul.f32 %v814, 1.442695
      %v817 = vpow.pop %v816
      %v818 = vmul.f32 %v815, 1.442695
      %v819 = vpow.pop %v818
      %v820 = vsel %vm185, %v817, 0.0
      %821 = vadd.xlane.f32.xlu0 %v820
      %v822 = vpop.xlane.xlu0 %821
      %v823 = vsel %vm185, %v819, 0.0
      %824 = vadd.xlane.f32.xlu0 %v823
      %v825 = vpop.xlane.xlu0 %824
      %v826 = vrcp.pop %v822
      %v827 = vrcp.pop %v825
      %v828 = vmul.f32 %v817, %v826
      %v829 = vmul.f32 %v819, %v827
      %v830 = vpack.c.bf16 %v829, %v828
      %v833 = vunpack.c.l.b16 %v745
      %v834 = vunpack.c.l.b16 %v746
      %v835 = vpack.c.b16 %v834, %v833
      %836 = vrot.lane.b32.xlu0 %v835, 96
      %v837 = vpop.permute.xlu0 %836
      %v840 = vsel %vm185, %v830, 0
      %842 = vmatprep.subr.bf16.mxu0 0
      %843 = vmatpush1.bf16.msra.mxu0 %v837
      %844 = vmatprep.subr.bf16.mxu0 0
      %845 = vmatpush1.bf16.msra.mxu0 0
      %846 = vmatprep.subr.bf16.mxu0 0
      %847 = vmatpush1.bf16.msra.mxu0 0
      %848 = vmatprep.subr.bf16.mxu0 0
      %849 = vmatpush1.bf16.msra.mxu0 0
      %850 = vmatprep.subr.bf16.mxu0 0
      %851 = vmatpush1.bf16.msra.mxu0 0
      %852 = vmatprep.subr.bf16.mxu0 0
      %853 = vmatpush1.bf16.msra.mxu0 0
      %854 = vmatprep.subr.bf16.mxu0 0
      %855 = vmatpush1.bf16.msra.mxu0 0
      %856 = vmatprep.subr.bf16.mxu0 0
      %857 = vmatpush1.bf16.msra.mxu0 0
      %858 = vmatprep.subr.bf16.mxu0 0
      %859 = vmatpush1.bf16.msra.mxu0 0
      %860 = vmatprep.subr.bf16.mxu0 0
      %861 = vmatpush1.bf16.msra.mxu0 0
      %862 = vmatprep.subr.bf16.mxu0 0
      %863 = vmatpush1.bf16.msra.mxu0 0
      %864 = vmatprep.subr.bf16.mxu0 0
      %865 = vmatpush1.bf16.msra.mxu0 0
      %866 = vmatprep.subr.bf16.mxu0 0
      %867 = vmatpush1.bf16.msra.mxu0 0
      %868 = vmatprep.subr.bf16.mxu0 0
      %869 = vmatpush1.bf16.msra.mxu0 0
      %870 = vmatprep.subr.bf16.mxu0 0
      %871 = vmatpush1.bf16.msra.mxu0 0
      %872 = vmatprep.subr.bf16.mxu0 0
      %873 = vmatpush1.bf16.msra.mxu0 0
      %874 = vmatprep.mubr.bf16.mxu0 0
      %875 = vmatmul.mubr.bf16.gmra.mrb[0].mxu0 %v840
      %v876 = vpop.f32.mrb[0].mxu0
      %v877 = vadd.f32 0.0, %v876
      %v878 = vpop.f32.mrb[0].mxu0
      %v879 = vpop.f32.mrb[0].mxu0
      %v880 = vadd.f32 0.0, %v879
      %v881 = vpop.f32.mrb[0].mxu0
      %882 = vdwg.mxu0
      %v883 = vpack.c.bf16 %v880, %v877
      %v885 = vunpack.c.l.b16 %v883
      %v886 = vunpack.c.h.b16 %v883
      %v887 = vpack.c.b16 %v885, %v885
      %v888 = vpack.c.b16 %v886, %v886
      %889 = vrot.lane.b32.xlu0 %v887, 32
      %v890 = vpop.permute.xlu0 %889
      %891 = vrot.lane.b32.xlu0 %v888, 32
      %v892 = vpop.permute.xlu0 %891
      %vm895 = vcmask 322816
      %896 = vst.msk [vmem:[%s116] sm:$0xf] %vm895, %v890
      %897 = vst.msk [vmem:[%s116 + $0x4] sm:$0xf] %vm895, %v892
      %v898 = vld [vmem:[%s111] sm:$0xf]
      %v899 = vld [vmem:[%s111 + $0x8] sm:$0xf]
      %v900 = vmul.bf16 %v898, 1052065461
      %v901 = vmul.bf16 %v899, 1052065461
      %v902 = vld [vmem:[%s111 + $0x4] sm:$0xf]
      %v903 = vld [vmem:[%s111 + $0xc] sm:$0xf]
      %v906 = vunpack.c.l.b16 %v900
      %v907 = vunpack.c.l.b16 %v901
      %v908 = vpack.c.b16 %v907, %v906
      %909 = vrot.lane.b32.xlu0 %v908, 88
      %v910 = vpop.permute.xlu0 %909
      %v913 = vunpack.c.l.b16 %v898
      %v914 = vunpack.c.l.b16 %v899
      %v915 = vpack.c.b16 %v914, %v913
      %916 = vrot.lane.b32.xlu0 %v915, 24
      %v917 = vpop.permute.xlu0 %916
      %v919 = vsel %vm137, %v910, 0
      %v922 = vsel %vm137, %v917, 0
      %924 = vmatprep.subr.bf16.mxu0 0
      %925 = vmatpush1.bf16.xpose.msra.mxu0 %v922
      %926 = vmatprep.subr.bf16.mxu0 0
      %927 = vmatpush1.bf16.xpose.msra.mxu0 0
      %928 = vmatprep.subr.bf16.mxu0 0
      %929 = vmatpush1.bf16.xpose.msra.mxu0 0
      %930 = vmatprep.subr.bf16.mxu0 0
      %931 = vmatpush1.bf16.xpose.msra.mxu0 0
      %932 = vmatprep.subr.bf16.mxu0 0
      %933 = vmatpush1.bf16.xpose.msra.mxu0 0
      %934 = vmatprep.subr.bf16.mxu0 0
      %935 = vmatpush1.bf16.xpose.msra.mxu0 0
      %936 = vmatprep.subr.bf16.mxu0 0
      %937 = vmatpush1.bf16.xpose.msra.mxu0 0
      %938 = vmatprep.subr.bf16.mxu0 0
      %939 = vmatpush1.bf16.xpose.msra.mxu0 0
      %940 = vmatprep.subr.bf16.mxu0 0
      %941 = vmatpush1.bf16.xpose.msra.mxu0 0
      %942 = vmatprep.subr.bf16.mxu0 0
      %943 = vmatpush1.bf16.xpose.msra.mxu0 0
      %944 = vmatprep.subr.bf16.mxu0 0
      %945 = vmatpush1.bf16.xpose.msra.mxu0 0
      %946 = vmatprep.subr.bf16.mxu0 0
      %947 = vmatpush1.bf16.xpose.msra.mxu0 0
      %948 = vmatprep.subr.bf16.mxu0 0
      %949 = vmatpush1.bf16.xpose.msra.mxu0 0
      %950 = vmatprep.subr.bf16.mxu0 0
      %951 = vmatpush1.bf16.xpose.msra.mxu0 0
      %952 = vmatprep.subr.bf16.mxu0 0
      %953 = vmatpush1.bf16.xpose.msra.mxu0 0
      %954 = vmatprep.subr.bf16.mxu0 0
      %955 = vmatpush1.bf16.xpose.msra.mxu0 0
      %956 = vmatprep.mubr.bf16.mxu0 0
      %957 = vmatmul.mubr.bf16.gmra.mrb[0].mxu0 %v919
      %v958 = vpop.f32.mrb[0].mxu0
      %v959 = vadd.f32 0.0, %v958
      %v960 = vpop.f32.mrb[0].mxu0
      %v961 = vpop.f32.mrb[0].mxu0
      %v962 = vadd.f32 0.0, %v961
      %v963 = vpop.f32.mrb[0].mxu0
      %964 = vdwg.mxu0
      %v965 = vsel %vm185, %v959, -inf
      %966 = vmax.xlane.f32.xlu0 %v965
      %v967 = vpop.xlane.xlu0 %966
      %v968 = vsel %vm185, %v962, -inf
      %969 = vmax.xlane.f32.xlu0 %v968
      %v970 = vpop.xlane.xlu0 %969
      %v971 = vsub.f32 %v959, %v967
      %v972 = vsub.f32 %v962, %v970
      %v973 = vmul.f32 %v971, 1.442695
      %v974 = vpow.pop %v973
      %v975 = vmul.f32 %v972, 1.442695
      %v976 = vpow.pop %v975
      %v977 = vsel %vm185, %v974, 0.0
      %978 = vadd.xlane.f32.xlu0 %v977
      %v979 = vpop.xlane.xlu0 %978
      %v980 = vsel %vm185, %v976, 0.0
      %981 = vadd.xlane.f32.xlu0 %v980
      %v982 = vpop.xlane.xlu0 %981
      %v983 = vrcp.pop %v979
      %v984 = vrcp.pop %v982
      %v985 = vmul.f32 %v974, %v983
      %v986 = vmul.f32 %v976, %v984
      %v987 = vpack.c.bf16 %v986, %v985
      %v990 = vunpack.c.l.b16 %v902
      %v991 = vunpack.c.l.b16 %v903
      %v992 = vpack.c.b16 %v991, %v990
      %993 = vrot.lane.b32.xlu0 %v992, 88
      %v994 = vpop.permute.xlu0 %993
      %v997 = vsel %vm185, %v987, 0
      %999 = vmatprep.subr.bf16.mxu0 0
      %1000 = vmatpush1.bf16.msra.mxu0 %v994
      %1001 = vmatprep.subr.bf16.mxu0 0
      %1002 = vmatpush1.bf16.msra.mxu0 0
      %1003 = vmatprep.subr.bf16.mxu0 0
      %1004 = vmatpush1.bf16.msra.mxu0 0
      %1005 = vmatprep.subr.bf16.mxu0 0
      %1006 = vmatpush1.bf16.msra.mxu0 0
      %1007 = vmatprep.subr.bf16.mxu0 0
      %1008 = vmatpush1.bf16.msra.mxu0 0
      %1009 = vmatprep.subr.bf16.mxu0 0
      %1010 = vmatpush1.bf16.msra.mxu0 0
      %1011 = vmatprep.subr.bf16.mxu0 0
      %1012 = vmatpush1.bf16.msra.mxu0 0
      %1013 = vmatprep.subr.bf16.mxu0 0
      %1014 = vmatpush1.bf16.msra.mxu0 0
      %1015 = vmatprep.subr.bf16.mxu0 0
      %1016 = vmatpush1.bf16.msra.mxu0 0
      %1017 = vmatprep.subr.bf16.mxu0 0
      %1018 = vmatpush1.bf16.msra.mxu0 0
      %1019 = vmatprep.subr.bf16.mxu0 0
      %1020 = vmatpush1.bf16.msra.mxu0 0
      %1021 = vmatprep.subr.bf16.mxu0 0
      %1022 = vmatpush1.bf16.msra.mxu0 0
      %1023 = vmatprep.subr.bf16.mxu0 0
      %1024 = vmatpush1.bf16.msra.mxu0 0
      %1025 = vmatprep.subr.bf16.mxu0 0
      %1026 = vmatpush1.bf16.msra.mxu0 0
      %1027 = vmatprep.subr.bf16.mxu0 0
      %1028 = vmatpush1.bf16.msra.mxu0 0
      %1029 = vmatprep.subr.bf16.mxu0 0
      %1030 = vmatpush1.bf16.msra.mxu0 0
      %1031 = vmatprep.mubr.bf16.mxu0 0
      %1032 = vmatmul.mubr.bf16.gmra.mrb[0].mxu0 %v997
      %v1033 = vpop.f32.mrb[0].mxu0
      %v1034 = vadd.f32 0.0, %v1033
      %v1035 = vpop.f32.mrb[0].mxu0
      %v1036 = vpop.f32.mrb[0].mxu0
      %v1037 = vadd.f32 0.0, %v1036
      %v1038 = vpop.f32.mrb[0].mxu0
      %1039 = vdwg.mxu0
      %v1040 = vpack.c.bf16 %v1037, %v1034
      %v1042 = vunpack.c.l.b16 %v1040
      %v1043 = vunpack.c.h.b16 %v1040
      %v1044 = vpack.c.b16 %v1042, %v1042
      %v1045 = vpack.c.b16 %v1043, %v1043
      %1046 = vrot.lane.b32.xlu0 %v1044, 40
      %v1047 = vpop.permute.xlu0 %1046
      %1048 = vrot.lane.b32.xlu0 %v1045, 40
      %v1049 = vpop.permute.xlu0 %1048
      %vm1052 = vcmask 388416
      %1053 = vst.msk [vmem:[%s116] sm:$0xf] %vm1052, %v1047
      %1054 = vst.msk [vmem:[%s116 + $0x4] sm:$0xf] %vm1052, %v1049
      %v1055 = vld [vmem:[%s111] sm:$0xf]
      %v1056 = vld [vmem:[%s111 + $0x8] sm:$0xf]
      %v1057 = vmul.bf16 %v1055, 1052065461
      %v1058 = vmul.bf16 %v1056, 1052065461
      %v1059 = vld [vmem:[%s111 + $0x4] sm:$0xf]
      %v1060 = vld [vmem:[%s111 + $0xc] sm:$0xf]
      %v1063 = vunpack.c.l.b16 %v1057
      %v1064 = vunpack.c.l.b16 %v1058
      %v1065 = vpack.c.b16 %v1064, %v1063
      %1066 = vrot.lane.b32.xlu0 %v1065, 80
      %v1067 = vpop.permute.xlu0 %1066
      %v1070 = vunpack.c.l.b16 %v1055
      %v1071 = vunpack.c.l.b16 %v1056
      %v1072 = vpack.c.b16 %v1071, %v1070
      %1073 = vrot.lane.b32.xlu0 %v1072, 16
      %v1074 = vpop.permute.xlu0 %1073
      %v1076 = vsel %vm137, %v1067, 0
      %v1079 = vsel %vm137, %v1074, 0
      %1081 = vmatprep.subr.bf16.mxu0 0
      %1082 = vmatpush1.bf16.xpose.msra.mxu0 %v1079
      %1083 = vmatprep.subr.bf16.mxu0 0
      %1084 = vmatpush1.bf16.xpose.msra.mxu0 0
      %1085 = vmatprep.subr.bf16.mxu0 0
      %1086 = vmatpush1.bf16.xpose.msra.mxu0 0
      %1087 = vmatprep.subr.bf16.mxu0 0
      %1088 = vmatpush1.bf16.xpose.msra.mxu0 0
      %1089 = vmatprep.subr.bf16.mxu0 0
      %1090 = vmatpush1.bf16.xpose.msra.mxu0 0
      %1091 = vmatprep.subr.bf16.mxu0 0
      %1092 = vmatpush1.bf16.xpose.msra.mxu0 0
      %1093 = vmatprep.subr.bf16.mxu0 0
      %1094 = vmatpush1.bf16.xpose.msra.mxu0 0
      %1095 = vmatprep.subr.bf16.mxu0 0
      %1096 = vmatpush1.bf16.xpose.msra.mxu0 0
      %1097 = vmatprep.subr.bf16.mxu0 0
      %1098 = vmatpush1.bf16.xpose.msra.mxu0 0
      %1099 = vmatprep.subr.bf16.mxu0 0
      %1100 = vmatpush1.bf16.xpose.msra.mxu0 0
      %1101 = vmatprep.subr.bf16.mxu0 0
      %1102 = vmatpush1.bf16.xpose.msra.mxu0 0
      %1103 = vmatprep.subr.bf16.mxu0 0
      %1104 = vmatpush1.bf16.xpose.msra.mxu0 0
      %1105 = vmatprep.subr.bf16.mxu0 0
      %1106 = vmatpush1.bf16.xpose.msra.mxu0 0
      %1107 = vmatprep.subr.bf16.mxu0 0
      %1108 = vmatpush1.bf16.xpose.msra.mxu0 0
      %1109 = vmatprep.subr.bf16.mxu0 0
      %1110 = vmatpush1.bf16.xpose.msra.mxu0 0
      %1111 = vmatprep.subr.bf16.mxu0 0
      %1112 = vmatpush1.bf16.xpose.msra.mxu0 0
      %1113 = vmatprep.mubr.bf16.mxu0 0
      %1114 = vmatmul.mubr.bf16.gmra.mrb[0].mxu0 %v1076
      %v1115 = vpop.f32.mrb[0].mxu0
      %v1116 = vadd.f32 0.0, %v1115
      %v1117 = vpop.f32.mrb[0].mxu0
      %v1118 = vpop.f32.mrb[0].mxu0
      %v1119 = vadd.f32 0.0, %v1118
      %v1120 = vpop.f32.mrb[0].mxu0
      %1121 = vdwg.mxu0
      %v1122 = vsel %vm185, %v1116, -inf
      %1123 = vmax.xlane.f32.xlu0 %v1122
      %v1124 = vpop.xlane.xlu0 %1123
      %v1125 = vsel %vm185, %v1119, -inf
      %1126 = vmax.xlane.f32.xlu0 %v1125
      %v1127 = vpop.xlane.xlu0 %1126
      %v1128 = vsub.f32 %v1116, %v1124
      %v1129 = vsub.f32 %v1119, %v1127
      %v1130 = vmul.f32 %v1128, 1.442695
      %v1131 = vpow.pop %v1130
      %v1132 = vmul.f32 %v1129, 1.442695
      %v1133 = vpow.pop %v1132
      %v1134 = vsel %vm185, %v1131, 0.0
      %1135 = vadd.xlane.f32.xlu0 %v1134
      %v1136 = vpop.xlane.xlu0 %1135
      %v1137 = vsel %vm185, %v1133, 0.0
      %1138 = vadd.xlane.f32.xlu0 %v1137
      %v1139 = vpop.xlane.xlu0 %1138
      %v1140 = vrcp.pop %v1136
      %v1141 = vrcp.pop %v1139
      %v1142 = vmul.f32 %v1131, %v1140
      %v1143 = vmul.f32 %v1133, %v1141
      %v1144 = vpack.c.bf16 %v1143, %v1142
      %v1147 = vunpack.c.l.b16 %v1059
      %v1148 = vunpack.c.l.b16 %v1060
      %v1149 = vpack.c.b16 %v1148, %v1147
      %1150 = vrot.lane.b32.xlu0 %v1149, 80
      %v1151 = vpop.permute.xlu0 %1150
      %v1154 = vsel %vm185, %v1144, 0
      %1156 = vmatprep.subr.bf16.mxu0 0
      %1157 = vmatpush1.bf16.msra.mxu0 %v1151
      %1158 = vmatprep.subr.bf16.mxu0 0
      %1159 = vmatpush1.bf16.msra.mxu0 0
      %1160 = vmatprep.subr.bf16.mxu0 0
      %1161 = vmatpush1.bf16.msra.mxu0 0
      %1162 = vmatprep.subr.bf16.mxu0 0
      %1163 = vmatpush1.bf16.msra.mxu0 0
      %1164 = vmatprep.subr.bf16.mxu0 0
      %1165 = vmatpush1.bf16.msra.mxu0 0
      %1166 = vmatprep.subr.bf16.mxu0 0
      %1167 = vmatpush1.bf16.msra.mxu0 0
      %1168 = vmatprep.subr.bf16.mxu0 0
      %1169 = vmatpush1.bf16.msra.mxu0 0
      %1170 = vmatprep.subr.bf16.mxu0 0
      %1171 = vmatpush1.bf16.msra.mxu0 0
      %1172 = vmatprep.subr.bf16.mxu0 0
      %1173 = vmatpush1.bf16.msra.mxu0 0
      %1174 = vmatprep.subr.bf16.mxu0 0
      %1175 = vmatpush1.bf16.msra.mxu0 0
      %1176 = vmatprep.subr.bf16.mxu0 0
      %1177 = vmatpush1.bf16.msra.mxu0 0
      %1178 = vmatprep.subr.bf16.mxu0 0
      %1179 = vmatpush1.bf16.msra.mxu0 0
      %1180 = vmatprep.subr.bf16.mxu0 0
      %1181 = vmatpush1.bf16.msra.mxu0 0
      %1182 = vmatprep.subr.bf16.mxu0 0
      %1183 = vmatpush1.bf16.msra.mxu0 0
      %1184 = vmatprep.subr.bf16.mxu0 0
      %1185 = vmatpush1.bf16.msra.mxu0 0
      %1186 = vmatprep.subr.bf16.mxu0 0
      %1187 = vmatpush1.bf16.msra.mxu0 0
      %1188 = vmatprep.mubr.bf16.mxu0 0
      %1189 = vmatmul.mubr.bf16.gmra.mrb[0].mxu0 %v1154
      %v1190 = vpop.f32.mrb[0].mxu0
      %v1191 = vadd.f32 0.0, %v1190
      %v1192 = vpop.f32.mrb[0].mxu0
      %v1193 = vpop.f32.mrb[0].mxu0
      %v1194 = vadd.f32 0.0, %v1193
      %v1195 = vpop.f32.mrb[0].mxu0
      %1196 = vdwg.mxu0
      %v1197 = vpack.c.bf16 %v1194, %v1191
      %v1199 = vunpack.c.l.b16 %v1197
      %v1200 = vunpack.c.h.b16 %v1197
      %v1201 = vpack.c.b16 %v1199, %v1199
      %v1202 = vpack.c.b16 %v1200, %v1200
      %1203 = vrot.lane.b32.xlu0 %v1201, 48
      %v1204 = vpop.permute.xlu0 %1203
      %1205 = vrot.lane.b32.xlu0 %v1202, 48
      %v1206 = vpop.permute.xlu0 %1205
      %vm1209 = vcmask 454016
      %1210 = vst.msk [vmem:[%s116] sm:$0xf] %vm1209, %v1204
      %1211 = vst.msk [vmem:[%s116 + $0x4] sm:$0xf] %vm1209, %v1206
      %v1212 = vld [vmem:[%s111] sm:$0xf]
      %v1213 = vld [vmem:[%s111 + $0x8] sm:$0xf]
      %v1214 = vmul.bf16 %v1212, 1052065461
      %v1215 = vmul.bf16 %v1213, 1052065461
      %v1216 = vld [vmem:[%s111 + $0x4] sm:$0xf]
      %v1217 = vld [vmem:[%s111 + $0xc] sm:$0xf]
      %v1220 = vunpack.c.l.b16 %v1214
      %v1221 = vunpack.c.l.b16 %v1215
      %v1222 = vpack.c.b16 %v1221, %v1220
      %1223 = vrot.lane.b32.xlu0 %v1222, 72
      %v1224 = vpop.permute.xlu0 %1223
      %v1227 = vunpack.c.l.b16 %v1212
      %v1228 = vunpack.c.l.b16 %v1213
      %v1229 = vpack.c.b16 %v1228, %v1227
      %1230 = vrot.lane.b32.xlu0 %v1229, 8
      %v1231 = vpop.permute.xlu0 %1230
      %v1233 = vsel %vm137, %v1224, 0
      %v1236 = vsel %vm137, %v1231, 0
      %1238 = vmatprep.subr.bf16.mxu0 0
      %1239 = vmatpush1.bf16.xpose.msra.mxu0 %v1236
      %1240 = vmatprep.subr.bf16.mxu0 0
      %1241 = vmatpush1.bf16.xpose.msra.mxu0 0
      %1242 = vmatprep.subr.bf16.mxu0 0
      %1243 = vmatpush1.bf16.xpose.msra.mxu0 0
      %1244 = vmatprep.subr.bf16.mxu0 0
      %1245 = vmatpush1.bf16.xpose.msra.mxu0 0
      %1246 = vmatprep.subr.bf16.mxu0 0
      %1247 = vmatpush1.bf16.xpose.msra.mxu0 0
      %1248 = vmatprep.subr.bf16.mxu0 0
      %1249 = vmatpush1.bf16.xpose.msra.mxu0 0
      %1250 = vmatprep.subr.bf16.mxu0 0
      %1251 = vmatpush1.bf16.xpose.msra.mxu0 0
      %1252 = vmatprep.subr.bf16.mxu0 0
      %1253 = vmatpush1.bf16.xpose.msra.mxu0 0
      %1254 = vmatprep.subr.bf16.mxu0 0
      %1255 = vmatpush1.bf16.xpose.msra.mxu0 0
      %1256 = vmatprep.subr.bf16.mxu0 0
      %1257 = vmatpush1.bf16.xpose.msra.mxu0 0
      %1258 = vmatprep.subr.bf16.mxu0 0
      %1259 = vmatpush1.bf16.xpose.msra.mxu0 0
      %1260 = vmatprep.subr.bf16.mxu0 0
      %1261 = vmatpush1.bf16.xpose.msra.mxu0 0
      %1262 = vmatprep.subr.bf16.mxu0 0
      %1263 = vmatpush1.bf16.xpose.msra.mxu0 0
      %1264 = vmatprep.subr.bf16.mxu0 0
      %1265 = vmatpush1.bf16.xpose.msra.mxu0 0
      %1266 = vmatprep.subr.bf16.mxu0 0
      %1267 = vmatpush1.bf16.xpose.msra.mxu0 0
      %1268 = vmatprep.subr.bf16.mxu0 0
      %1269 = vmatpush1.bf16.xpose.msra.mxu0 0
      %1270 = vmatprep.mubr.bf16.mxu0 0
      %1271 = vmatmul.mubr.bf16.gmra.mrb[0].mxu0 %v1233
      %v1272 = vpop.f32.mrb[0].mxu0
      %v1273 = vadd.f32 0.0, %v1272
      %v1274 = vpop.f32.mrb[0].mxu0
      %v1275 = vpop.f32.mrb[0].mxu0
      %v1276 = vadd.f32 0.0, %v1275
      %v1277 = vpop.f32.mrb[0].mxu0
      %1278 = vdwg.mxu0
      %v1279 = vsel %vm185, %v1273, -inf
      %1280 = vmax.xlane.f32.xlu0 %v1279
      %v1281 = vpop.xlane.xlu0 %1280
      %v1282 = vsel %vm185, %v1276, -inf
      %1283 = vmax.xlane.f32.xlu0 %v1282
      %v1284 = vpop.xlane.xlu0 %1283
      %v1285 = vsub.f32 %v1273, %v1281
      %v1286 = vsub.f32 %v1276, %v1284
      %v1287 = vmul.f32 %v1285, 1.442695
      %v1288 = vpow.pop %v1287
      %v1289 = vmul.f32 %v1286, 1.442695
      %v1290 = vpow.pop %v1289
      %v1291 = vsel %vm185, %v1288, 0.0
      %1292 = vadd.xlane.f32.xlu0 %v1291
      %v1293 = vpop.xlane.xlu0 %1292
      %v1294 = vsel %vm185, %v1290, 0.0
      %1295 = vadd.xlane.f32.xlu0 %v1294
      %v1296 = vpop.xlane.xlu0 %1295
      %v1297 = vrcp.pop %v1293
      %v1298 = vrcp.pop %v1296
      %v1299 = vmul.f32 %v1288, %v1297
      %v1300 = vmul.f32 %v1290, %v1298
      %v1301 = vpack.c.bf16 %v1300, %v1299
      %v1304 = vunpack.c.l.b16 %v1216
      %v1305 = vunpack.c.l.b16 %v1217
      %v1306 = vpack.c.b16 %v1305, %v1304
      %1307 = vrot.lane.b32.xlu0 %v1306, 72
      %v1308 = vpop.permute.xlu0 %1307
      %v1311 = vsel %vm185, %v1301, 0
      %1313 = vmatprep.subr.bf16.mxu0 0
      %1314 = vmatpush1.bf16.msra.mxu0 %v1308
      %1315 = vmatprep.subr.bf16.mxu0 0
      %1316 = vmatpush1.bf16.msra.mxu0 0
      %1317 = vmatprep.subr.bf16.mxu0 0
      %1318 = vmatpush1.bf16.msra.mxu0 0
      %1319 = vmatprep.subr.bf16.mxu0 0
      %1320 = vmatpush1.bf16.msra.mxu0 0
      %1321 = vmatprep.subr.bf16.mxu0 0
      %1322 = vmatpush1.bf16.msra.mxu0 0
      %1323 = vmatprep.subr.bf16.mxu0 0
      %1324 = vmatpush1.bf16.msra.mxu0 0
      %1325 = vmatprep.subr.bf16.mxu0 0
      %1326 = vmatpush1.bf16.msra.mxu0 0
      %1327 = vmatprep.subr.bf16.mxu0 0
      %1328 = vmatpush1.bf16.msra.mxu0 0
      %1329 = vmatprep.subr.bf16.mxu0 0
      %1330 = vmatpush1.bf16.msra.mxu0 0
      %1331 = vmatprep.subr.bf16.mxu0 0
      %1332 = vmatpush1.bf16.msra.mxu0 0
      %1333 = vmatprep.subr.bf16.mxu0 0
      %1334 = vmatpush1.bf16.msra.mxu0 0
      %1335 = vmatprep.subr.bf16.mxu0 0
      %1336 = vmatpush1.bf16.msra.mxu0 0
      %1337 = vmatprep.subr.bf16.mxu0 0
      %1338 = vmatpush1.bf16.msra.mxu0 0
      %1339 = vmatprep.subr.bf16.mxu0 0
      %1340 = vmatpush1.bf16.msra.mxu0 0
      %1341 = vmatprep.subr.bf16.mxu0 0
      %1342 = vmatpush1.bf16.msra.mxu0 0
      %1343 = vmatprep.subr.bf16.mxu0 0
      %1344 = vmatpush1.bf16.msra.mxu0 0
      %1345 = vmatprep.mubr.bf16.mxu0 0
      %1346 = vmatmul.mubr.bf16.gmra.mrb[0].mxu0 %v1311
      %v1347 = vpop.f32.mrb[0].mxu0
      %v1348 = vadd.f32 0.0, %v1347
      %v1349 = vpop.f32.mrb[0].mxu0
      %v1350 = vpop.f32.mrb[0].mxu0
      %v1351 = vadd.f32 0.0, %v1350
      %v1352 = vpop.f32.mrb[0].mxu0
      %1353 = vdwg.mxu0
      %v1354 = vpack.c.bf16 %v1351, %v1348
      %v1356 = vunpack.c.l.b16 %v1354
      %v1357 = vunpack.c.h.b16 %v1354
      %v1358 = vpack.c.b16 %v1356, %v1356
      %v1359 = vpack.c.b16 %v1357, %v1357
      %1360 = vrot.lane.b32.xlu0 %v1358, 56
      %v1361 = vpop.permute.xlu0 %1360
      %1362 = vrot.lane.b32.xlu0 %v1359, 56
      %v1363 = vpop.permute.xlu0 %1362
      %vm1366 = vcmask 519616
      %1367 = vst.msk [vmem:[%s116] sm:$0xf] %vm1366, %v1361
      %1368 = vst.msk [vmem:[%s116 + $0x4] sm:$0xf] %vm1366, %v1363
      %p1369 = scmp.lt.s32.totalorder %s12, 1
      %s1370 = scalar_select %p1369, %s12, 1
      %s1371 = smul.addr %s1370, 2
      %s1372 = smul.addr %s1371, 4
      %s1373 = scalar_lea.vmem %s1, %s1372
      // Predicated region
      $region25: #{classifier3_forward.58} parent=23 // pred_check
        %p1374 = pneg %p56
      $region26: #{classifier3_forward.58} parent=23 // pred_check_branch
        %1376 = sbr.rel (%p1374) target = $region28
      $region27: #{classifier3_forward.58} parent=23 // pred_region
        _
      $region28: #{classifier3_forward.58} parent=23 // pred_fallthru
        _
    $region24: #{classifier3_forward.58} parent=5 // pred_fallthru
      _
    %p1377 = scmp.le.s32.totalorder 2, %s7
    // Predicated region
    $region29: #{classifier3_forward.58} parent=5 // pred_check
      %p1378 = pneg %p1377
    $region30: #{classifier3_forward.58} parent=5 // pred_check_branch
      %1380 = sbr.rel (%p1378) target = $region32
    $region31: #{classifier3_forward.58} parent=5 // pred_region
      %s1381 = ssub.s32 %s7, 2
      // Predicated region
      $region33: #{classifier3_forward.58} parent=31 // pred_check
        %p1382 = pneg %p62
      $region34: #{classifier3_forward.58} parent=31 // pred_check_branch
        %1384 = sbr.rel (%p1382) target = $region36
      $region35: #{classifier3_forward.58} parent=31 // pred_region
        %p1385 = scmp.lt.s32.totalorder %s13, 1
        %s1386 = scalar_select %p1385, %s13, 1
        %s1387 = smul.addr %s1386, 2
        %s1388 = smul.addr %s1387, 4
        %s1389 = scalar_lea.vmem %s1, %s1388
      $region36: #{classifier3_forward.58} parent=31 // pred_fallthru
        _
    $region32: #{classifier3_forward.58} parent=5 // pred_fallthru
      _
  $region6: #{classifier3_forward.58} parent=0 // loop_footer
    %s11 = sadd.s32 1, %s7
  $region7: #{classifier3_forward.58} parent=0 // loop_footer_branch
    %6 = sbr.rel target = $region3
  $region8: #{classifier3_forward.58} parent=0 // loop_exit
    _

// kernel: classifier3_forward.67
$region0: #{classifier3_forward.67}
  #allocation0 [shape = 'u32[]', space=smem, size = 0x4, offset = 0x4, fixed_abs, tag = 'smem constant byte address 0x4 - core index']
  #allocation1 [shape = 'u32[144,128]{1,0:T(1,128)}', space=vmem, size = 0x12000, scoped, tag = 'internal scratch']
  %s0 = inlined_call_operand.vmem [shape: f32[2,16,64], index: 0, kind: input, shape index: {}]
  %s1 = inlined_call_operand.vmem [shape: bf16[64,64], index: 1, kind: input, shape index: {}]
  %s2 = inlined_call_operand.vmem [shape: f32[1,64], index: 2, kind: input, shape index: {}]
  %s3 = inlined_call_operand.vmem [shape: f32[1,64], index: 3, kind: input, shape index: {}]
  %s4 = inlined_call_operand.vmem [shape: f32[1,64], index: 4, kind: input, shape index: {}]
  %s5 = inlined_call_operand.vmem [shape: bf16[64,10], index: 5, kind: input, shape index: {}]
  %s6 = inlined_call_operand.vmem [shape: f32[1,10], index: 6, kind: input, shape index: {}]
  %s7 = inlined_call_operand.hbm [shape: f32[2,10], index: 7, kind: output, shape index: {}]
  %s8 = sld [smem:[#allocation0]]
  $region38: #{classifier3_forward.67} parent=0
    _
  %s10 = ssub.s32 1, %s8
  %s11 = scalar_select 0, %s10, %s8
  $region1: #{classifier3_forward.67} parent=0
    #allocation2 [shape = 'u8[1024]{0}', space=vmem, size = 0x400, scoped, tag = 'output window, operand 0, single buffered']
    #allocation3 [shape = 's32[1]{0}', space=sflag, size = 0x4, scoped, tag = 'scoped memory for classifier3_forward.67']
    %12 = vsyncpa [#allocation3], 0
    // Predicated region
    $region2: #{classifier3_forward.67} parent=1 // pred_check
      _
    $region3: #{classifier3_forward.67} parent=1 // pred_check_branch
      %14 = sbr.rel (0) target = $region5
    $region4: #{classifier3_forward.67} parent=1 // pred_region
      _
    $region5: #{classifier3_forward.67} parent=1 // pred_fallthru
      _
    // Predicated region
    $region6: #{classifier3_forward.67} parent=1 // pred_check
      _
    $region7: #{classifier3_forward.67} parent=1 // pred_check_branch
      %16 = sbr.rel (0) target = $region9
    $region8: #{classifier3_forward.67} parent=1 // pred_region
      _
    $region9: #{classifier3_forward.67} parent=1 // pred_fallthru
      _
    // Predicated region
    $region10: #{classifier3_forward.67} parent=1 // pred_check
      _
    $region11: #{classifier3_forward.67} parent=1 // pred_check_branch
      %18 = sbr.rel (0) target = $region13
    $region12: #{classifier3_forward.67} parent=1 // pred_region
      _
    $region13: #{classifier3_forward.67} parent=1 // pred_fallthru
      _
    // Predicated region
    $region14: #{classifier3_forward.67} parent=1 // pred_check
      _
    $region15: #{classifier3_forward.67} parent=1 // pred_check_branch
      %20 = sbr.rel (0) target = $region17
    $region16: #{classifier3_forward.67} parent=1 // pred_region
      _
    $region17: #{classifier3_forward.67} parent=1 // pred_fallthru
      _
    // Predicated region
    $region18: #{classifier3_forward.67} parent=1 // pred_check
      _
    $region19: #{classifier3_forward.67} parent=1 // pred_check_branch
      %22 = sbr.rel (0) target = $region21
    $region20: #{classifier3_forward.67} parent=1 // pred_region
      _
    $region21: #{classifier3_forward.67} parent=1 // pred_fallthru
      _
    // Predicated region
    $region22: #{classifier3_forward.67} parent=1 // pred_check
      _
    $region23: #{classifier3_forward.67} parent=1 // pred_check_branch
      %24 = sbr.rel (0) target = $region25
    $region24: #{classifier3_forward.67} parent=1 // pred_region
      _
    $region25: #{classifier3_forward.67} parent=1 // pred_fallthru
      _
    // Predicated region
    $region26: #{classifier3_forward.67} parent=1 // pred_check
      _
    $region27: #{classifier3_forward.67} parent=1 // pred_check_branch
      %26 = sbr.rel (0) target = $region29
    $region28: #{classifier3_forward.67} parent=1 // pred_region
      _
    $region29: #{classifier3_forward.67} parent=1 // pred_fallthru
      _
    %v28 = vld [vmem:[%s0] sm:$0xff]
    %v29 = vld [vmem:[%s0 + $0x8] sm:$0xff]
    %v30 = vld [vmem:[%s0 + $0x10] sm:$0xff]
    %v31 = vld [vmem:[%s0 + $0x18] sm:$0xff]
    %vm32 = vcmask 523264
    %v33 = vsel %vm32, %v28, 0.0
    %v34 = vsel %vm32, %v29, 0.0
    %v35 = vadd.f32 %v33, %v34
    %v36 = vrot.slane %v35, 4
    %v37 = vadd.f32 %v35, %v36
    %v38 = vrot.slane %v37, 2
    %v39 = vadd.f32 %v37, %v38
    %v40 = vrot.slane %v39, 1
    %v41 = vadd.f32 %v39, %v40
    %v42 = vsel %vm32, %v30, 0.0
    %v43 = vsel %vm32, %v31, 0.0
    %v44 = vadd.f32 %v42, %v43
    %v45 = vrot.slane %v44, 4
    %v46 = vadd.f32 %v44, %v45
    %v47 = vrot.slane %v46, 2
    %v48 = vadd.f32 %v46, %v47
    %v49 = vrot.slane %v48, 1
    %v50 = vadd.f32 %v48, %v49
    %v51 = vrcp.pop 16.0
    %v52 = vmul.f32 %v41, %v51
    %v53 = vmul.f32 %v50, %v51
    %v54 = vld [vmem:[%s1] sm:$0xf]
    %v55 = vld [vmem:[%s1 + $0x4] sm:$0xf]
    %v56 = vld [vmem:[%s1 + $0x8] sm:$0xf]
    %v57 = vld [vmem:[%s1 + $0xc] sm:$0xf]
    %v58 = vld [vmem:[%s1 + $0x10] sm:$0xf]
    %v59 = vld [vmem:[%s1 + $0x14] sm:$0xf]
    %v60 = vld [vmem:[%s1 + $0x18] sm:$0xf]
    %v61 = vld [vmem:[%s1 + $0x1c] sm:$0xf]
    %v62 = vpack.c.bf16 %v52, %v52
    %v63 = vpack.c.bf16 %v53, %v53
    %v64 = vld [vmem:[%s2] sm:$0x1]
    %v66 = vlaneseq
    %v67 = vshrl.u32 %v66, 7
    %v68 = vsub.s32 0, %v67
    %v69 = vrot.slane %v64, %v68
    %v73 = vunpack.c.l.b16 %v62
    %v74 = vunpack.c.l.b16 %v63
    %vm75 = vcmask 1041409
    %v76 = vsel %vm75, %v74, %v73
    %v77 = vpack.c.b16 %v76, %v76
    %v86 = vunpack.c.l.b16 %v54
    %v87 = vunpack.c.l.b16 %v55
    %v88 = vunpack.c.l.b16 %v56
    %v89 = vunpack.c.l.b16 %v57
    %v90 = vunpack.c.l.b16 %v58
    %v91 = vunpack.c.l.b16 %v59
    %v92 = vunpack.c.l.b16 %v60
    %v93 = vunpack.c.l.b16 %v61
    %v94 = vpack.c.b16 %v87, %v86
    %v95 = vpack.c.b16 %v89, %v88
    %v96 = vpack.c.b16 %v91, %v90
    %v97 = vpack.c.b16 %v93, %v92
    %v103 = vsel %vm32, %v77, 0
    %105 = vmatprep.subr.bf16.mxu0 0
    %106 = vmatpush1.bf16.msra.mxu0 %v94
    %107 = vmatprep.subr.bf16.mxu0 0
    %108 = vmatpush1.bf16.msra.mxu0 %v95
    %109 = vmatprep.subr.bf16.mxu0 0
    %110 = vmatpush1.bf16.msra.mxu0 %v96
    %111 = vmatprep.subr.bf16.mxu0 0
    %112 = vmatpush1.bf16.msra.mxu0 %v97
    %113 = vmatprep.subr.bf16.mxu0 0
    %114 = vmatpush1.bf16.msra.mxu0 0
    %115 = vmatprep.subr.bf16.mxu0 0
    %116 = vmatpush1.bf16.msra.mxu0 0
    %117 = vmatprep.subr.bf16.mxu0 0
    %118 = vmatpush1.bf16.msra.mxu0 0
    %119 = vmatprep.subr.bf16.mxu0 0
    %120 = vmatpush1.bf16.msra.mxu0 0
    %121 = vmatprep.subr.bf16.mxu0 0
    %122 = vmatpush1.bf16.msra.mxu0 0
    %123 = vmatprep.subr.bf16.mxu0 0
    %124 = vmatpush1.bf16.msra.mxu0 0
    %125 = vmatprep.subr.bf16.mxu0 0
    %126 = vmatpush1.bf16.msra.mxu0 0
    %127 = vmatprep.subr.bf16.mxu0 0
    %128 = vmatpush1.bf16.msra.mxu0 0
    %129 = vmatprep.subr.bf16.mxu0 0
    %130 = vmatpush1.bf16.msra.mxu0 0
    %131 = vmatprep.subr.bf16.mxu0 0
    %132 = vmatpush1.bf16.msra.mxu0 0
    %133 = vmatprep.subr.bf16.mxu0 0
    %134 = vmatpush1.bf16.msra.mxu0 0
    %135 = vmatprep.subr.bf16.mxu0 0
    %136 = vmatpush1.bf16.msra.mxu0 0
    %137 = vmatprep.mubr.bf16.mxu0 0
    %138 = vmatmul.mubr.bf16.gmra.mrb[0].mxu0 %v103
    %v139 = vpop.f32.mrb[0].mxu0
    %v140 = vadd.f32 %v69, %v139
    %v141 = vpop.f32.mrb[0].mxu0
    %v142 = vpop.f32.mrb[0].mxu0
    %v143 = vpop.f32.mrb[0].mxu0
    %144 = vdwg.mxu0
    %v145 = vld [vmem:[%s3] sm:$0x1]
    %v147 = vlaneseq
    %v148 = vshrl.u32 %v147, 7
    %v149 = vsub.s32 0, %v148
    %v150 = vrot.slane %v145, %v149
    %v152 = vmul.f32 %v140, %v150
    %v153 = vld [vmem:[%s4] sm:$0x1]
    %v155 = vlaneseq
    %v156 = vshrl.u32 %v155, 7
    %v157 = vsub.s32 0, %v156
    %v158 = vrot.slane %v153, %v157
    %v160 = vadd.f32 %v152, %v158
    %v161 = vmax.f32 %v160, 0.0
    %v162 = vld [vmem:[%s5] sm:$0xf]
    %v163 = vld [vmem:[%s5 + $0x4] sm:$0xf]
    %v164 = vld [vmem:[%s5 + $0x8] sm:$0xf]
    %v165 = vld [vmem:[%s5 + $0xc] sm:$0xf]
    %v166 = vld [vmem:[%s5 + $0x10] sm:$0xf]
    %v167 = vld [vmem:[%s5 + $0x14] sm:$0xf]
    %v168 = vld [vmem:[%s5 + $0x18] sm:$0xf]
    %v169 = vld [vmem:[%s5 + $0x1c] sm:$0xf]
    %v170 = vpack.c.bf16 %v161, %v161
    %v171 = vld [vmem:[%s6] sm:$0x1]
    %v173 = vlaneseq
    %v174 = vshrl.u32 %v173, 7
    %v175 = vsub.s32 0, %v174
    %v176 = vrot.slane %v171, %v175
    %v186 = vunpack.c.l.b16 %v162
    %v187 = vunpack.c.l.b16 %v163
    %v188 = vunpack.c.l.b16 %v164
    %v189 = vunpack.c.l.b16 %v165
    %v190 = vunpack.c.l.b16 %v166
    %v191 = vunpack.c.l.b16 %v167
    %v192 = vunpack.c.l.b16 %v168
    %v193 = vunpack.c.l.b16 %v169
    %v194 = vpack.c.b16 %v187, %v186
    %v195 = vpack.c.b16 %v189, %v188
    %v196 = vpack.c.b16 %v191, %v190
    %v197 = vpack.c.b16 %v193, %v192
    %v203 = vsel %vm32, %v170, 0
    %205 = vmatprep.subr.bf16.mxu0 0
    %206 = vmatpush1.bf16.msra.mxu0 %v194
    %207 = vmatprep.subr.bf16.mxu0 0
    %208 = vmatpush1.bf16.msra.mxu0 %v195
    %209 = vmatprep.subr.bf16.mxu0 0
    %210 = vmatpush1.bf16.msra.mxu0 %v196
    %211 = vmatprep.subr.bf16.mxu0 0
    %212 = vmatpush1.bf16.msra.mxu0 %v197
    %213 = vmatprep.subr.bf16.mxu0 0
    %214 = vmatpush1.bf16.msra.mxu0 0
    %215 = vmatprep.subr.bf16.mxu0 0
    %216 = vmatpush1.bf16.msra.mxu0 0
    %217 = vmatprep.subr.bf16.mxu0 0
    %218 = vmatpush1.bf16.msra.mxu0 0
    %219 = vmatprep.subr.bf16.mxu0 0
    %220 = vmatpush1.bf16.msra.mxu0 0
    %221 = vmatprep.subr.bf16.mxu0 0
    %222 = vmatpush1.bf16.msra.mxu0 0
    %223 = vmatprep.subr.bf16.mxu0 0
    %224 = vmatpush1.bf16.msra.mxu0 0
    %225 = vmatprep.subr.bf16.mxu0 0
    %226 = vmatpush1.bf16.msra.mxu0 0
    %227 = vmatprep.subr.bf16.mxu0 0
    %228 = vmatpush1.bf16.msra.mxu0 0
    %229 = vmatprep.subr.bf16.mxu0 0
    %230 = vmatpush1.bf16.msra.mxu0 0
    %231 = vmatprep.subr.bf16.mxu0 0
    %232 = vmatpush1.bf16.msra.mxu0 0
    %233 = vmatprep.subr.bf16.mxu0 0
    %234 = vmatpush1.bf16.msra.mxu0 0
    %235 = vmatprep.subr.bf16.mxu0 0
    %236 = vmatpush1.bf16.msra.mxu0 0
    %237 = vmatprep.mubr.bf16.mxu0 0
    %238 = vmatmul.mubr.bf16.gmra.mrb[0].mxu0 %v203
    %v239 = vpop.f32.mrb[0].mxu0
    %v240 = vadd.f32 %v176, %v239
    %v241 = vpop.f32.mrb[0].mxu0
    %v242 = vpop.f32.mrb[0].mxu0
    %v243 = vpop.f32.mrb[0].mxu0
    %244 = vdwg.mxu0
    %vm245 = vcmask 74752
    %246 = vst.msk [vmem:[#allocation2] sm:$0x3] %vm245, %v240
    // Predicated region
    $region30: #{classifier3_forward.67} parent=1 // pred_check
      _
    $region31: #{classifier3_forward.67} parent=1 // pred_check_branch
      %248 = sbr.rel (0) target = $region33
    $region32: #{classifier3_forward.67} parent=1 // pred_region
      %s250 = ssub.s32 32, 32
      %251 = vsyncadd [#allocation3], %s250
      %s253 = sshll.u32 [#allocation2], 4
      %s254 = int_to_ptr.vmem [resolvable:$true] %s253
      %256 = dma.vmem_to_hbm [thread:$0]  %s254, 32, %s7, [#allocation3]
    $region33: #{classifier3_forward.67} parent=1 // pred_fallthru
      _
    // Predicated region
    $region34: #{classifier3_forward.67} parent=1 // pred_check
      _
    $region35: #{classifier3_forward.67} parent=1 // pred_check_branch
      %258 = sbr.rel (0) target = $region37
    $region36: #{classifier3_forward.67} parent=1 // pred_region
      %259 = dma.done [#allocation3], 32
    $region37: #{classifier3_forward.67} parent=1 // pred_fallthru
      _
    %260 = vsyncpa [#allocation3], 1

</llo_original>
